<compile_context>
chip_gen: v5e
topology: v5e:2x2
jax: 0.10.0
libtpu: 0.0.40
codegen_flags: <defaults>
</compile_context>

<pallas_src>
import functools

import numpy as np
import jax
import jax.numpy as jnp
from jax import lax
from jax.experimental import pallas as pl
from jax.experimental.pallas import tpu as pltpu


# ----------------------------------------------------------------------------
# Pallas kernel 1: multi-tap conv-as-matmul over one output depth plane,
# fused with masked per-row (sum, sumsq) accumulation for InstanceNorm.
# ----------------------------------------------------------------------------
def _make_tap_conv_kernel(plane_cins, shifts, rows, m_out):
    n_planes = len(plane_cins)

    def kernel(*refs):
        w_ref = refs[n_planes]          # (rows, K_total) bf16, VMEM resident
        mask_ref = refs[n_planes + 1]   # (1, m_out) f32, 1.0 on valid columns
        y_ref = refs[n_planes + 2]      # (1, 1, rows, m_out)
        st_ref = refs[n_planes + 3]     # (1, rows, 2) f32 accumulator

        acc = jnp.zeros((rows, m_out), jnp.float32)
        col = 0
        for p in range(n_planes):
            cin = plane_cins[p]
            x = refs[p][0, 0]                              # (cin, P) bf16
            for s in shifts:
                w_tap = w_ref[:, col:col + cin]            # (rows, cin)
                acc = acc + jnp.dot(w_tap, x[:, s:s + m_out],
                                    preferred_element_type=jnp.float32)
                col += cin

        y_ref[0, 0] = acc.astype(y_ref.dtype)

        # masked partial sums for the following InstanceNorm (junk cols = 0)
        msk = mask_ref[...]                                # (1, m_out)
        ym = acc * msk
        p1 = jnp.sum(ym, axis=1, keepdims=True)            # (rows, 1)
        p2 = jnp.sum(ym * acc, axis=1, keepdims=True)      # (rows, 1)

        @pl.when(pl.program_id(1) == 0)
        def _():
            st_ref[0, :, 0:1] = p1
            st_ref[0, :, 1:2] = p2

        @pl.when(pl.program_id(1) > 0)
        def _():
            st_ref[0, :, 0:1] = st_ref[0, :, 0:1] + p1
            st_ref[0, :, 1:2] = st_ref[0, :, 1:2] + p2

    return kernel


def tap_conv(sources, w_packed, mask, *, n_kd, taps, wp, m_out, d_out, rows):
    """Shifted-slice conv (3x3x3 'same' conv or parity-phase deconv).

    sources : list of (arr, cin); arr layout (N, Dp, cin, P) bf16, P = Hp*wp
              is a zero-padded flattened (H, W) plane.
    w_packed: (rows, K_total) bf16, columns ordered (source, kd, tap, cin).
    Returns y (N, d_out, rows, m_out) bf16 and per-row masked (sum, sumsq)
    stats (N, rows, 2) f32 accumulated over the depth grid axis.
    """
    nb = sources[0][0].shape[0]
    plane_arrays, plane_cins, in_specs = [], [], []
    bytes_acc = 0
    for arr, cin in sources:
        p_len = arr.shape[-1]
        for kd in range(n_kd):
            plane_arrays.append(arr)
            plane_cins.append(cin)
            in_specs.append(
                pl.BlockSpec((1, 1, cin, p_len),
                             lambda n, d, _kd=kd: (n, d + _kd, 0, 0)))
            bytes_acc += nb * d_out * cin * p_len * 2
    in_specs.append(pl.BlockSpec(w_packed.shape, lambda n, d: (0, 0)))
    in_specs.append(pl.BlockSpec(mask.shape, lambda n, d: (0, 0)))

    shifts = tuple(kh * wp + kw for (kh, kw) in taps)
    kernel = _make_tap_conv_kernel(tuple(plane_cins), shifts, rows, m_out)

    k_total = w_packed.shape[1]
    cost = pl.CostEstimate(
        flops=int(2 * rows * k_total * m_out * nb * d_out),
        transcendentals=0,
        bytes_accessed=int(bytes_acc + w_packed.size * 2
                           + nb * d_out * rows * m_out * 2 + nb * rows * 8))

    return pl.pallas_call(
        kernel,
        out_shape=(jax.ShapeDtypeStruct((nb, d_out, rows, m_out), jnp.bfloat16),
                   jax.ShapeDtypeStruct((nb, rows, 2), jnp.float32)),
        grid_spec=pltpu.PrefetchScalarGridSpec(
            num_scalar_prefetch=0,
            grid=(nb, d_out),
            in_specs=in_specs,
            out_specs=[
                pl.BlockSpec((1, 1, rows, m_out), lambda n, d: (n, d, 0, 0)),
                pl.BlockSpec((1, rows, 2), lambda n, d: (n, 0, 0)),
            ],
        ),
        compiler_params=pltpu.CompilerParams(
            dimension_semantics=("parallel", "arbitrary")),
        cost_estimate=cost,
    )(*plane_arrays, w_packed, mask)


# ----------------------------------------------------------------------------
# Pallas kernel 2: pointwise InstanceNorm (precomputed per-row scale/shift)
# + LeakyReLU(0.1), tiled per (batch, depth plane).
# ----------------------------------------------------------------------------
def _norm_act_kernel(y_ref, sc_ref, sh_ref, o_ref, *, slope):
    y = y_ref[0, 0].astype(jnp.float32)                    # (R, M)
    z = y * sc_ref[0] + sh_ref[0]                          # (R,1) broadcasts
    o_ref[0, 0] = jnp.where(z >= 0.0, z, slope * z).astype(o_ref.dtype)


def norm_act(y, scale_rows, shift_rows, *, out_dtype, slope=0.1):
    nb, dp, r, m = y.shape
    kernel = functools.partial(_norm_act_kernel, slope=slope)
    return pl.pallas_call(
        kernel,
        out_shape=jax.ShapeDtypeStruct((nb, dp, r, m), out_dtype),
        grid_spec=pltpu.PrefetchScalarGridSpec(
            num_scalar_prefetch=0,
            grid=(nb, dp),
            in_specs=[
                pl.BlockSpec((1, 1, r, m), lambda n, d: (n, d, 0, 0)),
                pl.BlockSpec((1, r, 1), lambda n, d: (n, 0, 0)),
                pl.BlockSpec((1, r, 1), lambda n, d: (n, 0, 0)),
            ],
            out_specs=pl.BlockSpec((1, 1, r, m), lambda n, d: (n, d, 0, 0)),
        ),
        compiler_params=pltpu.CompilerParams(
            dimension_semantics=("parallel", "parallel")),
    )(y, scale_rows, shift_rows)


def make_affine(stats, gamma, beta, *, group, count, eps=1e-5):
    """Per-channel mean/var from per-row (sum, sumsq) -> per-row scale/shift."""
    nb, r, _ = stats.shape
    c = r // group
    s = stats.reshape(nb, c, group, 2).sum(axis=2)         # (nb, c, 2)
    mean = s[..., 0] / count
    var = s[..., 1] / count - mean * mean
    rstd = lax.rsqrt(jnp.maximum(var, 0.0) + eps)
    scale = gamma[None, :] * rstd
    shift = beta[None, :] - mean * scale
    def rows(a):
        return jnp.repeat(a, group, axis=1).reshape(nb, r, 1).astype(jnp.float32)
    return rows(scale), rows(shift)


# ----------------------------------------------------------------------------
# XLA-side layout glue (small copies between the Pallas stages).
# ----------------------------------------------------------------------------
def _make_mask(h_out, wp, w_valid):
    col = jnp.arange(h_out * wp, dtype=jnp.int32) % wp
    return (col < w_valid).astype(jnp.float32).reshape(1, h_out * wp)


def _to_planes(x, pad_d, pad_h, pad_w):
    """(N, C, D, H, W) -> (N, Dp, C, Hp*Wp) bf16, zero-padded."""
    x = jnp.transpose(x, (0, 2, 1, 3, 4))
    x = jnp.pad(x, ((0, 0), pad_d, (0, 0), pad_h, pad_w))
    n, dp, c, hp, wp = x.shape
    return x.reshape(n, dp, c, hp * wp).astype(jnp.bfloat16)


def _rows_to_ncdhw(y, h_out, wp, w_valid):
    """(N, Do, C, h_out*wp) -> (N, C, Do, h_out, w_valid)."""
    n, do, c, _ = y.shape
    y = y.reshape(n, do, c, h_out, wp)[..., :w_valid]
    return jnp.transpose(y, (0, 2, 1, 3, 4))


# ----------------------------------------------------------------------------
# One-time parameter packing (hoisted out of the forward pass).
# Conv biases are dropped on purpose: a per-channel constant added before
# InstanceNorm cancels exactly in (y - mean(y)), so the output is unchanged.
# ----------------------------------------------------------------------------
def pack_conv_weight(w, splits):
    """(Cout, sum(splits), 3,3,3) -> (Cout, 27*sum(splits)) bf16,
    columns ordered (source, kd, kh, kw, cin) to match the kernel taps."""
    wn = np.asarray(jax.device_get(w), np.float32)
    cout = wn.shape[0]
    blocks, off = [], 0
    for cin in splits:
        ws = wn[:, off:off + cin]
        blocks.append(ws.transpose(0, 2, 3, 4, 1).reshape(cout, 27 * cin))
        off += cin
    return jnp.asarray(np.concatenate(blocks, axis=1), dtype=jnp.bfloat16)


def pack_deconv_weight(wt):
    """ConvTranspose3d weight (Cin, Cout, 3,3,3) -> parity-phase packed
    (8*Cout, 8*Cin) bf16; row = cout*8 + (pd*4+ph*2+pw),
    col = (ad*4+ah*2+aw)*Cin + cin.  Per axis: parity 0 uses tap a=0 (k=1);
    parity 1 uses a=0 (k=2) and a=1 (k=0)."""
    wn = np.asarray(jax.device_get(wt), np.float32)
    cin, cout = wn.shape[0], wn.shape[1]
    kmap = {(0, 0): 1, (1, 0): 2, (1, 1): 0}
    out = np.zeros((8 * cout, 8 * cin), np.float32)
    for pd in range(2):
        for ph in range(2):
            for pw in range(2):
                phase = pd * 4 + ph * 2 + pw
                for ad in range(2):
                    for ah in range(2):
                        for aw in range(2):
                            if ((pd, ad) not in kmap or (ph, ah) not in kmap
                                    or (pw, aw) not in kmap):
                                continue
                            kd = kmap[(pd, ad)]
                            kh = kmap[(ph, ah)]
                            kw = kmap[(pw, aw)]
                            col = (ad * 4 + ah * 2 + aw) * cin
                            for c in range(cout):
                                out[c * 8 + phase, col:col + cin] = \
                                    wn[:, c, kd, kh, kw]
    return jnp.asarray(out, dtype=jnp.bfloat16)


def prepare_params(raw):
    cout = raw["trans_w"].shape[1]
    p = {
        "w_t": pack_deconv_weight(raw["trans_w"]),
        "w_1": pack_conv_weight(raw["conv1_w"], (cout, cout)),
        "w_2": pack_conv_weight(raw["conv2_w"], (cout,)),
    }
    for k in ("trans", "conv1", "conv2"):
        p[f"{k}_g"] = raw[f"{k}_g"].astype(jnp.float32)
        p[f"{k}_beta"] = raw[f"{k}_beta"].astype(jnp.float32)
    return p


# ----------------------------------------------------------------------------
# Conv_Up_with_skip forward (PyTorch NCDHW in / NCDHW out).
# ----------------------------------------------------------------------------
@jax.jit
def conv_up_with_skip_forward(params, x, x_enc):
    n, cin, d, h, w = x.shape
    cout = x_enc.shape[1]
    assert cout % 8 == 0 and cin % 8 == 0

    # ---- conv_trans: parity-phase ConvTranspose3d(k3, s2, p1, op1); all 8
    # output parities packed along the matmul row dim (8*cout rows).
    xp = _to_planes(x, (0, 1), (0, 2), (0, 1))       # (n, d+1, cin, (h+2)*(w+1))
    wp_t = w + 1
    m0 = h * wp_t
    y0, st0 = tap_conv(
        [(xp, cin)], params["w_t"], _make_mask(h, wp_t, w),
        n_kd=2, taps=[(a, b) for a in (0, 1) for b in (0, 1)],
        wp=wp_t, m_out=m0, d_out=d, rows=8 * cout)
    sc0, sh0 = make_affine(st0, params["trans_g"], params["trans_beta"],
                           group=8, count=8 * d * h * w)
    x0r = norm_act(y0, sc0, sh0, out_dtype=jnp.bfloat16)
    # un-pack the 8 parities -> NCDHW spatial (one small XLA transpose)
    t = x0r.reshape(n, d, cout, 2, 2, 2, h, wp_t)[..., :w]
    x0 = jnp.transpose(t, (0, 2, 1, 3, 6, 4, 7, 5)).reshape(
        n, cout, 2 * d, 2 * h, 2 * w)

    do, ho, wo = 2 * d, 2 * h, 2 * w
    wp_c = wo + 2
    m1 = ho * wp_c
    taps9 = [(a, b) for a in range(3) for b in range(3)]
    mask_c = _make_mask(ho, wp_c, wo)

    # ---- conv1 on cat([x_encoder, x_0], dim=channel) WITHOUT materializing
    # the concat: two plane streams + split-K weight blocks in one kernel.
    enc_p = _to_planes(x_enc, (1, 1), (1, 2), (1, 1))
    x0_p = _to_planes(x0, (1, 1), (1, 2), (1, 1))
    y1, st1 = tap_conv(
        [(enc_p, cout), (x0_p, cout)], params["w_1"], mask_c,
        n_kd=3, taps=taps9, wp=wp_c, m_out=m1, d_out=do, rows=cout)
    sc1, sh1 = make_affine(st1, params["conv1_g"], params["conv1_beta"],
                           group=1, count=do * ho * wo)
    x1r = norm_act(y1, sc1, sh1, out_dtype=jnp.bfloat16)
    x1 = _rows_to_ncdhw(x1r, ho, wp_c, wo)

    # ---- conv2 (+ final norm/act kept in f32)
    x1_p = _to_planes(x1, (1, 1), (1, 2), (1, 1))
    y2, st2 = tap_conv(
        [(x1_p, cout)], params["w_2"], mask_c,
        n_kd=3, taps=taps9, wp=wp_c, m_out=m1, d_out=do, rows=cout)
    sc2, sh2 = make_affine(st2, params["conv2_g"], params["conv2_beta"],
                           group=1, count=do * ho * wo)
    x2r = norm_act(y2, sc2, sh2, out_dtype=jnp.float32)
    return _rows_to_ncdhw(x2r, ho, wp_c, wo)


# ----------------------------------------------------------------------------
# Deterministic parameter init (PyTorch layouts).  Biases are only consumed
# by the reference (they cancel under InstanceNorm in the kernel path).
# ----------------------------------------------------------------------------
def init_raw_params(key, in_features, out_features):
    ks = jax.random.split(key, 12)

    def w_init(k, shape, fan_in):
        return jax.random.normal(k, shape, jnp.float32) / jnp.sqrt(fan_in)

    return {
        "trans_w": w_init(ks[0], (in_features, out_features, 3, 3, 3),
                          in_features * 27),
        "trans_b": 0.01 * jax.random.normal(ks[1], (out_features,), jnp.float32),
        "trans_g": 1.0 + 0.1 * jax.random.normal(ks[2], (out_features,), jnp.float32),
        "trans_beta": 0.1 * jax.random.normal(ks[3], (out_features,), jnp.float32),
        "conv1_w": w_init(ks[4], (out_features, 2 * out_features, 3, 3, 3),
                          2 * out_features * 27),
        "conv1_b": 0.01 * jax.random.normal(ks[5], (out_features,), jnp.float32),
        "conv1_g": 1.0 + 0.1 * jax.random.normal(ks[6], (out_features,), jnp.float32),
        "conv1_beta": 0.1 * jax.random.normal(ks[7], (out_features,), jnp.float32),
        "conv2_w": w_init(ks[8], (out_features, out_features, 3, 3, 3),
                          out_features * 27),
        "conv2_b": 0.01 * jax.random.normal(ks[9], (out_features,), jnp.float32),
        "conv2_g": 1.0 + 0.1 * jax.random.normal(ks[10], (out_features,), jnp.float32),
        "conv2_beta": 0.1 * jax.random.normal(ks[11], (out_features,), jnp.float32),
    }


# ----------------------------------------------------------------------------
# Pure-JAX f32 reference (PyTorch semantics) for the correctness check.
# ----------------------------------------------------------------------------
_DN = ("NCDHW", "OIDHW", "NCDHW")


def reference_forward(raw, x, x_enc):
    def inorm_lrelu(hh, g, bta):
        mean = hh.mean(axis=(2, 3, 4), keepdims=True)
        var = jnp.mean((hh - mean) ** 2, axis=(2, 3, 4), keepdims=True)
        z = (hh - mean) * lax.rsqrt(var + 1e-5)
        z = z * g[None, :, None, None, None] + bta[None, :, None, None, None]
        return jnp.where(z >= 0, z, 0.1 * z)

    def conv(hh, ww, b):
        y = lax.conv_general_dilated(hh, ww, (1, 1, 1), "SAME",
                                     dimension_numbers=_DN,
                                     precision=lax.Precision.HIGHEST)
        return y + b[None, :, None, None, None]

    def conv_t(hh, ww, b):
        w_conv = jnp.transpose(ww, (1, 0, 2, 3, 4))[:, :, ::-1, ::-1, ::-1]
        y = lax.conv_general_dilated(hh, w_conv, (1, 1, 1),
                                     padding=((1, 2), (1, 2), (1, 2)),
                                     lhs_dilation=(2, 2, 2),
                                     dimension_numbers=_DN,
                                     precision=lax.Precision.HIGHEST)
        return y + b[None, :, None, None, None]

    x0 = inorm_lrelu(conv_t(x, raw["trans_w"], raw["trans_b"]),
                     raw["trans_g"], raw["trans_beta"])
    xc = jnp.concatenate([x_enc, x0], axis=1)
    x1 = inorm_lrelu(conv(xc, raw["conv1_w"], raw["conv1_b"]),
                     raw["conv1_g"], raw["conv1_beta"])
    x2 = inorm_lrelu(conv(x1, raw["conv2_w"], raw["conv2_b"]),
                     raw["conv2_g"], raw["conv2_beta"])
    return x2


if __name__ == "__main__":
    key = jax.random.PRNGKey(0)
    k_p, k_x, k_e = jax.random.split(key, 3)

    # Conv_Up_with_skip(dim=3, in_features=32, out_features=16,
    #                   strides=(2, 2, 2), kernel_size=3)
    N, Cin, Cout, D, H, W = 2, 32, 16, 8, 8, 8
    x = jax.random.normal(k_x, (N, Cin, D, H, W), jnp.float32)
    x_enc = jax.random.normal(k_e, (N, Cout, 2 * D, 2 * H, 2 * W), jnp.float32)

    raw = init_raw_params(k_p, in_features=Cin, out_features=Cout)
    params = prepare_params(raw)

    out = jax.block_until_ready(conv_up_with_skip_forward(params, x, x_enc))
    assert out.shape == (N, Cout, 2 * D, 2 * H, 2 * W), out.shape
    assert bool(jnp.all(jnp.isfinite(out)))

    ref = jax.block_until_ready(reference_forward(raw, x, x_enc))
    rel_err = jnp.linalg.norm(out - ref) / (jnp.linalg.norm(ref) + 1e-12)
    assert float(rel_err) < 3e-2, ("relative L2 error too large", float(rel_err))

    print("KERNEL_OK")
</pallas_src>

<mosaic_0001>
module attributes {stable_mosaic.version = 11 : i64} {
  func.func @kernel(%arg0: i32, %arg1: i32, %arg2: memref<1x1x32x90xbf16, #tpu.memory_space<vmem>>, %arg3: memref<1x1x32x90xbf16, #tpu.memory_space<vmem>>, %arg4: memref<128x256xbf16, #tpu.memory_space<vmem>>, %arg5: memref<1x72xf32, #tpu.memory_space<vmem>>, %arg6: memref<1x1x128x72xbf16, #tpu.memory_space<vmem>>, %arg7: memref<1x128x2xf32, #tpu.memory_space<vmem>>) attributes {dimension_semantics = [#tpu.dimension_semantics<parallel>, #tpu.dimension_semantics<arbitrary>], iteration_bounds = array<i64: 2, 8>, scalar_prefetch = 0 : i64, scratch_operands = 0 : i64, tpu.core_type = #tpu.core_type<tc>, window_params = [{transform_indices = @transform_0, window_bounds = array<i64: 1, 1, 32, 90>}, {transform_indices = @transform_1, window_bounds = array<i64: 1, 1, 32, 90>}, {pipeline_mode = #tpu.pipeline_mode<synchronous>, transform_indices = @transform_2, window_bounds = array<i64: 128, 256>}, {pipeline_mode = #tpu.pipeline_mode<synchronous>, transform_indices = @transform_3, window_bounds = array<i64: 1, 72>}, {transform_indices = @transform_4, window_bounds = array<i64: 1, 1, 128, 72>}, {transform_indices = @transform_5, window_bounds = array<i64: 1, 128, 2>}]} {
    %cst = arith.constant 0.000000e+00 : f32
    %0 = vector.broadcast %cst : f32 to vector<128x72xf32>
    %c0 = arith.constant 0 : index
    %c0_0 = arith.constant 0 : index
    %c0_1 = arith.constant 0 : index
    %c0_2 = arith.constant 0 : index
    %1 = vector.load %arg2[%c0, %c0_0, %c0_1, %c0_2] : memref<1x1x32x90xbf16, #tpu.memory_space<vmem>>, vector<1x1x32x90xbf16>
    %2 = vector.shape_cast %1 : vector<1x1x32x90xbf16> to vector<32x90xbf16>
    %c0_3 = arith.constant 0 : index
    %c0_4 = arith.constant 0 : index
    %3 = vector.load %arg4[%c0_3, %c0_4] : memref<128x256xbf16, #tpu.memory_space<vmem>>, vector<128x32xbf16>
    %4 = vector.extract_strided_slice %2 {offsets = [0, 0], sizes = [32, 72], strides = [1, 1]} : vector<32x90xbf16> to vector<32x72xbf16>
    %cst_5 = arith.constant dense<0.000000e+00> : vector<128x72xf32>
    %5 = tpu.matmul %3, %4, %cst_5 {dimension_numbers = #tpu.dot_dimension_numbers<[1], [0], [0], [1], [0, 0, 1, 1], [], []>} : vector<128x32xbf16>, vector<32x72xbf16>, vector<128x72xf32> -> vector<128x72xf32>
    %6 = arith.addf %0, %5 : vector<128x72xf32>
    %c0_6 = arith.constant 0 : index
    %c32 = arith.constant 32 : index
    %7 = vector.load %arg4[%c0_6, %c32] : memref<128x256xbf16, #tpu.memory_space<vmem>>, vector<128x32xbf16>
    %8 = vector.extract_strided_slice %2 {offsets = [0, 1], sizes = [32, 72], strides = [1, 1]} : vector<32x90xbf16> to vector<32x72xbf16>
    %cst_7 = arith.constant dense<0.000000e+00> : vector<128x72xf32>
    %9 = tpu.matmul %7, %8, %cst_7 {dimension_numbers = #tpu.dot_dimension_numbers<[1], [0], [0], [1], [0, 0, 1, 1], [], []>} : vector<128x32xbf16>, vector<32x72xbf16>, vector<128x72xf32> -> vector<128x72xf32>
    %10 = arith.addf %6, %9 : vector<128x72xf32>
    %c0_8 = arith.constant 0 : index
    %c64 = arith.constant 64 : index
    %11 = vector.load %arg4[%c0_8, %c64] : memref<128x256xbf16, #tpu.memory_space<vmem>>, vector<128x32xbf16>
    %12 = vector.extract_strided_slice %2 {offsets = [0, 9], sizes = [32, 72], strides = [1, 1]} : vector<32x90xbf16> to vector<32x72xbf16>
    %cst_9 = arith.constant dense<0.000000e+00> : vector<128x72xf32>
    %13 = tpu.matmul %11, %12, %cst_9 {dimension_numbers = #tpu.dot_dimension_numbers<[1], [0], [0], [1], [0, 0, 1, 1], [], []>} : vector<128x32xbf16>, vector<32x72xbf16>, vector<128x72xf32> -> vector<128x72xf32>
    %14 = arith.addf %10, %13 : vector<128x72xf32>
    %c0_10 = arith.constant 0 : index
    %c96 = arith.constant 96 : index
    %15 = vector.load %arg4[%c0_10, %c96] : memref<128x256xbf16, #tpu.memory_space<vmem>>, vector<128x32xbf16>
    %16 = vector.extract_strided_slice %2 {offsets = [0, 10], sizes = [32, 72], strides = [1, 1]} : vector<32x90xbf16> to vector<32x72xbf16>
    %cst_11 = arith.constant dense<0.000000e+00> : vector<128x72xf32>
    %17 = tpu.matmul %15, %16, %cst_11 {dimension_numbers = #tpu.dot_dimension_numbers<[1], [0], [0], [1], [0, 0, 1, 1], [], []>} : vector<128x32xbf16>, vector<32x72xbf16>, vector<128x72xf32> -> vector<128x72xf32>
    %18 = arith.addf %14, %17 : vector<128x72xf32>
    %c0_12 = arith.constant 0 : index
    %c0_13 = arith.constant 0 : index
    %c0_14 = arith.constant 0 : index
    %c0_15 = arith.constant 0 : index
    %19 = vector.load %arg3[%c0_12, %c0_13, %c0_14, %c0_15] : memref<1x1x32x90xbf16, #tpu.memory_space<vmem>>, vector<1x1x32x90xbf16>
    %20 = vector.shape_cast %19 : vector<1x1x32x90xbf16> to vector<32x90xbf16>
    %c0_16 = arith.constant 0 : index
    %c128 = arith.constant 128 : index
    %21 = vector.load %arg4[%c0_16, %c128] : memref<128x256xbf16, #tpu.memory_space<vmem>>, vector<128x32xbf16>
    %22 = vector.extract_strided_slice %20 {offsets = [0, 0], sizes = [32, 72], strides = [1, 1]} : vector<32x90xbf16> to vector<32x72xbf16>
    %cst_17 = arith.constant dense<0.000000e+00> : vector<128x72xf32>
    %23 = tpu.matmul %21, %22, %cst_17 {dimension_numbers = #tpu.dot_dimension_numbers<[1], [0], [0], [1], [0, 0, 1, 1], [], []>} : vector<128x32xbf16>, vector<32x72xbf16>, vector<128x72xf32> -> vector<128x72xf32>
    %24 = arith.addf %18, %23 : vector<128x72xf32>
    %c0_18 = arith.constant 0 : index
    %c160 = arith.constant 160 : index
    %25 = vector.load %arg4[%c0_18, %c160] : memref<128x256xbf16, #tpu.memory_space<vmem>>, vector<128x32xbf16>
    %26 = vector.extract_strided_slice %20 {offsets = [0, 1], sizes = [32, 72], strides = [1, 1]} : vector<32x90xbf16> to vector<32x72xbf16>
    %cst_19 = arith.constant dense<0.000000e+00> : vector<128x72xf32>
    %27 = tpu.matmul %25, %26, %cst_19 {dimension_numbers = #tpu.dot_dimension_numbers<[1], [0], [0], [1], [0, 0, 1, 1], [], []>} : vector<128x32xbf16>, vector<32x72xbf16>, vector<128x72xf32> -> vector<128x72xf32>
    %28 = arith.addf %24, %27 : vector<128x72xf32>
    %c0_20 = arith.constant 0 : index
    %c192 = arith.constant 192 : index
    %29 = vector.load %arg4[%c0_20, %c192] : memref<128x256xbf16, #tpu.memory_space<vmem>>, vector<128x32xbf16>
    %30 = vector.extract_strided_slice %20 {offsets = [0, 9], sizes = [32, 72], strides = [1, 1]} : vector<32x90xbf16> to vector<32x72xbf16>
    %cst_21 = arith.constant dense<0.000000e+00> : vector<128x72xf32>
    %31 = tpu.matmul %29, %30, %cst_21 {dimension_numbers = #tpu.dot_dimension_numbers<[1], [0], [0], [1], [0, 0, 1, 1], [], []>} : vector<128x32xbf16>, vector<32x72xbf16>, vector<128x72xf32> -> vector<128x72xf32>
    %32 = arith.addf %28, %31 : vector<128x72xf32>
    %c0_22 = arith.constant 0 : index
    %c224 = arith.constant 224 : index
    %33 = vector.load %arg4[%c0_22, %c224] : memref<128x256xbf16, #tpu.memory_space<vmem>>, vector<128x32xbf16>
    %34 = vector.extract_strided_slice %20 {offsets = [0, 10], sizes = [32, 72], strides = [1, 1]} : vector<32x90xbf16> to vector<32x72xbf16>
    %cst_23 = arith.constant dense<0.000000e+00> : vector<128x72xf32>
    %35 = tpu.matmul %33, %34, %cst_23 {dimension_numbers = #tpu.dot_dimension_numbers<[1], [0], [0], [1], [0, 0, 1, 1], [], []>} : vector<128x32xbf16>, vector<32x72xbf16>, vector<128x72xf32> -> vector<128x72xf32>
    %36 = arith.addf %32, %35 : vector<128x72xf32>
    %37 = arith.truncf %36 : vector<128x72xf32> to vector<128x72xbf16>
    %c0_24 = arith.constant 0 : index
    %c0_25 = arith.constant 0 : index
    %c0_26 = arith.constant 0 : index
    %c0_27 = arith.constant 0 : index
    %38 = vector.load %arg6[%c0_24, %c0_25, %c0_26, %c0_27] : memref<1x1x128x72xbf16, #tpu.memory_space<vmem>>, vector<1x1x128x72xbf16>
    %39 = vector.shape_cast %38 : vector<1x1x128x72xbf16> to vector<128x72xbf16>
    %40 = vector.shape_cast %37 : vector<128x72xbf16> to vector<1x1x128x72xbf16>
    tpu.vector_store %arg6[%c0_24, %c0_25, %c0_26, %c0_27], %40 {strides = array<i32>} : memref<1x1x128x72xbf16, #tpu.memory_space<vmem>>, vector<1x1x128x72xbf16>,
    %c0_28 = arith.constant 0 : index
    %c0_29 = arith.constant 0 : index
    %41 = vector.load %arg5[%c0_28, %c0_29] : memref<1x72xf32, #tpu.memory_space<vmem>>, vector<1x72xf32>
    %42 = vector.broadcast %41 : vector<1x72xf32> to vector<128x72xf32>
    %43 = arith.mulf %36, %42 : vector<128x72xf32>
    %cst_30 = arith.constant dense<0.000000e+00> : vector<128xf32>
    %44 = vector.multi_reduction <add>, %43, %cst_30 [1] : vector<128x72xf32> to vector<128xf32>
    %45 = vector.shape_cast %44 : vector<128xf32> to vector<128x1xf32>
    %46 = arith.mulf %43, %36 : vector<128x72xf32>
    %cst_31 = arith.constant dense<0.000000e+00> : vector<128xf32>
    %47 = vector.multi_reduction <add>, %46, %cst_31 [1] : vector<128x72xf32> to vector<128xf32>
    %48 = vector.shape_cast %47 : vector<128xf32> to vector<128x1xf32>
    %c0_i32 = arith.constant 0 : i32
    %49 = arith.cmpi eq, %arg1, %c0_i32 : i32
    %50 = arith.extui %49 : i1 to i32
    %c0_i32_32 = arith.constant 0 : i32
    %51 = arith.cmpi ne, %50, %c0_i32_32 : i32
    scf.if %51 {
      %c0_35 = arith.constant 0 : index
      %c0_36 = arith.constant 0 : index
      %c0_37 = arith.constant 0 : index
      %55 = vector.load %arg7[%c0_35, %c0_36, %c0_37] : memref<1x128x2xf32, #tpu.memory_space<vmem>>, vector<1x128x1xf32>
      %56 = vector.shape_cast %55 : vector<1x128x1xf32> to vector<128x1xf32>
      %57 = vector.shape_cast %45 : vector<128x1xf32> to vector<1x128x1xf32>
      tpu.vector_store %arg7[%c0_35, %c0_36, %c0_37], %57 {strides = array<i32>} : memref<1x128x2xf32, #tpu.memory_space<vmem>>, vector<1x128x1xf32>,
      %c0_38 = arith.constant 0 : index
      %c0_39 = arith.constant 0 : index
      %c1 = arith.constant 1 : index
      %58 = vector.load %arg7[%c0_38, %c0_39, %c1] : memref<1x128x2xf32, #tpu.memory_space<vmem>>, vector<1x128x1xf32>
      %59 = vector.shape_cast %58 : vector<1x128x1xf32> to vector<128x1xf32>
      %60 = vector.shape_cast %48 : vector<128x1xf32> to vector<1x128x1xf32>
      tpu.vector_store %arg7[%c0_38, %c0_39, %c1], %60 {strides = array<i32>} : memref<1x128x2xf32, #tpu.memory_space<vmem>>, vector<1x128x1xf32>,
    } else {
    }
    %c0_i32_33 = arith.constant 0 : i32
    %52 = arith.cmpi sgt, %arg1, %c0_i32_33 : i32
    %53 = arith.extui %52 : i1 to i32
    %c0_i32_34 = arith.constant 0 : i32
    %54 = arith.cmpi ne, %53, %c0_i32_34 : i32
    scf.if %54 {
      %c0_35 = arith.constant 0 : index
      %c0_36 = arith.constant 0 : index
      %c0_37 = arith.constant 0 : index
      %55 = vector.load %arg7[%c0_35, %c0_36, %c0_37] : memref<1x128x2xf32, #tpu.memory_space<vmem>>, vector<1x128x1xf32>
      %56 = vector.shape_cast %55 : vector<1x128x1xf32> to vector<128x1xf32>
      %57 = arith.addf %56, %45 : vector<128x1xf32>
      %c0_38 = arith.constant 0 : index
      %c0_39 = arith.constant 0 : index
      %c0_40 = arith.constant 0 : index
      %58 = vector.load %arg7[%c0_38, %c0_39, %c0_40] : memref<1x128x2xf32, #tpu.memory_space<vmem>>, vector<1x128x1xf32>
      %59 = vector.shape_cast %58 : vector<1x128x1xf32> to vector<128x1xf32>
      %60 = vector.shape_cast %57 : vector<128x1xf32> to vector<1x128x1xf32>
      tpu.vector_store %arg7[%c0_38, %c0_39, %c0_40], %60 {strides = array<i32>} : memref<1x128x2xf32, #tpu.memory_space<vmem>>, vector<1x128x1xf32>,
      %c0_41 = arith.constant 0 : index
      %c0_42 = arith.constant 0 : index
      %c1 = arith.constant 1 : index
      %61 = vector.load %arg7[%c0_41, %c0_42, %c1] : memref<1x128x2xf32, #tpu.memory_space<vmem>>, vector<1x128x1xf32>
      %62 = vector.shape_cast %61 : vector<1x128x1xf32> to vector<128x1xf32>
      %63 = arith.addf %62, %48 : vector<128x1xf32>
      %c0_43 = arith.constant 0 : index
      %c0_44 = arith.constant 0 : index
      %c1_45 = arith.constant 1 : index
      %64 = vector.load %arg7[%c0_43, %c0_44, %c1_45] : memref<1x128x2xf32, #tpu.memory_space<vmem>>, vector<1x128x1xf32>
      %65 = vector.shape_cast %64 : vector<1x128x1xf32> to vector<128x1xf32>
      %66 = vector.shape_cast %63 : vector<128x1xf32> to vector<1x128x1xf32>
      tpu.vector_store %arg7[%c0_43, %c0_44, %c1_45], %66 {strides = array<i32>} : memref<1x128x2xf32, #tpu.memory_space<vmem>>, vector<1x128x1xf32>,
    } else {
    }
    return
  }
  func.func @transform_0(%arg0: i32, %arg1: i32) -> (i32, i32, i32, i32) {
    %c0_i32 = arith.constant 0 : i32
    %0 = arith.addi %arg1, %c0_i32 : i32
    %c0_i32_0 = arith.constant 0 : i32
    %c0_i32_1 = arith.constant 0 : i32
    %c0_i32_2 = arith.constant 0 : i32
    return %arg0, %0, %c0_i32_0, %c0_i32_1 : i32, i32, i32, i32
  }
  func.func @transform_1(%arg0: i32, %arg1: i32) -> (i32, i32, i32, i32) {
    %c1_i32 = arith.constant 1 : i32
    %0 = arith.addi %arg1, %c1_i32 : i32
    %c0_i32 = arith.constant 0 : i32
    %c0_i32_0 = arith.constant 0 : i32
    %c0_i32_1 = arith.constant 0 : i32
    return %arg0, %0, %c0_i32, %c0_i32_0 : i32, i32, i32, i32
  }
  func.func @transform_2(%arg0: i32, %arg1: i32) -> (i32, i32) {
    %c0_i32 = arith.constant 0 : i32
    %c0_i32_0 = arith.constant 0 : i32
    %c0_i32_1 = arith.constant 0 : i32
    return %c0_i32, %c0_i32_0 : i32, i32
  }
  func.func @transform_3(%arg0: i32, %arg1: i32) -> (i32, i32) {
    %c0_i32 = arith.constant 0 : i32
    %c0_i32_0 = arith.constant 0 : i32
    %c0_i32_1 = arith.constant 0 : i32
    return %c0_i32, %c0_i32_0 : i32, i32
  }
  func.func @transform_4(%arg0: i32, %arg1: i32) -> (i32, i32, i32, i32) {
    %c0_i32 = arith.constant 0 : i32
    %c0_i32_0 = arith.constant 0 : i32
    %c0_i32_1 = arith.constant 0 : i32
    return %arg0, %arg1, %c0_i32, %c0_i32_0 : i32, i32, i32, i32
  }
  func.func @transform_5(%arg0: i32, %arg1: i32) -> (i32, i32, i32) {
    %c0_i32 = arith.constant 0 : i32
    %c0_i32_0 = arith.constant 0 : i32
    %c0_i32_1 = arith.constant 0 : i32
    return %arg0, %c0_i32, %c0_i32_0 : i32, i32, i32
  }
}

module attributes {stable_mosaic.version = 11 : i64} {
  func.func @_norm_act_kernel(%arg0: i32, %arg1: i32, %arg2: memref<1x1x128x72xbf16, #tpu.memory_space<vmem>>, %arg3: memref<1x128x1xf32, #tpu.memory_space<vmem>>, %arg4: memref<1x128x1xf32, #tpu.memory_space<vmem>>, %arg5: memref<1x1x128x72xbf16, #tpu.memory_space<vmem>>) attributes {dimension_semantics = [#tpu.dimension_semantics<parallel>, #tpu.dimension_semantics<parallel>], iteration_bounds = array<i64: 2, 8>, scalar_prefetch = 0 : i64, scratch_operands = 0 : i64, tpu.core_type = #tpu.core_type<tc>, window_params = [{transform_indices = @transform_0, window_bounds = array<i64: 1, 1, 128, 72>}, {transform_indices = @transform_1, window_bounds = array<i64: 1, 128, 1>}, {transform_indices = @transform_2, window_bounds = array<i64: 1, 128, 1>}, {transform_indices = @transform_3, window_bounds = array<i64: 1, 1, 128, 72>}]} {
    %c0 = arith.constant 0 : index
    %c0_0 = arith.constant 0 : index
    %c0_1 = arith.constant 0 : index
    %c0_2 = arith.constant 0 : index
    %0 = vector.load %arg2[%c0, %c0_0, %c0_1, %c0_2] : memref<1x1x128x72xbf16, #tpu.memory_space<vmem>>, vector<1x1x128x72xbf16>
    %1 = vector.shape_cast %0 : vector<1x1x128x72xbf16> to vector<128x72xbf16>
    %2 = arith.extf %1 : vector<128x72xbf16> to vector<128x72xf32>
    %c0_3 = arith.constant 0 : index
    %c0_4 = arith.constant 0 : index
    %c0_5 = arith.constant 0 : index
    %3 = vector.load %arg3[%c0_3, %c0_4, %c0_5] : memref<1x128x1xf32, #tpu.memory_space<vmem>>, vector<1x128x1xf32>
    %4 = vector.shape_cast %3 : vector<1x128x1xf32> to vector<128x1xf32>
    %5 = vector.broadcast %4 : vector<128x1xf32> to vector<128x72xf32>
    %6 = arith.mulf %2, %5 : vector<128x72xf32>
    %c0_6 = arith.constant 0 : index
    %c0_7 = arith.constant 0 : index
    %c0_8 = arith.constant 0 : index
    %7 = vector.load %arg4[%c0_6, %c0_7, %c0_8] : memref<1x128x1xf32, #tpu.memory_space<vmem>>, vector<1x128x1xf32>
    %8 = vector.shape_cast %7 : vector<1x128x1xf32> to vector<128x1xf32>
    %9 = vector.broadcast %8 : vector<128x1xf32> to vector<128x72xf32>
    %10 = arith.addf %6, %9 : vector<128x72xf32>
    %cst = arith.constant 0.000000e+00 : f32
    %11 = vector.broadcast %cst : f32 to vector<128x72xf32>
    %12 = arith.cmpf oge, %10, %11 : vector<128x72xf32>
    %cst_9 = arith.constant 1.000000e-01 : f32
    %13 = vector.broadcast %cst_9 : f32 to vector<128x72xf32>
    %14 = arith.mulf %13, %10 : vector<128x72xf32>
    %15 = arith.select %12, %10, %14 : vector<128x72xi1>, vector<128x72xf32>
    %16 = arith.truncf %15 : vector<128x72xf32> to vector<128x72xbf16>
    %c0_10 = arith.constant 0 : index
    %c0_11 = arith.constant 0 : index
    %c0_12 = arith.constant 0 : index
    %c0_13 = arith.constant 0 : index
    %17 = vector.load %arg5[%c0_10, %c0_11, %c0_12, %c0_13] : memref<1x1x128x72xbf16, #tpu.memory_space<vmem>>, vector<1x1x128x72xbf16>
    %18 = vector.shape_cast %17 : vector<1x1x128x72xbf16> to vector<128x72xbf16>
    %19 = vector.shape_cast %16 : vector<128x72xbf16> to vector<1x1x128x72xbf16>
    tpu.vector_store %arg5[%c0_10, %c0_11, %c0_12, %c0_13], %19 {strides = array<i32>} : memref<1x1x128x72xbf16, #tpu.memory_space<vmem>>, vector<1x1x128x72xbf16>,
    return
  }
  func.func @transform_0(%arg0: i32, %arg1: i32) -> (i32, i32, i32, i32) {
    %c0_i32 = arith.constant 0 : i32
    %c0_i32_0 = arith.constant 0 : i32
    %c0_i32_1 = arith.constant 0 : i32
    return %arg0, %arg1, %c0_i32, %c0_i32_0 : i32, i32, i32, i32
  }
  func.func @transform_1(%arg0: i32, %arg1: i32) -> (i32, i32, i32) {
    %c0_i32 = arith.constant 0 : i32
    %c0_i32_0 = arith.constant 0 : i32
    %c0_i32_1 = arith.constant 0 : i32
    return %arg0, %c0_i32, %c0_i32_0 : i32, i32, i32
  }
  func.func @transform_2(%arg0: i32, %arg1: i32) -> (i32, i32, i32) {
    %c0_i32 = arith.constant 0 : i32
    %c0_i32_0 = arith.constant 0 : i32
    %c0_i32_1 = arith.constant 0 : i32
    return %arg0, %c0_i32, %c0_i32_0 : i32, i32, i32
  }
  func.func @transform_3(%arg0: i32, %arg1: i32) -> (i32, i32, i32, i32) {
    %c0_i32 = arith.constant 0 : i32
    %c0_i32_0 = arith.constant 0 : i32
    %c0_i32_1 = arith.constant 0 : i32
    return %arg0, %arg1, %c0_i32, %c0_i32_0 : i32, i32, i32, i32
  }
}

module attributes {stable_mosaic.version = 11 : i64} {
  func.func @kernel(%arg0: i32, %arg1: i32, %arg2: memref<1x1x16x342xbf16, #tpu.memory_space<vmem>>, %arg3: memref<1x1x16x342xbf16, #tpu.memory_space<vmem>>, %arg4: memref<1x1x16x342xbf16, #tpu.memory_space<vmem>>, %arg5: memref<1x1x16x342xbf16, #tpu.memory_space<vmem>>, %arg6: memref<1x1x16x342xbf16, #tpu.memory_space<vmem>>, %arg7: memref<1x1x16x342xbf16, #tpu.memory_space<vmem>>, %arg8: memref<16x864xbf16, #tpu.memory_space<vmem>>, %arg9: memref<1x288xf32, #tpu.memory_space<vmem>>, %arg10: memref<1x1x16x288xbf16, #tpu.memory_space<vmem>>, %arg11: memref<1x16x2xf32, #tpu.memory_space<vmem>>) attributes {dimension_semantics = [#tpu.dimension_semantics<parallel>, #tpu.dimension_semantics<arbitrary>], iteration_bounds = array<i64: 2, 16>, scalar_prefetch = 0 : i64, scratch_operands = 0 : i64, tpu.core_type = #tpu.core_type<tc>, window_params = [{transform_indices = @transform_0, window_bounds = array<i64: 1, 1, 16, 342>}, {transform_indices = @transform_1, window_bounds = array<i64: 1, 1, 16, 342>}, {transform_indices = @transform_2, window_bounds = array<i64: 1, 1, 16, 342>}, {transform_indices = @transform_3, window_bounds = array<i64: 1, 1, 16, 342>}, {transform_indices = @transform_4, window_bounds = array<i64: 1, 1, 16, 342>}, {transform_indices = @transform_5, window_bounds = array<i64: 1, 1, 16, 342>}, {pipeline_mode = #tpu.pipeline_mode<synchronous>, transform_indices = @transform_6, window_bounds = array<i64: 16, 864>}, {pipeline_mode = #tpu.pipeline_mode<synchronous>, transform_indices = @transform_7, window_bounds = array<i64: 1, 288>}, {transform_indices = @transform_8, window_bounds = array<i64: 1, 1, 16, 288>}, {transform_indices = @transform_9, window_bounds = array<i64: 1, 16, 2>}]} {
    %cst = arith.constant 0.000000e+00 : f32
    %0 = vector.broadcast %cst : f32 to vector<16x288xf32>
    %c0 = arith.constant 0 : index
    %c0_0 = arith.constant 0 : index
    %c0_1 = arith.constant 0 : index
    %c0_2 = arith.constant 0 : index
    %1 = vector.load %arg2[%c0, %c0_0, %c0_1, %c0_2] : memref<1x1x16x342xbf16, #tpu.memory_space<vmem>>, vector<1x1x16x342xbf16>
    %2 = vector.shape_cast %1 : vector<1x1x16x342xbf16> to vector<16x342xbf16>
    %c0_3 = arith.constant 0 : index
    %c0_4 = arith.constant 0 : index
    %3 = vector.load %arg8[%c0_3, %c0_4] : memref<16x864xbf16, #tpu.memory_space<vmem>>, vector<16x16xbf16>
    %4 = vector.extract_strided_slice %2 {offsets = [0, 0], sizes = [16, 288], strides = [1, 1]} : vector<16x342xbf16> to vector<16x288xbf16>
    %cst_5 = arith.constant dense<0.000000e+00> : vector<16x288xf32>
    %5 = tpu.matmul %3, %4, %cst_5 {dimension_numbers = #tpu.dot_dimension_numbers<[1], [0], [0], [1], [0, 0, 1, 1], [], []>} : vector<16x16xbf16>, vector<16x288xbf16>, vector<16x288xf32> -> vector<16x288xf32>
    %6 = arith.addf %0, %5 : vector<16x288xf32>
    %c0_6 = arith.constant 0 : index
    %c16 = arith.constant 16 : index
    %7 = vector.load %arg8[%c0_6, %c16] : memref<16x864xbf16, #tpu.memory_space<vmem>>, vector<16x16xbf16>
    %8 = vector.extract_strided_slice %2 {offsets = [0, 1], sizes = [16, 288], strides = [1, 1]} : vector<16x342xbf16> to vector<16x288xbf16>
    %cst_7 = arith.constant dense<0.000000e+00> : vector<16x288xf32>
    %9 = tpu.matmul %7, %8, %cst_7 {dimension_numbers = #tpu.dot_dimension_numbers<[1], [0], [0], [1], [0, 0, 1, 1], [], []>} : vector<16x16xbf16>, vector<16x288xbf16>, vector<16x288xf32> -> vector<16x288xf32>
    %10 = arith.addf %6, %9 : vector<16x288xf32>
    %c0_8 = arith.constant 0 : index
    %c32 = arith.constant 32 : index
    %11 = vector.load %arg8[%c0_8, %c32] : memref<16x864xbf16, #tpu.memory_space<vmem>>, vector<16x16xbf16>
    %12 = vector.extract_strided_slice %2 {offsets = [0, 2], sizes = [16, 288], strides = [1, 1]} : vector<16x342xbf16> to vector<16x288xbf16>
    %cst_9 = arith.constant dense<0.000000e+00> : vector<16x288xf32>
    %13 = tpu.matmul %11, %12, %cst_9 {dimension_numbers = #tpu.dot_dimension_numbers<[1], [0], [0], [1], [0, 0, 1, 1], [], []>} : vector<16x16xbf16>, vector<16x288xbf16>, vector<16x288xf32> -> vector<16x288xf32>
    %14 = arith.addf %10, %13 : vector<16x288xf32>
    %c0_10 = arith.constant 0 : index
    %c48 = arith.constant 48 : index
    %15 = vector.load %arg8[%c0_10, %c48] : memref<16x864xbf16, #tpu.memory_space<vmem>>, vector<16x16xbf16>
    %16 = vector.extract_strided_slice %2 {offsets = [0, 18], sizes = [16, 288], strides = [1, 1]} : vector<16x342xbf16> to vector<16x288xbf16>
    %cst_11 = arith.constant dense<0.000000e+00> : vector<16x288xf32>
    %17 = tpu.matmul %15, %16, %cst_11 {dimension_numbers = #tpu.dot_dimension_numbers<[1], [0], [0], [1], [0, 0, 1, 1], [], []>} : vector<16x16xbf16>, vector<16x288xbf16>, vector<16x288xf32> -> vector<16x288xf32>
    %18 = arith.addf %14, %17 : vector<16x288xf32>
    %c0_12 = arith.constant 0 : index
    %c64 = arith.constant 64 : index
    %19 = vector.load %arg8[%c0_12, %c64] : memref<16x864xbf16, #tpu.memory_space<vmem>>, vector<16x16xbf16>
    %20 = vector.extract_strided_slice %2 {offsets = [0, 19], sizes = [16, 288], strides = [1, 1]} : vector<16x342xbf16> to vector<16x288xbf16>
    %cst_13 = arith.constant dense<0.000000e+00> : vector<16x288xf32>
    %21 = tpu.matmul %19, %20, %cst_13 {dimension_numbers = #tpu.dot_dimension_numbers<[1], [0], [0], [1], [0, 0, 1, 1], [], []>} : vector<16x16xbf16>, vector<16x288xbf16>, vector<16x288xf32> -> vector<16x288xf32>
    %22 = arith.addf %18, %21 : vector<16x288xf32>
    %c0_14 = arith.constant 0 : index
    %c80 = arith.constant 80 : index
    %23 = vector.load %arg8[%c0_14, %c80] : memref<16x864xbf16, #tpu.memory_space<vmem>>, vector<16x16xbf16>
    %24 = vector.extract_strided_slice %2 {offsets = [0, 20], sizes = [16, 288], strides = [1, 1]} : vector<16x342xbf16> to vector<16x288xbf16>
    %cst_15 = arith.constant dense<0.000000e+00> : vector<16x288xf32>
    %25 = tpu.matmul %23, %24, %cst_15 {dimension_numbers = #tpu.dot_dimension_numbers<[1], [0], [0], [1], [0, 0, 1, 1], [], []>} : vector<16x16xbf16>, vector<16x288xbf16>, vector<16x288xf32> -> vector<16x288xf32>
    %26 = arith.addf %22, %25 : vector<16x288xf32>
    %c0_16 = arith.constant 0 : index
    %c96 = arith.constant 96 : index
    %27 = vector.load %arg8[%c0_16, %c96] : memref<16x864xbf16, #tpu.memory_space<vmem>>, vector<16x16xbf16>
    %28 = vector.extract_strided_slice %2 {offsets = [0, 36], sizes = [16, 288], strides = [1, 1]} : vector<16x342xbf16> to vector<16x288xbf16>
    %cst_17 = arith.constant dense<0.000000e+00> : vector<16x288xf32>
    %29 = tpu.matmul %27, %28, %cst_17 {dimension_numbers = #tpu.dot_dimension_numbers<[1], [0], [0], [1], [0, 0, 1, 1], [], []>} : vector<16x16xbf16>, vector<16x288xbf16>, vector<16x288xf32> -> vector<16x288xf32>
    %30 = arith.addf %26, %29 : vector<16x288xf32>
    %c0_18 = arith.constant 0 : index
    %c112 = arith.constant 112 : index
    %31 = vector.load %arg8[%c0_18, %c112] : memref<16x864xbf16, #tpu.memory_space<vmem>>, vector<16x16xbf16>
    %32 = vector.extract_strided_slice %2 {offsets = [0, 37], sizes = [16, 288], strides = [1, 1]} : vector<16x342xbf16> to vector<16x288xbf16>
    %cst_19 = arith.constant dense<0.000000e+00> : vector<16x288xf32>
    %33 = tpu.matmul %31, %32, %cst_19 {dimension_numbers = #tpu.dot_dimension_numbers<[1], [0], [0], [1], [0, 0, 1, 1], [], []>} : vector<16x16xbf16>, vector<16x288xbf16>, vector<16x288xf32> -> vector<16x288xf32>
    %34 = arith.addf %30, %33 : vector<16x288xf32>
    %c0_20 = arith.constant 0 : index
    %c128 = arith.constant 128 : index
    %35 = vector.load %arg8[%c0_20, %c128] : memref<16x864xbf16, #tpu.memory_space<vmem>>, vector<16x16xbf16>
    %36 = vector.extract_strided_slice %2 {offsets = [0, 38], sizes = [16, 288], strides = [1, 1]} : vector<16x342xbf16> to vector<16x288xbf16>
    %cst_21 = arith.constant dense<0.000000e+00> : vector<16x288xf32>
    %37 = tpu.matmul %35, %36, %cst_21 {dimension_numbers = #tpu.dot_dimension_numbers<[1], [0], [0], [1], [0, 0, 1, 1], [], []>} : vector<16x16xbf16>, vector<16x288xbf16>, vector<16x288xf32> -> vector<16x288xf32>
    %38 = arith.addf %34, %37 : vector<16x288xf32>
    %c0_22 = arith.constant 0 : index
    %c0_23 = arith.constant 0 : index
    %c0_24 = arith.constant 0 : index
    %c0_25 = arith.constant 0 : index
    %39 = vector.load %arg3[%c0_22, %c0_23, %c0_24, %c0_25] : memref<1x1x16x342xbf16, #tpu.memory_space<vmem>>, vector<1x1x16x342xbf16>
    %40 = vector.shape_cast %39 : vector<1x1x16x342xbf16> to vector<16x342xbf16>
    %c0_26 = arith.constant 0 : index
    %c144 = arith.constant 144 : index
    %41 = vector.load %arg8[%c0_26, %c144] : memref<16x864xbf16, #tpu.memory_space<vmem>>, vector<16x16xbf16>
    %42 = vector.extract_strided_slice %40 {offsets = [0, 0], sizes = [16, 288], strides = [1, 1]} : vector<16x342xbf16> to vector<16x288xbf16>
    %cst_27 = arith.constant dense<0.000000e+00> : vector<16x288xf32>
    %43 = tpu.matmul %41, %42, %cst_27 {dimension_numbers = #tpu.dot_dimension_numbers<[1], [0], [0], [1], [0, 0, 1, 1], [], []>} : vector<16x16xbf16>, vector<16x288xbf16>, vector<16x288xf32> -> vector<16x288xf32>
    %44 = arith.addf %38, %43 : vector<16x288xf32>
    %c0_28 = arith.constant 0 : index
    %c160 = arith.constant 160 : index
    %45 = vector.load %arg8[%c0_28, %c160] : memref<16x864xbf16, #tpu.memory_space<vmem>>, vector<16x16xbf16>
    %46 = vector.extract_strided_slice %40 {offsets = [0, 1], sizes = [16, 288], strides = [1, 1]} : vector<16x342xbf16> to vector<16x288xbf16>
    %cst_29 = arith.constant dense<0.000000e+00> : vector<16x288xf32>
    %47 = tpu.matmul %45, %46, %cst_29 {dimension_numbers = #tpu.dot_dimension_numbers<[1], [0], [0], [1], [0, 0, 1, 1], [], []>} : vector<16x16xbf16>, vector<16x288xbf16>, vector<16x288xf32> -> vector<16x288xf32>
    %48 = arith.addf %44, %47 : vector<16x288xf32>
    %c0_30 = arith.constant 0 : index
    %c176 = arith.constant 176 : index
    %49 = vector.load %arg8[%c0_30, %c176] : memref<16x864xbf16, #tpu.memory_space<vmem>>, vector<16x16xbf16>
    %50 = vector.extract_strided_slice %40 {offsets = [0, 2], sizes = [16, 288], strides = [1, 1]} : vector<16x342xbf16> to vector<16x288xbf16>
    %cst_31 = arith.constant dense<0.000000e+00> : vector<16x288xf32>
    %51 = tpu.matmul %49, %50, %cst_31 {dimension_numbers = #tpu.dot_dimension_numbers<[1], [0], [0], [1], [0, 0, 1, 1], [], []>} : vector<16x16xbf16>, vector<16x288xbf16>, vector<16x288xf32> -> vector<16x288xf32>
    %52 = arith.addf %48, %51 : vector<16x288xf32>
    %c0_32 = arith.constant 0 : index
    %c192 = arith.constant 192 : index
    %53 = vector.load %arg8[%c0_32, %c192] : memref<16x864xbf16, #tpu.memory_space<vmem>>, vector<16x16xbf16>
    %54 = vector.extract_strided_slice %40 {offsets = [0, 18], sizes = [16, 288], strides = [1, 1]} : vector<16x342xbf16> to vector<16x288xbf16>
    %cst_33 = arith.constant dense<0.000000e+00> : vector<16x288xf32>
    %55 = tpu.matmul %53, %54, %cst_33 {dimension_numbers = #tpu.dot_dimension_numbers<[1], [0], [0], [1], [0, 0, 1, 1], [], []>} : vector<16x16xbf16>, vector<16x288xbf16>, vector<16x288xf32> -> vector<16x288xf32>
    %56 = arith.addf %52, %55 : vector<16x288xf32>
    %c0_34 = arith.constant 0 : index
    %c208 = arith.constant 208 : index
    %57 = vector.load %arg8[%c0_34, %c208] : memref<16x864xbf16, #tpu.memory_space<vmem>>, vector<16x16xbf16>
    %58 = vector.extract_strided_slice %40 {offsets = [0, 19], sizes = [16, 288], strides = [1, 1]} : vector<16x342xbf16> to vector<16x288xbf16>
    %cst_35 = arith.constant dense<0.000000e+00> : vector<16x288xf32>
    %59 = tpu.matmul %57, %58, %cst_35 {dimension_numbers = #tpu.dot_dimension_numbers<[1], [0], [0], [1], [0, 0, 1, 1], [], []>} : vector<16x16xbf16>, vector<16x288xbf16>, vector<16x288xf32> -> vector<16x288xf32>
    %60 = arith.addf %56, %59 : vector<16x288xf32>
    %c0_36 = arith.constant 0 : index
    %c224 = arith.constant 224 : index
    %61 = vector.load %arg8[%c0_36, %c224] : memref<16x864xbf16, #tpu.memory_space<vmem>>, vector<16x16xbf16>
    %62 = vector.extract_strided_slice %40 {offsets = [0, 20], sizes = [16, 288], strides = [1, 1]} : vector<16x342xbf16> to vector<16x288xbf16>
    %cst_37 = arith.constant dense<0.000000e+00> : vector<16x288xf32>
    %63 = tpu.matmul %61, %62, %cst_37 {dimension_numbers = #tpu.dot_dimension_numbers<[1], [0], [0], [1], [0, 0, 1, 1], [], []>} : vector<16x16xbf16>, vector<16x288xbf16>, vector<16x288xf32> -> vector<16x288xf32>
    %64 = arith.addf %60, %63 : vector<16x288xf32>
    %c0_38 = arith.constant 0 : index
    %c240 = arith.constant 240 : index
    %65 = vector.load %arg8[%c0_38, %c240] : memref<16x864xbf16, #tpu.memory_space<vmem>>, vector<16x16xbf16>
    %66 = vector.extract_strided_slice %40 {offsets = [0, 36], sizes = [16, 288], strides = [1, 1]} : vector<16x342xbf16> to vector<16x288xbf16>
    %cst_39 = arith.constant dense<0.000000e+00> : vector<16x288xf32>
    %67 = tpu.matmul %65, %66, %cst_39 {dimension_numbers = #tpu.dot_dimension_numbers<[1], [0], [0], [1], [0, 0, 1, 1], [], []>} : vector<16x16xbf16>, vector<16x288xbf16>, vector<16x288xf32> -> vector<16x288xf32>
    %68 = arith.addf %64, %67 : vector<16x288xf32>
    %c0_40 = arith.constant 0 : index
    %c256 = arith.constant 256 : index
    %69 = vector.load %arg8[%c0_40, %c256] : memref<16x864xbf16, #tpu.memory_space<vmem>>, vector<16x16xbf16>
    %70 = vector.extract_strided_slice %40 {offsets = [0, 37], sizes = [16, 288], strides = [1, 1]} : vector<16x342xbf16> to vector<16x288xbf16>
    %cst_41 = arith.constant dense<0.000000e+00> : vector<16x288xf32>
    %71 = tpu.matmul %69, %70, %cst_41 {dimension_numbers = #tpu.dot_dimension_numbers<[1], [0], [0], [1], [0, 0, 1, 1], [], []>} : vector<16x16xbf16>, vector<16x288xbf16>, vector<16x288xf32> -> vector<16x288xf32>
    %72 = arith.addf %68, %71 : vector<16x288xf32>
    %c0_42 = arith.constant 0 : index
    %c272 = arith.constant 272 : index
    %73 = vector.load %arg8[%c0_42, %c272] : memref<16x864xbf16, #tpu.memory_space<vmem>>, vector<16x16xbf16>
    %74 = vector.extract_strided_slice %40 {offsets = [0, 38], sizes = [16, 288], strides = [1, 1]} : vector<16x342xbf16> to vector<16x288xbf16>
    %cst_43 = arith.constant dense<0.000000e+00> : vector<16x288xf32>
    %75 = tpu.matmul %73, %74, %cst_43 {dimension_numbers = #tpu.dot_dimension_numbers<[1], [0], [0], [1], [0, 0, 1, 1], [], []>} : vector<16x16xbf16>, vector<16x288xbf16>, vector<16x288xf32> -> vector<16x288xf32>
    %76 = arith.addf %72, %75 : vector<16x288xf32>
    %c0_44 = arith.constant 0 : index
    %c0_45 = arith.constant 0 : index
    %c0_46 = arith.constant 0 : index
    %c0_47 = arith.constant 0 : index
    %77 = vector.load %arg4[%c0_44, %c0_45, %c0_46, %c0_47] : memref<1x1x16x342xbf16, #tpu.memory_space<vmem>>, vector<1x1x16x342xbf16>
    %78 = vector.shape_cast %77 : vector<1x1x16x342xbf16> to vector<16x342xbf16>
    %c0_48 = arith.constant 0 : index
    %c288 = arith.constant 288 : index
    %79 = vector.load %arg8[%c0_48, %c288] : memref<16x864xbf16, #tpu.memory_space<vmem>>, vector<16x16xbf16>
    %80 = vector.extract_strided_slice %78 {offsets = [0, 0], sizes = [16, 288], strides = [1, 1]} : vector<16x342xbf16> to vector<16x288xbf16>
    %cst_49 = arith.constant dense<0.000000e+00> : vector<16x288xf32>
    %81 = tpu.matmul %79, %80, %cst_49 {dimension_numbers = #tpu.dot_dimension_numbers<[1], [0], [0], [1], [0, 0, 1, 1], [], []>} : vector<16x16xbf16>, vector<16x288xbf16>, vector<16x288xf32> -> vector<16x288xf32>
    %82 = arith.addf %76, %81 : vector<16x288xf32>
    %c0_50 = arith.constant 0 : index
    %c304 = arith.constant 304 : index
    %83 = vector.load %arg8[%c0_50, %c304] : memref<16x864xbf16, #tpu.memory_space<vmem>>, vector<16x16xbf16>
    %84 = vector.extract_strided_slice %78 {offsets = [0, 1], sizes = [16, 288], strides = [1, 1]} : vector<16x342xbf16> to vector<16x288xbf16>
    %cst_51 = arith.constant dense<0.000000e+00> : vector<16x288xf32>
    %85 = tpu.matmul %83, %84, %cst_51 {dimension_numbers = #tpu.dot_dimension_numbers<[1], [0], [0], [1], [0, 0, 1, 1], [], []>} : vector<16x16xbf16>, vector<16x288xbf16>, vector<16x288xf32> -> vector<16x288xf32>
    %86 = arith.addf %82, %85 : vector<16x288xf32>
    %c0_52 = arith.constant 0 : index
    %c320 = arith.constant 320 : index
    %87 = vector.load %arg8[%c0_52, %c320] : memref<16x864xbf16, #tpu.memory_space<vmem>>, vector<16x16xbf16>
    %88 = vector.extract_strided_slice %78 {offsets = [0, 2], sizes = [16, 288], strides = [1, 1]} : vector<16x342xbf16> to vector<16x288xbf16>
    %cst_53 = arith.constant dense<0.000000e+00> : vector<16x288xf32>
    %89 = tpu.matmul %87, %88, %cst_53 {dimension_numbers = #tpu.dot_dimension_numbers<[1], [0], [0], [1], [0, 0, 1, 1], [], []>} : vector<16x16xbf16>, vector<16x288xbf16>, vector<16x288xf32> -> vector<16x288xf32>
    %90 = arith.addf %86, %89 : vector<16x288xf32>
    %c0_54 = arith.constant 0 : index
    %c336 = arith.constant 336 : index
    %91 = vector.load %arg8[%c0_54, %c336] : memref<16x864xbf16, #tpu.memory_space<vmem>>, vector<16x16xbf16>
    %92 = vector.extract_strided_slice %78 {offsets = [0, 18], sizes = [16, 288], strides = [1, 1]} : vector<16x342xbf16> to vector<16x288xbf16>
    %cst_55 = arith.constant dense<0.000000e+00> : vector<16x288xf32>
    %93 = tpu.matmul %91, %92, %cst_55 {dimension_numbers = #tpu.dot_dimension_numbers<[1], [0], [0], [1], [0, 0, 1, 1], [], []>} : vector<16x16xbf16>, vector<16x288xbf16>, vector<16x288xf32> -> vector<16x288xf32>
    %94 = arith.addf %90, %93 : vector<16x288xf32>
    %c0_56 = arith.constant 0 : index
    %c352 = arith.constant 352 : index
    %95 = vector.load %arg8[%c0_56, %c352] : memref<16x864xbf16, #tpu.memory_space<vmem>>, vector<16x16xbf16>
    %96 = vector.extract_strided_slice %78 {offsets = [0, 19], sizes = [16, 288], strides = [1, 1]} : vector<16x342xbf16> to vector<16x288xbf16>
    %cst_57 = arith.constant dense<0.000000e+00> : vector<16x288xf32>
    %97 = tpu.matmul %95, %96, %cst_57 {dimension_numbers = #tpu.dot_dimension_numbers<[1], [0], [0], [1], [0, 0, 1, 1], [], []>} : vector<16x16xbf16>, vector<16x288xbf16>, vector<16x288xf32> -> vector<16x288xf32>
    %98 = arith.addf %94, %97 : vector<16x288xf32>
    %c0_58 = arith.constant 0 : index
    %c368 = arith.constant 368 : index
    %99 = vector.load %arg8[%c0_58, %c368] : memref<16x864xbf16, #tpu.memory_space<vmem>>, vector<16x16xbf16>
    %100 = vector.extract_strided_slice %78 {offsets = [0, 20], sizes = [16, 288], strides = [1, 1]} : vector<16x342xbf16> to vector<16x288xbf16>
    %cst_59 = arith.constant dense<0.000000e+00> : vector<16x288xf32>
    %101 = tpu.matmul %99, %100, %cst_59 {dimension_numbers = #tpu.dot_dimension_numbers<[1], [0], [0], [1], [0, 0, 1, 1], [], []>} : vector<16x16xbf16>, vector<16x288xbf16>, vector<16x288xf32> -> vector<16x288xf32>
    %102 = arith.addf %98, %101 : vector<16x288xf32>
    %c0_60 = arith.constant 0 : index
    %c384 = arith.constant 384 : index
    %103 = vector.load %arg8[%c0_60, %c384] : memref<16x864xbf16, #tpu.memory_space<vmem>>, vector<16x16xbf16>
    %104 = vector.extract_strided_slice %78 {offsets = [0, 36], sizes = [16, 288], strides = [1, 1]} : vector<16x342xbf16> to vector<16x288xbf16>
    %cst_61 = arith.constant dense<0.000000e+00> : vector<16x288xf32>
    %105 = tpu.matmul %103, %104, %cst_61 {dimension_numbers = #tpu.dot_dimension_numbers<[1], [0], [0], [1], [0, 0, 1, 1], [], []>} : vector<16x16xbf16>, vector<16x288xbf16>, vector<16x288xf32> -> vector<16x288xf32>
    %106 = arith.addf %102, %105 : vector<16x288xf32>
    %c0_62 = arith.constant 0 : index
    %c400 = arith.constant 400 : index
    %107 = vector.load %arg8[%c0_62, %c400] : memref<16x864xbf16, #tpu.memory_space<vmem>>, vector<16x16xbf16>
    %108 = vector.extract_strided_slice %78 {offsets = [0, 37], sizes = [16, 288], strides = [1, 1]} : vector<16x342xbf16> to vector<16x288xbf16>
    %cst_63 = arith.constant dense<0.000000e+00> : vector<16x288xf32>
    %109 = tpu.matmul %107, %108, %cst_63 {dimension_numbers = #tpu.dot_dimension_numbers<[1], [0], [0], [1], [0, 0, 1, 1], [], []>} : vector<16x16xbf16>, vector<16x288xbf16>, vector<16x288xf32> -> vector<16x288xf32>
    %110 = arith.addf %106, %109 : vector<16x288xf32>
    %c0_64 = arith.constant 0 : index
    %c416 = arith.constant 416 : index
    %111 = vector.load %arg8[%c0_64, %c416] : memref<16x864xbf16, #tpu.memory_space<vmem>>, vector<16x16xbf16>
    %112 = vector.extract_strided_slice %78 {offsets = [0, 38], sizes = [16, 288], strides = [1, 1]} : vector<16x342xbf16> to vector<16x288xbf16>
    %cst_65 = arith.constant dense<0.000000e+00> : vector<16x288xf32>
    %113 = tpu.matmul %111, %112, %cst_65 {dimension_numbers = #tpu.dot_dimension_numbers<[1], [0], [0], [1], [0, 0, 1, 1], [], []>} : vector<16x16xbf16>, vector<16x288xbf16>, vector<16x288xf32> -> vector<16x288xf32>
    %114 = arith.addf %110, %113 : vector<16x288xf32>
    %c0_66 = arith.constant 0 : index
    %c0_67 = arith.constant 0 : index
    %c0_68 = arith.constant 0 : index
    %c0_69 = arith.constant 0 : index
    %115 = vector.load %arg5[%c0_66, %c0_67, %c0_68, %c0_69] : memref<1x1x16x342xbf16, #tpu.memory_space<vmem>>, vector<1x1x16x342xbf16>
    %116 = vector.shape_cast %115 : vector<1x1x16x342xbf16> to vector<16x342xbf16>
    %c0_70 = arith.constant 0 : index
    %c432 = arith.constant 432 : index
    %117 = vector.load %arg8[%c0_70, %c432] : memref<16x864xbf16, #tpu.memory_space<vmem>>, vector<16x16xbf16>
    %118 = vector.extract_strided_slice %116 {offsets = [0, 0], sizes = [16, 288], strides = [1, 1]} : vector<16x342xbf16> to vector<16x288xbf16>
    %cst_71 = arith.constant dense<0.000000e+00> : vector<16x288xf32>
    %119 = tpu.matmul %117, %118, %cst_71 {dimension_numbers = #tpu.dot_dimension_numbers<[1], [0], [0], [1], [0, 0, 1, 1], [], []>} : vector<16x16xbf16>, vector<16x288xbf16>, vector<16x288xf32> -> vector<16x288xf32>
    %120 = arith.addf %114, %119 : vector<16x288xf32>
    %c0_72 = arith.constant 0 : index
    %c448 = arith.constant 448 : index
    %121 = vector.load %arg8[%c0_72, %c448] : memref<16x864xbf16, #tpu.memory_space<vmem>>, vector<16x16xbf16>
    %122 = vector.extract_strided_slice %116 {offsets = [0, 1], sizes = [16, 288], strides = [1, 1]} : vector<16x342xbf16> to vector<16x288xbf16>
    %cst_73 = arith.constant dense<0.000000e+00> : vector<16x288xf32>
    %123 = tpu.matmul %121, %122, %cst_73 {dimension_numbers = #tpu.dot_dimension_numbers<[1], [0], [0], [1], [0, 0, 1, 1], [], []>} : vector<16x16xbf16>, vector<16x288xbf16>, vector<16x288xf32> -> vector<16x288xf32>
    %124 = arith.addf %120, %123 : vector<16x288xf32>
    %c0_74 = arith.constant 0 : index
    %c464 = arith.constant 464 : index
    %125 = vector.load %arg8[%c0_74, %c464] : memref<16x864xbf16, #tpu.memory_space<vmem>>, vector<16x16xbf16>
    %126 = vector.extract_strided_slice %116 {offsets = [0, 2], sizes = [16, 288], strides = [1, 1]} : vector<16x342xbf16> to vector<16x288xbf16>
    %cst_75 = arith.constant dense<0.000000e+00> : vector<16x288xf32>
    %127 = tpu.matmul %125, %126, %cst_75 {dimension_numbers = #tpu.dot_dimension_numbers<[1], [0], [0], [1], [0, 0, 1, 1], [], []>} : vector<16x16xbf16>, vector<16x288xbf16>, vector<16x288xf32> -> vector<16x288xf32>
    %128 = arith.addf %124, %127 : vector<16x288xf32>
    %c0_76 = arith.constant 0 : index
    %c480 = arith.constant 480 : index
    %129 = vector.load %arg8[%c0_76, %c480] : memref<16x864xbf16, #tpu.memory_space<vmem>>, vector<16x16xbf16>
    %130 = vector.extract_strided_slice %116 {offsets = [0, 18], sizes = [16, 288], strides = [1, 1]} : vector<16x342xbf16> to vector<16x288xbf16>
    %cst_77 = arith.constant dense<0.000000e+00> : vector<16x288xf32>
    %131 = tpu.matmul %129, %130, %cst_77 {dimension_numbers = #tpu.dot_dimension_numbers<[1], [0], [0], [1], [0, 0, 1, 1], [], []>} : vector<16x16xbf16>, vector<16x288xbf16>, vector<16x288xf32> -> vector<16x288xf32>
    %132 = arith.addf %128, %131 : vector<16x288xf32>
    %c0_78 = arith.constant 0 : index
    %c496 = arith.constant 496 : index
    %133 = vector.load %arg8[%c0_78, %c496] : memref<16x864xbf16, #tpu.memory_space<vmem>>, vector<16x16xbf16>
    %134 = vector.extract_strided_slice %116 {offsets = [0, 19], sizes = [16, 288], strides = [1, 1]} : vector<16x342xbf16> to vector<16x288xbf16>
    %cst_79 = arith.constant dense<0.000000e+00> : vector<16x288xf32>
    %135 = tpu.matmul %133, %134, %cst_79 {dimension_numbers = #tpu.dot_dimension_numbers<[1], [0], [0], [1], [0, 0, 1, 1], [], []>} : vector<16x16xbf16>, vector<16x288xbf16>, vector<16x288xf32> -> vector<16x288xf32>
    %136 = arith.addf %132, %135 : vector<16x288xf32>
    %c0_80 = arith.constant 0 : index
    %c512 = arith.constant 512 : index
    %137 = vector.load %arg8[%c0_80, %c512] : memref<16x864xbf16, #tpu.memory_space<vmem>>, vector<16x16xbf16>
    %138 = vector.extract_strided_slice %116 {offsets = [0, 20], sizes = [16, 288], strides = [1, 1]} : vector<16x342xbf16> to vector<16x288xbf16>
    %cst_81 = arith.constant dense<0.000000e+00> : vector<16x288xf32>
    %139 = tpu.matmul %137, %138, %cst_81 {dimension_numbers = #tpu.dot_dimension_numbers<[1], [0], [0], [1], [0, 0, 1, 1], [], []>} : vector<16x16xbf16>, vector<16x288xbf16>, vector<16x288xf32> -> vector<16x288xf32>
    %140 = arith.addf %136, %139 : vector<16x288xf32>
    %c0_82 = arith.constant 0 : index
    %c528 = arith.constant 528 : index
    %141 = vector.load %arg8[%c0_82, %c528] : memref<16x864xbf16, #tpu.memory_space<vmem>>, vector<16x16xbf16>
    %142 = vector.extract_strided_slice %116 {offsets = [0, 36], sizes = [16, 288], strides = [1, 1]} : vector<16x342xbf16> to vector<16x288xbf16>
    %cst_83 = arith.constant dense<0.000000e+00> : vector<16x288xf32>
    %143 = tpu.matmul %141, %142, %cst_83 {dimension_numbers = #tpu.dot_dimension_numbers<[1], [0], [0], [1], [0, 0, 1, 1], [], []>} : vector<16x16xbf16>, vector<16x288xbf16>, vector<16x288xf32> -> vector<16x288xf32>
    %144 = arith.addf %140, %143 : vector<16x288xf32>
    %c0_84 = arith.constant 0 : index
    %c544 = arith.constant 544 : index
    %145 = vector.load %arg8[%c0_84, %c544] : memref<16x864xbf16, #tpu.memory_space<vmem>>, vector<16x16xbf16>
    %146 = vector.extract_strided_slice %116 {offsets = [0, 37], sizes = [16, 288], strides = [1, 1]} : vector<16x342xbf16> to vector<16x288xbf16>
    %cst_85 = arith.constant dense<0.000000e+00> : vector<16x288xf32>
    %147 = tpu.matmul %145, %146, %cst_85 {dimension_numbers = #tpu.dot_dimension_numbers<[1], [0], [0], [1], [0, 0, 1, 1], [], []>} : vector<16x16xbf16>, vector<16x288xbf16>, vector<16x288xf32> -> vector<16x288xf32>
    %148 = arith.addf %144, %147 : vector<16x288xf32>
    %c0_86 = arith.constant 0 : index
    %c560 = arith.constant 560 : index
    %149 = vector.load %arg8[%c0_86, %c560] : memref<16x864xbf16, #tpu.memory_space<vmem>>, vector<16x16xbf16>
    %150 = vector.extract_strided_slice %116 {offsets = [0, 38], sizes = [16, 288], strides = [1, 1]} : vector<16x342xbf16> to vector<16x288xbf16>
    %cst_87 = arith.constant dense<0.000000e+00> : vector<16x288xf32>
    %151 = tpu.matmul %149, %150, %cst_87 {dimension_numbers = #tpu.dot_dimension_numbers<[1], [0], [0], [1], [0, 0, 1, 1], [], []>} : vector<16x16xbf16>, vector<16x288xbf16>, vector<16x288xf32> -> vector<16x288xf32>
    %152 = arith.addf %148, %151 : vector<16x288xf32>
    %c0_88 = arith.constant 0 : index
    %c0_89 = arith.constant 0 : index
    %c0_90 = arith.constant 0 : index
    %c0_91 = arith.constant 0 : index
    %153 = vector.load %arg6[%c0_88, %c0_89, %c0_90, %c0_91] : memref<1x1x16x342xbf16, #tpu.memory_space<vmem>>, vector<1x1x16x342xbf16>
    %154 = vector.shape_cast %153 : vector<1x1x16x342xbf16> to vector<16x342xbf16>
    %c0_92 = arith.constant 0 : index
    %c576 = arith.constant 576 : index
    %155 = vector.load %arg8[%c0_92, %c576] : memref<16x864xbf16, #tpu.memory_space<vmem>>, vector<16x16xbf16>
    %156 = vector.extract_strided_slice %154 {offsets = [0, 0], sizes = [16, 288], strides = [1, 1]} : vector<16x342xbf16> to vector<16x288xbf16>
    %cst_93 = arith.constant dense<0.000000e+00> : vector<16x288xf32>
    %157 = tpu.matmul %155, %156, %cst_93 {dimension_numbers = #tpu.dot_dimension_numbers<[1], [0], [0], [1], [0, 0, 1, 1], [], []>} : vector<16x16xbf16>, vector<16x288xbf16>, vector<16x288xf32> -> vector<16x288xf32>
    %158 = arith.addf %152, %157 : vector<16x288xf32>
    %c0_94 = arith.constant 0 : index
    %c592 = arith.constant 592 : index
    %159 = vector.load %arg8[%c0_94, %c592] : memref<16x864xbf16, #tpu.memory_space<vmem>>, vector<16x16xbf16>
    %160 = vector.extract_strided_slice %154 {offsets = [0, 1], sizes = [16, 288], strides = [1, 1]} : vector<16x342xbf16> to vector<16x288xbf16>
    %cst_95 = arith.constant dense<0.000000e+00> : vector<16x288xf32>
    %161 = tpu.matmul %159, %160, %cst_95 {dimension_numbers = #tpu.dot_dimension_numbers<[1], [0], [0], [1], [0, 0, 1, 1], [], []>} : vector<16x16xbf16>, vector<16x288xbf16>, vector<16x288xf32> -> vector<16x288xf32>
    %162 = arith.addf %158, %161 : vector<16x288xf32>
    %c0_96 = arith.constant 0 : index
    %c608 = arith.constant 608 : index
    %163 = vector.load %arg8[%c0_96, %c608] : memref<16x864xbf16, #tpu.memory_space<vmem>>, vector<16x16xbf16>
    %164 = vector.extract_strided_slice %154 {offsets = [0, 2], sizes = [16, 288], strides = [1, 1]} : vector<16x342xbf16> to vector<16x288xbf16>
    %cst_97 = arith.constant dense<0.000000e+00> : vector<16x288xf32>
    %165 = tpu.matmul %163, %164, %cst_97 {dimension_numbers = #tpu.dot_dimension_numbers<[1], [0], [0], [1], [0, 0, 1, 1], [], []>} : vector<16x16xbf16>, vector<16x288xbf16>, vector<16x288xf32> -> vector<16x288xf32>
    %166 = arith.addf %162, %165 : vector<16x288xf32>
    %c0_98 = arith.constant 0 : index
    %c624 = arith.constant 624 : index
    %167 = vector.load %arg8[%c0_98, %c624] : memref<16x864xbf16, #tpu.memory_space<vmem>>, vector<16x16xbf16>
    %168 = vector.extract_strided_slice %154 {offsets = [0, 18], sizes = [16, 288], strides = [1, 1]} : vector<16x342xbf16> to vector<16x288xbf16>
    %cst_99 = arith.constant dense<0.000000e+00> : vector<16x288xf32>
    %169 = tpu.matmul %167, %168, %cst_99 {dimension_numbers = #tpu.dot_dimension_numbers<[1], [0], [0], [1], [0, 0, 1, 1], [], []>} : vector<16x16xbf16>, vector<16x288xbf16>, vector<16x288xf32> -> vector<16x288xf32>
    %170 = arith.addf %166, %169 : vector<16x288xf32>
    %c0_100 = arith.constant 0 : index
    %c640 = arith.constant 640 : index
    %171 = vector.load %arg8[%c0_100, %c640] : memref<16x864xbf16, #tpu.memory_space<vmem>>, vector<16x16xbf16>
    %172 = vector.extract_strided_slice %154 {offsets = [0, 19], sizes = [16, 288], strides = [1, 1]} : vector<16x342xbf16> to vector<16x288xbf16>
    %cst_101 = arith.constant dense<0.000000e+00> : vector<16x288xf32>
    %173 = tpu.matmul %171, %172, %cst_101 {dimension_numbers = #tpu.dot_dimension_numbers<[1], [0], [0], [1], [0, 0, 1, 1], [], []>} : vector<16x16xbf16>, vector<16x288xbf16>, vector<16x288xf32> -> vector<16x288xf32>
    %174 = arith.addf %170, %173 : vector<16x288xf32>
    %c0_102 = arith.constant 0 : index
    %c656 = arith.constant 656 : index
    %175 = vector.load %arg8[%c0_102, %c656] : memref<16x864xbf16, #tpu.memory_space<vmem>>, vector<16x16xbf16>
    %176 = vector.extract_strided_slice %154 {offsets = [0, 20], sizes = [16, 288], strides = [1, 1]} : vector<16x342xbf16> to vector<16x288xbf16>
    %cst_103 = arith.constant dense<0.000000e+00> : vector<16x288xf32>
    %177 = tpu.matmul %175, %176, %cst_103 {dimension_numbers = #tpu.dot_dimension_numbers<[1], [0], [0], [1], [0, 0, 1, 1], [], []>} : vector<16x16xbf16>, vector<16x288xbf16>, vector<16x288xf32> -> vector<16x288xf32>
    %178 = arith.addf %174, %177 : vector<16x288xf32>
    %c0_104 = arith.constant 0 : index
    %c672 = arith.constant 672 : index
    %179 = vector.load %arg8[%c0_104, %c672] : memref<16x864xbf16, #tpu.memory_space<vmem>>, vector<16x16xbf16>
    %180 = vector.extract_strided_slice %154 {offsets = [0, 36], sizes = [16, 288], strides = [1, 1]} : vector<16x342xbf16> to vector<16x288xbf16>
    %cst_105 = arith.constant dense<0.000000e+00> : vector<16x288xf32>
    %181 = tpu.matmul %179, %180, %cst_105 {dimension_numbers = #tpu.dot_dimension_numbers<[1], [0], [0], [1], [0, 0, 1, 1], [], []>} : vector<16x16xbf16>, vector<16x288xbf16>, vector<16x288xf32> -> vector<16x288xf32>
    %182 = arith.addf %178, %181 : vector<16x288xf32>
    %c0_106 = arith.constant 0 : index
    %c688 = arith.constant 688 : index
    %183 = vector.load %arg8[%c0_106, %c688] : memref<16x864xbf16, #tpu.memory_space<vmem>>, vector<16x16xbf16>
    %184 = vector.extract_strided_slice %154 {offsets = [0, 37], sizes = [16, 288], strides = [1, 1]} : vector<16x342xbf16> to vector<16x288xbf16>
    %cst_107 = arith.constant dense<0.000000e+00> : vector<16x288xf32>
    %185 = tpu.matmul %183, %184, %cst_107 {dimension_numbers = #tpu.dot_dimension_numbers<[1], [0], [0], [1], [0, 0, 1, 1], [], []>} : vector<16x16xbf16>, vector<16x288xbf16>, vector<16x288xf32> -> vector<16x288xf32>
    %186 = arith.addf %182, %185 : vector<16x288xf32>
    %c0_108 = arith.constant 0 : index
    %c704 = arith.constant 704 : index
    %187 = vector.load %arg8[%c0_108, %c704] : memref<16x864xbf16, #tpu.memory_space<vmem>>, vector<16x16xbf16>
    %188 = vector.extract_strided_slice %154 {offsets = [0, 38], sizes = [16, 288], strides = [1, 1]} : vector<16x342xbf16> to vector<16x288xbf16>
    %cst_109 = arith.constant dense<0.000000e+00> : vector<16x288xf32>
    %189 = tpu.matmul %187, %188, %cst_109 {dimension_numbers = #tpu.dot_dimension_numbers<[1], [0], [0], [1], [0, 0, 1, 1], [], []>} : vector<16x16xbf16>, vector<16x288xbf16>, vector<16x288xf32> -> vector<16x288xf32>
    %190 = arith.addf %186, %189 : vector<16x288xf32>
    %c0_110 = arith.constant 0 : index
    %c0_111 = arith.constant 0 : index
    %c0_112 = arith.constant 0 : index
    %c0_113 = arith.constant 0 : index
    %191 = vector.load %arg7[%c0_110, %c0_111, %c0_112, %c0_113] : memref<1x1x16x342xbf16, #tpu.memory_space<vmem>>, vector<1x1x16x342xbf16>
    %192 = vector.shape_cast %191 : vector<1x1x16x342xbf16> to vector<16x342xbf16>
    %c0_114 = arith.constant 0 : index
    %c720 = arith.constant 720 : index
    %193 = vector.load %arg8[%c0_114, %c720] : memref<16x864xbf16, #tpu.memory_space<vmem>>, vector<16x16xbf16>
    %194 = vector.extract_strided_slice %192 {offsets = [0, 0], sizes = [16, 288], strides = [1, 1]} : vector<16x342xbf16> to vector<16x288xbf16>
    %cst_115 = arith.constant dense<0.000000e+00> : vector<16x288xf32>
    %195 = tpu.matmul %193, %194, %cst_115 {dimension_numbers = #tpu.dot_dimension_numbers<[1], [0], [0], [1], [0, 0, 1, 1], [], []>} : vector<16x16xbf16>, vector<16x288xbf16>, vector<16x288xf32> -> vector<16x288xf32>
    %196 = arith.addf %190, %195 : vector<16x288xf32>
    %c0_116 = arith.constant 0 : index
    %c736 = arith.constant 736 : index
    %197 = vector.load %arg8[%c0_116, %c736] : memref<16x864xbf16, #tpu.memory_space<vmem>>, vector<16x16xbf16>
    %198 = vector.extract_strided_slice %192 {offsets = [0, 1], sizes = [16, 288], strides = [1, 1]} : vector<16x342xbf16> to vector<16x288xbf16>
    %cst_117 = arith.constant dense<0.000000e+00> : vector<16x288xf32>
    %199 = tpu.matmul %197, %198, %cst_117 {dimension_numbers = #tpu.dot_dimension_numbers<[1], [0], [0], [1], [0, 0, 1, 1], [], []>} : vector<16x16xbf16>, vector<16x288xbf16>, vector<16x288xf32> -> vector<16x288xf32>
    %200 = arith.addf %196, %199 : vector<16x288xf32>
    %c0_118 = arith.constant 0 : index
    %c752 = arith.constant 752 : index
    %201 = vector.load %arg8[%c0_118, %c752] : memref<16x864xbf16, #tpu.memory_space<vmem>>, vector<16x16xbf16>
    %202 = vector.extract_strided_slice %192 {offsets = [0, 2], sizes = [16, 288], strides = [1, 1]} : vector<16x342xbf16> to vector<16x288xbf16>
    %cst_119 = arith.constant dense<0.000000e+00> : vector<16x288xf32>
    %203 = tpu.matmul %201, %202, %cst_119 {dimension_numbers = #tpu.dot_dimension_numbers<[1], [0], [0], [1], [0, 0, 1, 1], [], []>} : vector<16x16xbf16>, vector<16x288xbf16>, vector<16x288xf32> -> vector<16x288xf32>
    %204 = arith.addf %200, %203 : vector<16x288xf32>
    %c0_120 = arith.constant 0 : index
    %c768 = arith.constant 768 : index
    %205 = vector.load %arg8[%c0_120, %c768] : memref<16x864xbf16, #tpu.memory_space<vmem>>, vector<16x16xbf16>
    %206 = vector.extract_strided_slice %192 {offsets = [0, 18], sizes = [16, 288], strides = [1, 1]} : vector<16x342xbf16> to vector<16x288xbf16>
    %cst_121 = arith.constant dense<0.000000e+00> : vector<16x288xf32>
    %207 = tpu.matmul %205, %206, %cst_121 {dimension_numbers = #tpu.dot_dimension_numbers<[1], [0], [0], [1], [0, 0, 1, 1], [], []>} : vector<16x16xbf16>, vector<16x288xbf16>, vector<16x288xf32> -> vector<16x288xf32>
    %208 = arith.addf %204, %207 : vector<16x288xf32>
    %c0_122 = arith.constant 0 : index
    %c784 = arith.constant 784 : index
    %209 = vector.load %arg8[%c0_122, %c784] : memref<16x864xbf16, #tpu.memory_space<vmem>>, vector<16x16xbf16>
    %210 = vector.extract_strided_slice %192 {offsets = [0, 19], sizes = [16, 288], strides = [1, 1]} : vector<16x342xbf16> to vector<16x288xbf16>
    %cst_123 = arith.constant dense<0.000000e+00> : vector<16x288xf32>
    %211 = tpu.matmul %209, %210, %cst_123 {dimension_numbers = #tpu.dot_dimension_numbers<[1], [0], [0], [1], [0, 0, 1, 1], [], []>} : vector<16x16xbf16>, vector<16x288xbf16>, vector<16x288xf32> -> vector<16x288xf32>
    %212 = arith.addf %208, %211 : vector<16x288xf32>
    %c0_124 = arith.constant 0 : index
    %c800 = arith.constant 800 : index
    %213 = vector.load %arg8[%c0_124, %c800] : memref<16x864xbf16, #tpu.memory_space<vmem>>, vector<16x16xbf16>
    %214 = vector.extract_strided_slice %192 {offsets = [0, 20], sizes = [16, 288], strides = [1, 1]} : vector<16x342xbf16> to vector<16x288xbf16>
    %cst_125 = arith.constant dense<0.000000e+00> : vector<16x288xf32>
    %215 = tpu.matmul %213, %214, %cst_125 {dimension_numbers = #tpu.dot_dimension_numbers<[1], [0], [0], [1], [0, 0, 1, 1], [], []>} : vector<16x16xbf16>, vector<16x288xbf16>, vector<16x288xf32> -> vector<16x288xf32>
    %216 = arith.addf %212, %215 : vector<16x288xf32>
    %c0_126 = arith.constant 0 : index
    %c816 = arith.constant 816 : index
    %217 = vector.load %arg8[%c0_126, %c816] : memref<16x864xbf16, #tpu.memory_space<vmem>>, vector<16x16xbf16>
    %218 = vector.extract_strided_slice %192 {offsets = [0, 36], sizes = [16, 288], strides = [1, 1]} : vector<16x342xbf16> to vector<16x288xbf16>
    %cst_127 = arith.constant dense<0.000000e+00> : vector<16x288xf32>
    %219 = tpu.matmul %217, %218, %cst_127 {dimension_numbers = #tpu.dot_dimension_numbers<[1], [0], [0], [1], [0, 0, 1, 1], [], []>} : vector<16x16xbf16>, vector<16x288xbf16>, vector<16x288xf32> -> vector<16x288xf32>
    %220 = arith.addf %216, %219 : vector<16x288xf32>
    %c0_128 = arith.constant 0 : index
    %c832 = arith.constant 832 : index
    %221 = vector.load %arg8[%c0_128, %c832] : memref<16x864xbf16, #tpu.memory_space<vmem>>, vector<16x16xbf16>
    %222 = vector.extract_strided_slice %192 {offsets = [0, 37], sizes = [16, 288], strides = [1, 1]} : vector<16x342xbf16> to vector<16x288xbf16>
    %cst_129 = arith.constant dense<0.000000e+00> : vector<16x288xf32>
    %223 = tpu.matmul %221, %222, %cst_129 {dimension_numbers = #tpu.dot_dimension_numbers<[1], [0], [0], [1], [0, 0, 1, 1], [], []>} : vector<16x16xbf16>, vector<16x288xbf16>, vector<16x288xf32> -> vector<16x288xf32>
    %224 = arith.addf %220, %223 : vector<16x288xf32>
    %c0_130 = arith.constant 0 : index
    %c848 = arith.constant 848 : index
    %225 = vector.load %arg8[%c0_130, %c848] : memref<16x864xbf16, #tpu.memory_space<vmem>>, vector<16x16xbf16>
    %226 = vector.extract_strided_slice %192 {offsets = [0, 38], sizes = [16, 288], strides = [1, 1]} : vector<16x342xbf16> to vector<16x288xbf16>
    %cst_131 = arith.constant dense<0.000000e+00> : vector<16x288xf32>
    %227 = tpu.matmul %225, %226, %cst_131 {dimension_numbers = #tpu.dot_dimension_numbers<[1], [0], [0], [1], [0, 0, 1, 1], [], []>} : vector<16x16xbf16>, vector<16x288xbf16>, vector<16x288xf32> -> vector<16x288xf32>
    %228 = arith.addf %224, %227 : vector<16x288xf32>
    %229 = arith.truncf %228 : vector<16x288xf32> to vector<16x288xbf16>
    %c0_132 = arith.constant 0 : index
    %c0_133 = arith.constant 0 : index
    %c0_134 = arith.constant 0 : index
    %c0_135 = arith.constant 0 : index
    %230 = vector.load %arg10[%c0_132, %c0_133, %c0_134, %c0_135] : memref<1x1x16x288xbf16, #tpu.memory_space<vmem>>, vector<1x1x16x288xbf16>
    %231 = vector.shape_cast %230 : vector<1x1x16x288xbf16> to vector<16x288xbf16>
    %232 = vector.shape_cast %229 : vector<16x288xbf16> to vector<1x1x16x288xbf16>
    tpu.vector_store %arg10[%c0_132, %c0_133, %c0_134, %c0_135], %232 {strides = array<i32>} : memref<1x1x16x288xbf16, #tpu.memory_space<vmem>>, vector<1x1x16x288xbf16>,
    %c0_136 = arith.constant 0 : index
    %c0_137 = arith.constant 0 : index
    %233 = vector.load %arg9[%c0_136, %c0_137] : memref<1x288xf32, #tpu.memory_space<vmem>>, vector<1x288xf32>
    %234 = vector.broadcast %233 : vector<1x288xf32> to vector<16x288xf32>
    %235 = arith.mulf %228, %234 : vector<16x288xf32>
    %cst_138 = arith.constant dense<0.000000e+00> : vector<16xf32>
    %236 = vector.multi_reduction <add>, %235, %cst_138 [1] : vector<16x288xf32> to vector<16xf32>
    %237 = vector.shape_cast %236 : vector<16xf32> to vector<16x1xf32>
    %238 = arith.mulf %235, %228 : vector<16x288xf32>
    %cst_139 = arith.constant dense<0.000000e+00> : vector<16xf32>
    %239 = vector.multi_reduction <add>, %238, %cst_139 [1] : vector<16x288xf32> to vector<16xf32>
    %240 = vector.shape_cast %239 : vector<16xf32> to vector<16x1xf32>
    %c0_i32 = arith.constant 0 : i32
    %241 = arith.cmpi eq, %arg1, %c0_i32 : i32
    %242 = arith.extui %241 : i1 to i32
    %c0_i32_140 = arith.constant 0 : i32
    %243 = arith.cmpi ne, %242, %c0_i32_140 : i32
    scf.if %243 {
      %c0_143 = arith.constant 0 : index
      %c0_144 = arith.constant 0 : index
      %c0_145 = arith.constant 0 : index
      %247 = vector.load %arg11[%c0_143, %c0_144, %c0_145] : memref<1x16x2xf32, #tpu.memory_space<vmem>>, vector<1x16x1xf32>
      %248 = vector.shape_cast %247 : vector<1x16x1xf32> to vector<16x1xf32>
      %249 = vector.shape_cast %237 : vector<16x1xf32> to vector<1x16x1xf32>
      tpu.vector_store %arg11[%c0_143, %c0_144, %c0_145], %249 {strides = array<i32>} : memref<1x16x2xf32, #tpu.memory_space<vmem>>, vector<1x16x1xf32>,
      %c0_146 = arith.constant 0 : index
      %c0_147 = arith.constant 0 : index
      %c1 = arith.constant 1 : index
      %250 = vector.load %arg11[%c0_146, %c0_147, %c1] : memref<1x16x2xf32, #tpu.memory_space<vmem>>, vector<1x16x1xf32>
      %251 = vector.shape_cast %250 : vector<1x16x1xf32> to vector<16x1xf32>
      %252 = vector.shape_cast %240 : vector<16x1xf32> to vector<1x16x1xf32>
      tpu.vector_store %arg11[%c0_146, %c0_147, %c1], %252 {strides = array<i32>} : memref<1x16x2xf32, #tpu.memory_space<vmem>>, vector<1x16x1xf32>,
    } else {
    }
    %c0_i32_141 = arith.constant 0 : i32
    %244 = arith.cmpi sgt, %arg1, %c0_i32_141 : i32
    %245 = arith.extui %244 : i1 to i32
    %c0_i32_142 = arith.constant 0 : i32
    %246 = arith.cmpi ne, %245, %c0_i32_142 : i32
    scf.if %246 {
      %c0_143 = arith.constant 0 : index
      %c0_144 = arith.constant 0 : index
      %c0_145 = arith.constant 0 : index
      %247 = vector.load %arg11[%c0_143, %c0_144, %c0_145] : memref<1x16x2xf32, #tpu.memory_space<vmem>>, vector<1x16x1xf32>
      %248 = vector.shape_cast %247 : vector<1x16x1xf32> to vector<16x1xf32>
      %249 = arith.addf %248, %237 : vector<16x1xf32>
      %c0_146 = arith.constant 0 : index
      %c0_147 = arith.constant 0 : index
      %c0_148 = arith.constant 0 : index
      %250 = vector.load %arg11[%c0_146, %c0_147, %c0_148] : memref<1x16x2xf32, #tpu.memory_space<vmem>>, vector<1x16x1xf32>
      %251 = vector.shape_cast %250 : vector<1x16x1xf32> to vector<16x1xf32>
      %252 = vector.shape_cast %249 : vector<16x1xf32> to vector<1x16x1xf32>
      tpu.vector_store %arg11[%c0_146, %c0_147, %c0_148], %252 {strides = array<i32>} : memref<1x16x2xf32, #tpu.memory_space<vmem>>, vector<1x16x1xf32>,
      %c0_149 = arith.constant 0 : index
      %c0_150 = arith.constant 0 : index
      %c1 = arith.constant 1 : index
      %253 = vector.load %arg11[%c0_149, %c0_150, %c1] : memref<1x16x2xf32, #tpu.memory_space<vmem>>, vector<1x16x1xf32>
      %254 = vector.shape_cast %253 : vector<1x16x1xf32> to vector<16x1xf32>
      %255 = arith.addf %254, %240 : vector<16x1xf32>
      %c0_151 = arith.constant 0 : index
      %c0_152 = arith.constant 0 : index
      %c1_153 = arith.constant 1 : index
      %256 = vector.load %arg11[%c0_151, %c0_152, %c1_153] : memref<1x16x2xf32, #tpu.memory_space<vmem>>, vector<1x16x1xf32>
      %257 = vector.shape_cast %256 : vector<1x16x1xf32> to vector<16x1xf32>
      %258 = vector.shape_cast %255 : vector<16x1xf32> to vector<1x16x1xf32>
      tpu.vector_store %arg11[%c0_151, %c0_152, %c1_153], %258 {strides = array<i32>} : memref<1x16x2xf32, #tpu.memory_space<vmem>>, vector<1x16x1xf32>,
    } else {
    }
    return
  }
  func.func @transform_0(%arg0: i32, %arg1: i32) -> (i32, i32, i32, i32) {
    %c0_i32 = arith.constant 0 : i32
    %0 = arith.addi %arg1, %c0_i32 : i32
    %c0_i32_0 = arith.constant 0 : i32
    %c0_i32_1 = arith.constant 0 : i32
    %c0_i32_2 = arith.constant 0 : i32
    return %arg0, %0, %c0_i32_0, %c0_i32_1 : i32, i32, i32, i32
  }
  func.func @transform_1(%arg0: i32, %arg1: i32) -> (i32, i32, i32, i32) {
    %c1_i32 = arith.constant 1 : i32
    %0 = arith.addi %arg1, %c1_i32 : i32
    %c0_i32 = arith.constant 0 : i32
    %c0_i32_0 = arith.constant 0 : i32
    %c0_i32_1 = arith.constant 0 : i32
    return %arg0, %0, %c0_i32, %c0_i32_0 : i32, i32, i32, i32
  }
  func.func @transform_2(%arg0: i32, %arg1: i32) -> (i32, i32, i32, i32) {
    %c2_i32 = arith.constant 2 : i32
    %0 = arith.addi %arg1, %c2_i32 : i32
    %c0_i32 = arith.constant 0 : i32
    %c0_i32_0 = arith.constant 0 : i32
    %c0_i32_1 = arith.constant 0 : i32
    return %arg0, %0, %c0_i32, %c0_i32_0 : i32, i32, i32, i32
  }
  func.func @transform_3(%arg0: i32, %arg1: i32) -> (i32, i32, i32, i32) {
    %c0_i32 = arith.constant 0 : i32
    %0 = arith.addi %arg1, %c0_i32 : i32
    %c0_i32_0 = arith.constant 0 : i32
    %c0_i32_1 = arith.constant 0 : i32
    %c0_i32_2 = arith.constant 0 : i32
    return %arg0, %0, %c0_i32_0, %c0_i32_1 : i32, i32, i32, i32
  }
  func.func @transform_4(%arg0: i32, %arg1: i32) -> (i32, i32, i32, i32) {
    %c1_i32 = arith.constant 1 : i32
    %0 = arith.addi %arg1, %c1_i32 : i32
    %c0_i32 = arith.constant 0 : i32
    %c0_i32_0 = arith.constant 0 : i32
    %c0_i32_1 = arith.constant 0 : i32
    return %arg0, %0, %c0_i32, %c0_i32_0 : i32, i32, i32, i32
  }
  func.func @transform_5(%arg0: i32, %arg1: i32) -> (i32, i32, i32, i32) {
    %c2_i32 = arith.constant 2 : i32
    %0 = arith.addi %arg1, %c2_i32 : i32
    %c0_i32 = arith.constant 0 : i32
    %c0_i32_0 = arith.constant 0 : i32
    %c0_i32_1 = arith.constant 0 : i32
    return %arg0, %0, %c0_i32, %c0_i32_0 : i32, i32, i32, i32
  }
  func.func @transform_6(%arg0: i32, %arg1: i32) -> (i32, i32) {
    %c0_i32 = arith.constant 0 : i32
    %c0_i32_0 = arith.constant 0 : i32
    %c0_i32_1 = arith.constant 0 : i32
    return %c0_i32, %c0_i32_0 : i32, i32
  }
  func.func @transform_7(%arg0: i32, %arg1: i32) -> (i32, i32) {
    %c0_i32 = arith.constant 0 : i32
    %c0_i32_0 = arith.constant 0 : i32
    %c0_i32_1 = arith.constant 0 : i32
    return %c0_i32, %c0_i32_0 : i32, i32
  }
  func.func @transform_8(%arg0: i32, %arg1: i32) -> (i32, i32, i32, i32) {
    %c0_i32 = arith.constant 0 : i32
    %c0_i32_0 = arith.constant 0 : i32
    %c0_i32_1 = arith.constant 0 : i32
    return %arg0, %arg1, %c0_i32, %c0_i32_0 : i32, i32, i32, i32
  }
  func.func @transform_9(%arg0: i32, %arg1: i32) -> (i32, i32, i32) {
    %c0_i32 = arith.constant 0 : i32
    %c0_i32_0 = arith.constant 0 : i32
    %c0_i32_1 = arith.constant 0 : i32
    return %arg0, %c0_i32, %c0_i32_0 : i32, i32, i32
  }
}

module attributes {stable_mosaic.version = 11 : i64} {
  func.func @_norm_act_kernel(%arg0: i32, %arg1: i32, %arg2: memref<1x1x16x288xbf16, #tpu.memory_space<vmem>>, %arg3: memref<1x16x1xf32, #tpu.memory_space<vmem>>, %arg4: memref<1x16x1xf32, #tpu.memory_space<vmem>>, %arg5: memref<1x1x16x288xbf16, #tpu.memory_space<vmem>>) attributes {dimension_semantics = [#tpu.dimension_semantics<parallel>, #tpu.dimension_semantics<parallel>], iteration_bounds = array<i64: 2, 16>, scalar_prefetch = 0 : i64, scratch_operands = 0 : i64, tpu.core_type = #tpu.core_type<tc>, window_params = [{transform_indices = @transform_0, window_bounds = array<i64: 1, 1, 16, 288>}, {transform_indices = @transform_1, window_bounds = array<i64: 1, 16, 1>}, {transform_indices = @transform_2, window_bounds = array<i64: 1, 16, 1>}, {transform_indices = @transform_3, window_bounds = array<i64: 1, 1, 16, 288>}]} {
    %c0 = arith.constant 0 : index
    %c0_0 = arith.constant 0 : index
    %c0_1 = arith.constant 0 : index
    %c0_2 = arith.constant 0 : index
    %0 = vector.load %arg2[%c0, %c0_0, %c0_1, %c0_2] : memref<1x1x16x288xbf16, #tpu.memory_space<vmem>>, vector<1x1x16x288xbf16>
    %1 = vector.shape_cast %0 : vector<1x1x16x288xbf16> to vector<16x288xbf16>
    %2 = arith.extf %1 : vector<16x288xbf16> to vector<16x288xf32>
    %c0_3 = arith.constant 0 : index
    %c0_4 = arith.constant 0 : index
    %c0_5 = arith.constant 0 : index
    %3 = vector.load %arg3[%c0_3, %c0_4, %c0_5] : memref<1x16x1xf32, #tpu.memory_space<vmem>>, vector<1x16x1xf32>
    %4 = vector.shape_cast %3 : vector<1x16x1xf32> to vector<16x1xf32>
    %5 = vector.broadcast %4 : vector<16x1xf32> to vector<16x288xf32>
    %6 = arith.mulf %2, %5 : vector<16x288xf32>
    %c0_6 = arith.constant 0 : index
    %c0_7 = arith.constant 0 : index
    %c0_8 = arith.constant 0 : index
    %7 = vector.load %arg4[%c0_6, %c0_7, %c0_8] : memref<1x16x1xf32, #tpu.memory_space<vmem>>, vector<1x16x1xf32>
    %8 = vector.shape_cast %7 : vector<1x16x1xf32> to vector<16x1xf32>
    %9 = vector.broadcast %8 : vector<16x1xf32> to vector<16x288xf32>
    %10 = arith.addf %6, %9 : vector<16x288xf32>
    %cst = arith.constant 0.000000e+00 : f32
    %11 = vector.broadcast %cst : f32 to vector<16x288xf32>
    %12 = arith.cmpf oge, %10, %11 : vector<16x288xf32>
    %cst_9 = arith.constant 1.000000e-01 : f32
    %13 = vector.broadcast %cst_9 : f32 to vector<16x288xf32>
    %14 = arith.mulf %13, %10 : vector<16x288xf32>
    %15 = arith.select %12, %10, %14 : vector<16x288xi1>, vector<16x288xf32>
    %16 = arith.truncf %15 : vector<16x288xf32> to vector<16x288xbf16>
    %c0_10 = arith.constant 0 : index
    %c0_11 = arith.constant 0 : index
    %c0_12 = arith.constant 0 : index
    %c0_13 = arith.constant 0 : index
    %17 = vector.load %arg5[%c0_10, %c0_11, %c0_12, %c0_13] : memref<1x1x16x288xbf16, #tpu.memory_space<vmem>>, vector<1x1x16x288xbf16>
    %18 = vector.shape_cast %17 : vector<1x1x16x288xbf16> to vector<16x288xbf16>
    %19 = vector.shape_cast %16 : vector<16x288xbf16> to vector<1x1x16x288xbf16>
    tpu.vector_store %arg5[%c0_10, %c0_11, %c0_12, %c0_13], %19 {strides = array<i32>} : memref<1x1x16x288xbf16, #tpu.memory_space<vmem>>, vector<1x1x16x288xbf16>,
    return
  }
  func.func @transform_0(%arg0: i32, %arg1: i32) -> (i32, i32, i32, i32) {
    %c0_i32 = arith.constant 0 : i32
    %c0_i32_0 = arith.constant 0 : i32
    %c0_i32_1 = arith.constant 0 : i32
    return %arg0, %arg1, %c0_i32, %c0_i32_0 : i32, i32, i32, i32
  }
  func.func @transform_1(%arg0: i32, %arg1: i32) -> (i32, i32, i32) {
    %c0_i32 = arith.constant 0 : i32
    %c0_i32_0 = arith.constant 0 : i32
    %c0_i32_1 = arith.constant 0 : i32
    return %arg0, %c0_i32, %c0_i32_0 : i32, i32, i32
  }
  func.func @transform_2(%arg0: i32, %arg1: i32) -> (i32, i32, i32) {
    %c0_i32 = arith.constant 0 : i32
    %c0_i32_0 = arith.constant 0 : i32
    %c0_i32_1 = arith.constant 0 : i32
    return %arg0, %c0_i32, %c0_i32_0 : i32, i32, i32
  }
  func.func @transform_3(%arg0: i32, %arg1: i32) -> (i32, i32, i32, i32) {
    %c0_i32 = arith.constant 0 : i32
    %c0_i32_0 = arith.constant 0 : i32
    %c0_i32_1 = arith.constant 0 : i32
    return %arg0, %arg1, %c0_i32, %c0_i32_0 : i32, i32, i32, i32
  }
}

module attributes {stable_mosaic.version = 11 : i64} {
  func.func @kernel(%arg0: i32, %arg1: i32, %arg2: memref<1x1x16x342xbf16, #tpu.memory_space<vmem>>, %arg3: memref<1x1x16x342xbf16, #tpu.memory_space<vmem>>, %arg4: memref<1x1x16x342xbf16, #tpu.memory_space<vmem>>, %arg5: memref<16x432xbf16, #tpu.memory_space<vmem>>, %arg6: memref<1x288xf32, #tpu.memory_space<vmem>>, %arg7: memref<1x1x16x288xbf16, #tpu.memory_space<vmem>>, %arg8: memref<1x16x2xf32, #tpu.memory_space<vmem>>) attributes {dimension_semantics = [#tpu.dimension_semantics<parallel>, #tpu.dimension_semantics<arbitrary>], iteration_bounds = array<i64: 2, 16>, scalar_prefetch = 0 : i64, scratch_operands = 0 : i64, tpu.core_type = #tpu.core_type<tc>, window_params = [{transform_indices = @transform_0, window_bounds = array<i64: 1, 1, 16, 342>}, {transform_indices = @transform_1, window_bounds = array<i64: 1, 1, 16, 342>}, {transform_indices = @transform_2, window_bounds = array<i64: 1, 1, 16, 342>}, {pipeline_mode = #tpu.pipeline_mode<synchronous>, transform_indices = @transform_3, window_bounds = array<i64: 16, 432>}, {pipeline_mode = #tpu.pipeline_mode<synchronous>, transform_indices = @transform_4, window_bounds = array<i64: 1, 288>}, {transform_indices = @transform_5, window_bounds = array<i64: 1, 1, 16, 288>}, {transform_indices = @transform_6, window_bounds = array<i64: 1, 16, 2>}]} {
    %cst = arith.constant 0.000000e+00 : f32
    %0 = vector.broadcast %cst : f32 to vector<16x288xf32>
    %c0 = arith.constant 0 : index
    %c0_0 = arith.constant 0 : index
    %c0_1 = arith.constant 0 : index
    %c0_2 = arith.constant 0 : index
    %1 = vector.load %arg2[%c0, %c0_0, %c0_1, %c0_2] : memref<1x1x16x342xbf16, #tpu.memory_space<vmem>>, vector<1x1x16x342xbf16>
    %2 = vector.shape_cast %1 : vector<1x1x16x342xbf16> to vector<16x342xbf16>
    %c0_3 = arith.constant 0 : index
    %c0_4 = arith.constant 0 : index
    %3 = vector.load %arg5[%c0_3, %c0_4] : memref<16x432xbf16, #tpu.memory_space<vmem>>, vector<16x16xbf16>
    %4 = vector.extract_strided_slice %2 {offsets = [0, 0], sizes = [16, 288], strides = [1, 1]} : vector<16x342xbf16> to vector<16x288xbf16>
    %cst_5 = arith.constant dense<0.000000e+00> : vector<16x288xf32>
    %5 = tpu.matmul %3, %4, %cst_5 {dimension_numbers = #tpu.dot_dimension_numbers<[1], [0], [0], [1], [0, 0, 1, 1], [], []>} : vector<16x16xbf16>, vector<16x288xbf16>, vector<16x288xf32> -> vector<16x288xf32>
    %6 = arith.addf %0, %5 : vector<16x288xf32>
    %c0_6 = arith.constant 0 : index
    %c16 = arith.constant 16 : index
    %7 = vector.load %arg5[%c0_6, %c16] : memref<16x432xbf16, #tpu.memory_space<vmem>>, vector<16x16xbf16>
    %8 = vector.extract_strided_slice %2 {offsets = [0, 1], sizes = [16, 288], strides = [1, 1]} : vector<16x342xbf16> to vector<16x288xbf16>
    %cst_7 = arith.constant dense<0.000000e+00> : vector<16x288xf32>
    %9 = tpu.matmul %7, %8, %cst_7 {dimension_numbers = #tpu.dot_dimension_numbers<[1], [0], [0], [1], [0, 0, 1, 1], [], []>} : vector<16x16xbf16>, vector<16x288xbf16>, vector<16x288xf32> -> vector<16x288xf32>
    %10 = arith.addf %6, %9 : vector<16x288xf32>
    %c0_8 = arith.constant 0 : index
    %c32 = arith.constant 32 : index
    %11 = vector.load %arg5[%c0_8, %c32] : memref<16x432xbf16, #tpu.memory_space<vmem>>, vector<16x16xbf16>
    %12 = vector.extract_strided_slice %2 {offsets = [0, 2], sizes = [16, 288], strides = [1, 1]} : vector<16x342xbf16> to vector<16x288xbf16>
    %cst_9 = arith.constant dense<0.000000e+00> : vector<16x288xf32>
    %13 = tpu.matmul %11, %12, %cst_9 {dimension_numbers = #tpu.dot_dimension_numbers<[1], [0], [0], [1], [0, 0, 1, 1], [], []>} : vector<16x16xbf16>, vector<16x288xbf16>, vector<16x288xf32> -> vector<16x288xf32>
    %14 = arith.addf %10, %13 : vector<16x288xf32>
    %c0_10 = arith.constant 0 : index
    %c48 = arith.constant 48 : index
    %15 = vector.load %arg5[%c0_10, %c48] : memref<16x432xbf16, #tpu.memory_space<vmem>>, vector<16x16xbf16>
    %16 = vector.extract_strided_slice %2 {offsets = [0, 18], sizes = [16, 288], strides = [1, 1]} : vector<16x342xbf16> to vector<16x288xbf16>
    %cst_11 = arith.constant dense<0.000000e+00> : vector<16x288xf32>
    %17 = tpu.matmul %15, %16, %cst_11 {dimension_numbers = #tpu.dot_dimension_numbers<[1], [0], [0], [1], [0, 0, 1, 1], [], []>} : vector<16x16xbf16>, vector<16x288xbf16>, vector<16x288xf32> -> vector<16x288xf32>
    %18 = arith.addf %14, %17 : vector<16x288xf32>
    %c0_12 = arith.constant 0 : index
    %c64 = arith.constant 64 : index
    %19 = vector.load %arg5[%c0_12, %c64] : memref<16x432xbf16, #tpu.memory_space<vmem>>, vector<16x16xbf16>
    %20 = vector.extract_strided_slice %2 {offsets = [0, 19], sizes = [16, 288], strides = [1, 1]} : vector<16x342xbf16> to vector<16x288xbf16>
    %cst_13 = arith.constant dense<0.000000e+00> : vector<16x288xf32>
    %21 = tpu.matmul %19, %20, %cst_13 {dimension_numbers = #tpu.dot_dimension_numbers<[1], [0], [0], [1], [0, 0, 1, 1], [], []>} : vector<16x16xbf16>, vector<16x288xbf16>, vector<16x288xf32> -> vector<16x288xf32>
    %22 = arith.addf %18, %21 : vector<16x288xf32>
    %c0_14 = arith.constant 0 : index
    %c80 = arith.constant 80 : index
    %23 = vector.load %arg5[%c0_14, %c80] : memref<16x432xbf16, #tpu.memory_space<vmem>>, vector<16x16xbf16>
    %24 = vector.extract_strided_slice %2 {offsets = [0, 20], sizes = [16, 288], strides = [1, 1]} : vector<16x342xbf16> to vector<16x288xbf16>
    %cst_15 = arith.constant dense<0.000000e+00> : vector<16x288xf32>
    %25 = tpu.matmul %23, %24, %cst_15 {dimension_numbers = #tpu.dot_dimension_numbers<[1], [0], [0], [1], [0, 0, 1, 1], [], []>} : vector<16x16xbf16>, vector<16x288xbf16>, vector<16x288xf32> -> vector<16x288xf32>
    %26 = arith.addf %22, %25 : vector<16x288xf32>
    %c0_16 = arith.constant 0 : index
    %c96 = arith.constant 96 : index
    %27 = vector.load %arg5[%c0_16, %c96] : memref<16x432xbf16, #tpu.memory_space<vmem>>, vector<16x16xbf16>
    %28 = vector.extract_strided_slice %2 {offsets = [0, 36], sizes = [16, 288], strides = [1, 1]} : vector<16x342xbf16> to vector<16x288xbf16>
    %cst_17 = arith.constant dense<0.000000e+00> : vector<16x288xf32>
    %29 = tpu.matmul %27, %28, %cst_17 {dimension_numbers = #tpu.dot_dimension_numbers<[1], [0], [0], [1], [0, 0, 1, 1], [], []>} : vector<16x16xbf16>, vector<16x288xbf16>, vector<16x288xf32> -> vector<16x288xf32>
    %30 = arith.addf %26, %29 : vector<16x288xf32>
    %c0_18 = arith.constant 0 : index
    %c112 = arith.constant 112 : index
    %31 = vector.load %arg5[%c0_18, %c112] : memref<16x432xbf16, #tpu.memory_space<vmem>>, vector<16x16xbf16>
    %32 = vector.extract_strided_slice %2 {offsets = [0, 37], sizes = [16, 288], strides = [1, 1]} : vector<16x342xbf16> to vector<16x288xbf16>
    %cst_19 = arith.constant dense<0.000000e+00> : vector<16x288xf32>
    %33 = tpu.matmul %31, %32, %cst_19 {dimension_numbers = #tpu.dot_dimension_numbers<[1], [0], [0], [1], [0, 0, 1, 1], [], []>} : vector<16x16xbf16>, vector<16x288xbf16>, vector<16x288xf32> -> vector<16x288xf32>
    %34 = arith.addf %30, %33 : vector<16x288xf32>
    %c0_20 = arith.constant 0 : index
    %c128 = arith.constant 128 : index
    %35 = vector.load %arg5[%c0_20, %c128] : memref<16x432xbf16, #tpu.memory_space<vmem>>, vector<16x16xbf16>
    %36 = vector.extract_strided_slice %2 {offsets = [0, 38], sizes = [16, 288], strides = [1, 1]} : vector<16x342xbf16> to vector<16x288xbf16>
    %cst_21 = arith.constant dense<0.000000e+00> : vector<16x288xf32>
    %37 = tpu.matmul %35, %36, %cst_21 {dimension_numbers = #tpu.dot_dimension_numbers<[1], [0], [0], [1], [0, 0, 1, 1], [], []>} : vector<16x16xbf16>, vector<16x288xbf16>, vector<16x288xf32> -> vector<16x288xf32>
    %38 = arith.addf %34, %37 : vector<16x288xf32>
    %c0_22 = arith.constant 0 : index
    %c0_23 = arith.constant 0 : index
    %c0_24 = arith.constant 0 : index
    %c0_25 = arith.constant 0 : index
    %39 = vector.load %arg3[%c0_22, %c0_23, %c0_24, %c0_25] : memref<1x1x16x342xbf16, #tpu.memory_space<vmem>>, vector<1x1x16x342xbf16>
    %40 = vector.shape_cast %39 : vector<1x1x16x342xbf16> to vector<16x342xbf16>
    %c0_26 = arith.constant 0 : index
    %c144 = arith.constant 144 : index
    %41 = vector.load %arg5[%c0_26, %c144] : memref<16x432xbf16, #tpu.memory_space<vmem>>, vector<16x16xbf16>
    %42 = vector.extract_strided_slice %40 {offsets = [0, 0], sizes = [16, 288], strides = [1, 1]} : vector<16x342xbf16> to vector<16x288xbf16>
    %cst_27 = arith.constant dense<0.000000e+00> : vector<16x288xf32>
    %43 = tpu.matmul %41, %42, %cst_27 {dimension_numbers = #tpu.dot_dimension_numbers<[1], [0], [0], [1], [0, 0, 1, 1], [], []>} : vector<16x16xbf16>, vector<16x288xbf16>, vector<16x288xf32> -> vector<16x288xf32>
    %44 = arith.addf %38, %43 : vector<16x288xf32>
    %c0_28 = arith.constant 0 : index
    %c160 = arith.constant 160 : index
    %45 = vector.load %arg5[%c0_28, %c160] : memref<16x432xbf16, #tpu.memory_space<vmem>>, vector<16x16xbf16>
    %46 = vector.extract_strided_slice %40 {offsets = [0, 1], sizes = [16, 288], strides = [1, 1]} : vector<16x342xbf16> to vector<16x288xbf16>
    %cst_29 = arith.constant dense<0.000000e+00> : vector<16x288xf32>
    %47 = tpu.matmul %45, %46, %cst_29 {dimension_numbers = #tpu.dot_dimension_numbers<[1], [0], [0], [1], [0, 0, 1, 1], [], []>} : vector<16x16xbf16>, vector<16x288xbf16>, vector<16x288xf32> -> vector<16x288xf32>
    %48 = arith.addf %44, %47 : vector<16x288xf32>
    %c0_30 = arith.constant 0 : index
    %c176 = arith.constant 176 : index
    %49 = vector.load %arg5[%c0_30, %c176] : memref<16x432xbf16, #tpu.memory_space<vmem>>, vector<16x16xbf16>
    %50 = vector.extract_strided_slice %40 {offsets = [0, 2], sizes = [16, 288], strides = [1, 1]} : vector<16x342xbf16> to vector<16x288xbf16>
    %cst_31 = arith.constant dense<0.000000e+00> : vector<16x288xf32>
    %51 = tpu.matmul %49, %50, %cst_31 {dimension_numbers = #tpu.dot_dimension_numbers<[1], [0], [0], [1], [0, 0, 1, 1], [], []>} : vector<16x16xbf16>, vector<16x288xbf16>, vector<16x288xf32> -> vector<16x288xf32>
    %52 = arith.addf %48, %51 : vector<16x288xf32>
    %c0_32 = arith.constant 0 : index
    %c192 = arith.constant 192 : index
    %53 = vector.load %arg5[%c0_32, %c192] : memref<16x432xbf16, #tpu.memory_space<vmem>>, vector<16x16xbf16>
    %54 = vector.extract_strided_slice %40 {offsets = [0, 18], sizes = [16, 288], strides = [1, 1]} : vector<16x342xbf16> to vector<16x288xbf16>
    %cst_33 = arith.constant dense<0.000000e+00> : vector<16x288xf32>
    %55 = tpu.matmul %53, %54, %cst_33 {dimension_numbers = #tpu.dot_dimension_numbers<[1], [0], [0], [1], [0, 0, 1, 1], [], []>} : vector<16x16xbf16>, vector<16x288xbf16>, vector<16x288xf32> -> vector<16x288xf32>
    %56 = arith.addf %52, %55 : vector<16x288xf32>
    %c0_34 = arith.constant 0 : index
    %c208 = arith.constant 208 : index
    %57 = vector.load %arg5[%c0_34, %c208] : memref<16x432xbf16, #tpu.memory_space<vmem>>, vector<16x16xbf16>
    %58 = vector.extract_strided_slice %40 {offsets = [0, 19], sizes = [16, 288], strides = [1, 1]} : vector<16x342xbf16> to vector<16x288xbf16>
    %cst_35 = arith.constant dense<0.000000e+00> : vector<16x288xf32>
    %59 = tpu.matmul %57, %58, %cst_35 {dimension_numbers = #tpu.dot_dimension_numbers<[1], [0], [0], [1], [0, 0, 1, 1], [], []>} : vector<16x16xbf16>, vector<16x288xbf16>, vector<16x288xf32> -> vector<16x288xf32>
    %60 = arith.addf %56, %59 : vector<16x288xf32>
    %c0_36 = arith.constant 0 : index
    %c224 = arith.constant 224 : index
    %61 = vector.load %arg5[%c0_36, %c224] : memref<16x432xbf16, #tpu.memory_space<vmem>>, vector<16x16xbf16>
    %62 = vector.extract_strided_slice %40 {offsets = [0, 20], sizes = [16, 288], strides = [1, 1]} : vector<16x342xbf16> to vector<16x288xbf16>
    %cst_37 = arith.constant dense<0.000000e+00> : vector<16x288xf32>
    %63 = tpu.matmul %61, %62, %cst_37 {dimension_numbers = #tpu.dot_dimension_numbers<[1], [0], [0], [1], [0, 0, 1, 1], [], []>} : vector<16x16xbf16>, vector<16x288xbf16>, vector<16x288xf32> -> vector<16x288xf32>
    %64 = arith.addf %60, %63 : vector<16x288xf32>
    %c0_38 = arith.constant 0 : index
    %c240 = arith.constant 240 : index
    %65 = vector.load %arg5[%c0_38, %c240] : memref<16x432xbf16, #tpu.memory_space<vmem>>, vector<16x16xbf16>
    %66 = vector.extract_strided_slice %40 {offsets = [0, 36], sizes = [16, 288], strides = [1, 1]} : vector<16x342xbf16> to vector<16x288xbf16>
    %cst_39 = arith.constant dense<0.000000e+00> : vector<16x288xf32>
    %67 = tpu.matmul %65, %66, %cst_39 {dimension_numbers = #tpu.dot_dimension_numbers<[1], [0], [0], [1], [0, 0, 1, 1], [], []>} : vector<16x16xbf16>, vector<16x288xbf16>, vector<16x288xf32> -> vector<16x288xf32>
    %68 = arith.addf %64, %67 : vector<16x288xf32>
    %c0_40 = arith.constant 0 : index
    %c256 = arith.constant 256 : index
    %69 = vector.load %arg5[%c0_40, %c256] : memref<16x432xbf16, #tpu.memory_space<vmem>>, vector<16x16xbf16>
    %70 = vector.extract_strided_slice %40 {offsets = [0, 37], sizes = [16, 288], strides = [1, 1]} : vector<16x342xbf16> to vector<16x288xbf16>
    %cst_41 = arith.constant dense<0.000000e+00> : vector<16x288xf32>
    %71 = tpu.matmul %69, %70, %cst_41 {dimension_numbers = #tpu.dot_dimension_numbers<[1], [0], [0], [1], [0, 0, 1, 1], [], []>} : vector<16x16xbf16>, vector<16x288xbf16>, vector<16x288xf32> -> vector<16x288xf32>
    %72 = arith.addf %68, %71 : vector<16x288xf32>
    %c0_42 = arith.constant 0 : index
    %c272 = arith.constant 272 : index
    %73 = vector.load %arg5[%c0_42, %c272] : memref<16x432xbf16, #tpu.memory_space<vmem>>, vector<16x16xbf16>
    %74 = vector.extract_strided_slice %40 {offsets = [0, 38], sizes = [16, 288], strides = [1, 1]} : vector<16x342xbf16> to vector<16x288xbf16>
    %cst_43 = arith.constant dense<0.000000e+00> : vector<16x288xf32>
    %75 = tpu.matmul %73, %74, %cst_43 {dimension_numbers = #tpu.dot_dimension_numbers<[1], [0], [0], [1], [0, 0, 1, 1], [], []>} : vector<16x16xbf16>, vector<16x288xbf16>, vector<16x288xf32> -> vector<16x288xf32>
    %76 = arith.addf %72, %75 : vector<16x288xf32>
    %c0_44 = arith.constant 0 : index
    %c0_45 = arith.constant 0 : index
    %c0_46 = arith.constant 0 : index
    %c0_47 = arith.constant 0 : index
    %77 = vector.load %arg4[%c0_44, %c0_45, %c0_46, %c0_47] : memref<1x1x16x342xbf16, #tpu.memory_space<vmem>>, vector<1x1x16x342xbf16>
    %78 = vector.shape_cast %77 : vector<1x1x16x342xbf16> to vector<16x342xbf16>
    %c0_48 = arith.constant 0 : index
    %c288 = arith.constant 288 : index
    %79 = vector.load %arg5[%c0_48, %c288] : memref<16x432xbf16, #tpu.memory_space<vmem>>, vector<16x16xbf16>
    %80 = vector.extract_strided_slice %78 {offsets = [0, 0], sizes = [16, 288], strides = [1, 1]} : vector<16x342xbf16> to vector<16x288xbf16>
    %cst_49 = arith.constant dense<0.000000e+00> : vector<16x288xf32>
    %81 = tpu.matmul %79, %80, %cst_49 {dimension_numbers = #tpu.dot_dimension_numbers<[1], [0], [0], [1], [0, 0, 1, 1], [], []>} : vector<16x16xbf16>, vector<16x288xbf16>, vector<16x288xf32> -> vector<16x288xf32>
    %82 = arith.addf %76, %81 : vector<16x288xf32>
    %c0_50 = arith.constant 0 : index
    %c304 = arith.constant 304 : index
    %83 = vector.load %arg5[%c0_50, %c304] : memref<16x432xbf16, #tpu.memory_space<vmem>>, vector<16x16xbf16>
    %84 = vector.extract_strided_slice %78 {offsets = [0, 1], sizes = [16, 288], strides = [1, 1]} : vector<16x342xbf16> to vector<16x288xbf16>
    %cst_51 = arith.constant dense<0.000000e+00> : vector<16x288xf32>
    %85 = tpu.matmul %83, %84, %cst_51 {dimension_numbers = #tpu.dot_dimension_numbers<[1], [0], [0], [1], [0, 0, 1, 1], [], []>} : vector<16x16xbf16>, vector<16x288xbf16>, vector<16x288xf32> -> vector<16x288xf32>
    %86 = arith.addf %82, %85 : vector<16x288xf32>
    %c0_52 = arith.constant 0 : index
    %c320 = arith.constant 320 : index
    %87 = vector.load %arg5[%c0_52, %c320] : memref<16x432xbf16, #tpu.memory_space<vmem>>, vector<16x16xbf16>
    %88 = vector.extract_strided_slice %78 {offsets = [0, 2], sizes = [16, 288], strides = [1, 1]} : vector<16x342xbf16> to vector<16x288xbf16>
    %cst_53 = arith.constant dense<0.000000e+00> : vector<16x288xf32>
    %89 = tpu.matmul %87, %88, %cst_53 {dimension_numbers = #tpu.dot_dimension_numbers<[1], [0], [0], [1], [0, 0, 1, 1], [], []>} : vector<16x16xbf16>, vector<16x288xbf16>, vector<16x288xf32> -> vector<16x288xf32>
    %90 = arith.addf %86, %89 : vector<16x288xf32>
    %c0_54 = arith.constant 0 : index
    %c336 = arith.constant 336 : index
    %91 = vector.load %arg5[%c0_54, %c336] : memref<16x432xbf16, #tpu.memory_space<vmem>>, vector<16x16xbf16>
    %92 = vector.extract_strided_slice %78 {offsets = [0, 18], sizes = [16, 288], strides = [1, 1]} : vector<16x342xbf16> to vector<16x288xbf16>
    %cst_55 = arith.constant dense<0.000000e+00> : vector<16x288xf32>
    %93 = tpu.matmul %91, %92, %cst_55 {dimension_numbers = #tpu.dot_dimension_numbers<[1], [0], [0], [1], [0, 0, 1, 1], [], []>} : vector<16x16xbf16>, vector<16x288xbf16>, vector<16x288xf32> -> vector<16x288xf32>
    %94 = arith.addf %90, %93 : vector<16x288xf32>
    %c0_56 = arith.constant 0 : index
    %c352 = arith.constant 352 : index
    %95 = vector.load %arg5[%c0_56, %c352] : memref<16x432xbf16, #tpu.memory_space<vmem>>, vector<16x16xbf16>
    %96 = vector.extract_strided_slice %78 {offsets = [0, 19], sizes = [16, 288], strides = [1, 1]} : vector<16x342xbf16> to vector<16x288xbf16>
    %cst_57 = arith.constant dense<0.000000e+00> : vector<16x288xf32>
    %97 = tpu.matmul %95, %96, %cst_57 {dimension_numbers = #tpu.dot_dimension_numbers<[1], [0], [0], [1], [0, 0, 1, 1], [], []>} : vector<16x16xbf16>, vector<16x288xbf16>, vector<16x288xf32> -> vector<16x288xf32>
    %98 = arith.addf %94, %97 : vector<16x288xf32>
    %c0_58 = arith.constant 0 : index
    %c368 = arith.constant 368 : index
    %99 = vector.load %arg5[%c0_58, %c368] : memref<16x432xbf16, #tpu.memory_space<vmem>>, vector<16x16xbf16>
    %100 = vector.extract_strided_slice %78 {offsets = [0, 20], sizes = [16, 288], strides = [1, 1]} : vector<16x342xbf16> to vector<16x288xbf16>
    %cst_59 = arith.constant dense<0.000000e+00> : vector<16x288xf32>
    %101 = tpu.matmul %99, %100, %cst_59 {dimension_numbers = #tpu.dot_dimension_numbers<[1], [0], [0], [1], [0, 0, 1, 1], [], []>} : vector<16x16xbf16>, vector<16x288xbf16>, vector<16x288xf32> -> vector<16x288xf32>
    %102 = arith.addf %98, %101 : vector<16x288xf32>
    %c0_60 = arith.constant 0 : index
    %c384 = arith.constant 384 : index
    %103 = vector.load %arg5[%c0_60, %c384] : memref<16x432xbf16, #tpu.memory_space<vmem>>, vector<16x16xbf16>
    %104 = vector.extract_strided_slice %78 {offsets = [0, 36], sizes = [16, 288], strides = [1, 1]} : vector<16x342xbf16> to vector<16x288xbf16>
    %cst_61 = arith.constant dense<0.000000e+00> : vector<16x288xf32>
    %105 = tpu.matmul %103, %104, %cst_61 {dimension_numbers = #tpu.dot_dimension_numbers<[1], [0], [0], [1], [0, 0, 1, 1], [], []>} : vector<16x16xbf16>, vector<16x288xbf16>, vector<16x288xf32> -> vector<16x288xf32>
    %106 = arith.addf %102, %105 : vector<16x288xf32>
    %c0_62 = arith.constant 0 : index
    %c400 = arith.constant 400 : index
    %107 = vector.load %arg5[%c0_62, %c400] : memref<16x432xbf16, #tpu.memory_space<vmem>>, vector<16x16xbf16>
    %108 = vector.extract_strided_slice %78 {offsets = [0, 37], sizes = [16, 288], strides = [1, 1]} : vector<16x342xbf16> to vector<16x288xbf16>
    %cst_63 = arith.constant dense<0.000000e+00> : vector<16x288xf32>
    %109 = tpu.matmul %107, %108, %cst_63 {dimension_numbers = #tpu.dot_dimension_numbers<[1], [0], [0], [1], [0, 0, 1, 1], [], []>} : vector<16x16xbf16>, vector<16x288xbf16>, vector<16x288xf32> -> vector<16x288xf32>
    %110 = arith.addf %106, %109 : vector<16x288xf32>
    %c0_64 = arith.constant 0 : index
    %c416 = arith.constant 416 : index
    %111 = vector.load %arg5[%c0_64, %c416] : memref<16x432xbf16, #tpu.memory_space<vmem>>, vector<16x16xbf16>
    %112 = vector.extract_strided_slice %78 {offsets = [0, 38], sizes = [16, 288], strides = [1, 1]} : vector<16x342xbf16> to vector<16x288xbf16>
    %cst_65 = arith.constant dense<0.000000e+00> : vector<16x288xf32>
    %113 = tpu.matmul %111, %112, %cst_65 {dimension_numbers = #tpu.dot_dimension_numbers<[1], [0], [0], [1], [0, 0, 1, 1], [], []>} : vector<16x16xbf16>, vector<16x288xbf16>, vector<16x288xf32> -> vector<16x288xf32>
    %114 = arith.addf %110, %113 : vector<16x288xf32>
    %115 = arith.truncf %114 : vector<16x288xf32> to vector<16x288xbf16>
    %c0_66 = arith.constant 0 : index
    %c0_67 = arith.constant 0 : index
    %c0_68 = arith.constant 0 : index
    %c0_69 = arith.constant 0 : index
    %116 = vector.load %arg7[%c0_66, %c0_67, %c0_68, %c0_69] : memref<1x1x16x288xbf16, #tpu.memory_space<vmem>>, vector<1x1x16x288xbf16>
    %117 = vector.shape_cast %116 : vector<1x1x16x288xbf16> to vector<16x288xbf16>
    %118 = vector.shape_cast %115 : vector<16x288xbf16> to vector<1x1x16x288xbf16>
    tpu.vector_store %arg7[%c0_66, %c0_67, %c0_68, %c0_69], %118 {strides = array<i32>} : memref<1x1x16x288xbf16, #tpu.memory_space<vmem>>, vector<1x1x16x288xbf16>,
    %c0_70 = arith.constant 0 : index
    %c0_71 = arith.constant 0 : index
    %119 = vector.load %arg6[%c0_70, %c0_71] : memref<1x288xf32, #tpu.memory_space<vmem>>, vector<1x288xf32>
    %120 = vector.broadcast %119 : vector<1x288xf32> to vector<16x288xf32>
    %121 = arith.mulf %114, %120 : vector<16x288xf32>
    %cst_72 = arith.constant dense<0.000000e+00> : vector<16xf32>
    %122 = vector.multi_reduction <add>, %121, %cst_72 [1] : vector<16x288xf32> to vector<16xf32>
    %123 = vector.shape_cast %122 : vector<16xf32> to vector<16x1xf32>
    %124 = arith.mulf %121, %114 : vector<16x288xf32>
    %cst_73 = arith.constant dense<0.000000e+00> : vector<16xf32>
    %125 = vector.multi_reduction <add>, %124, %cst_73 [1] : vector<16x288xf32> to vector<16xf32>
    %126 = vector.shape_cast %125 : vector<16xf32> to vector<16x1xf32>
    %c0_i32 = arith.constant 0 : i32
    %127 = arith.cmpi eq, %arg1, %c0_i32 : i32
    %128 = arith.extui %127 : i1 to i32
    %c0_i32_74 = arith.constant 0 : i32
    %129 = arith.cmpi ne, %128, %c0_i32_74 : i32
    scf.if %129 {
      %c0_77 = arith.constant 0 : index
      %c0_78 = arith.constant 0 : index
      %c0_79 = arith.constant 0 : index
      %133 = vector.load %arg8[%c0_77, %c0_78, %c0_79] : memref<1x16x2xf32, #tpu.memory_space<vmem>>, vector<1x16x1xf32>
      %134 = vector.shape_cast %133 : vector<1x16x1xf32> to vector<16x1xf32>
      %135 = vector.shape_cast %123 : vector<16x1xf32> to vector<1x16x1xf32>
      tpu.vector_store %arg8[%c0_77, %c0_78, %c0_79], %135 {strides = array<i32>} : memref<1x16x2xf32, #tpu.memory_space<vmem>>, vector<1x16x1xf32>,
      %c0_80 = arith.constant 0 : index
      %c0_81 = arith.constant 0 : index
      %c1 = arith.constant 1 : index
      %136 = vector.load %arg8[%c0_80, %c0_81, %c1] : memref<1x16x2xf32, #tpu.memory_space<vmem>>, vector<1x16x1xf32>
      %137 = vector.shape_cast %136 : vector<1x16x1xf32> to vector<16x1xf32>
      %138 = vector.shape_cast %126 : vector<16x1xf32> to vector<1x16x1xf32>
      tpu.vector_store %arg8[%c0_80, %c0_81, %c1], %138 {strides = array<i32>} : memref<1x16x2xf32, #tpu.memory_space<vmem>>, vector<1x16x1xf32>,
    } else {
    }
    %c0_i32_75 = arith.constant 0 : i32
    %130 = arith.cmpi sgt, %arg1, %c0_i32_75 : i32
    %131 = arith.extui %130 : i1 to i32
    %c0_i32_76 = arith.constant 0 : i32
    %132 = arith.cmpi ne, %131, %c0_i32_76 : i32
    scf.if %132 {
      %c0_77 = arith.constant 0 : index
      %c0_78 = arith.constant 0 : index
      %c0_79 = arith.constant 0 : index
      %133 = vector.load %arg8[%c0_77, %c0_78, %c0_79] : memref<1x16x2xf32, #tpu.memory_space<vmem>>, vector<1x16x1xf32>
      %134 = vector.shape_cast %133 : vector<1x16x1xf32> to vector<16x1xf32>
      %135 = arith.addf %134, %123 : vector<16x1xf32>
      %c0_80 = arith.constant 0 : index
      %c0_81 = arith.constant 0 : index
      %c0_82 = arith.constant 0 : index
      %136 = vector.load %arg8[%c0_80, %c0_81, %c0_82] : memref<1x16x2xf32, #tpu.memory_space<vmem>>, vector<1x16x1xf32>
      %137 = vector.shape_cast %136 : vector<1x16x1xf32> to vector<16x1xf32>
      %138 = vector.shape_cast %135 : vector<16x1xf32> to vector<1x16x1xf32>
      tpu.vector_store %arg8[%c0_80, %c0_81, %c0_82], %138 {strides = array<i32>} : memref<1x16x2xf32, #tpu.memory_space<vmem>>, vector<1x16x1xf32>,
      %c0_83 = arith.constant 0 : index
      %c0_84 = arith.constant 0 : index
      %c1 = arith.constant 1 : index
      %139 = vector.load %arg8[%c0_83, %c0_84, %c1] : memref<1x16x2xf32, #tpu.memory_space<vmem>>, vector<1x16x1xf32>
      %140 = vector.shape_cast %139 : vector<1x16x1xf32> to vector<16x1xf32>
      %141 = arith.addf %140, %126 : vector<16x1xf32>
      %c0_85 = arith.constant 0 : index
      %c0_86 = arith.constant 0 : index
      %c1_87 = arith.constant 1 : index
      %142 = vector.load %arg8[%c0_85, %c0_86, %c1_87] : memref<1x16x2xf32, #tpu.memory_space<vmem>>, vector<1x16x1xf32>
      %143 = vector.shape_cast %142 : vector<1x16x1xf32> to vector<16x1xf32>
      %144 = vector.shape_cast %141 : vector<16x1xf32> to vector<1x16x1xf32>
      tpu.vector_store %arg8[%c0_85, %c0_86, %c1_87], %144 {strides = array<i32>} : memref<1x16x2xf32, #tpu.memory_space<vmem>>, vector<1x16x1xf32>,
    } else {
    }
    return
  }
  func.func @transform_0(%arg0: i32, %arg1: i32) -> (i32, i32, i32, i32) {
    %c0_i32 = arith.constant 0 : i32
    %0 = arith.addi %arg1, %c0_i32 : i32
    %c0_i32_0 = arith.constant 0 : i32
    %c0_i32_1 = arith.constant 0 : i32
    %c0_i32_2 = arith.constant 0 : i32
    return %arg0, %0, %c0_i32_0, %c0_i32_1 : i32, i32, i32, i32
  }
  func.func @transform_1(%arg0: i32, %arg1: i32) -> (i32, i32, i32, i32) {
    %c1_i32 = arith.constant 1 : i32
    %0 = arith.addi %arg1, %c1_i32 : i32
    %c0_i32 = arith.constant 0 : i32
    %c0_i32_0 = arith.constant 0 : i32
    %c0_i32_1 = arith.constant 0 : i32
    return %arg0, %0, %c0_i32, %c0_i32_0 : i32, i32, i32, i32
  }
  func.func @transform_2(%arg0: i32, %arg1: i32) -> (i32, i32, i32, i32) {
    %c2_i32 = arith.constant 2 : i32
    %0 = arith.addi %arg1, %c2_i32 : i32
    %c0_i32 = arith.constant 0 : i32
    %c0_i32_0 = arith.constant 0 : i32
    %c0_i32_1 = arith.constant 0 : i32
    return %arg0, %0, %c0_i32, %c0_i32_0 : i32, i32, i32, i32
  }
  func.func @transform_3(%arg0: i32, %arg1: i32) -> (i32, i32) {
    %c0_i32 = arith.constant 0 : i32
    %c0_i32_0 = arith.constant 0 : i32
    %c0_i32_1 = arith.constant 0 : i32
    return %c0_i32, %c0_i32_0 : i32, i32
  }
  func.func @transform_4(%arg0: i32, %arg1: i32) -> (i32, i32) {
    %c0_i32 = arith.constant 0 : i32
    %c0_i32_0 = arith.constant 0 : i32
    %c0_i32_1 = arith.constant 0 : i32
    return %c0_i32, %c0_i32_0 : i32, i32
  }
  func.func @transform_5(%arg0: i32, %arg1: i32) -> (i32, i32, i32, i32) {
    %c0_i32 = arith.constant 0 : i32
    %c0_i32_0 = arith.constant 0 : i32
    %c0_i32_1 = arith.constant 0 : i32
    return %arg0, %arg1, %c0_i32, %c0_i32_0 : i32, i32, i32, i32
  }
  func.func @transform_6(%arg0: i32, %arg1: i32) -> (i32, i32, i32) {
    %c0_i32 = arith.constant 0 : i32
    %c0_i32_0 = arith.constant 0 : i32
    %c0_i32_1 = arith.constant 0 : i32
    return %arg0, %c0_i32, %c0_i32_0 : i32, i32, i32
  }
}

module attributes {stable_mosaic.version = 11 : i64} {
  func.func @_norm_act_kernel(%arg0: i32, %arg1: i32, %arg2: memref<1x1x16x288xbf16, #tpu.memory_space<vmem>>, %arg3: memref<1x16x1xf32, #tpu.memory_space<vmem>>, %arg4: memref<1x16x1xf32, #tpu.memory_space<vmem>>, %arg5: memref<1x1x16x288xf32, #tpu.memory_space<vmem>>) attributes {dimension_semantics = [#tpu.dimension_semantics<parallel>, #tpu.dimension_semantics<parallel>], iteration_bounds = array<i64: 2, 16>, scalar_prefetch = 0 : i64, scratch_operands = 0 : i64, tpu.core_type = #tpu.core_type<tc>, window_params = [{transform_indices = @transform_0, window_bounds = array<i64: 1, 1, 16, 288>}, {transform_indices = @transform_1, window_bounds = array<i64: 1, 16, 1>}, {transform_indices = @transform_2, window_bounds = array<i64: 1, 16, 1>}, {transform_indices = @transform_3, window_bounds = array<i64: 1, 1, 16, 288>}]} {
    %c0 = arith.constant 0 : index
    %c0_0 = arith.constant 0 : index
    %c0_1 = arith.constant 0 : index
    %c0_2 = arith.constant 0 : index
    %0 = vector.load %arg2[%c0, %c0_0, %c0_1, %c0_2] : memref<1x1x16x288xbf16, #tpu.memory_space<vmem>>, vector<1x1x16x288xbf16>
    %1 = vector.shape_cast %0 : vector<1x1x16x288xbf16> to vector<16x288xbf16>
    %2 = arith.extf %1 : vector<16x288xbf16> to vector<16x288xf32>
    %c0_3 = arith.constant 0 : index
    %c0_4 = arith.constant 0 : index
    %c0_5 = arith.constant 0 : index
    %3 = vector.load %arg3[%c0_3, %c0_4, %c0_5] : memref<1x16x1xf32, #tpu.memory_space<vmem>>, vector<1x16x1xf32>
    %4 = vector.shape_cast %3 : vector<1x16x1xf32> to vector<16x1xf32>
    %5 = vector.broadcast %4 : vector<16x1xf32> to vector<16x288xf32>
    %6 = arith.mulf %2, %5 : vector<16x288xf32>
    %c0_6 = arith.constant 0 : index
    %c0_7 = arith.constant 0 : index
    %c0_8 = arith.constant 0 : index
    %7 = vector.load %arg4[%c0_6, %c0_7, %c0_8] : memref<1x16x1xf32, #tpu.memory_space<vmem>>, vector<1x16x1xf32>
    %8 = vector.shape_cast %7 : vector<1x16x1xf32> to vector<16x1xf32>
    %9 = vector.broadcast %8 : vector<16x1xf32> to vector<16x288xf32>
    %10 = arith.addf %6, %9 : vector<16x288xf32>
    %cst = arith.constant 0.000000e+00 : f32
    %11 = vector.broadcast %cst : f32 to vector<16x288xf32>
    %12 = arith.cmpf oge, %10, %11 : vector<16x288xf32>
    %cst_9 = arith.constant 1.000000e-01 : f32
    %13 = vector.broadcast %cst_9 : f32 to vector<16x288xf32>
    %14 = arith.mulf %13, %10 : vector<16x288xf32>
    %15 = arith.select %12, %10, %14 : vector<16x288xi1>, vector<16x288xf32>
    %c0_10 = arith.constant 0 : index
    %c0_11 = arith.constant 0 : index
    %c0_12 = arith.constant 0 : index
    %c0_13 = arith.constant 0 : index
    %16 = vector.load %arg5[%c0_10, %c0_11, %c0_12, %c0_13] : memref<1x1x16x288xf32, #tpu.memory_space<vmem>>, vector<1x1x16x288xf32>
    %17 = vector.shape_cast %16 : vector<1x1x16x288xf32> to vector<16x288xf32>
    %18 = vector.shape_cast %15 : vector<16x288xf32> to vector<1x1x16x288xf32>
    tpu.vector_store %arg5[%c0_10, %c0_11, %c0_12, %c0_13], %18 {strides = array<i32>} : memref<1x1x16x288xf32, #tpu.memory_space<vmem>>, vector<1x1x16x288xf32>,
    return
  }
  func.func @transform_0(%arg0: i32, %arg1: i32) -> (i32, i32, i32, i32) {
    %c0_i32 = arith.constant 0 : i32
    %c0_i32_0 = arith.constant 0 : i32
    %c0_i32_1 = arith.constant 0 : i32
    return %arg0, %arg1, %c0_i32, %c0_i32_0 : i32, i32, i32, i32
  }
  func.func @transform_1(%arg0: i32, %arg1: i32) -> (i32, i32, i32) {
    %c0_i32 = arith.constant 0 : i32
    %c0_i32_0 = arith.constant 0 : i32
    %c0_i32_1 = arith.constant 0 : i32
    return %arg0, %c0_i32, %c0_i32_0 : i32, i32, i32
  }
  func.func @transform_2(%arg0: i32, %arg1: i32) -> (i32, i32, i32) {
    %c0_i32 = arith.constant 0 : i32
    %c0_i32_0 = arith.constant 0 : i32
    %c0_i32_1 = arith.constant 0 : i32
    return %arg0, %c0_i32, %c0_i32_0 : i32, i32, i32
  }
  func.func @transform_3(%arg0: i32, %arg1: i32) -> (i32, i32, i32, i32) {
    %c0_i32 = arith.constant 0 : i32
    %c0_i32_0 = arith.constant 0 : i32
    %c0_i32_1 = arith.constant 0 : i32
    return %arg0, %arg1, %c0_i32, %c0_i32_0 : i32, i32, i32, i32
  }
}

</mosaic_0001>

<llo_original>
// kernel: conv_up_with_skip_forward.6
$region0: #{conv_up_with_skip_forward.6}
  #allocation0 [shape = 'u32[]', space=smem, size = 0x4, offset = 0x4, fixed_abs, tag = 'smem constant byte address 0x4 - core index']
  #allocation1 [shape = 'u32[72,128]{1,0:T(1,128)}', space=vmem, size = 0x9000, scoped, tag = 'internal scratch']
  %s0 = inlined_call_operand.vmem [shape: bf16[2,9,32,90], index: 0, kind: input, shape index: {}, may-alias: {0,1}]
  %s1 = inlined_call_operand.vmem [shape: bf16[2,9,32,90], index: 1, kind: input, shape index: {}, may-alias: {0,1}]
  %s2 = inlined_call_operand.hbm [shape: bf16[128,256], index: 2, kind: input, shape index: {}]
  %s3 = inlined_call_operand.vmem [shape: f32[1,72], index: 3, kind: input, shape index: {}]
  %s4 = inlined_call_operand.vmem [shape: bf16[2,8,128,72], index: 4, kind: output, shape index: {0}]
  %s5 = inlined_call_operand.vmem [shape: f32[2,128,2], index: 5, kind: output, shape index: {1}]
  %6 = xla_tuple %s4, %s5
  %s7 = sld [smem:[#allocation0]]
  $region69: #{conv_up_with_skip_forward.6} parent=0
    _
  %s9 = ssub.s32 1, %s7
  %s10 = scalar_select 0, %s9, %s7
  $region1: #{conv_up_with_skip_forward.6} parent=0
    #allocation2 [shape = 'u8[65536]{0}', space=vmem, size = 0x10000, scoped, tag = 'input window, operand 2, single buffered']
    #allocation3 [shape = 's32[2]{0}', space=sflag, size = 0x8, scoped, tag = 'scoped memory for conv_up_with_skip_forward.6']
    %11 = vsyncpa [#allocation3], 0
    loop: start=0, step=1, limit=18
    $region2: #{conv_up_with_skip_forward.6} parent=1 // loop_pre_header
      _
    $region3: #{conv_up_with_skip_forward.6} parent=1 // loop_header
      %s13 = sphi 0, %s17
      %p14 = scmp.ge.s32.totalorder %s13, 18
      %s20 = sphi 0, %s32
      %s21 = sphi 0, %s28
      %s22 = sphi 0, %s20
      %s23 = sphi 0, %s21
      %s24 = sphi 0, %s22
      %s25 = sphi 0, %s23
      %s37 = sphi 0, %s39
      %s40 = sphi 0, %s37
      %s41 = sphi 0, %s40
      %s57 = sphi 0, %s41
      %s67 = sphi 0, %s69
      %s70 = sphi 0, %s67
      %s71 = sphi 0, %s70
      %s87 = sphi 0, %s71
      %s91 = sphi 0, %s91
      %s93 = sphi 0, %s91
      %s94 = sphi 0, %s93
      %s108 = sphi 0, %s94
      %s112 = sphi 0, %s112
      %s114 = sphi 0, %s112
      %s115 = sphi 0, %s114
      %s129 = sphi 0, %s115
      %s137 = sphi 0, %s139
      %s140 = sphi 0, %s137
      %s141 = sphi 0, %s140
      %s157 = sphi 0, %s141
      %s163 = sphi 0, %s165
      %s166 = sphi 0, %s163
      %s167 = sphi 0, %s166
      %s183 = sphi 0, %s167
    $region4: #{conv_up_with_skip_forward.6} parent=1 // loop_header_branch
      %16 = sbr.rel (%p14) target = $region8
    $region5: #{conv_up_with_skip_forward.6} parent=1 // loop_body
      %s18 = ssub.s32 %s13, 1
      %s19 = ssub.s32 %s13, 2
      %s26 = sadd.s32 1, %s21
      %p27 = scmp.ge.s32.totalorder %s26, 8
      %s28 = scalar_select %p27, 0, %s26
      %s29 = sadd.s32 1, %s20
      %s30 = scalar_select %p27, %s29, %s20
      %p31 = scmp.ge.s32.totalorder %s30, 2
      %s32 = scalar_select %p31, 0, %s30
      %s33 = ssub.s32 %s20, %s32
      %s34 = ssub.s32 %s21, %s28
      %s35 = sor.u32 %s33, %s34
      %p36 = scmp.eq.s32.totalorder %s35, 0
      %s38 = sadd.s32 %s37, 1
      %s39 = scalar_select %p36, %s37, %s38
      %p42 = pneg %p36
      %p43 = scmp.eq.s32.totalorder %s13, 15
      %p44 = por %p42, %p43
      %p45 = scmp.ne.s32.totalorder %s37, %s40
      %p46 = scmp.eq.s32.totalorder %s13, 0
      %p47 = por %p45, %p46
      %p48 = scmp.ne.s32.totalorder %s37, %s40
      %p49 = scmp.eq.s32.totalorder %s18, 15
      %p50 = por %p48, %p49
      %p51 = scmp.ne.s32.totalorder %s40, %s41
      %p52 = scmp.eq.s32.totalorder %s18, 0
      %p53 = por %p51, %p52
      %p54 = scmp.ne.s32.totalorder %s40, %s41
      %p55 = scmp.eq.s32.totalorder %s19, 15
      %p56 = por %p54, %p55
      %p58 = scmp.ne.s32.totalorder %s41, %s57
      %p59 = scmp.eq.s32.totalorder %s19, 0
      %p60 = por %p58, %p59
      %s61 = sadd.s32 %s21, 1
      %s62 = sadd.s32 %s28, 1
      %s63 = ssub.s32 %s20, %s32
      %s64 = ssub.s32 %s61, %s62
      %s65 = sor.u32 %s63, %s64
      %p66 = scmp.eq.s32.totalorder %s65, 0
      %s68 = sadd.s32 %s67, 1
      %s69 = scalar_select %p66, %s67, %s68
      %p72 = pneg %p66
      %p73 = scmp.eq.s32.totalorder %s13, 15
      %p74 = por %p72, %p73
      %p75 = scmp.ne.s32.totalorder %s67, %s70
      %p76 = scmp.eq.s32.totalorder %s13, 0
      %p77 = por %p75, %p76
      %p78 = scmp.ne.s32.totalorder %s67, %s70
      %p79 = scmp.eq.s32.totalorder %s18, 15
      %p80 = por %p78, %p79
      %p81 = scmp.ne.s32.totalorder %s70, %s71
      %p82 = scmp.eq.s32.totalorder %s18, 0
      %p83 = por %p81, %p82
      %p84 = scmp.ne.s32.totalorder %s70, %s71
      %p85 = scmp.eq.s32.totalorder %s19, 15
      %p86 = por %p84, %p85
      %p88 = scmp.ne.s32.totalorder %s71, %s87
      %p89 = scmp.eq.s32.totalorder %s19, 0
      %p90 = por %p88, %p89
      %s92 = sadd.s32 %s91, 1
      %p95 = scmp.eq.s32.totalorder %s13, 15
      %p96 = scmp.ne.s32.totalorder %s91, %s93
      %p97 = scmp.eq.s32.totalorder %s13, 0
      %p98 = por %p96, %p97
      %p99 = scmp.ne.s32.totalorder %s91, %s93
      %p100 = scmp.eq.s32.totalorder %s18, 15
      %p101 = por %p99, %p100
      %p102 = scmp.ne.s32.totalorder %s93, %s94
      %p103 = scmp.eq.s32.totalorder %s18, 0
      %p104 = por %p102, %p103
      %p105 = scmp.ne.s32.totalorder %s93, %s94
      %p106 = scmp.eq.s32.totalorder %s19, 15
      %p107 = por %p105, %p106
      %p109 = scmp.ne.s32.totalorder %s94, %s108
      %p110 = scmp.eq.s32.totalorder %s19, 0
      %p111 = por %p109, %p110
      %s113 = sadd.s32 %s112, 1
      %p116 = scmp.eq.s32.totalorder %s13, 15
      %p117 = scmp.ne.s32.totalorder %s112, %s114
      %p118 = scmp.eq.s32.totalorder %s13, 0
      %p119 = por %p117, %p118
      %p120 = scmp.ne.s32.totalorder %s112, %s114
      %p121 = scmp.eq.s32.totalorder %s18, 15
      %p122 = por %p120, %p121
      %p123 = scmp.ne.s32.totalorder %s114, %s115
      %p124 = scmp.eq.s32.totalorder %s18, 0
      %p125 = por %p123, %p124
      %p126 = scmp.ne.s32.totalorder %s114, %s115
      %p127 = scmp.eq.s32.totalorder %s19, 15
      %p128 = por %p126, %p127
      %p130 = scmp.ne.s32.totalorder %s115, %s129
      %p131 = scmp.eq.s32.totalorder %s19, 0
      %p132 = por %p130, %p131
      %s133 = ssub.s32 %s20, %s32
      %s134 = ssub.s32 %s21, %s28
      %s135 = sor.u32 %s133, %s134
      %p136 = scmp.eq.s32.totalorder %s135, 0
      %s138 = sadd.s32 %s137, 1
      %s139 = scalar_select %p136, %s137, %s138
      %p142 = pneg %p136
      %p143 = scmp.eq.s32.totalorder %s13, 15
      %p144 = por %p142, %p143
      %p145 = scmp.ne.s32.totalorder %s137, %s140
      %p146 = scmp.eq.s32.totalorder %s13, 0
      %p147 = por %p145, %p146
      %p148 = scmp.ne.s32.totalorder %s137, %s140
      %p149 = scmp.eq.s32.totalorder %s18, 15
      %p150 = por %p148, %p149
      %p151 = scmp.ne.s32.totalorder %s140, %s141
      %p152 = scmp.eq.s32.totalorder %s18, 0
      %p153 = por %p151, %p152
      %p154 = scmp.ne.s32.totalorder %s140, %s141
      %p155 = scmp.eq.s32.totalorder %s19, 15
      %p156 = por %p154, %p155
      %p158 = scmp.ne.s32.totalorder %s141, %s157
      %p159 = scmp.eq.s32.totalorder %s19, 0
      %p160 = por %p158, %p159
      %s161 = ssub.s32 %s20, %s32
      %p162 = scmp.eq.s32.totalorder %s161, 0
      %s164 = sadd.s32 %s163, 1
      %s165 = scalar_select %p162, %s163, %s164
      %p168 = pneg %p162
      %p169 = scmp.eq.s32.totalorder %s13, 15
      %p170 = por %p168, %p169
      %p171 = scmp.ne.s32.totalorder %s163, %s166
      %p172 = scmp.eq.s32.totalorder %s13, 0
      %p173 = por %p171, %p172
      %p174 = scmp.ne.s32.totalorder %s163, %s166
      %p175 = scmp.eq.s32.totalorder %s18, 15
      %p176 = por %p174, %p175
      %p177 = scmp.ne.s32.totalorder %s166, %s167
      %p178 = scmp.eq.s32.totalorder %s18, 0
      %p179 = por %p177, %p178
      %p180 = scmp.ne.s32.totalorder %s166, %s167
      %p181 = scmp.eq.s32.totalorder %s19, 15
      %p182 = por %p180, %p181
      %p184 = scmp.ne.s32.totalorder %s167, %s183
      %p185 = scmp.eq.s32.totalorder %s19, 0
      %p186 = por %p184, %p185
      %p187 = scmp.le.s32.totalorder 1, %s13
      %p188 = scmp.lt.s32.totalorder %s13, 17
      %p189 = pnand %p187, %p188
      %p190 = pneg %p189
      // Predicated region
      $region9: #{conv_up_with_skip_forward.6} parent=5 // pred_check
        _
      $region10: #{conv_up_with_skip_forward.6} parent=5 // pred_check_branch
        %192 = sbr.rel (%p189) target = $region12
      $region11: #{conv_up_with_skip_forward.6} parent=5 // pred_region
        %s193 = ssub.s32 %s13, 1
        // Predicated region
        $region13: #{conv_up_with_skip_forward.6} parent=11 // pred_check
          %p194 = pneg %p104
        $region14: #{conv_up_with_skip_forward.6} parent=11 // pred_check_branch
          %196 = sbr.rel (%p194) target = $region16
        $region15: #{conv_up_with_skip_forward.6} parent=11 // pred_region
          %198 = vsyncadd [#allocation3], 0
          %s199 = sshll.u32 %s2, 4
          %s200 = int_to_ptr.hbm [resolvable:$true] %s199
          %s201 = sshll.u32 [#allocation2], 4
          %s202 = int_to_ptr.vmem [resolvable:$true] %s201
          %207 = dma.hbm_to_vmem [thread:$0]  %s200, 2048, %s202, [#allocation3], 128, 128, 8
        $region16: #{conv_up_with_skip_forward.6} parent=11 // pred_fallthru
          _
        // Predicated region
        $region17: #{conv_up_with_skip_forward.6} parent=11 // pred_check
          %p208 = pneg %p125
        $region18: #{conv_up_with_skip_forward.6} parent=11 // pred_check_branch
          %210 = sbr.rel (%p208) target = $region20
        $region19: #{conv_up_with_skip_forward.6} parent=11 // pred_region
          _
        $region20: #{conv_up_with_skip_forward.6} parent=11 // pred_fallthru
          _
      $region12: #{conv_up_with_skip_forward.6} parent=5 // pred_fallthru
        _
      %p211 = scmp.lt.s32.totalorder %s13, 16
      // Predicated region
      $region21: #{conv_up_with_skip_forward.6} parent=5 // pred_check
        %p212 = pneg %p211
      $region22: #{conv_up_with_skip_forward.6} parent=5 // pred_check_branch
        %214 = sbr.rel (%p212) target = $region24
      $region23: #{conv_up_with_skip_forward.6} parent=5 // pred_region
        // Predicated region
        $region25: #{conv_up_with_skip_forward.6} parent=23 // pred_check
          %p215 = pneg %p47
        $region26: #{conv_up_with_skip_forward.6} parent=23 // pred_check_branch
          %217 = sbr.rel (%p215) target = $region28
        $region27: #{conv_up_with_skip_forward.6} parent=23 // pred_region
          %p218 = scmp.lt.s32.totalorder %s20, 1
          %s219 = scalar_select %p218, %s20, 1
          %p220 = scmp.lt.s32.totalorder %s21, 8
          %s221 = scalar_select %p220, %s21, 8
          %s222 = smul.addr %s221, 4
          %s223 = smul.addr %s219, 36
          %s224 = sadd.s32 %s222, %s223
          %s225 = smul.addr %s224, 4
          %s226 = scalar_lea.vmem %s0, %s225
        $region28: #{conv_up_with_skip_forward.6} parent=23 // pred_fallthru
          _
        // Predicated region
        $region29: #{conv_up_with_skip_forward.6} parent=23 // pred_check
          %p227 = pneg %p77
        $region30: #{conv_up_with_skip_forward.6} parent=23 // pred_check_branch
          %229 = sbr.rel (%p227) target = $region32
        $region31: #{conv_up_with_skip_forward.6} parent=23 // pred_region
          %s230 = sadd.s32 %s21, 1
          %p231 = scmp.lt.s32.totalorder %s20, 1
          %s232 = scalar_select %p231, %s20, 1
          %p233 = scmp.lt.s32.totalorder %s230, 8
          %s234 = scalar_select %p233, %s230, 8
          %s235 = smul.addr %s234, 4
          %s236 = smul.addr %s232, 36
          %s237 = sadd.s32 %s235, %s236
          %s238 = smul.addr %s237, 4
          %s239 = scalar_lea.vmem %s1, %s238
          %s240 = sadd.s32 %s21, 1
        $region32: #{conv_up_with_skip_forward.6} parent=23 // pred_fallthru
          _
      $region24: #{conv_up_with_skip_forward.6} parent=5 // pred_fallthru
        _
      %p241 = scmp.le.s32.totalorder 1, %s13
      %p242 = scmp.lt.s32.totalorder %s13, 17
      %p243 = pnand %p241, %p242
      %p244 = pneg %p243
      // Predicated region
      $region33: #{conv_up_with_skip_forward.6} parent=5 // pred_check
        _
      $region34: #{conv_up_with_skip_forward.6} parent=5 // pred_check_branch
        %246 = sbr.rel (%p243) target = $region36
      $region35: #{conv_up_with_skip_forward.6} parent=5 // pred_region
        %s247 = ssub.s32 %s13, 1
        // Predicated region
        $region37: #{conv_up_with_skip_forward.6} parent=35 // pred_check
          %p248 = pneg %p104
        $region38: #{conv_up_with_skip_forward.6} parent=35 // pred_check_branch
          %250 = sbr.rel (%p248) target = $region40
        $region39: #{conv_up_with_skip_forward.6} parent=35 // pred_region
          %252 = dma.done [#allocation3], 2048
        $region40: #{conv_up_with_skip_forward.6} parent=35 // pred_fallthru
          _
        %p253 = scmp.lt.s32.totalorder %s22, 1
        %s254 = scalar_select %p253, %s22, 1
        %p255 = scmp.lt.s32.totalorder %s23, 8
        %s256 = scalar_select %p255, %s23, 8
        %s257 = smul.addr %s256, 4
        %s258 = smul.addr %s254, 36
        %s259 = sadd.s32 %s257, %s258
        %s260 = smul.addr %s259, 4
        %s261 = scalar_lea.vmem %s0, %s260
        %p262 = pneg %p53
        %p263 = pneg %p50
        %s264 = sadd.s32 %s23, 1
        %p265 = scmp.lt.s32.totalorder %s22, 1
        %s266 = scalar_select %p265, %s22, 1
        %p267 = scmp.lt.s32.totalorder %s264, 8
        %s268 = scalar_select %p267, %s264, 8
        %s269 = smul.addr %s268, 4
        %s270 = smul.addr %s266, 36
        %s271 = sadd.s32 %s269, %s270
        %s272 = smul.addr %s271, 4
        %s273 = scalar_lea.vmem %s1, %s272
        %p274 = pneg %p83
        %p275 = pneg %p80
        %p276 = pneg %p104
        %p277 = pneg %p101
        %p278 = pneg %p125
        %p279 = pneg %p122
        %p280 = pneg %p153
        %p281 = pneg %p150
        %p282 = scmp.lt.s32.totalorder %s22, 1
        %s283 = scalar_select %p282, %s22, 1
        %p284 = scmp.lt.s32.totalorder %s23, 7
        %s285 = scalar_select %p284, %s23, 7
        %s286 = smul.addr %s285, 16
        %s287 = smul.addr %s283, 128
        %s288 = sadd.s32 %s286, %s287
        %s289 = smul.addr %s288, 4
        %s290 = scalar_lea.vmem %s4, %s289
        %p291 = pneg %p179
        %p292 = pneg %p176
        %p293 = scmp.lt.s32.totalorder %s22, 1
        %s294 = scalar_select %p293, %s22, 1
        %s295 = smul.addr %s294, 16
        %s296 = smul.addr %s295, 8
        %s297 = scalar_lea.vmem %s5, %s296
        %p298 = scmp.lt.s32.totalorder %s22, 1
        %s299 = scalar_select %p298, %s22, 1
        %p300 = scmp.lt.s32.totalorder %s23, 8
        %s301 = scalar_select %p300, %s23, 8
        %s302 = smul.addr %s301, 4
        %s303 = smul.addr %s299, 36
        %s304 = sadd.s32 %s302, %s303
        %s305 = smul.addr %s304, 4
        %s306 = scalar_lea.vmem %s0, %s305
        %s307 = sadd.s32 %s23, 1
        %p308 = scmp.lt.s32.totalorder %s22, 1
        %s309 = scalar_select %p308, %s22, 1
        %p310 = scmp.lt.s32.totalorder %s307, 8
        %s311 = scalar_select %p310, %s307, 8
        %s312 = smul.addr %s311, 4
        %s313 = smul.addr %s309, 36
        %s314 = sadd.s32 %s312, %s313
        %s315 = smul.addr %s314, 4
        %s316 = scalar_lea.vmem %s1, %s315
        %s317 = sadd.s32 %s23, 1
        %p318 = scmp.lt.s32.totalorder %s22, 1
        %s319 = scalar_select %p318, %s22, 1
        %p320 = scmp.lt.s32.totalorder %s23, 7
        %s321 = scalar_select %p320, %s23, 7
        %s322 = smul.addr %s321, 16
        %s323 = smul.addr %s319, 128
        %s324 = sadd.s32 %s322, %s323
        %s325 = smul.addr %s324, 4
        %s326 = scalar_lea.vmem %s4, %s325
        %p327 = scmp.lt.s32.totalorder %s22, 1
        %s328 = scalar_select %p327, %s22, 1
        %s329 = smul.addr %s328, 16
        %s330 = smul.addr %s329, 8
        %s331 = scalar_lea.vmem %s5, %s330
        %v333 = vld [vmem:[%s306] sm:$0xf]
        %v334 = vld [vmem:[%s306 + $0x4] sm:$0xf]
        %v335 = vld [vmem:[%s306 + $0x8] sm:$0xf]
        %v336 = vld [vmem:[%s306 + $0xc] sm:$0xf]
        %v337 = vld [vmem:[#allocation2] sm:$0xf]
        %v338 = vld [vmem:[#allocation2 + $0x8] sm:$0xf]
        %v339 = vld [vmem:[#allocation2 + $0x10] sm:$0xf]
        %v340 = vld [vmem:[#allocation2 + $0x18] sm:$0xf]
        %v341 = vld [vmem:[#allocation2 + $0x20] sm:$0xf]
        %v342 = vld [vmem:[#allocation2 + $0x28] sm:$0xf]
        %v343 = vld [vmem:[#allocation2 + $0x30] sm:$0xf]
        %v344 = vld [vmem:[#allocation2 + $0x38] sm:$0xf]
        %v345 = vld [vmem:[#allocation2 + $0x40] sm:$0xf]
        %v346 = vld [vmem:[#allocation2 + $0x48] sm:$0xf]
        %v347 = vld [vmem:[#allocation2 + $0x50] sm:$0xf]
        %v348 = vld [vmem:[#allocation2 + $0x58] sm:$0xf]
        %v349 = vld [vmem:[#allocation2 + $0x60] sm:$0xf]
        %v350 = vld [vmem:[#allocation2 + $0x68] sm:$0xf]
        %v351 = vld [vmem:[#allocation2 + $0x70] sm:$0xf]
        %v352 = vld [vmem:[#allocation2 + $0x78] sm:$0xf]
        %v369 = vunpack.c.l.b16 %v337
        %v370 = vunpack.c.l.b16 %v338
        %v371 = vunpack.c.l.b16 %v339
        %v372 = vunpack.c.l.b16 %v340
        %v373 = vunpack.c.l.b16 %v341
        %v374 = vunpack.c.l.b16 %v342
        %v375 = vunpack.c.l.b16 %v343
        %v376 = vunpack.c.l.b16 %v344
        %v377 = vunpack.c.l.b16 %v345
        %v378 = vunpack.c.l.b16 %v346
        %v379 = vunpack.c.l.b16 %v347
        %v380 = vunpack.c.l.b16 %v348
        %v381 = vunpack.c.l.b16 %v349
        %v382 = vunpack.c.l.b16 %v350
        %v383 = vunpack.c.l.b16 %v351
        %v384 = vunpack.c.l.b16 %v352
        %v385 = vpack.c.b16 %v370, %v369
        %v386 = vpack.c.b16 %v372, %v371
        %v387 = vpack.c.b16 %v374, %v373
        %v388 = vpack.c.b16 %v376, %v375
        %v389 = vpack.c.b16 %v378, %v377
        %v390 = vpack.c.b16 %v380, %v379
        %v391 = vpack.c.b16 %v382, %v381
        %v392 = vpack.c.b16 %v384, %v383
        %393 = vrot.lane.b32.xlu0 %v385, 96
        %v394 = vpop.permute.xlu0 %393
        %395 = vrot.lane.b32.xlu0 %v386, 96
        %v396 = vpop.permute.xlu0 %395
        %397 = vrot.lane.b32.xlu0 %v387, 96
        %v398 = vpop.permute.xlu0 %397
        %399 = vrot.lane.b32.xlu0 %v388, 96
        %v400 = vpop.permute.xlu0 %399
        %401 = vrot.lane.b32.xlu0 %v389, 96
        %v402 = vpop.permute.xlu0 %401
        %403 = vrot.lane.b32.xlu0 %v390, 96
        %v404 = vpop.permute.xlu0 %403
        %405 = vrot.lane.b32.xlu0 %v391, 96
        %v406 = vpop.permute.xlu0 %405
        %407 = vrot.lane.b32.xlu0 %v392, 96
        %v408 = vpop.permute.xlu0 %407
        %v413 = vunpack.c.l.b16 %v333
        %v414 = vunpack.c.l.b16 %v334
        %v415 = vunpack.c.l.b16 %v335
        %v416 = vunpack.c.l.b16 %v336
        %v417 = vpack.c.b16 %v414, %v413
        %v418 = vpack.c.b16 %v416, %v415
        %419 = vrot.lane.b32.xlu0 %v417, 127
        %v420 = vpop.permute.xlu0 %419
        %421 = vrot.lane.b32.xlu0 %v418, 127
        %v422 = vpop.permute.xlu0 %421
        %vm425 = vcmask 261120
        %v427 = vsel %vm425, %v394, 0
        %v430 = vsel %vm425, %v396, 0
        %v433 = vsel %vm425, %v398, 0
        %v436 = vsel %vm425, %v400, 0
        %v439 = vsel %vm425, %v402, 0
        %v442 = vsel %vm425, %v404, 0
        %v445 = vsel %vm425, %v406, 0
        %v448 = vsel %vm425, %v408, 0
        %450 = vmatpush.bf16.msra.mxu0 0
        %451 = vmatpush.bf16.msra.mxu0 0
        %452 = vmatpush.bf16.msra.mxu0 0
        %453 = vmatpush.bf16.msra.mxu0 0
        %454 = vmatpush.bf16.msra.mxu0 0
        %455 = vmatpush.bf16.msra.mxu0 0
        %456 = vmatpush.bf16.msra.mxu0 %v422
        %457 = vmatpush.bf16.msra.mxu0 %v420
        %458 = vmatmul.bf16.gmra.mxu0 %v427
        %v459 = vpop.f32.mrf.mxu0
        %v460 = vadd.f32 0.0, %v459
        %v461 = vpop.f32.mrf.mxu0
        %v462 = vadd.f32 0.0, %v461
        %463 = vmatmul.bf16.gmra.mxu0 %v430
        %v464 = vpop.f32.mrf.mxu0
        %v465 = vadd.f32 0.0, %v464
        %v466 = vpop.f32.mrf.mxu0
        %v467 = vadd.f32 0.0, %v466
        %468 = vmatmul.bf16.gmra.mxu0 %v433
        %v469 = vpop.f32.mrf.mxu0
        %v470 = vadd.f32 0.0, %v469
        %v471 = vpop.f32.mrf.mxu0
        %v472 = vadd.f32 0.0, %v471
        %473 = vmatmul.bf16.gmra.mxu0 %v436
        %v474 = vpop.f32.mrf.mxu0
        %v475 = vadd.f32 0.0, %v474
        %v476 = vpop.f32.mrf.mxu0
        %v477 = vadd.f32 0.0, %v476
        %478 = vmatmul.bf16.gmra.mxu0 %v439
        %v479 = vpop.f32.mrf.mxu0
        %v480 = vadd.f32 0.0, %v479
        %v481 = vpop.f32.mrf.mxu0
        %v482 = vadd.f32 0.0, %v481
        %483 = vmatmul.bf16.gmra.mxu0 %v442
        %v484 = vpop.f32.mrf.mxu0
        %v485 = vadd.f32 0.0, %v484
        %v486 = vpop.f32.mrf.mxu0
        %v487 = vadd.f32 0.0, %v486
        %488 = vmatmul.bf16.gmra.mxu0 %v445
        %v489 = vpop.f32.mrf.mxu0
        %v490 = vadd.f32 0.0, %v489
        %v491 = vpop.f32.mrf.mxu0
        %v492 = vadd.f32 0.0, %v491
        %493 = vmatmul.bf16.gmra.mxu0 %v448
        %v494 = vpop.f32.mrf.mxu0
        %v495 = vadd.f32 0.0, %v494
        %v496 = vpop.f32.mrf.mxu0
        %v497 = vadd.f32 0.0, %v496
        %498 = vdwg.mxu0
        %v502 = vsel %vm425, %v385, 0
        %v505 = vsel %vm425, %v386, 0
        %v508 = vsel %vm425, %v387, 0
        %v511 = vsel %vm425, %v388, 0
        %v514 = vsel %vm425, %v389, 0
        %v517 = vsel %vm425, %v390, 0
        %v520 = vsel %vm425, %v391, 0
        %v523 = vsel %vm425, %v392, 0
        %525 = vmatpush.bf16.msra.mxu0 0
        %526 = vmatpush.bf16.msra.mxu0 0
        %527 = vmatpush.bf16.msra.mxu0 0
        %528 = vmatpush.bf16.msra.mxu0 0
        %529 = vmatpush.bf16.msra.mxu0 0
        %530 = vmatpush.bf16.msra.mxu0 0
        %531 = vmatpush.bf16.msra.mxu0 %v418
        %532 = vmatpush.bf16.msra.mxu0 %v417
        %533 = vmatmul.bf16.gmra.mxu0 %v502
        %v534 = vpop.f32.mrf.mxu0
        %v535 = vadd.f32 %v460, %v534
        %v536 = vpop.f32.mrf.mxu0
        %v537 = vadd.f32 %v462, %v536
        %538 = vmatmul.bf16.gmra.mxu0 %v505
        %v539 = vpop.f32.mrf.mxu0
        %v540 = vadd.f32 %v465, %v539
        %v541 = vpop.f32.mrf.mxu0
        %v542 = vadd.f32 %v467, %v541
        %543 = vmatmul.bf16.gmra.mxu0 %v508
        %v544 = vpop.f32.mrf.mxu0
        %v545 = vadd.f32 %v470, %v544
        %v546 = vpop.f32.mrf.mxu0
        %v547 = vadd.f32 %v472, %v546
        %548 = vmatmul.bf16.gmra.mxu0 %v511
        %v549 = vpop.f32.mrf.mxu0
        %v550 = vadd.f32 %v475, %v549
        %v551 = vpop.f32.mrf.mxu0
        %v552 = vadd.f32 %v477, %v551
        %553 = vmatmul.bf16.gmra.mxu0 %v514
        %v554 = vpop.f32.mrf.mxu0
        %v555 = vadd.f32 %v480, %v554
        %v556 = vpop.f32.mrf.mxu0
        %v557 = vadd.f32 %v482, %v556
        %558 = vmatmul.bf16.gmra.mxu0 %v517
        %v559 = vpop.f32.mrf.mxu0
        %v560 = vadd.f32 %v485, %v559
        %v561 = vpop.f32.mrf.mxu0
        %v562 = vadd.f32 %v487, %v561
        %563 = vmatmul.bf16.gmra.mxu0 %v520
        %v564 = vpop.f32.mrf.mxu0
        %v565 = vadd.f32 %v490, %v564
        %v566 = vpop.f32.mrf.mxu0
        %v567 = vadd.f32 %v492, %v566
        %568 = vmatmul.bf16.gmra.mxu0 %v523
        %v569 = vpop.f32.mrf.mxu0
        %v570 = vadd.f32 %v495, %v569
        %v571 = vpop.f32.mrf.mxu0
        %v572 = vadd.f32 %v497, %v571
        %573 = vdwg.mxu0
        %574 = vrot.lane.b32.xlu0 %v385, 64
        %v575 = vpop.permute.xlu0 %574
        %576 = vrot.lane.b32.xlu0 %v386, 64
        %v577 = vpop.permute.xlu0 %576
        %578 = vrot.lane.b32.xlu0 %v387, 64
        %v579 = vpop.permute.xlu0 %578
        %580 = vrot.lane.b32.xlu0 %v388, 64
        %v581 = vpop.permute.xlu0 %580
        %582 = vrot.lane.b32.xlu0 %v389, 64
        %v583 = vpop.permute.xlu0 %582
        %584 = vrot.lane.b32.xlu0 %v390, 64
        %v585 = vpop.permute.xlu0 %584
        %586 = vrot.lane.b32.xlu0 %v391, 64
        %v587 = vpop.permute.xlu0 %586
        %588 = vrot.lane.b32.xlu0 %v392, 64
        %v589 = vpop.permute.xlu0 %588
        %590 = vrot.lane.b32.xlu0 %v417, 119
        %v591 = vpop.permute.xlu0 %590
        %592 = vrot.lane.b32.xlu0 %v418, 119
        %v593 = vpop.permute.xlu0 %592
        %v597 = vsel %vm425, %v575, 0
        %v600 = vsel %vm425, %v577, 0
        %v603 = vsel %vm425, %v579, 0
        %v606 = vsel %vm425, %v581, 0
        %v609 = vsel %vm425, %v583, 0
        %v612 = vsel %vm425, %v585, 0
        %v615 = vsel %vm425, %v587, 0
        %v618 = vsel %vm425, %v589, 0
        %620 = vmatpush.bf16.msra.mxu0 0
        %621 = vmatpush.bf16.msra.mxu0 0
        %622 = vmatpush.bf16.msra.mxu0 0
        %623 = vmatpush.bf16.msra.mxu0 0
        %624 = vmatpush.bf16.msra.mxu0 0
        %625 = vmatpush.bf16.msra.mxu0 0
        %626 = vmatpush.bf16.msra.mxu0 %v593
        %627 = vmatpush.bf16.msra.mxu0 %v591
        %628 = vmatmul.bf16.gmra.mxu0 %v597
        %v629 = vpop.f32.mrf.mxu0
        %v630 = vadd.f32 0.0, %v629
        %v631 = vpop.f32.mrf.mxu0
        %v632 = vadd.f32 0.0, %v631
        %633 = vmatmul.bf16.gmra.mxu0 %v600
        %v634 = vpop.f32.mrf.mxu0
        %v635 = vadd.f32 0.0, %v634
        %v636 = vpop.f32.mrf.mxu0
        %v637 = vadd.f32 0.0, %v636
        %638 = vmatmul.bf16.gmra.mxu0 %v603
        %v639 = vpop.f32.mrf.mxu0
        %v640 = vadd.f32 0.0, %v639
        %v641 = vpop.f32.mrf.mxu0
        %v642 = vadd.f32 0.0, %v641
        %643 = vmatmul.bf16.gmra.mxu0 %v606
        %v644 = vpop.f32.mrf.mxu0
        %v645 = vadd.f32 0.0, %v644
        %v646 = vpop.f32.mrf.mxu0
        %v647 = vadd.f32 0.0, %v646
        %648 = vmatmul.bf16.gmra.mxu0 %v609
        %v649 = vpop.f32.mrf.mxu0
        %v650 = vadd.f32 0.0, %v649
        %v651 = vpop.f32.mrf.mxu0
        %v652 = vadd.f32 0.0, %v651
        %653 = vmatmul.bf16.gmra.mxu0 %v612
        %v654 = vpop.f32.mrf.mxu0
        %v655 = vadd.f32 0.0, %v654
        %v656 = vpop.f32.mrf.mxu0
        %v657 = vadd.f32 0.0, %v656
        %658 = vmatmul.bf16.gmra.mxu0 %v615
        %v659 = vpop.f32.mrf.mxu0
        %v660 = vadd.f32 0.0, %v659
        %v661 = vpop.f32.mrf.mxu0
        %v662 = vadd.f32 0.0, %v661
        %663 = vmatmul.bf16.gmra.mxu0 %v618
        %v664 = vpop.f32.mrf.mxu0
        %v665 = vadd.f32 0.0, %v664
        %v666 = vpop.f32.mrf.mxu0
        %v667 = vadd.f32 0.0, %v666
        %668 = vdwg.mxu0
        %v669 = vadd.f32 %v535, %v630
        %v670 = vadd.f32 %v537, %v632
        %v671 = vadd.f32 %v540, %v635
        %v672 = vadd.f32 %v542, %v637
        %v673 = vadd.f32 %v545, %v640
        %v674 = vadd.f32 %v547, %v642
        %v675 = vadd.f32 %v550, %v645
        %v676 = vadd.f32 %v552, %v647
        %v677 = vadd.f32 %v555, %v650
        %v678 = vadd.f32 %v557, %v652
        %v679 = vadd.f32 %v560, %v655
        %v680 = vadd.f32 %v562, %v657
        %v681 = vadd.f32 %v565, %v660
        %v682 = vadd.f32 %v567, %v662
        %v683 = vadd.f32 %v570, %v665
        %v684 = vadd.f32 %v572, %v667
        %685 = vrot.lane.b32.xlu0 %v385, 32
        %v686 = vpop.permute.xlu0 %685
        %687 = vrot.lane.b32.xlu0 %v386, 32
        %v688 = vpop.permute.xlu0 %687
        %689 = vrot.lane.b32.xlu0 %v387, 32
        %v690 = vpop.permute.xlu0 %689
        %691 = vrot.lane.b32.xlu0 %v388, 32
        %v692 = vpop.permute.xlu0 %691
        %693 = vrot.lane.b32.xlu0 %v389, 32
        %v694 = vpop.permute.xlu0 %693
        %695 = vrot.lane.b32.xlu0 %v390, 32
        %v696 = vpop.permute.xlu0 %695
        %697 = vrot.lane.b32.xlu0 %v391, 32
        %v698 = vpop.permute.xlu0 %697
        %699 = vrot.lane.b32.xlu0 %v392, 32
        %v700 = vpop.permute.xlu0 %699
        %701 = vrot.lane.b32.xlu0 %v417, 118
        %v702 = vpop.permute.xlu0 %701
        %703 = vrot.lane.b32.xlu0 %v418, 118
        %v704 = vpop.permute.xlu0 %703
        %v708 = vsel %vm425, %v686, 0
        %v711 = vsel %vm425, %v688, 0
        %v714 = vsel %vm425, %v690, 0
        %v717 = vsel %vm425, %v692, 0
        %v720 = vsel %vm425, %v694, 0
        %v723 = vsel %vm425, %v696, 0
        %v726 = vsel %vm425, %v698, 0
        %v729 = vsel %vm425, %v700, 0
        %731 = vmatpush.bf16.msra.mxu0 0
        %732 = vmatpush.bf16.msra.mxu0 0
        %733 = vmatpush.bf16.msra.mxu0 0
        %734 = vmatpush.bf16.msra.mxu0 0
        %735 = vmatpush.bf16.msra.mxu0 0
        %736 = vmatpush.bf16.msra.mxu0 0
        %737 = vmatpush.bf16.msra.mxu0 %v704
        %738 = vmatpush.bf16.msra.mxu0 %v702
        %739 = vmatmul.bf16.gmra.mxu0 %v708
        %v740 = vpop.f32.mrf.mxu0
        %v741 = vadd.f32 0.0, %v740
        %v742 = vpop.f32.mrf.mxu0
        %v743 = vadd.f32 0.0, %v742
        %744 = vmatmul.bf16.gmra.mxu0 %v711
        %v745 = vpop.f32.mrf.mxu0
        %v746 = vadd.f32 0.0, %v745
        %v747 = vpop.f32.mrf.mxu0
        %v748 = vadd.f32 0.0, %v747
        %749 = vmatmul.bf16.gmra.mxu0 %v714
        %v750 = vpop.f32.mrf.mxu0
        %v751 = vadd.f32 0.0, %v750
        %v752 = vpop.f32.mrf.mxu0
        %v753 = vadd.f32 0.0, %v752
        %754 = vmatmul.bf16.gmra.mxu0 %v717
        %v755 = vpop.f32.mrf.mxu0
        %v756 = vadd.f32 0.0, %v755
        %v757 = vpop.f32.mrf.mxu0
        %v758 = vadd.f32 0.0, %v757
        %759 = vmatmul.bf16.gmra.mxu0 %v720
        %v760 = vpop.f32.mrf.mxu0
        %v761 = vadd.f32 0.0, %v760
        %v762 = vpop.f32.mrf.mxu0
        %v763 = vadd.f32 0.0, %v762
        %764 = vmatmul.bf16.gmra.mxu0 %v723
        %v765 = vpop.f32.mrf.mxu0
        %v766 = vadd.f32 0.0, %v765
        %v767 = vpop.f32.mrf.mxu0
        %v768 = vadd.f32 0.0, %v767
        %769 = vmatmul.bf16.gmra.mxu0 %v726
        %v770 = vpop.f32.mrf.mxu0
        %v771 = vadd.f32 0.0, %v770
        %v772 = vpop.f32.mrf.mxu0
        %v773 = vadd.f32 0.0, %v772
        %774 = vmatmul.bf16.gmra.mxu0 %v729
        %v775 = vpop.f32.mrf.mxu0
        %v776 = vadd.f32 0.0, %v775
        %v777 = vpop.f32.mrf.mxu0
        %v778 = vadd.f32 0.0, %v777
        %779 = vdwg.mxu0
        %v780 = vadd.f32 %v669, %v741
        %v781 = vadd.f32 %v670, %v743
        %v782 = vadd.f32 %v671, %v746
        %v783 = vadd.f32 %v672, %v748
        %v784 = vadd.f32 %v673, %v751
        %v785 = vadd.f32 %v674, %v753
        %v786 = vadd.f32 %v675, %v756
        %v787 = vadd.f32 %v676, %v758
        %v788 = vadd.f32 %v677, %v761
        %v789 = vadd.f32 %v678, %v763
        %v790 = vadd.f32 %v679, %v766
        %v791 = vadd.f32 %v680, %v768
        %v792 = vadd.f32 %v681, %v771
        %v793 = vadd.f32 %v682, %v773
        %v794 = vadd.f32 %v683, %v776
        %v795 = vadd.f32 %v684, %v778
        %v796 = vld [vmem:[%s316] sm:$0xf]
        %v797 = vld [vmem:[%s316 + $0x4] sm:$0xf]
        %v798 = vld [vmem:[%s316 + $0x8] sm:$0xf]
        %v799 = vld [vmem:[%s316 + $0xc] sm:$0xf]
        %v800 = vld [vmem:[#allocation2 + $0x4] sm:$0xf]
        %v801 = vld [vmem:[#allocation2 + $0xc] sm:$0xf]
        %v802 = vld [vmem:[#allocation2 + $0x14] sm:$0xf]
        %v803 = vld [vmem:[#allocation2 + $0x1c] sm:$0xf]
        %v804 = vld [vmem:[#allocation2 + $0x24] sm:$0xf]
        %v805 = vld [vmem:[#allocation2 + $0x2c] sm:$0xf]
        %v806 = vld [vmem:[#allocation2 + $0x34] sm:$0xf]
        %v807 = vld [vmem:[#allocation2 + $0x3c] sm:$0xf]
        %v808 = vld [vmem:[#allocation2 + $0x44] sm:$0xf]
        %v809 = vld [vmem:[#allocation2 + $0x4c] sm:$0xf]
        %v810 = vld [vmem:[#allocation2 + $0x54] sm:$0xf]
        %v811 = vld [vmem:[#allocation2 + $0x5c] sm:$0xf]
        %v812 = vld [vmem:[#allocation2 + $0x64] sm:$0xf]
        %v813 = vld [vmem:[#allocation2 + $0x6c] sm:$0xf]
        %v814 = vld [vmem:[#allocation2 + $0x74] sm:$0xf]
        %v815 = vld [vmem:[#allocation2 + $0x7c] sm:$0xf]
        %v832 = vunpack.c.l.b16 %v800
        %v833 = vunpack.c.l.b16 %v801
        %v834 = vunpack.c.l.b16 %v802
        %v835 = vunpack.c.l.b16 %v803
        %v836 = vunpack.c.l.b16 %v804
        %v837 = vunpack.c.l.b16 %v805
        %v838 = vunpack.c.l.b16 %v806
        %v839 = vunpack.c.l.b16 %v807
        %v840 = vunpack.c.l.b16 %v808
        %v841 = vunpack.c.l.b16 %v809
        %v842 = vunpack.c.l.b16 %v810
        %v843 = vunpack.c.l.b16 %v811
        %v844 = vunpack.c.l.b16 %v812
        %v845 = vunpack.c.l.b16 %v813
        %v846 = vunpack.c.l.b16 %v814
        %v847 = vunpack.c.l.b16 %v815
        %v848 = vpack.c.b16 %v833, %v832
        %v849 = vpack.c.b16 %v835, %v834
        %v850 = vpack.c.b16 %v837, %v836
        %v851 = vpack.c.b16 %v839, %v838
        %v852 = vpack.c.b16 %v841, %v840
        %v853 = vpack.c.b16 %v843, %v842
        %v854 = vpack.c.b16 %v845, %v844
        %v855 = vpack.c.b16 %v847, %v846
        %v860 = vunpack.c.l.b16 %v796
        %v861 = vunpack.c.l.b16 %v797
        %v862 = vunpack.c.l.b16 %v798
        %v863 = vunpack.c.l.b16 %v799
        %v864 = vpack.c.b16 %v861, %v860
        %v865 = vpack.c.b16 %v863, %v862
        %v869 = vsel %vm425, %v848, 0
        %v872 = vsel %vm425, %v849, 0
        %v875 = vsel %vm425, %v850, 0
        %v878 = vsel %vm425, %v851, 0
        %v881 = vsel %vm425, %v852, 0
        %v884 = vsel %vm425, %v853, 0
        %v887 = vsel %vm425, %v854, 0
        %v890 = vsel %vm425, %v855, 0
        %892 = vmatpush.bf16.msra.mxu0 0
        %893 = vmatpush.bf16.msra.mxu0 0
        %894 = vmatpush.bf16.msra.mxu0 0
        %895 = vmatpush.bf16.msra.mxu0 0
        %896 = vmatpush.bf16.msra.mxu0 0
        %897 = vmatpush.bf16.msra.mxu0 0
        %898 = vmatpush.bf16.msra.mxu0 %v865
        %899 = vmatpush.bf16.msra.mxu0 %v864
        %900 = vmatmul.bf16.gmra.mxu0 %v869
        %v901 = vpop.f32.mrf.mxu0
        %v902 = vadd.f32 0.0, %v901
        %v903 = vpop.f32.mrf.mxu0
        %v904 = vadd.f32 0.0, %v903
        %905 = vmatmul.bf16.gmra.mxu0 %v872
        %v906 = vpop.f32.mrf.mxu0
        %v907 = vadd.f32 0.0, %v906
        %v908 = vpop.f32.mrf.mxu0
        %v909 = vadd.f32 0.0, %v908
        %910 = vmatmul.bf16.gmra.mxu0 %v875
        %v911 = vpop.f32.mrf.mxu0
        %v912 = vadd.f32 0.0, %v911
        %v913 = vpop.f32.mrf.mxu0
        %v914 = vadd.f32 0.0, %v913
        %915 = vmatmul.bf16.gmra.mxu0 %v878
        %v916 = vpop.f32.mrf.mxu0
        %v917 = vadd.f32 0.0, %v916
        %v918 = vpop.f32.mrf.mxu0
        %v919 = vadd.f32 0.0, %v918
        %920 = vmatmul.bf16.gmra.mxu0 %v881
        %v921 = vpop.f32.mrf.mxu0
        %v922 = vadd.f32 0.0, %v921
        %v923 = vpop.f32.mrf.mxu0
        %v924 = vadd.f32 0.0, %v923
        %925 = vmatmul.bf16.gmra.mxu0 %v884
        %v926 = vpop.f32.mrf.mxu0
        %v927 = vadd.f32 0.0, %v926
        %v928 = vpop.f32.mrf.mxu0
        %v929 = vadd.f32 0.0, %v928
        %930 = vmatmul.bf16.gmra.mxu0 %v887
        %v931 = vpop.f32.mrf.mxu0
        %v932 = vadd.f32 0.0, %v931
        %v933 = vpop.f32.mrf.mxu0
        %v934 = vadd.f32 0.0, %v933
        %935 = vmatmul.bf16.gmra.mxu0 %v890
        %v936 = vpop.f32.mrf.mxu0
        %v937 = vadd.f32 0.0, %v936
        %v938 = vpop.f32.mrf.mxu0
        %v939 = vadd.f32 0.0, %v938
        %940 = vdwg.mxu0
        %v941 = vadd.f32 %v780, %v902
        %v942 = vadd.f32 %v781, %v904
        %v943 = vadd.f32 %v782, %v907
        %v944 = vadd.f32 %v783, %v909
        %v945 = vadd.f32 %v784, %v912
        %v946 = vadd.f32 %v785, %v914
        %v947 = vadd.f32 %v786, %v917
        %v948 = vadd.f32 %v787, %v919
        %v949 = vadd.f32 %v788, %v922
        %v950 = vadd.f32 %v789, %v924
        %v951 = vadd.f32 %v790, %v927
        %v952 = vadd.f32 %v791, %v929
        %v953 = vadd.f32 %v792, %v932
        %v954 = vadd.f32 %v793, %v934
        %v955 = vadd.f32 %v794, %v937
        %v956 = vadd.f32 %v795, %v939
        %957 = vrot.lane.b32.xlu0 %v848, 96
        %v958 = vpop.permute.xlu0 %957
        %959 = vrot.lane.b32.xlu0 %v849, 96
        %v960 = vpop.permute.xlu0 %959
        %961 = vrot.lane.b32.xlu0 %v850, 96
        %v962 = vpop.permute.xlu0 %961
        %963 = vrot.lane.b32.xlu0 %v851, 96
        %v964 = vpop.permute.xlu0 %963
        %965 = vrot.lane.b32.xlu0 %v852, 96
        %v966 = vpop.permute.xlu0 %965
        %967 = vrot.lane.b32.xlu0 %v853, 96
        %v968 = vpop.permute.xlu0 %967
        %969 = vrot.lane.b32.xlu0 %v854, 96
        %v970 = vpop.permute.xlu0 %969
        %971 = vrot.lane.b32.xlu0 %v855, 96
        %v972 = vpop.permute.xlu0 %971
        %973 = vrot.lane.b32.xlu0 %v864, 127
        %v974 = vpop.permute.xlu0 %973
        %975 = vrot.lane.b32.xlu0 %v865, 127
        %v976 = vpop.permute.xlu0 %975
        %v980 = vsel %vm425, %v958, 0
        %v983 = vsel %vm425, %v960, 0
        %v986 = vsel %vm425, %v962, 0
        %v989 = vsel %vm425, %v964, 0
        %v992 = vsel %vm425, %v966, 0
        %v995 = vsel %vm425, %v968, 0
        %v998 = vsel %vm425, %v970, 0
        %v1001 = vsel %vm425, %v972, 0
        %1003 = vmatpush.bf16.msra.mxu0 0
        %1004 = vmatpush.bf16.msra.mxu0 0
        %1005 = vmatpush.bf16.msra.mxu0 0
        %1006 = vmatpush.bf16.msra.mxu0 0
        %1007 = vmatpush.bf16.msra.mxu0 0
        %1008 = vmatpush.bf16.msra.mxu0 0
        %1009 = vmatpush.bf16.msra.mxu0 %v976
        %1010 = vmatpush.bf16.msra.mxu0 %v974
        %1011 = vmatmul.bf16.gmra.mxu0 %v980
        %v1012 = vpop.f32.mrf.mxu0
        %v1013 = vadd.f32 0.0, %v1012
        %v1014 = vpop.f32.mrf.mxu0
        %v1015 = vadd.f32 0.0, %v1014
        %1016 = vmatmul.bf16.gmra.mxu0 %v983
        %v1017 = vpop.f32.mrf.mxu0
        %v1018 = vadd.f32 0.0, %v1017
        %v1019 = vpop.f32.mrf.mxu0
        %v1020 = vadd.f32 0.0, %v1019
        %1021 = vmatmul.bf16.gmra.mxu0 %v986
        %v1022 = vpop.f32.mrf.mxu0
        %v1023 = vadd.f32 0.0, %v1022
        %v1024 = vpop.f32.mrf.mxu0
        %v1025 = vadd.f32 0.0, %v1024
        %1026 = vmatmul.bf16.gmra.mxu0 %v989
        %v1027 = vpop.f32.mrf.mxu0
        %v1028 = vadd.f32 0.0, %v1027
        %v1029 = vpop.f32.mrf.mxu0
        %v1030 = vadd.f32 0.0, %v1029
        %1031 = vmatmul.bf16.gmra.mxu0 %v992
        %v1032 = vpop.f32.mrf.mxu0
        %v1033 = vadd.f32 0.0, %v1032
        %v1034 = vpop.f32.mrf.mxu0
        %v1035 = vadd.f32 0.0, %v1034
        %1036 = vmatmul.bf16.gmra.mxu0 %v995
        %v1037 = vpop.f32.mrf.mxu0
        %v1038 = vadd.f32 0.0, %v1037
        %v1039 = vpop.f32.mrf.mxu0
        %v1040 = vadd.f32 0.0, %v1039
        %1041 = vmatmul.bf16.gmra.mxu0 %v998
        %v1042 = vpop.f32.mrf.mxu0
        %v1043 = vadd.f32 0.0, %v1042
        %v1044 = vpop.f32.mrf.mxu0
        %v1045 = vadd.f32 0.0, %v1044
        %1046 = vmatmul.bf16.gmra.mxu0 %v1001
        %v1047 = vpop.f32.mrf.mxu0
        %v1048 = vadd.f32 0.0, %v1047
        %v1049 = vpop.f32.mrf.mxu0
        %v1050 = vadd.f32 0.0, %v1049
        %1051 = vdwg.mxu0
        %v1052 = vadd.f32 %v941, %v1013
        %v1053 = vadd.f32 %v942, %v1015
        %v1054 = vadd.f32 %v943, %v1018
        %v1055 = vadd.f32 %v944, %v1020
        %v1056 = vadd.f32 %v945, %v1023
        %v1057 = vadd.f32 %v946, %v1025
        %v1058 = vadd.f32 %v947, %v1028
        %v1059 = vadd.f32 %v948, %v1030
        %v1060 = vadd.f32 %v949, %v1033
        %v1061 = vadd.f32 %v950, %v1035
        %v1062 = vadd.f32 %v951, %v1038
        %v1063 = vadd.f32 %v952, %v1040
        %v1064 = vadd.f32 %v953, %v1043
        %v1065 = vadd.f32 %v954, %v1045
        %v1066 = vadd.f32 %v955, %v1048
        %v1067 = vadd.f32 %v956, %v1050
        %1068 = vrot.lane.b32.xlu0 %v848, 64
        %v1069 = vpop.permute.xlu0 %1068
        %1070 = vrot.lane.b32.xlu0 %v849, 64
        %v1071 = vpop.permute.xlu0 %1070
        %1072 = vrot.lane.b32.xlu0 %v850, 64
        %v1073 = vpop.permute.xlu0 %1072
        %1074 = vrot.lane.b32.xlu0 %v851, 64
        %v1075 = vpop.permute.xlu0 %1074
        %1076 = vrot.lane.b32.xlu0 %v852, 64
        %v1077 = vpop.permute.xlu0 %1076
        %1078 = vrot.lane.b32.xlu0 %v853, 64
        %v1079 = vpop.permute.xlu0 %1078
        %1080 = vrot.lane.b32.xlu0 %v854, 64
        %v1081 = vpop.permute.xlu0 %1080
        %1082 = vrot.lane.b32.xlu0 %v855, 64
        %v1083 = vpop.permute.xlu0 %1082
        %1084 = vrot.lane.b32.xlu0 %v864, 119
        %v1085 = vpop.permute.xlu0 %1084
        %1086 = vrot.lane.b32.xlu0 %v865, 119
        %v1087 = vpop.permute.xlu0 %1086
        %v1091 = vsel %vm425, %v1069, 0
        %v1094 = vsel %vm425, %v1071, 0
        %v1097 = vsel %vm425, %v1073, 0
        %v1100 = vsel %vm425, %v1075, 0
        %v1103 = vsel %vm425, %v1077, 0
        %v1106 = vsel %vm425, %v1079, 0
        %v1109 = vsel %vm425, %v1081, 0
        %v1112 = vsel %vm425, %v1083, 0
        %1114 = vmatpush.bf16.msra.mxu0 0
        %1115 = vmatpush.bf16.msra.mxu0 0
        %1116 = vmatpush.bf16.msra.mxu0 0
        %1117 = vmatpush.bf16.msra.mxu0 0
        %1118 = vmatpush.bf16.msra.mxu0 0
        %1119 = vmatpush.bf16.msra.mxu0 0
        %1120 = vmatpush.bf16.msra.mxu0 %v1087
        %1121 = vmatpush.bf16.msra.mxu0 %v1085
        %1122 = vmatmul.bf16.gmra.mxu0 %v1091
        %v1123 = vpop.f32.mrf.mxu0
        %v1124 = vadd.f32 0.0, %v1123
        %v1125 = vpop.f32.mrf.mxu0
        %v1126 = vadd.f32 0.0, %v1125
        %1127 = vmatmul.bf16.gmra.mxu0 %v1094
        %v1128 = vpop.f32.mrf.mxu0
        %v1129 = vadd.f32 0.0, %v1128
        %v1130 = vpop.f32.mrf.mxu0
        %v1131 = vadd.f32 0.0, %v1130
        %1132 = vmatmul.bf16.gmra.mxu0 %v1097
        %v1133 = vpop.f32.mrf.mxu0
        %v1134 = vadd.f32 0.0, %v1133
        %v1135 = vpop.f32.mrf.mxu0
        %v1136 = vadd.f32 0.0, %v1135
        %1137 = vmatmul.bf16.gmra.mxu0 %v1100
        %v1138 = vpop.f32.mrf.mxu0
        %v1139 = vadd.f32 0.0, %v1138
        %v1140 = vpop.f32.mrf.mxu0
        %v1141 = vadd.f32 0.0, %v1140
        %1142 = vmatmul.bf16.gmra.mxu0 %v1103
        %v1143 = vpop.f32.mrf.mxu0
        %v1144 = vadd.f32 0.0, %v1143
        %v1145 = vpop.f32.mrf.mxu0
        %v1146 = vadd.f32 0.0, %v1145
        %1147 = vmatmul.bf16.gmra.mxu0 %v1106
        %v1148 = vpop.f32.mrf.mxu0
        %v1149 = vadd.f32 0.0, %v1148
        %v1150 = vpop.f32.mrf.mxu0
        %v1151 = vadd.f32 0.0, %v1150
        %1152 = vmatmul.bf16.gmra.mxu0 %v1109
        %v1153 = vpop.f32.mrf.mxu0
        %v1154 = vadd.f32 0.0, %v1153
        %v1155 = vpop.f32.mrf.mxu0
        %v1156 = vadd.f32 0.0, %v1155
        %1157 = vmatmul.bf16.gmra.mxu0 %v1112
        %v1158 = vpop.f32.mrf.mxu0
        %v1159 = vadd.f32 0.0, %v1158
        %v1160 = vpop.f32.mrf.mxu0
        %v1161 = vadd.f32 0.0, %v1160
        %1162 = vdwg.mxu0
        %v1163 = vadd.f32 %v1052, %v1124
        %v1164 = vadd.f32 %v1053, %v1126
        %v1165 = vadd.f32 %v1054, %v1129
        %v1166 = vadd.f32 %v1055, %v1131
        %v1167 = vadd.f32 %v1056, %v1134
        %v1168 = vadd.f32 %v1057, %v1136
        %v1169 = vadd.f32 %v1058, %v1139
        %v1170 = vadd.f32 %v1059, %v1141
        %v1171 = vadd.f32 %v1060, %v1144
        %v1172 = vadd.f32 %v1061, %v1146
        %v1173 = vadd.f32 %v1062, %v1149
        %v1174 = vadd.f32 %v1063, %v1151
        %v1175 = vadd.f32 %v1064, %v1154
        %v1176 = vadd.f32 %v1065, %v1156
        %v1177 = vadd.f32 %v1066, %v1159
        %v1178 = vadd.f32 %v1067, %v1161
        %1179 = vrot.lane.b32.xlu0 %v848, 32
        %v1180 = vpop.permute.xlu0 %1179
        %1181 = vrot.lane.b32.xlu0 %v849, 32
        %v1182 = vpop.permute.xlu0 %1181
        %1183 = vrot.lane.b32.xlu0 %v850, 32
        %v1184 = vpop.permute.xlu0 %1183
        %1185 = vrot.lane.b32.xlu0 %v851, 32
        %v1186 = vpop.permute.xlu0 %1185
        %1187 = vrot.lane.b32.xlu0 %v852, 32
        %v1188 = vpop.permute.xlu0 %1187
        %1189 = vrot.lane.b32.xlu0 %v853, 32
        %v1190 = vpop.permute.xlu0 %1189
        %1191 = vrot.lane.b32.xlu0 %v854, 32
        %v1192 = vpop.permute.xlu0 %1191
        %1193 = vrot.lane.b32.xlu0 %v855, 32
        %v1194 = vpop.permute.xlu0 %1193
        %1195 = vrot.lane.b32.xlu0 %v864, 118
        %v1196 = vpop.permute.xlu0 %1195
        %1197 = vrot.lane.b32.xlu0 %v865, 118
        %v1198 = vpop.permute.xlu0 %1197
        %v1202 = vsel %vm425, %v1180, 0
        %v1205 = vsel %vm425, %v1182, 0
        %v1208 = vsel %vm425, %v1184, 0
        %v1211 = vsel %vm425, %v1186, 0
        %v1214 = vsel %vm425, %v1188, 0
        %v1217 = vsel %vm425, %v1190, 0
        %v1220 = vsel %vm425, %v1192, 0
        %v1223 = vsel %vm425, %v1194, 0
        %1225 = vmatpush.bf16.msra.mxu0 0
        %1226 = vmatpush.bf16.msra.mxu0 0
        %1227 = vmatpush.bf16.msra.mxu0 0
        %1228 = vmatpush.bf16.msra.mxu0 0
        %1229 = vmatpush.bf16.msra.mxu0 0
        %1230 = vmatpush.bf16.msra.mxu0 0
        %1231 = vmatpush.bf16.msra.mxu0 %v1198
        %1232 = vmatpush.bf16.msra.mxu0 %v1196
        %1233 = vmatmul.bf16.gmra.mxu0 %v1202
        %v1234 = vpop.f32.mrf.mxu0
        %v1235 = vadd.f32 0.0, %v1234
        %v1236 = vpop.f32.mrf.mxu0
        %v1237 = vadd.f32 0.0, %v1236
        %1238 = vmatmul.bf16.gmra.mxu0 %v1205
        %v1239 = vpop.f32.mrf.mxu0
        %v1240 = vadd.f32 0.0, %v1239
        %v1241 = vpop.f32.mrf.mxu0
        %v1242 = vadd.f32 0.0, %v1241
        %1243 = vmatmul.bf16.gmra.mxu0 %v1208
        %v1244 = vpop.f32.mrf.mxu0
        %v1245 = vadd.f32 0.0, %v1244
        %v1246 = vpop.f32.mrf.mxu0
        %v1247 = vadd.f32 0.0, %v1246
        %1248 = vmatmul.bf16.gmra.mxu0 %v1211
        %v1249 = vpop.f32.mrf.mxu0
        %v1250 = vadd.f32 0.0, %v1249
        %v1251 = vpop.f32.mrf.mxu0
        %v1252 = vadd.f32 0.0, %v1251
        %1253 = vmatmul.bf16.gmra.mxu0 %v1214
        %v1254 = vpop.f32.mrf.mxu0
        %v1255 = vadd.f32 0.0, %v1254
        %v1256 = vpop.f32.mrf.mxu0
        %v1257 = vadd.f32 0.0, %v1256
        %1258 = vmatmul.bf16.gmra.mxu0 %v1217
        %v1259 = vpop.f32.mrf.mxu0
        %v1260 = vadd.f32 0.0, %v1259
        %v1261 = vpop.f32.mrf.mxu0
        %v1262 = vadd.f32 0.0, %v1261
        %1263 = vmatmul.bf16.gmra.mxu0 %v1220
        %v1264 = vpop.f32.mrf.mxu0
        %v1265 = vadd.f32 0.0, %v1264
        %v1266 = vpop.f32.mrf.mxu0
        %v1267 = vadd.f32 0.0, %v1266
        %1268 = vmatmul.bf16.gmra.mxu0 %v1223
        %v1269 = vpop.f32.mrf.mxu0
        %v1270 = vadd.f32 0.0, %v1269
        %v1271 = vpop.f32.mrf.mxu0
        %v1272 = vadd.f32 0.0, %v1271
        %1273 = vdwg.mxu0
        %v1274 = vadd.f32 %v1163, %v1235
        %v1275 = vadd.f32 %v1164, %v1237
        %v1276 = vadd.f32 %v1165, %v1240
        %v1277 = vadd.f32 %v1166, %v1242
        %v1278 = vadd.f32 %v1167, %v1245
        %v1279 = vadd.f32 %v1168, %v1247
        %v1280 = vadd.f32 %v1169, %v1250
        %v1281 = vadd.f32 %v1170, %v1252
        %v1282 = vadd.f32 %v1171, %v1255
        %v1283 = vadd.f32 %v1172, %v1257
        %v1284 = vadd.f32 %v1173, %v1260
        %v1285 = vadd.f32 %v1174, %v1262
        %v1286 = vadd.f32 %v1175, %v1265
        %v1287 = vadd.f32 %v1176, %v1267
        %v1288 = vadd.f32 %v1177, %v1270
        %v1289 = vadd.f32 %v1178, %v1272
        %v1290 = vpack.c.bf16 %v1274, %v1274
        %v1291 = vpack.c.bf16 %v1275, %v1275
        %v1292 = vpack.c.bf16 %v1276, %v1276
        %v1293 = vpack.c.bf16 %v1277, %v1277
        %v1294 = vpack.c.bf16 %v1278, %v1278
        %v1295 = vpack.c.bf16 %v1279, %v1279
        %v1296 = vpack.c.bf16 %v1280, %v1280
        %v1297 = vpack.c.bf16 %v1281, %v1281
        %v1298 = vpack.c.bf16 %v1282, %v1282
        %v1299 = vpack.c.bf16 %v1283, %v1283
        %v1300 = vpack.c.bf16 %v1284, %v1284
        %v1301 = vpack.c.bf16 %v1285, %v1285
        %v1302 = vpack.c.bf16 %v1286, %v1286
        %v1303 = vpack.c.bf16 %v1287, %v1287
        %v1304 = vpack.c.bf16 %v1288, %v1288
        %v1305 = vpack.c.bf16 %v1289, %v1289
        %vm1306 = vcmask 584704
        %1307 = vst.msk [vmem:[%s326] sm:$0xf] %vm1306, %v1290
        %1308 = vst.msk [vmem:[%s326 + $0x4] sm:$0xf] %vm1306, %v1291
        %1309 = vst.msk [vmem:[%s326 + $0x8] sm:$0xf] %vm1306, %v1292
        %1310 = vst.msk [vmem:[%s326 + $0xc] sm:$0xf] %vm1306, %v1293
        %1311 = vst.msk [vmem:[%s326 + $0x10] sm:$0xf] %vm1306, %v1294
        %1312 = vst.msk [vmem:[%s326 + $0x14] sm:$0xf] %vm1306, %v1295
        %1313 = vst.msk [vmem:[%s326 + $0x18] sm:$0xf] %vm1306, %v1296
        %1314 = vst.msk [vmem:[%s326 + $0x1c] sm:$0xf] %vm1306, %v1297
        %1315 = vst.msk [vmem:[%s326 + $0x20] sm:$0xf] %vm1306, %v1298
        %1316 = vst.msk [vmem:[%s326 + $0x24] sm:$0xf] %vm1306, %v1299
        %1317 = vst.msk [vmem:[%s326 + $0x28] sm:$0xf] %vm1306, %v1300
        %1318 = vst.msk [vmem:[%s326 + $0x2c] sm:$0xf] %vm1306, %v1301
        %1319 = vst.msk [vmem:[%s326 + $0x30] sm:$0xf] %vm1306, %v1302
        %1320 = vst.msk [vmem:[%s326 + $0x34] sm:$0xf] %vm1306, %v1303
        %1321 = vst.msk [vmem:[%s326 + $0x38] sm:$0xf] %vm1306, %v1304
        %1322 = vst.msk [vmem:[%s326 + $0x3c] sm:$0xf] %vm1306, %v1305
        %v1323 = vld [vmem:[%s3] sm:$0x1]
        %v1325 = vperm.slane %v1323, 0
        %v1327 = vmul.f32 %v1274, %v1325
        %v1328 = vmul.f32 %v1275, %v1325
        %v1329 = vmul.f32 %v1276, %v1325
        %v1330 = vmul.f32 %v1277, %v1325
        %v1331 = vmul.f32 %v1278, %v1325
        %v1332 = vmul.f32 %v1279, %v1325
        %v1333 = vmul.f32 %v1280, %v1325
        %v1334 = vmul.f32 %v1281, %v1325
        %v1335 = vmul.f32 %v1282, %v1325
        %v1336 = vmul.f32 %v1283, %v1325
        %v1337 = vmul.f32 %v1284, %v1325
        %v1338 = vmul.f32 %v1285, %v1325
        %v1339 = vmul.f32 %v1286, %v1325
        %v1340 = vmul.f32 %v1287, %v1325
        %v1341 = vmul.f32 %v1288, %v1325
        %v1342 = vmul.f32 %v1289, %v1325
        %vm1343 = vcmask 588800
        %v1344 = vsel %vm1343, %v1327, 0.0
        %1345 = vadd.xlane.f32.xlu0 %v1344
        %v1346 = vpop.xlane.xlu0 %1345
        %v1347 = vsel %vm1343, %v1328, 0.0
        %1348 = vadd.xlane.f32.xlu0 %v1347
        %v1349 = vpop.xlane.xlu0 %1348
        %v1350 = vsel %vm1343, %v1329, 0.0
        %1351 = vadd.xlane.f32.xlu0 %v1350
        %v1352 = vpop.xlane.xlu0 %1351
        %v1353 = vsel %vm1343, %v1330, 0.0
        %1354 = vadd.xlane.f32.xlu0 %v1353
        %v1355 = vpop.xlane.xlu0 %1354
        %v1356 = vsel %vm1343, %v1331, 0.0
        %1357 = vadd.xlane.f32.xlu0 %v1356
        %v1358 = vpop.xlane.xlu0 %1357
        %v1359 = vsel %vm1343, %v1332, 0.0
        %1360 = vadd.xlane.f32.xlu0 %v1359
        %v1361 = vpop.xlane.xlu0 %1360
        %v1362 = vsel %vm1343, %v1333, 0.0
        %1363 = vadd.xlane.f32.xlu0 %v1362
        %v1364 = vpop.xlane.xlu0 %1363
        %v1365 = vsel %vm1343, %v1334, 0.0
        %1366 = vadd.xlane.f32.xlu0 %v1365
        %v1367 = vpop.xlane.xlu0 %1366
        %v1368 = vsel %vm1343, %v1335, 0.0
        %1369 = vadd.xlane.f32.xlu0 %v1368
        %v1370 = vpop.xlane.xlu0 %1369
        %v1371 = vsel %vm1343, %v1336, 0.0
        %1372 = vadd.xlane.f32.xlu0 %v1371
        %v1373 = vpop.xlane.xlu0 %1372
        %v1374 = vsel %vm1343, %v1337, 0.0
        %1375 = vadd.xlane.f32.xlu0 %v1374
        %v1376 = vpop.xlane.xlu0 %1375
        %v1377 = vsel %vm1343, %v1338, 0.0
        %1378 = vadd.xlane.f32.xlu0 %v1377
        %v1379 = vpop.xlane.xlu0 %1378
        %v1380 = vsel %vm1343, %v1339, 0.0
        %1381 = vadd.xlane.f32.xlu0 %v1380
        %v1382 = vpop.xlane.xlu0 %1381
        %v1383 = vsel %vm1343, %v1340, 0.0
        %1384 = vadd.xlane.f32.xlu0 %v1383
        %v1385 = vpop.xlane.xlu0 %1384
        %v1386 = vsel %vm1343, %v1341, 0.0
        %1387 = vadd.xlane.f32.xlu0 %v1386
        %v1388 = vpop.xlane.xlu0 %1387
        %v1389 = vsel %vm1343, %v1342, 0.0
        %1390 = vadd.xlane.f32.xlu0 %v1389
        %v1391 = vpop.xlane.xlu0 %1390
        %v1392 = vmul.f32 %v1327, %v1274
        %v1393 = vmul.f32 %v1328, %v1275
        %v1394 = vmul.f32 %v1329, %v1276
        %v1395 = vmul.f32 %v1330, %v1277
        %v1396 = vmul.f32 %v1331, %v1278
        %v1397 = vmul.f32 %v1332, %v1279
        %v1398 = vmul.f32 %v1333, %v1280
        %v1399 = vmul.f32 %v1334, %v1281
        %v1400 = vmul.f32 %v1335, %v1282
        %v1401 = vmul.f32 %v1336, %v1283
        %v1402 = vmul.f32 %v1337, %v1284
        %v1403 = vmul.f32 %v1338, %v1285
        %v1404 = vmul.f32 %v1339, %v1286
        %v1405 = vmul.f32 %v1340, %v1287
        %v1406 = vmul.f32 %v1341, %v1288
        %v1407 = vmul.f32 %v1342, %v1289
        %v1408 = vsel %vm1343, %v1392, 0.0
        %1409 = vadd.xlane.f32.xlu0 %v1408
        %v1410 = vpop.xlane.xlu0 %1409
        %v1411 = vsel %vm1343, %v1393, 0.0
        %1412 = vadd.xlane.f32.xlu0 %v1411
        %v1413 = vpop.xlane.xlu0 %1412
        %v1414 = vsel %vm1343, %v1394, 0.0
        %1415 = vadd.xlane.f32.xlu0 %v1414
        %v1416 = vpop.xlane.xlu0 %1415
        %v1417 = vsel %vm1343, %v1395, 0.0
        %1418 = vadd.xlane.f32.xlu0 %v1417
        %v1419 = vpop.xlane.xlu0 %1418
        %v1420 = vsel %vm1343, %v1396, 0.0
        %1421 = vadd.xlane.f32.xlu0 %v1420
        %v1422 = vpop.xlane.xlu0 %1421
        %v1423 = vsel %vm1343, %v1397, 0.0
        %1424 = vadd.xlane.f32.xlu0 %v1423
        %v1425 = vpop.xlane.xlu0 %1424
        %v1426 = vsel %vm1343, %v1398, 0.0
        %1427 = vadd.xlane.f32.xlu0 %v1426
        %v1428 = vpop.xlane.xlu0 %1427
        %v1429 = vsel %vm1343, %v1399, 0.0
        %1430 = vadd.xlane.f32.xlu0 %v1429
        %v1431 = vpop.xlane.xlu0 %1430
        %v1432 = vsel %vm1343, %v1400, 0.0
        %1433 = vadd.xlane.f32.xlu0 %v1432
        %v1434 = vpop.xlane.xlu0 %1433
        %v1435 = vsel %vm1343, %v1401, 0.0
        %1436 = vadd.xlane.f32.xlu0 %v1435
        %v1437 = vpop.xlane.xlu0 %1436
        %v1438 = vsel %vm1343, %v1402, 0.0
        %1439 = vadd.xlane.f32.xlu0 %v1438
        %v1440 = vpop.xlane.xlu0 %1439
        %v1441 = vsel %vm1343, %v1403, 0.0
        %1442 = vadd.xlane.f32.xlu0 %v1441
        %v1443 = vpop.xlane.xlu0 %1442
        %v1444 = vsel %vm1343, %v1404, 0.0
        %1445 = vadd.xlane.f32.xlu0 %v1444
        %v1446 = vpop.xlane.xlu0 %1445
        %v1447 = vsel %vm1343, %v1405, 0.0
        %1448 = vadd.xlane.f32.xlu0 %v1447
        %v1449 = vpop.xlane.xlu0 %1448
        %v1450 = vsel %vm1343, %v1406, 0.0
        %1451 = vadd.xlane.f32.xlu0 %v1450
        %v1452 = vpop.xlane.xlu0 %1451
        %v1453 = vsel %vm1343, %v1407, 0.0
        %1454 = vadd.xlane.f32.xlu0 %v1453
        %v1455 = vpop.xlane.xlu0 %1454
        %p1456 = scmp.eq.s32.totalorder %s23, 0
        // Predicated region
        $region41: #{conv_up_with_skip_forward.6} parent=35 // pred_check
          %p1457 = pneg %p1456
        $region42: #{conv_up_with_skip_forward.6} parent=35 // pred_check_branch
          %1459 = sbr.rel (%p1457) target = $region44
        $region43: #{conv_up_with_skip_forward.6} parent=35 // pred_region
          %vm1460 = vcmask 7168
          %1461 = vst.msk [vmem:[%s331] sm:$0xff] %vm1460, %v1346
          %1462 = vst.msk [vmem:[%s331 + $0x8] sm:$0xff] %vm1460, %v1349
          %1463 = vst.msk [vmem:[%s331 + $0x10] sm:$0xff] %vm1460, %v1352
          %1464 = vst.msk [vmem:[%s331 + $0x18] sm:$0xff] %vm1460, %v1355
          %1465 = vst.msk [vmem:[%s331 + $0x20] sm:$0xff] %vm1460, %v1358
          %1466 = vst.msk [vmem:[%s331 + $0x28] sm:$0xff] %vm1460, %v1361
          %1467 = vst.msk [vmem:[%s331 + $0x30] sm:$0xff] %vm1460, %v1364
          %1468 = vst.msk [vmem:[%s331 + $0x38] sm:$0xff] %vm1460, %v1367
          %1469 = vst.msk [vmem:[%s331 + $0x40] sm:$0xff] %vm1460, %v1370
          %1470 = vst.msk [vmem:[%s331 + $0x48] sm:$0xff] %vm1460, %v1373
          %1471 = vst.msk [vmem:[%s331 + $0x50] sm:$0xff] %vm1460, %v1376
          %1472 = vst.msk [vmem:[%s331 + $0x58] sm:$0xff] %vm1460, %v1379
          %1473 = vst.msk [vmem:[%s331 + $0x60] sm:$0xff] %vm1460, %v1382
          %1474 = vst.msk [vmem:[%s331 + $0x68] sm:$0xff] %vm1460, %v1385
          %1475 = vst.msk [vmem:[%s331 + $0x70] sm:$0xff] %vm1460, %v1388
          %1476 = vst.msk [vmem:[%s331 + $0x78] sm:$0xff] %vm1460, %v1391
          %vm1477 = vcmask 15368
          %1478 = vst.msk [vmem:[%s331] sm:$0xff] %vm1477, %v1410
          %1479 = vst.msk [vmem:[%s331 + $0x8] sm:$0xff] %vm1477, %v1413
          %1480 = vst.msk [vmem:[%s331 + $0x10] sm:$0xff] %vm1477, %v1416
          %1481 = vst.msk [vmem:[%s331 + $0x18] sm:$0xff] %vm1477, %v1419
          %1482 = vst.msk [vmem:[%s331 + $0x20] sm:$0xff] %vm1477, %v1422
          %1483 = vst.msk [vmem:[%s331 + $0x28] sm:$0xff] %vm1477, %v1425
          %1484 = vst.msk [vmem:[%s331 + $0x30] sm:$0xff] %vm1477, %v1428
          %1485 = vst.msk [vmem:[%s331 + $0x38] sm:$0xff] %vm1477, %v1431
          %1486 = vst.msk [vmem:[%s331 + $0x40] sm:$0xff] %vm1477, %v1434
          %1487 = vst.msk [vmem:[%s331 + $0x48] sm:$0xff] %vm1477, %v1437
          %1488 = vst.msk [vmem:[%s331 + $0x50] sm:$0xff] %vm1477, %v1440
          %1489 = vst.msk [vmem:[%s331 + $0x58] sm:$0xff] %vm1477, %v1443
          %1490 = vst.msk [vmem:[%s331 + $0x60] sm:$0xff] %vm1477, %v1446
          %1491 = vst.msk [vmem:[%s331 + $0x68] sm:$0xff] %vm1477, %v1449
          %1492 = vst.msk [vmem:[%s331 + $0x70] sm:$0xff] %vm1477, %v1452
          %1493 = vst.msk [vmem:[%s331 + $0x78] sm:$0xff] %vm1477, %v1455
        $region44: #{conv_up_with_skip_forward.6} parent=35 // pred_fallthru
          _
        %p1494 = scmp.gt.s32.totalorder %s23, 0
        // Predicated region
        $region45: #{conv_up_with_skip_forward.6} parent=35 // pred_check
          %p1495 = pneg %p1494
        $region46: #{conv_up_with_skip_forward.6} parent=35 // pred_check_branch
          %1497 = sbr.rel (%p1495) target = $region48
        $region47: #{conv_up_with_skip_forward.6} parent=35 // pred_region
          %v1498 = vld [vmem:[%s331] sm:$0xff]
          %v1499 = vld [vmem:[%s331 + $0x8] sm:$0xff]
          %v1500 = vld [vmem:[%s331 + $0x10] sm:$0xff]
          %v1501 = vld [vmem:[%s331 + $0x18] sm:$0xff]
          %v1502 = vld [vmem:[%s331 + $0x20] sm:$0xff]
          %v1503 = vld [vmem:[%s331 + $0x28] sm:$0xff]
          %v1504 = vld [vmem:[%s331 + $0x30] sm:$0xff]
          %v1505 = vld [vmem:[%s331 + $0x38] sm:$0xff]
          %v1506 = vld [vmem:[%s331 + $0x40] sm:$0xff]
          %v1507 = vld [vmem:[%s331 + $0x48] sm:$0xff]
          %v1508 = vld [vmem:[%s331 + $0x50] sm:$0xff]
          %v1509 = vld [vmem:[%s331 + $0x58] sm:$0xff]
          %v1510 = vld [vmem:[%s331 + $0x60] sm:$0xff]
          %v1511 = vld [vmem:[%s331 + $0x68] sm:$0xff]
          %v1512 = vld [vmem:[%s331 + $0x70] sm:$0xff]
          %v1513 = vld [vmem:[%s331 + $0x78] sm:$0xff]
          %v1514 = vadd.f32 %v1498, %v1346
          %v1515 = vadd.f32 %v1499, %v1349
          %v1516 = vadd.f32 %v1500, %v1352
          %v1517 = vadd.f32 %v1501, %v1355
          %v1518 = vadd.f32 %v1502, %v1358
          %v1519 = vadd.f32 %v1503, %v1361
          %v1520 = vadd.f32 %v1504, %v1364
          %v1521 = vadd.f32 %v1505, %v1367
          %v1522 = vadd.f32 %v1506, %v1370
          %v1523 = vadd.f32 %v1507, %v1373
          %v1524 = vadd.f32 %v1508, %v1376
          %v1525 = vadd.f32 %v1509, %v1379
          %v1526 = vadd.f32 %v1510, %v1382
          %v1527 = vadd.f32 %v1511, %v1385
          %v1528 = vadd.f32 %v1512, %v1388
          %v1529 = vadd.f32 %v1513, %v1391
          %vm1530 = vcmask 7168
          %1531 = vst.msk [vmem:[%s331] sm:$0xff] %vm1530, %v1514
          %1532 = vst.msk [vmem:[%s331 + $0x8] sm:$0xff] %vm1530, %v1515
          %1533 = vst.msk [vmem:[%s331 + $0x10] sm:$0xff] %vm1530, %v1516
          %1534 = vst.msk [vmem:[%s331 + $0x18] sm:$0xff] %vm1530, %v1517
          %1535 = vst.msk [vmem:[%s331 + $0x20] sm:$0xff] %vm1530, %v1518
          %1536 = vst.msk [vmem:[%s331 + $0x28] sm:$0xff] %vm1530, %v1519
          %1537 = vst.msk [vmem:[%s331 + $0x30] sm:$0xff] %vm1530, %v1520
          %1538 = vst.msk [vmem:[%s331 + $0x38] sm:$0xff] %vm1530, %v1521
          %1539 = vst.msk [vmem:[%s331 + $0x40] sm:$0xff] %vm1530, %v1522
          %1540 = vst.msk [vmem:[%s331 + $0x48] sm:$0xff] %vm1530, %v1523
          %1541 = vst.msk [vmem:[%s331 + $0x50] sm:$0xff] %vm1530, %v1524
          %1542 = vst.msk [vmem:[%s331 + $0x58] sm:$0xff] %vm1530, %v1525
          %1543 = vst.msk [vmem:[%s331 + $0x60] sm:$0xff] %vm1530, %v1526
          %1544 = vst.msk [vmem:[%s331 + $0x68] sm:$0xff] %vm1530, %v1527
          %1545 = vst.msk [vmem:[%s331 + $0x70] sm:$0xff] %vm1530, %v1528
          %1546 = vst.msk [vmem:[%s331 + $0x78] sm:$0xff] %vm1530, %v1529
          %v1547 = vld [vmem:[%s331] sm:$0xff]
          %v1548 = vld [vmem:[%s331 + $0x8] sm:$0xff]
          %v1549 = vld [vmem:[%s331 + $0x10] sm:$0xff]
          %v1550 = vld [vmem:[%s331 + $0x18] sm:$0xff]
          %v1551 = vld [vmem:[%s331 + $0x20] sm:$0xff]
          %v1552 = vld [vmem:[%s331 + $0x28] sm:$0xff]
          %v1553 = vld [vmem:[%s331 + $0x30] sm:$0xff]
          %v1554 = vld [vmem:[%s331 + $0x38] sm:$0xff]
          %v1555 = vld [vmem:[%s331 + $0x40] sm:$0xff]
          %v1556 = vld [vmem:[%s331 + $0x48] sm:$0xff]
          %v1557 = vld [vmem:[%s331 + $0x50] sm:$0xff]
          %v1558 = vld [vmem:[%s331 + $0x58] sm:$0xff]
          %v1559 = vld [vmem:[%s331 + $0x60] sm:$0xff]
          %v1560 = vld [vmem:[%s331 + $0x68] sm:$0xff]
          %v1561 = vld [vmem:[%s331 + $0x70] sm:$0xff]
          %v1562 = vld [vmem:[%s331 + $0x78] sm:$0xff]
          %v1563 = vadd.f32 %v1547, %v1410
          %v1564 = vadd.f32 %v1548, %v1413
          %v1565 = vadd.f32 %v1549, %v1416
          %v1566 = vadd.f32 %v1550, %v1419
          %v1567 = vadd.f32 %v1551, %v1422
          %v1568 = vadd.f32 %v1552, %v1425
          %v1569 = vadd.f32 %v1553, %v1428
          %v1570 = vadd.f32 %v1554, %v1431
          %v1571 = vadd.f32 %v1555, %v1434
          %v1572 = vadd.f32 %v1556, %v1437
          %v1573 = vadd.f32 %v1557, %v1440
          %v1574 = vadd.f32 %v1558, %v1443
          %v1575 = vadd.f32 %v1559, %v1446
          %v1576 = vadd.f32 %v1560, %v1449
          %v1577 = vadd.f32 %v1561, %v1452
          %v1578 = vadd.f32 %v1562, %v1455
          %vm1579 = vcmask 15368
          %1580 = vst.msk [vmem:[%s331] sm:$0xff] %vm1579, %v1563
          %1581 = vst.msk [vmem:[%s331 + $0x8] sm:$0xff] %vm1579, %v1564
          %1582 = vst.msk [vmem:[%s331 + $0x10] sm:$0xff] %vm1579, %v1565
          %1583 = vst.msk [vmem:[%s331 + $0x18] sm:$0xff] %vm1579, %v1566
          %1584 = vst.msk [vmem:[%s331 + $0x20] sm:$0xff] %vm1579, %v1567
          %1585 = vst.msk [vmem:[%s331 + $0x28] sm:$0xff] %vm1579, %v1568
          %1586 = vst.msk [vmem:[%s331 + $0x30] sm:$0xff] %vm1579, %v1569
          %1587 = vst.msk [vmem:[%s331 + $0x38] sm:$0xff] %vm1579, %v1570
          %1588 = vst.msk [vmem:[%s331 + $0x40] sm:$0xff] %vm1579, %v1571
          %1589 = vst.msk [vmem:[%s331 + $0x48] sm:$0xff] %vm1579, %v1572
          %1590 = vst.msk [vmem:[%s331 + $0x50] sm:$0xff] %vm1579, %v1573
          %1591 = vst.msk [vmem:[%s331 + $0x58] sm:$0xff] %vm1579, %v1574
          %1592 = vst.msk [vmem:[%s331 + $0x60] sm:$0xff] %vm1579, %v1575
          %1593 = vst.msk [vmem:[%s331 + $0x68] sm:$0xff] %vm1579, %v1576
          %1594 = vst.msk [vmem:[%s331 + $0x70] sm:$0xff] %vm1579, %v1577
          %1595 = vst.msk [vmem:[%s331 + $0x78] sm:$0xff] %vm1579, %v1578
        $region48: #{conv_up_with_skip_forward.6} parent=35 // pred_fallthru
          _
        %p1596 = scmp.lt.s32.totalorder %s22, 1
        %s1597 = scalar_select %p1596, %s22, 1
        %p1598 = scmp.lt.s32.totalorder %s23, 7
        %s1599 = scalar_select %p1598, %s23, 7
        %s1600 = smul.addr %s1599, 16
        %s1601 = smul.addr %s1597, 128
        %s1602 = sadd.s32 %s1600, %s1601
        %s1603 = smul.addr %s1602, 4
        %s1604 = scalar_lea.vmem %s4, %s1603
        %p1605 = scmp.lt.s32.totalorder %s22, 1
        %s1606 = scalar_select %p1605, %s22, 1
        %s1607 = smul.addr %s1606, 16
        %s1608 = smul.addr %s1607, 8
        %s1609 = scalar_lea.vmem %s5, %s1608
        // Predicated region
        $region49: #{conv_up_with_skip_forward.6} parent=35 // pred_check
          %p1610 = pneg %p150
        $region50: #{conv_up_with_skip_forward.6} parent=35 // pred_check_branch
          %1612 = sbr.rel (%p1610) target = $region52
        $region51: #{conv_up_with_skip_forward.6} parent=35 // pred_region
          _
        $region52: #{conv_up_with_skip_forward.6} parent=35 // pred_fallthru
          _
        // Predicated region
        $region53: #{conv_up_with_skip_forward.6} parent=35 // pred_check
          %p1613 = pneg %p176
        $region54: #{conv_up_with_skip_forward.6} parent=35 // pred_check_branch
          %1615 = sbr.rel (%p1613) target = $region56
        $region55: #{conv_up_with_skip_forward.6} parent=35 // pred_region
          _
        $region56: #{conv_up_with_skip_forward.6} parent=35 // pred_fallthru
          _
      $region36: #{conv_up_with_skip_forward.6} parent=5 // pred_fallthru
        _
      %p1616 = scmp.le.s32.totalorder 2, %s13
      // Predicated region
      $region57: #{conv_up_with_skip_forward.6} parent=5 // pred_check
        %p1617 = pneg %p1616
      $region58: #{conv_up_with_skip_forward.6} parent=5 // pred_check_branch
        %1619 = sbr.rel (%p1617) target = $region60
      $region59: #{conv_up_with_skip_forward.6} parent=5 // pred_region
        %s1620 = ssub.s32 %s13, 2
        // Predicated region
        $region61: #{conv_up_with_skip_forward.6} parent=59 // pred_check
          %p1621 = pneg %p156
        $region62: #{conv_up_with_skip_forward.6} parent=59 // pred_check_branch
          %1623 = sbr.rel (%p1621) target = $region64
        $region63: #{conv_up_with_skip_forward.6} parent=59 // pred_region
          %p1624 = scmp.lt.s32.totalorder %s24, 1
          %s1625 = scalar_select %p1624, %s24, 1
          %p1626 = scmp.lt.s32.totalorder %s25, 7
          %s1627 = scalar_select %p1626, %s25, 7
          %s1628 = smul.addr %s1627, 16
          %s1629 = smul.addr %s1625, 128
          %s1630 = sadd.s32 %s1628, %s1629
          %s1631 = smul.addr %s1630, 4
          %s1632 = scalar_lea.vmem %s4, %s1631
        $region64: #{conv_up_with_skip_forward.6} parent=59 // pred_fallthru
          _
        // Predicated region
        $region65: #{conv_up_with_skip_forward.6} parent=59 // pred_check
          %p1633 = pneg %p182
        $region66: #{conv_up_with_skip_forward.6} parent=59 // pred_check_branch
          %1635 = sbr.rel (%p1633) target = $region68
        $region67: #{conv_up_with_skip_forward.6} parent=59 // pred_region
          %p1636 = scmp.lt.s32.totalorder %s24, 1
          %s1637 = scalar_select %p1636, %s24, 1
          %s1638 = smul.addr %s1637, 16
          %s1639 = smul.addr %s1638, 8
          %s1640 = scalar_lea.vmem %s5, %s1639
        $region68: #{conv_up_with_skip_forward.6} parent=59 // pred_fallthru
          _
      $region60: #{conv_up_with_skip_forward.6} parent=5 // pred_fallthru
        _
    $region6: #{conv_up_with_skip_forward.6} parent=1 // loop_footer
      %s17 = sadd.s32 1, %s13
    $region7: #{conv_up_with_skip_forward.6} parent=1 // loop_footer_branch
      %12 = sbr.rel target = $region3
    $region8: #{conv_up_with_skip_forward.6} parent=1 // loop_exit
      _
    %1641 = vsyncpa [#allocation3], 1
    %s1642 = scalar_lea.sflag [#allocation3], 1
    %1643 = vsyncpa %s1642, 1

// kernel: conv_up_with_skip_forward.7
$region0: #{conv_up_with_skip_forward.7}
  #allocation0 [shape = 'u32[]', space=smem, size = 0x4, offset = 0x4, fixed_abs, tag = 'smem constant byte address 0x4 - core index']
  #allocation1 [shape = 'u32[72,128]{1,0:T(1,128)}', space=vmem, size = 0x9000, scoped, tag = 'internal scratch']
  %s0 = inlined_call_operand.vmem [shape: bf16[2,8,128,72], index: 0, kind: input, shape index: {}]
  %s1 = inlined_call_operand.vmem [shape: f32[2,128,1], index: 1, kind: input, shape index: {}]
  %s2 = inlined_call_operand.vmem [shape: f32[2,128,1], index: 2, kind: input, shape index: {}]
  %s3 = inlined_call_operand.vmem [shape: bf16[2,8,128,72], index: 3, kind: output, shape index: {}]
  %s4 = sld [smem:[#allocation0]]
  $region45: #{conv_up_with_skip_forward.7} parent=0
    _
  %s6 = ssub.s32 1, %s4
  %s7 = scalar_select 0, %s6, %s4
  loop: start=0, step=1, limit=18
  $region2: #{conv_up_with_skip_forward.7} parent=0 // loop_pre_header
    _
  $region3: #{conv_up_with_skip_forward.7} parent=0 // loop_header
    %s9 = sphi 0, %s13
    %p10 = scmp.ge.s32.totalorder %s9, 18
    %s16 = sphi 0, %s28
    %s17 = sphi 0, %s24
    %s18 = sphi 0, %s16
    %s19 = sphi 0, %s17
    %s20 = sphi 0, %s18
    %s21 = sphi 0, %s19
    %s33 = sphi 0, %s35
    %s36 = sphi 0, %s33
    %s37 = sphi 0, %s36
    %s53 = sphi 0, %s37
    %s59 = sphi 0, %s61
    %s62 = sphi 0, %s59
    %s63 = sphi 0, %s62
    %s79 = sphi 0, %s63
    %s85 = sphi 0, %s87
    %s88 = sphi 0, %s85
    %s89 = sphi 0, %s88
    %s105 = sphi 0, %s89
    %s113 = sphi 0, %s115
    %s116 = sphi 0, %s113
    %s117 = sphi 0, %s116
    %s133 = sphi 0, %s117
  $region4: #{conv_up_with_skip_forward.7} parent=0 // loop_header_branch
    %12 = sbr.rel (%p10) target = $region8
  $region5: #{conv_up_with_skip_forward.7} parent=0 // loop_body
    %s14 = ssub.s32 %s9, 1
    %s15 = ssub.s32 %s9, 2
    %s22 = sadd.s32 1, %s17
    %p23 = scmp.ge.s32.totalorder %s22, 8
    %s24 = scalar_select %p23, 0, %s22
    %s25 = sadd.s32 1, %s16
    %s26 = scalar_select %p23, %s25, %s16
    %p27 = scmp.ge.s32.totalorder %s26, 2
    %s28 = scalar_select %p27, 0, %s26
    %s29 = ssub.s32 %s16, %s28
    %s30 = ssub.s32 %s17, %s24
    %s31 = sor.u32 %s29, %s30
    %p32 = scmp.eq.s32.totalorder %s31, 0
    %s34 = sadd.s32 %s33, 1
    %s35 = scalar_select %p32, %s33, %s34
    %p38 = pneg %p32
    %p39 = scmp.eq.s32.totalorder %s9, 15
    %p40 = por %p38, %p39
    %p41 = scmp.ne.s32.totalorder %s33, %s36
    %p42 = scmp.eq.s32.totalorder %s9, 0
    %p43 = por %p41, %p42
    %p44 = scmp.ne.s32.totalorder %s33, %s36
    %p45 = scmp.eq.s32.totalorder %s14, 15
    %p46 = por %p44, %p45
    %p47 = scmp.ne.s32.totalorder %s36, %s37
    %p48 = scmp.eq.s32.totalorder %s14, 0
    %p49 = por %p47, %p48
    %p50 = scmp.ne.s32.totalorder %s36, %s37
    %p51 = scmp.eq.s32.totalorder %s15, 15
    %p52 = por %p50, %p51
    %p54 = scmp.ne.s32.totalorder %s37, %s53
    %p55 = scmp.eq.s32.totalorder %s15, 0
    %p56 = por %p54, %p55
    %s57 = ssub.s32 %s16, %s28
    %p58 = scmp.eq.s32.totalorder %s57, 0
    %s60 = sadd.s32 %s59, 1
    %s61 = scalar_select %p58, %s59, %s60
    %p64 = pneg %p58
    %p65 = scmp.eq.s32.totalorder %s9, 15
    %p66 = por %p64, %p65
    %p67 = scmp.ne.s32.totalorder %s59, %s62
    %p68 = scmp.eq.s32.totalorder %s9, 0
    %p69 = por %p67, %p68
    %p70 = scmp.ne.s32.totalorder %s59, %s62
    %p71 = scmp.eq.s32.totalorder %s14, 15
    %p72 = por %p70, %p71
    %p73 = scmp.ne.s32.totalorder %s62, %s63
    %p74 = scmp.eq.s32.totalorder %s14, 0
    %p75 = por %p73, %p74
    %p76 = scmp.ne.s32.totalorder %s62, %s63
    %p77 = scmp.eq.s32.totalorder %s15, 15
    %p78 = por %p76, %p77
    %p80 = scmp.ne.s32.totalorder %s63, %s79
    %p81 = scmp.eq.s32.totalorder %s15, 0
    %p82 = por %p80, %p81
    %s83 = ssub.s32 %s16, %s28
    %p84 = scmp.eq.s32.totalorder %s83, 0
    %s86 = sadd.s32 %s85, 1
    %s87 = scalar_select %p84, %s85, %s86
    %p90 = pneg %p84
    %p91 = scmp.eq.s32.totalorder %s9, 15
    %p92 = por %p90, %p91
    %p93 = scmp.ne.s32.totalorder %s85, %s88
    %p94 = scmp.eq.s32.totalorder %s9, 0
    %p95 = por %p93, %p94
    %p96 = scmp.ne.s32.totalorder %s85, %s88
    %p97 = scmp.eq.s32.totalorder %s14, 15
    %p98 = por %p96, %p97
    %p99 = scmp.ne.s32.totalorder %s88, %s89
    %p100 = scmp.eq.s32.totalorder %s14, 0
    %p101 = por %p99, %p100
    %p102 = scmp.ne.s32.totalorder %s88, %s89
    %p103 = scmp.eq.s32.totalorder %s15, 15
    %p104 = por %p102, %p103
    %p106 = scmp.ne.s32.totalorder %s89, %s105
    %p107 = scmp.eq.s32.totalorder %s15, 0
    %p108 = por %p106, %p107
    %s109 = ssub.s32 %s16, %s28
    %s110 = ssub.s32 %s17, %s24
    %s111 = sor.u32 %s109, %s110
    %p112 = scmp.eq.s32.totalorder %s111, 0
    %s114 = sadd.s32 %s113, 1
    %s115 = scalar_select %p112, %s113, %s114
    %p118 = pneg %p112
    %p119 = scmp.eq.s32.totalorder %s9, 15
    %p120 = por %p118, %p119
    %p121 = scmp.ne.s32.totalorder %s113, %s116
    %p122 = scmp.eq.s32.totalorder %s9, 0
    %p123 = por %p121, %p122
    %p124 = scmp.ne.s32.totalorder %s113, %s116
    %p125 = scmp.eq.s32.totalorder %s14, 15
    %p126 = por %p124, %p125
    %p127 = scmp.ne.s32.totalorder %s116, %s117
    %p128 = scmp.eq.s32.totalorder %s14, 0
    %p129 = por %p127, %p128
    %p130 = scmp.ne.s32.totalorder %s116, %s117
    %p131 = scmp.eq.s32.totalorder %s15, 15
    %p132 = por %p130, %p131
    %p134 = scmp.ne.s32.totalorder %s117, %s133
    %p135 = scmp.eq.s32.totalorder %s15, 0
    %p136 = por %p134, %p135
    %p137 = scmp.le.s32.totalorder 1, %s9
    %p138 = scmp.lt.s32.totalorder %s9, 17
    %p139 = pnand %p137, %p138
    %p140 = pneg %p139
    // Predicated region
    $region9: #{conv_up_with_skip_forward.7} parent=5 // pred_check
      _
    $region10: #{conv_up_with_skip_forward.7} parent=5 // pred_check_branch
      %142 = sbr.rel (%p139) target = $region12
    $region11: #{conv_up_with_skip_forward.7} parent=5 // pred_region
      %s143 = ssub.s32 %s9, 1
    $region12: #{conv_up_with_skip_forward.7} parent=5 // pred_fallthru
      _
    %p144 = scmp.lt.s32.totalorder %s9, 16
    // Predicated region
    $region13: #{conv_up_with_skip_forward.7} parent=5 // pred_check
      %p145 = pneg %p144
    $region14: #{conv_up_with_skip_forward.7} parent=5 // pred_check_branch
      %147 = sbr.rel (%p145) target = $region16
    $region15: #{conv_up_with_skip_forward.7} parent=5 // pred_region
      // Predicated region
      $region17: #{conv_up_with_skip_forward.7} parent=15 // pred_check
        %p148 = pneg %p43
      $region18: #{conv_up_with_skip_forward.7} parent=15 // pred_check_branch
        %150 = sbr.rel (%p148) target = $region20
      $region19: #{conv_up_with_skip_forward.7} parent=15 // pred_region
        %p151 = scmp.lt.s32.totalorder %s16, 1
        %s152 = scalar_select %p151, %s16, 1
        %p153 = scmp.lt.s32.totalorder %s17, 7
        %s154 = scalar_select %p153, %s17, 7
        %s155 = smul.addr %s154, 16
        %s156 = smul.addr %s152, 128
        %s157 = sadd.s32 %s155, %s156
        %s158 = smul.addr %s157, 4
        %s159 = scalar_lea.vmem %s0, %s158
      $region20: #{conv_up_with_skip_forward.7} parent=15 // pred_fallthru
        _
      // Predicated region
      $region21: #{conv_up_with_skip_forward.7} parent=15 // pred_check
        %p160 = pneg %p69
      $region22: #{conv_up_with_skip_forward.7} parent=15 // pred_check_branch
        %162 = sbr.rel (%p160) target = $region24
      $region23: #{conv_up_with_skip_forward.7} parent=15 // pred_region
        %p163 = scmp.lt.s32.totalorder %s16, 1
        %s164 = scalar_select %p163, %s16, 1
        %s165 = smul.addr %s164, 16
        %s166 = smul.addr %s165, 8
        %s167 = scalar_lea.vmem %s1, %s166
      $region24: #{conv_up_with_skip_forward.7} parent=15 // pred_fallthru
        _
      // Predicated region
      $region25: #{conv_up_with_skip_forward.7} parent=15 // pred_check
        %p168 = pneg %p95
      $region26: #{conv_up_with_skip_forward.7} parent=15 // pred_check_branch
        %170 = sbr.rel (%p168) target = $region28
      $region27: #{conv_up_with_skip_forward.7} parent=15 // pred_region
        %p171 = scmp.lt.s32.totalorder %s16, 1
        %s172 = scalar_select %p171, %s16, 1
        %s173 = smul.addr %s172, 16
        %s174 = smul.addr %s173, 8
        %s175 = scalar_lea.vmem %s2, %s174
      $region28: #{conv_up_with_skip_forward.7} parent=15 // pred_fallthru
        _
    $region16: #{conv_up_with_skip_forward.7} parent=5 // pred_fallthru
      _
    %p176 = scmp.le.s32.totalorder 1, %s9
    %p177 = scmp.lt.s32.totalorder %s9, 17
    %p178 = pnand %p176, %p177
    %p179 = pneg %p178
    // Predicated region
    $region29: #{conv_up_with_skip_forward.7} parent=5 // pred_check
      _
    $region30: #{conv_up_with_skip_forward.7} parent=5 // pred_check_branch
      %181 = sbr.rel (%p178) target = $region32
    $region31: #{conv_up_with_skip_forward.7} parent=5 // pred_region
      %s182 = ssub.s32 %s9, 1
      %p183 = scmp.lt.s32.totalorder %s18, 1
      %s184 = scalar_select %p183, %s18, 1
      %p185 = scmp.lt.s32.totalorder %s19, 7
      %s186 = scalar_select %p185, %s19, 7
      %s187 = smul.addr %s186, 16
      %s188 = smul.addr %s184, 128
      %s189 = sadd.s32 %s187, %s188
      %s190 = smul.addr %s189, 4
      %s191 = scalar_lea.vmem %s0, %s190
      %p192 = pneg %p49
      %p193 = pneg %p46
      %p194 = scmp.lt.s32.totalorder %s18, 1
      %s195 = scalar_select %p194, %s18, 1
      %s196 = smul.addr %s195, 16
      %s197 = smul.addr %s196, 8
      %s198 = scalar_lea.vmem %s1, %s197
      %p199 = pneg %p75
      %p200 = pneg %p72
      %p201 = scmp.lt.s32.totalorder %s18, 1
      %s202 = scalar_select %p201, %s18, 1
      %s203 = smul.addr %s202, 16
      %s204 = smul.addr %s203, 8
      %s205 = scalar_lea.vmem %s2, %s204
      %p206 = pneg %p101
      %p207 = pneg %p98
      %p208 = pneg %p129
      %p209 = pneg %p126
      %p210 = scmp.lt.s32.totalorder %s18, 1
      %s211 = scalar_select %p210, %s18, 1
      %p212 = scmp.lt.s32.totalorder %s19, 7
      %s213 = scalar_select %p212, %s19, 7
      %s214 = smul.addr %s213, 16
      %s215 = smul.addr %s211, 128
      %s216 = sadd.s32 %s214, %s215
      %s217 = smul.addr %s216, 4
      %s218 = scalar_lea.vmem %s3, %s217
      %p219 = scmp.lt.s32.totalorder %s18, 1
      %s220 = scalar_select %p219, %s18, 1
      %p221 = scmp.lt.s32.totalorder %s19, 7
      %s222 = scalar_select %p221, %s19, 7
      %s223 = smul.addr %s222, 16
      %s224 = smul.addr %s220, 128
      %s225 = sadd.s32 %s223, %s224
      %s226 = smul.addr %s225, 4
      %s227 = scalar_lea.vmem %s0, %s226
      %p228 = scmp.lt.s32.totalorder %s18, 1
      %s229 = scalar_select %p228, %s18, 1
      %s230 = smul.addr %s229, 16
      %s231 = smul.addr %s230, 8
      %s232 = scalar_lea.vmem %s1, %s231
      %p233 = scmp.lt.s32.totalorder %s18, 1
      %s234 = scalar_select %p233, %s18, 1
      %s235 = smul.addr %s234, 16
      %s236 = smul.addr %s235, 8
      %s237 = scalar_lea.vmem %s2, %s236
      %p238 = scmp.lt.s32.totalorder %s18, 1
      %s239 = scalar_select %p238, %s18, 1
      %p240 = scmp.lt.s32.totalorder %s19, 7
      %s241 = scalar_select %p240, %s19, 7
      %s242 = smul.addr %s241, 16
      %s243 = smul.addr %s239, 128
      %s244 = sadd.s32 %s242, %s243
      %s245 = smul.addr %s244, 4
      %s246 = scalar_lea.vmem %s3, %s245
      %v247 = vld [vmem:[%s227] sm:$0xf]
      %v248 = vld [vmem:[%s227 + $0x4] sm:$0xf]
      %v249 = vld [vmem:[%s227 + $0x8] sm:$0xf]
      %v250 = vld [vmem:[%s227 + $0xc] sm:$0xf]
      %v251 = vld [vmem:[%s227 + $0x10] sm:$0xf]
      %v252 = vld [vmem:[%s227 + $0x14] sm:$0xf]
      %v253 = vld [vmem:[%s227 + $0x18] sm:$0xf]
      %v254 = vld [vmem:[%s227 + $0x1c] sm:$0xf]
      %v255 = vld [vmem:[%s227 + $0x20] sm:$0xf]
      %v256 = vld [vmem:[%s227 + $0x24] sm:$0xf]
      %v257 = vld [vmem:[%s227 + $0x28] sm:$0xf]
      %v258 = vld [vmem:[%s227 + $0x2c] sm:$0xf]
      %v259 = vld [vmem:[%s227 + $0x30] sm:$0xf]
      %v260 = vld [vmem:[%s227 + $0x34] sm:$0xf]
      %v261 = vld [vmem:[%s227 + $0x38] sm:$0xf]
      %v262 = vld [vmem:[%s227 + $0x3c] sm:$0xf]
      %v263 = vunpack.c.l.bf16 %v247
      %v264 = vunpack.c.l.bf16 %v248
      %v265 = vunpack.c.l.bf16 %v249
      %v266 = vunpack.c.l.bf16 %v250
      %v267 = vunpack.c.l.bf16 %v251
      %v268 = vunpack.c.l.bf16 %v252
      %v269 = vunpack.c.l.bf16 %v253
      %v270 = vunpack.c.l.bf16 %v254
      %v271 = vunpack.c.l.bf16 %v255
      %v272 = vunpack.c.l.bf16 %v256
      %v273 = vunpack.c.l.bf16 %v257
      %v274 = vunpack.c.l.bf16 %v258
      %v275 = vunpack.c.l.bf16 %v259
      %v276 = vunpack.c.l.bf16 %v260
      %v277 = vunpack.c.l.bf16 %v261
      %v278 = vunpack.c.l.bf16 %v262
      %v279 = vld [vmem:[%s232] sm:$0xff]
      %v280 = vld [vmem:[%s232 + $0x8] sm:$0xff]
      %v281 = vld [vmem:[%s232 + $0x10] sm:$0xff]
      %v282 = vld [vmem:[%s232 + $0x18] sm:$0xff]
      %v283 = vld [vmem:[%s232 + $0x20] sm:$0xff]
      %v284 = vld [vmem:[%s232 + $0x28] sm:$0xff]
      %v285 = vld [vmem:[%s232 + $0x30] sm:$0xff]
      %v286 = vld [vmem:[%s232 + $0x38] sm:$0xff]
      %v287 = vld [vmem:[%s232 + $0x40] sm:$0xff]
      %v288 = vld [vmem:[%s232 + $0x48] sm:$0xff]
      %v289 = vld [vmem:[%s232 + $0x50] sm:$0xff]
      %v290 = vld [vmem:[%s232 + $0x58] sm:$0xff]
      %v291 = vld [vmem:[%s232 + $0x60] sm:$0xff]
      %v292 = vld [vmem:[%s232 + $0x68] sm:$0xff]
      %v293 = vld [vmem:[%s232 + $0x70] sm:$0xff]
      %v294 = vld [vmem:[%s232 + $0x78] sm:$0xff]
      %296 = vset.pattern.permute.xlu0 0
      %297 = vperm.xlu0 %296, %v279
      %v298 = vpop.permute.xlu0 %297
      %301 = vset.pattern.permute.xlu0 0
      %302 = vperm.xlu0 %301, %v280
      %v303 = vpop.permute.xlu0 %302
      %306 = vset.pattern.permute.xlu0 0
      %307 = vperm.xlu0 %306, %v281
      %v308 = vpop.permute.xlu0 %307
      %311 = vset.pattern.permute.xlu0 0
      %312 = vperm.xlu0 %311, %v282
      %v313 = vpop.permute.xlu0 %312
      %316 = vset.pattern.permute.xlu0 0
      %317 = vperm.xlu0 %316, %v283
      %v318 = vpop.permute.xlu0 %317
      %321 = vset.pattern.permute.xlu0 0
      %322 = vperm.xlu0 %321, %v284
      %v323 = vpop.permute.xlu0 %322
      %326 = vset.pattern.permute.xlu0 0
      %327 = vperm.xlu0 %326, %v285
      %v328 = vpop.permute.xlu0 %327
      %331 = vset.pattern.permute.xlu0 0
      %332 = vperm.xlu0 %331, %v286
      %v333 = vpop.permute.xlu0 %332
      %336 = vset.pattern.permute.xlu0 0
      %337 = vperm.xlu0 %336, %v287
      %v338 = vpop.permute.xlu0 %337
      %341 = vset.pattern.permute.xlu0 0
      %342 = vperm.xlu0 %341, %v288
      %v343 = vpop.permute.xlu0 %342
      %346 = vset.pattern.permute.xlu0 0
      %347 = vperm.xlu0 %346, %v289
      %v348 = vpop.permute.xlu0 %347
      %351 = vset.pattern.permute.xlu0 0
      %352 = vperm.xlu0 %351, %v290
      %v353 = vpop.permute.xlu0 %352
      %356 = vset.pattern.permute.xlu0 0
      %357 = vperm.xlu0 %356, %v291
      %v358 = vpop.permute.xlu0 %357
      %361 = vset.pattern.permute.xlu0 0
      %362 = vperm.xlu0 %361, %v292
      %v363 = vpop.permute.xlu0 %362
      %366 = vset.pattern.permute.xlu0 0
      %367 = vperm.xlu0 %366, %v293
      %v368 = vpop.permute.xlu0 %367
      %371 = vset.pattern.permute.xlu0 0
      %372 = vperm.xlu0 %371, %v294
      %v373 = vpop.permute.xlu0 %372
      %v375 = vmul.f32 %v263, %v298
      %v376 = vmul.f32 %v264, %v303
      %v377 = vmul.f32 %v265, %v308
      %v378 = vmul.f32 %v266, %v313
      %v379 = vmul.f32 %v267, %v318
      %v380 = vmul.f32 %v268, %v323
      %v381 = vmul.f32 %v269, %v328
      %v382 = vmul.f32 %v270, %v333
      %v383 = vmul.f32 %v271, %v338
      %v384 = vmul.f32 %v272, %v343
      %v385 = vmul.f32 %v273, %v348
      %v386 = vmul.f32 %v274, %v353
      %v387 = vmul.f32 %v275, %v358
      %v388 = vmul.f32 %v276, %v363
      %v389 = vmul.f32 %v277, %v368
      %v390 = vmul.f32 %v278, %v373
      %v391 = vld [vmem:[%s237] sm:$0xff]
      %v392 = vld [vmem:[%s237 + $0x8] sm:$0xff]
      %v393 = vld [vmem:[%s237 + $0x10] sm:$0xff]
      %v394 = vld [vmem:[%s237 + $0x18] sm:$0xff]
      %v395 = vld [vmem:[%s237 + $0x20] sm:$0xff]
      %v396 = vld [vmem:[%s237 + $0x28] sm:$0xff]
      %v397 = vld [vmem:[%s237 + $0x30] sm:$0xff]
      %v398 = vld [vmem:[%s237 + $0x38] sm:$0xff]
      %v399 = vld [vmem:[%s237 + $0x40] sm:$0xff]
      %v400 = vld [vmem:[%s237 + $0x48] sm:$0xff]
      %v401 = vld [vmem:[%s237 + $0x50] sm:$0xff]
      %v402 = vld [vmem:[%s237 + $0x58] sm:$0xff]
      %v403 = vld [vmem:[%s237 + $0x60] sm:$0xff]
      %v404 = vld [vmem:[%s237 + $0x68] sm:$0xff]
      %v405 = vld [vmem:[%s237 + $0x70] sm:$0xff]
      %v406 = vld [vmem:[%s237 + $0x78] sm:$0xff]
      %408 = vset.pattern.permute.xlu0 0
      %409 = vperm.xlu0 %408, %v391
      %v410 = vpop.permute.xlu0 %409
      %413 = vset.pattern.permute.xlu0 0
      %414 = vperm.xlu0 %413, %v392
      %v415 = vpop.permute.xlu0 %414
      %418 = vset.pattern.permute.xlu0 0
      %419 = vperm.xlu0 %418, %v393
      %v420 = vpop.permute.xlu0 %419
      %423 = vset.pattern.permute.xlu0 0
      %424 = vperm.xlu0 %423, %v394
      %v425 = vpop.permute.xlu0 %424
      %428 = vset.pattern.permute.xlu0 0
      %429 = vperm.xlu0 %428, %v395
      %v430 = vpop.permute.xlu0 %429
      %433 = vset.pattern.permute.xlu0 0
      %434 = vperm.xlu0 %433, %v396
      %v435 = vpop.permute.xlu0 %434
      %438 = vset.pattern.permute.xlu0 0
      %439 = vperm.xlu0 %438, %v397
      %v440 = vpop.permute.xlu0 %439
      %443 = vset.pattern.permute.xlu0 0
      %444 = vperm.xlu0 %443, %v398
      %v445 = vpop.permute.xlu0 %444
      %448 = vset.pattern.permute.xlu0 0
      %449 = vperm.xlu0 %448, %v399
      %v450 = vpop.permute.xlu0 %449
      %453 = vset.pattern.permute.xlu0 0
      %454 = vperm.xlu0 %453, %v400
      %v455 = vpop.permute.xlu0 %454
      %458 = vset.pattern.permute.xlu0 0
      %459 = vperm.xlu0 %458, %v401
      %v460 = vpop.permute.xlu0 %459
      %463 = vset.pattern.permute.xlu0 0
      %464 = vperm.xlu0 %463, %v402
      %v465 = vpop.permute.xlu0 %464
      %468 = vset.pattern.permute.xlu0 0
      %469 = vperm.xlu0 %468, %v403
      %v470 = vpop.permute.xlu0 %469
      %473 = vset.pattern.permute.xlu0 0
      %474 = vperm.xlu0 %473, %v404
      %v475 = vpop.permute.xlu0 %474
      %478 = vset.pattern.permute.xlu0 0
      %479 = vperm.xlu0 %478, %v405
      %v480 = vpop.permute.xlu0 %479
      %483 = vset.pattern.permute.xlu0 0
      %484 = vperm.xlu0 %483, %v406
      %v485 = vpop.permute.xlu0 %484
      %v487 = vadd.f32 %v375, %v410
      %v488 = vadd.f32 %v376, %v415
      %v489 = vadd.f32 %v377, %v420
      %v490 = vadd.f32 %v378, %v425
      %v491 = vadd.f32 %v379, %v430
      %v492 = vadd.f32 %v380, %v435
      %v493 = vadd.f32 %v381, %v440
      %v494 = vadd.f32 %v382, %v445
      %v495 = vadd.f32 %v383, %v450
      %v496 = vadd.f32 %v384, %v455
      %v497 = vadd.f32 %v385, %v460
      %v498 = vadd.f32 %v386, %v465
      %v499 = vadd.f32 %v387, %v470
      %v500 = vadd.f32 %v388, %v475
      %v501 = vadd.f32 %v389, %v480
      %v502 = vadd.f32 %v390, %v485
      %vm503 = vcmp.ge.f32.partialorder %v487, 0.0
      %vm504 = vcmp.ge.f32.partialorder %v488, 0.0
      %vm505 = vcmp.ge.f32.partialorder %v489, 0.0
      %vm506 = vcmp.ge.f32.partialorder %v490, 0.0
      %vm507 = vcmp.ge.f32.partialorder %v491, 0.0
      %vm508 = vcmp.ge.f32.partialorder %v492, 0.0
      %vm509 = vcmp.ge.f32.partialorder %v493, 0.0
      %vm510 = vcmp.ge.f32.partialorder %v494, 0.0
      %vm511 = vcmp.ge.f32.partialorder %v495, 0.0
      %vm512 = vcmp.ge.f32.partialorder %v496, 0.0
      %vm513 = vcmp.ge.f32.partialorder %v497, 0.0
      %vm514 = vcmp.ge.f32.partialorder %v498, 0.0
      %vm515 = vcmp.ge.f32.partialorder %v499, 0.0
      %vm516 = vcmp.ge.f32.partialorder %v500, 0.0
      %vm517 = vcmp.ge.f32.partialorder %v501, 0.0
      %vm518 = vcmp.ge.f32.partialorder %v502, 0.0
      %v519 = vmul.f32 %v487, 0.1
      %v520 = vmul.f32 %v488, 0.1
      %v521 = vmul.f32 %v489, 0.1
      %v522 = vmul.f32 %v490, 0.1
      %v523 = vmul.f32 %v491, 0.1
      %v524 = vmul.f32 %v492, 0.1
      %v525 = vmul.f32 %v493, 0.1
      %v526 = vmul.f32 %v494, 0.1
      %v527 = vmul.f32 %v495, 0.1
      %v528 = vmul.f32 %v496, 0.1
      %v529 = vmul.f32 %v497, 0.1
      %v530 = vmul.f32 %v498, 0.1
      %v531 = vmul.f32 %v499, 0.1
      %v532 = vmul.f32 %v500, 0.1
      %v533 = vmul.f32 %v501, 0.1
      %v534 = vmul.f32 %v502, 0.1
      %v535 = vsel %vm503, %v487, %v519
      %v536 = vsel %vm504, %v488, %v520
      %v537 = vsel %vm505, %v489, %v521
      %v538 = vsel %vm506, %v490, %v522
      %v539 = vsel %vm507, %v491, %v523
      %v540 = vsel %vm508, %v492, %v524
      %v541 = vsel %vm509, %v493, %v525
      %v542 = vsel %vm510, %v494, %v526
      %v543 = vsel %vm511, %v495, %v527
      %v544 = vsel %vm512, %v496, %v528
      %v545 = vsel %vm513, %v497, %v529
      %v546 = vsel %vm514, %v498, %v530
      %v547 = vsel %vm515, %v499, %v531
      %v548 = vsel %vm516, %v500, %v532
      %v549 = vsel %vm517, %v501, %v533
      %v550 = vsel %vm518, %v502, %v534
      %v551 = vpack.c.bf16 %v535, %v535
      %v552 = vpack.c.bf16 %v536, %v536
      %v553 = vpack.c.bf16 %v537, %v537
      %v554 = vpack.c.bf16 %v538, %v538
      %v555 = vpack.c.bf16 %v539, %v539
      %v556 = vpack.c.bf16 %v540, %v540
      %v557 = vpack.c.bf16 %v541, %v541
      %v558 = vpack.c.bf16 %v542, %v542
      %v559 = vpack.c.bf16 %v543, %v543
      %v560 = vpack.c.bf16 %v544, %v544
      %v561 = vpack.c.bf16 %v545, %v545
      %v562 = vpack.c.bf16 %v546, %v546
      %v563 = vpack.c.bf16 %v547, %v547
      %v564 = vpack.c.bf16 %v548, %v548
      %v565 = vpack.c.bf16 %v549, %v549
      %v566 = vpack.c.bf16 %v550, %v550
      %vm567 = vcmask 584704
      %568 = vst.msk [vmem:[%s246] sm:$0xf] %vm567, %v551
      %569 = vst.msk [vmem:[%s246 + $0x4] sm:$0xf] %vm567, %v552
      %570 = vst.msk [vmem:[%s246 + $0x8] sm:$0xf] %vm567, %v553
      %571 = vst.msk [vmem:[%s246 + $0xc] sm:$0xf] %vm567, %v554
      %572 = vst.msk [vmem:[%s246 + $0x10] sm:$0xf] %vm567, %v555
      %573 = vst.msk [vmem:[%s246 + $0x14] sm:$0xf] %vm567, %v556
      %574 = vst.msk [vmem:[%s246 + $0x18] sm:$0xf] %vm567, %v557
      %575 = vst.msk [vmem:[%s246 + $0x1c] sm:$0xf] %vm567, %v558
      %576 = vst.msk [vmem:[%s246 + $0x20] sm:$0xf] %vm567, %v559
      %577 = vst.msk [vmem:[%s246 + $0x24] sm:$0xf] %vm567, %v560
      %578 = vst.msk [vmem:[%s246 + $0x28] sm:$0xf] %vm567, %v561
      %579 = vst.msk [vmem:[%s246 + $0x2c] sm:$0xf] %vm567, %v562
      %580 = vst.msk [vmem:[%s246 + $0x30] sm:$0xf] %vm567, %v563
      %581 = vst.msk [vmem:[%s246 + $0x34] sm:$0xf] %vm567, %v564
      %582 = vst.msk [vmem:[%s246 + $0x38] sm:$0xf] %vm567, %v565
      %583 = vst.msk [vmem:[%s246 + $0x3c] sm:$0xf] %vm567, %v566
      %p584 = scmp.lt.s32.totalorder %s18, 1
      %s585 = scalar_select %p584, %s18, 1
      %p586 = scmp.lt.s32.totalorder %s19, 7
      %s587 = scalar_select %p586, %s19, 7
      %s588 = smul.addr %s587, 16
      %s589 = smul.addr %s585, 128
      %s590 = sadd.s32 %s588, %s589
      %s591 = smul.addr %s590, 4
      %s592 = scalar_lea.vmem %s3, %s591
      // Predicated region
      $region33: #{conv_up_with_skip_forward.7} parent=31 // pred_check
        %p593 = pneg %p126
      $region34: #{conv_up_with_skip_forward.7} parent=31 // pred_check_branch
        %595 = sbr.rel (%p593) target = $region36
      $region35: #{conv_up_with_skip_forward.7} parent=31 // pred_region
        _
      $region36: #{conv_up_with_skip_forward.7} parent=31 // pred_fallthru
        _
    $region32: #{conv_up_with_skip_forward.7} parent=5 // pred_fallthru
      _
    %p596 = scmp.le.s32.totalorder 2, %s9
    // Predicated region
    $region37: #{conv_up_with_skip_forward.7} parent=5 // pred_check
      %p597 = pneg %p596
    $region38: #{conv_up_with_skip_forward.7} parent=5 // pred_check_branch
      %599 = sbr.rel (%p597) target = $region40
    $region39: #{conv_up_with_skip_forward.7} parent=5 // pred_region
      %s600 = ssub.s32 %s9, 2
      // Predicated region
      $region41: #{conv_up_with_skip_forward.7} parent=39 // pred_check
        %p601 = pneg %p132
      $region42: #{conv_up_with_skip_forward.7} parent=39 // pred_check_branch
        %603 = sbr.rel (%p601) target = $region44
      $region43: #{conv_up_with_skip_forward.7} parent=39 // pred_region
        %p604 = scmp.lt.s32.totalorder %s20, 1
        %s605 = scalar_select %p604, %s20, 1
        %p606 = scmp.lt.s32.totalorder %s21, 7
        %s607 = scalar_select %p606, %s21, 7
        %s608 = smul.addr %s607, 16
        %s609 = smul.addr %s605, 128
        %s610 = sadd.s32 %s608, %s609
        %s611 = smul.addr %s610, 4
        %s612 = scalar_lea.vmem %s3, %s611
      $region44: #{conv_up_with_skip_forward.7} parent=39 // pred_fallthru
        _
    $region40: #{conv_up_with_skip_forward.7} parent=5 // pred_fallthru
      _
  $region6: #{conv_up_with_skip_forward.7} parent=0 // loop_footer
    %s13 = sadd.s32 1, %s9
  $region7: #{conv_up_with_skip_forward.7} parent=0 // loop_footer_branch
    %8 = sbr.rel target = $region3
  $region8: #{conv_up_with_skip_forward.7} parent=0 // loop_exit
    _

// kernel: conv_up_with_skip_forward.9
$region0: #{conv_up_with_skip_forward.9}
  #allocation0 [shape = 'u32[]', space=smem, size = 0x4, offset = 0x4, fixed_abs, tag = 'smem constant byte address 0x4 - core index']
  #allocation1 [shape = 'u32[72,128]{1,0:T(1,128)}', space=vmem, size = 0x9000, scoped, tag = 'internal scratch']
  %s0 = inlined_call_operand.vmem [shape: bf16[2,16,16,288], index: 0, kind: input, shape index: {}]
  %s1 = inlined_call_operand.vmem [shape: f32[2,16,1], index: 1, kind: input, shape index: {}]
  %s2 = inlined_call_operand.vmem [shape: f32[2,16,1], index: 2, kind: input, shape index: {}]
  %s3 = inlined_call_operand.vmem [shape: bf16[2,16,16,288], index: 3, kind: output, shape index: {}]
  %s4 = sld [smem:[#allocation0]]
  $region45: #{conv_up_with_skip_forward.9} parent=0
    _
  %s6 = ssub.s32 1, %s4
  %s7 = scalar_select 0, %s6, %s4
  loop: start=0, step=1, limit=34
  $region2: #{conv_up_with_skip_forward.9} parent=0 // loop_pre_header
    _
  $region3: #{conv_up_with_skip_forward.9} parent=0 // loop_header
    %s9 = sphi 0, %s13
    %p10 = scmp.ge.s32.totalorder %s9, 34
    %s16 = sphi 0, %s28
    %s17 = sphi 0, %s24
    %s18 = sphi 0, %s16
    %s19 = sphi 0, %s17
    %s20 = sphi 0, %s18
    %s21 = sphi 0, %s19
    %s33 = sphi 0, %s35
    %s36 = sphi 0, %s33
    %s37 = sphi 0, %s36
    %s53 = sphi 0, %s37
    %s59 = sphi 0, %s61
    %s62 = sphi 0, %s59
    %s63 = sphi 0, %s62
    %s79 = sphi 0, %s63
    %s85 = sphi 0, %s87
    %s88 = sphi 0, %s85
    %s89 = sphi 0, %s88
    %s105 = sphi 0, %s89
    %s113 = sphi 0, %s115
    %s116 = sphi 0, %s113
    %s117 = sphi 0, %s116
    %s133 = sphi 0, %s117
  $region4: #{conv_up_with_skip_forward.9} parent=0 // loop_header_branch
    %12 = sbr.rel (%p10) target = $region8
  $region5: #{conv_up_with_skip_forward.9} parent=0 // loop_body
    %s14 = ssub.s32 %s9, 1
    %s15 = ssub.s32 %s9, 2
    %s22 = sadd.s32 1, %s17
    %p23 = scmp.ge.s32.totalorder %s22, 16
    %s24 = scalar_select %p23, 0, %s22
    %s25 = sadd.s32 1, %s16
    %s26 = scalar_select %p23, %s25, %s16
    %p27 = scmp.ge.s32.totalorder %s26, 2
    %s28 = scalar_select %p27, 0, %s26
    %s29 = ssub.s32 %s16, %s28
    %s30 = ssub.s32 %s17, %s24
    %s31 = sor.u32 %s29, %s30
    %p32 = scmp.eq.s32.totalorder %s31, 0
    %s34 = sadd.s32 %s33, 1
    %s35 = scalar_select %p32, %s33, %s34
    %p38 = pneg %p32
    %p39 = scmp.eq.s32.totalorder %s9, 31
    %p40 = por %p38, %p39
    %p41 = scmp.ne.s32.totalorder %s33, %s36
    %p42 = scmp.eq.s32.totalorder %s9, 0
    %p43 = por %p41, %p42
    %p44 = scmp.ne.s32.totalorder %s33, %s36
    %p45 = scmp.eq.s32.totalorder %s14, 31
    %p46 = por %p44, %p45
    %p47 = scmp.ne.s32.totalorder %s36, %s37
    %p48 = scmp.eq.s32.totalorder %s14, 0
    %p49 = por %p47, %p48
    %p50 = scmp.ne.s32.totalorder %s36, %s37
    %p51 = scmp.eq.s32.totalorder %s15, 31
    %p52 = por %p50, %p51
    %p54 = scmp.ne.s32.totalorder %s37, %s53
    %p55 = scmp.eq.s32.totalorder %s15, 0
    %p56 = por %p54, %p55
    %s57 = ssub.s32 %s16, %s28
    %p58 = scmp.eq.s32.totalorder %s57, 0
    %s60 = sadd.s32 %s59, 1
    %s61 = scalar_select %p58, %s59, %s60
    %p64 = pneg %p58
    %p65 = scmp.eq.s32.totalorder %s9, 31
    %p66 = por %p64, %p65
    %p67 = scmp.ne.s32.totalorder %s59, %s62
    %p68 = scmp.eq.s32.totalorder %s9, 0
    %p69 = por %p67, %p68
    %p70 = scmp.ne.s32.totalorder %s59, %s62
    %p71 = scmp.eq.s32.totalorder %s14, 31
    %p72 = por %p70, %p71
    %p73 = scmp.ne.s32.totalorder %s62, %s63
    %p74 = scmp.eq.s32.totalorder %s14, 0
    %p75 = por %p73, %p74
    %p76 = scmp.ne.s32.totalorder %s62, %s63
    %p77 = scmp.eq.s32.totalorder %s15, 31
    %p78 = por %p76, %p77
    %p80 = scmp.ne.s32.totalorder %s63, %s79
    %p81 = scmp.eq.s32.totalorder %s15, 0
    %p82 = por %p80, %p81
    %s83 = ssub.s32 %s16, %s28
    %p84 = scmp.eq.s32.totalorder %s83, 0
    %s86 = sadd.s32 %s85, 1
    %s87 = scalar_select %p84, %s85, %s86
    %p90 = pneg %p84
    %p91 = scmp.eq.s32.totalorder %s9, 31
    %p92 = por %p90, %p91
    %p93 = scmp.ne.s32.totalorder %s85, %s88
    %p94 = scmp.eq.s32.totalorder %s9, 0
    %p95 = por %p93, %p94
    %p96 = scmp.ne.s32.totalorder %s85, %s88
    %p97 = scmp.eq.s32.totalorder %s14, 31
    %p98 = por %p96, %p97
    %p99 = scmp.ne.s32.totalorder %s88, %s89
    %p100 = scmp.eq.s32.totalorder %s14, 0
    %p101 = por %p99, %p100
    %p102 = scmp.ne.s32.totalorder %s88, %s89
    %p103 = scmp.eq.s32.totalorder %s15, 31
    %p104 = por %p102, %p103
    %p106 = scmp.ne.s32.totalorder %s89, %s105
    %p107 = scmp.eq.s32.totalorder %s15, 0
    %p108 = por %p106, %p107
    %s109 = ssub.s32 %s16, %s28
    %s110 = ssub.s32 %s17, %s24
    %s111 = sor.u32 %s109, %s110
    %p112 = scmp.eq.s32.totalorder %s111, 0
    %s114 = sadd.s32 %s113, 1
    %s115 = scalar_select %p112, %s113, %s114
    %p118 = pneg %p112
    %p119 = scmp.eq.s32.totalorder %s9, 31
    %p120 = por %p118, %p119
    %p121 = scmp.ne.s32.totalorder %s113, %s116
    %p122 = scmp.eq.s32.totalorder %s9, 0
    %p123 = por %p121, %p122
    %p124 = scmp.ne.s32.totalorder %s113, %s116
    %p125 = scmp.eq.s32.totalorder %s14, 31
    %p126 = por %p124, %p125
    %p127 = scmp.ne.s32.totalorder %s116, %s117
    %p128 = scmp.eq.s32.totalorder %s14, 0
    %p129 = por %p127, %p128
    %p130 = scmp.ne.s32.totalorder %s116, %s117
    %p131 = scmp.eq.s32.totalorder %s15, 31
    %p132 = por %p130, %p131
    %p134 = scmp.ne.s32.totalorder %s117, %s133
    %p135 = scmp.eq.s32.totalorder %s15, 0
    %p136 = por %p134, %p135
    %p137 = scmp.le.s32.totalorder 1, %s9
    %p138 = scmp.lt.s32.totalorder %s9, 33
    %p139 = pnand %p137, %p138
    %p140 = pneg %p139
    // Predicated region
    $region9: #{conv_up_with_skip_forward.9} parent=5 // pred_check
      _
    $region10: #{conv_up_with_skip_forward.9} parent=5 // pred_check_branch
      %142 = sbr.rel (%p139) target = $region12
    $region11: #{conv_up_with_skip_forward.9} parent=5 // pred_region
      %s143 = ssub.s32 %s9, 1
    $region12: #{conv_up_with_skip_forward.9} parent=5 // pred_fallthru
      _
    %p144 = scmp.lt.s32.totalorder %s9, 32
    // Predicated region
    $region13: #{conv_up_with_skip_forward.9} parent=5 // pred_check
      %p145 = pneg %p144
    $region14: #{conv_up_with_skip_forward.9} parent=5 // pred_check_branch
      %147 = sbr.rel (%p145) target = $region16
    $region15: #{conv_up_with_skip_forward.9} parent=5 // pred_region
      // Predicated region
      $region17: #{conv_up_with_skip_forward.9} parent=15 // pred_check
        %p148 = pneg %p43
      $region18: #{conv_up_with_skip_forward.9} parent=15 // pred_check_branch
        %150 = sbr.rel (%p148) target = $region20
      $region19: #{conv_up_with_skip_forward.9} parent=15 // pred_region
        %p151 = scmp.lt.s32.totalorder %s16, 1
        %s152 = scalar_select %p151, %s16, 1
        %p153 = scmp.lt.s32.totalorder %s17, 15
        %s154 = scalar_select %p153, %s17, 15
        %s155 = smul.addr %s154, 6
        %s156 = smul.addr %s152, 96
        %s157 = sadd.s32 %s155, %s156
        %s158 = smul.addr %s157, 4
        %s159 = scalar_lea.vmem %s0, %s158
      $region20: #{conv_up_with_skip_forward.9} parent=15 // pred_fallthru
        _
      // Predicated region
      $region21: #{conv_up_with_skip_forward.9} parent=15 // pred_check
        %p160 = pneg %p69
      $region22: #{conv_up_with_skip_forward.9} parent=15 // pred_check_branch
        %162 = sbr.rel (%p160) target = $region24
      $region23: #{conv_up_with_skip_forward.9} parent=15 // pred_region
        %p163 = scmp.lt.s32.totalorder %s16, 1
        %s164 = scalar_select %p163, %s16, 1
        %s165 = smul.addr %s164, 2
        %s166 = smul.addr %s165, 8
        %s167 = scalar_lea.vmem %s1, %s166
      $region24: #{conv_up_with_skip_forward.9} parent=15 // pred_fallthru
        _
      // Predicated region
      $region25: #{conv_up_with_skip_forward.9} parent=15 // pred_check
        %p168 = pneg %p95
      $region26: #{conv_up_with_skip_forward.9} parent=15 // pred_check_branch
        %170 = sbr.rel (%p168) target = $region28
      $region27: #{conv_up_with_skip_forward.9} parent=15 // pred_region
        %p171 = scmp.lt.s32.totalorder %s16, 1
        %s172 = scalar_select %p171, %s16, 1
        %s173 = smul.addr %s172, 2
        %s174 = smul.addr %s173, 8
        %s175 = scalar_lea.vmem %s2, %s174
      $region28: #{conv_up_with_skip_forward.9} parent=15 // pred_fallthru
        _
    $region16: #{conv_up_with_skip_forward.9} parent=5 // pred_fallthru
      _
    %p176 = scmp.le.s32.totalorder 1, %s9
    %p177 = scmp.lt.s32.totalorder %s9, 33
    %p178 = pnand %p176, %p177
    %p179 = pneg %p178
    // Predicated region
    $region29: #{conv_up_with_skip_forward.9} parent=5 // pred_check
      _
    $region30: #{conv_up_with_skip_forward.9} parent=5 // pred_check_branch
      %181 = sbr.rel (%p178) target = $region32
    $region31: #{conv_up_with_skip_forward.9} parent=5 // pred_region
      %s182 = ssub.s32 %s9, 1
      %p183 = scmp.lt.s32.totalorder %s18, 1
      %s184 = scalar_select %p183, %s18, 1
      %p185 = scmp.lt.s32.totalorder %s19, 15
      %s186 = scalar_select %p185, %s19, 15
      %s187 = smul.addr %s186, 6
      %s188 = smul.addr %s184, 96
      %s189 = sadd.s32 %s187, %s188
      %s190 = smul.addr %s189, 4
      %s191 = scalar_lea.vmem %s0, %s190
      %p192 = pneg %p49
      %p193 = pneg %p46
      %p194 = scmp.lt.s32.totalorder %s18, 1
      %s195 = scalar_select %p194, %s18, 1
      %s196 = smul.addr %s195, 2
      %s197 = smul.addr %s196, 8
      %s198 = scalar_lea.vmem %s1, %s197
      %p199 = pneg %p75
      %p200 = pneg %p72
      %p201 = scmp.lt.s32.totalorder %s18, 1
      %s202 = scalar_select %p201, %s18, 1
      %s203 = smul.addr %s202, 2
      %s204 = smul.addr %s203, 8
      %s205 = scalar_lea.vmem %s2, %s204
      %p206 = pneg %p101
      %p207 = pneg %p98
      %p208 = pneg %p129
      %p209 = pneg %p126
      %p210 = scmp.lt.s32.totalorder %s18, 1
      %s211 = scalar_select %p210, %s18, 1
      %p212 = scmp.lt.s32.totalorder %s19, 15
      %s213 = scalar_select %p212, %s19, 15
      %s214 = smul.addr %s213, 6
      %s215 = smul.addr %s211, 96
      %s216 = sadd.s32 %s214, %s215
      %s217 = smul.addr %s216, 4
      %s218 = scalar_lea.vmem %s3, %s217
      %p219 = scmp.lt.s32.totalorder %s18, 1
      %s220 = scalar_select %p219, %s18, 1
      %p221 = scmp.lt.s32.totalorder %s19, 15
      %s222 = scalar_select %p221, %s19, 15
      %s223 = smul.addr %s222, 6
      %s224 = smul.addr %s220, 96
      %s225 = sadd.s32 %s223, %s224
      %s226 = smul.addr %s225, 4
      %s227 = scalar_lea.vmem %s0, %s226
      %p228 = scmp.lt.s32.totalorder %s18, 1
      %s229 = scalar_select %p228, %s18, 1
      %s230 = smul.addr %s229, 2
      %s231 = smul.addr %s230, 8
      %s232 = scalar_lea.vmem %s1, %s231
      %p233 = scmp.lt.s32.totalorder %s18, 1
      %s234 = scalar_select %p233, %s18, 1
      %s235 = smul.addr %s234, 2
      %s236 = smul.addr %s235, 8
      %s237 = scalar_lea.vmem %s2, %s236
      %p238 = scmp.lt.s32.totalorder %s18, 1
      %s239 = scalar_select %p238, %s18, 1
      %p240 = scmp.lt.s32.totalorder %s19, 15
      %s241 = scalar_select %p240, %s19, 15
      %s242 = smul.addr %s241, 6
      %s243 = smul.addr %s239, 96
      %s244 = sadd.s32 %s242, %s243
      %s245 = smul.addr %s244, 4
      %s246 = scalar_lea.vmem %s3, %s245
      %v247 = vld [vmem:[%s227] sm:$0xff]
      %v248 = vld [vmem:[%s227 + $0x8] sm:$0xf]
      %v249 = vld [vmem:[%s227 + $0xc] sm:$0xff]
      %v250 = vld [vmem:[%s227 + $0x14] sm:$0xf]
      %v251 = vunpack.c.l.bf16 %v247
      %v252 = vunpack.c.h.bf16 %v247
      %v253 = vunpack.c.l.bf16 %v248
      %v254 = vunpack.c.l.bf16 %v249
      %v255 = vunpack.c.h.bf16 %v249
      %v256 = vunpack.c.l.bf16 %v250
      %v257 = vld [vmem:[%s232] sm:$0xff]
      %v258 = vld [vmem:[%s232 + $0x8] sm:$0xff]
      %260 = vset.pattern.permute.xlu0 0
      %261 = vperm.xlu0 %260, %v257
      %v262 = vpop.permute.xlu0 %261
      %265 = vset.pattern.permute.xlu0 0
      %266 = vperm.xlu0 %265, %v258
      %v267 = vpop.permute.xlu0 %266
      %v269 = vmul.f32 %v251, %v262
      %v270 = vmul.f32 %v252, %v262
      %v271 = vmul.f32 %v253, %v262
      %v272 = vmul.f32 %v254, %v267
      %v273 = vmul.f32 %v255, %v267
      %v274 = vmul.f32 %v256, %v267
      %v275 = vld [vmem:[%s237] sm:$0xff]
      %v276 = vld [vmem:[%s237 + $0x8] sm:$0xff]
      %278 = vset.pattern.permute.xlu0 0
      %279 = vperm.xlu0 %278, %v275
      %v280 = vpop.permute.xlu0 %279
      %283 = vset.pattern.permute.xlu0 0
      %284 = vperm.xlu0 %283, %v276
      %v285 = vpop.permute.xlu0 %284
      %v287 = vadd.f32 %v269, %v280
      %v288 = vadd.f32 %v270, %v280
      %v289 = vadd.f32 %v271, %v280
      %v290 = vadd.f32 %v272, %v285
      %v291 = vadd.f32 %v273, %v285
      %v292 = vadd.f32 %v274, %v285
      %vm293 = vcmp.ge.f32.partialorder %v287, 0.0
      %vm294 = vcmp.ge.f32.partialorder %v288, 0.0
      %vm295 = vcmp.ge.f32.partialorder %v289, 0.0
      %vm296 = vcmp.ge.f32.partialorder %v290, 0.0
      %vm297 = vcmp.ge.f32.partialorder %v291, 0.0
      %vm298 = vcmp.ge.f32.partialorder %v292, 0.0
      %v299 = vmul.f32 %v287, 0.1
      %v300 = vmul.f32 %v288, 0.1
      %v301 = vmul.f32 %v289, 0.1
      %v302 = vmul.f32 %v290, 0.1
      %v303 = vmul.f32 %v291, 0.1
      %v304 = vmul.f32 %v292, 0.1
      %v305 = vsel %vm293, %v287, %v299
      %v306 = vsel %vm294, %v288, %v300
      %v307 = vsel %vm295, %v289, %v301
      %v308 = vsel %vm296, %v290, %v302
      %v309 = vsel %vm297, %v291, %v303
      %v310 = vsel %vm298, %v292, %v304
      %v311 = vpack.c.bf16 %v306, %v305
      %v312 = vpack.c.bf16 %v307, %v307
      %v313 = vpack.c.bf16 %v309, %v308
      %v314 = vpack.c.bf16 %v310, %v310
      %315 = vst [vmem:[%s246] sm:$0xff] %v311
      %vm316 = vcmask 257024
      %317 = vst.msk [vmem:[%s246 + $0x8] sm:$0xf] %vm316, %v312
      %318 = vst [vmem:[%s246 + $0xc] sm:$0xff] %v313
      %319 = vst.msk [vmem:[%s246 + $0x14] sm:$0xf] %vm316, %v314
      %p320 = scmp.lt.s32.totalorder %s18, 1
      %s321 = scalar_select %p320, %s18, 1
      %p322 = scmp.lt.s32.totalorder %s19, 15
      %s323 = scalar_select %p322, %s19, 15
      %s324 = smul.addr %s323, 6
      %s325 = smul.addr %s321, 96
      %s326 = sadd.s32 %s324, %s325
      %s327 = smul.addr %s326, 4
      %s328 = scalar_lea.vmem %s3, %s327
      // Predicated region
      $region33: #{conv_up_with_skip_forward.9} parent=31 // pred_check
        %p329 = pneg %p126
      $region34: #{conv_up_with_skip_forward.9} parent=31 // pred_check_branch
        %331 = sbr.rel (%p329) target = $region36
      $region35: #{conv_up_with_skip_forward.9} parent=31 // pred_region
        _
      $region36: #{conv_up_with_skip_forward.9} parent=31 // pred_fallthru
        _
    $region32: #{conv_up_with_skip_forward.9} parent=5 // pred_fallthru
      _
    %p332 = scmp.le.s32.totalorder 2, %s9
    // Predicated region
    $region37: #{conv_up_with_skip_forward.9} parent=5 // pred_check
      %p333 = pneg %p332
    $region38: #{conv_up_with_skip_forward.9} parent=5 // pred_check_branch
      %335 = sbr.rel (%p333) target = $region40
    $region39: #{conv_up_with_skip_forward.9} parent=5 // pred_region
      %s336 = ssub.s32 %s9, 2
      // Predicated region
      $region41: #{conv_up_with_skip_forward.9} parent=39 // pred_check
        %p337 = pneg %p132
      $region42: #{conv_up_with_skip_forward.9} parent=39 // pred_check_branch
        %339 = sbr.rel (%p337) target = $region44
      $region43: #{conv_up_with_skip_forward.9} parent=39 // pred_region
        %p340 = scmp.lt.s32.totalorder %s20, 1
        %s341 = scalar_select %p340, %s20, 1
        %p342 = scmp.lt.s32.totalorder %s21, 15
        %s343 = scalar_select %p342, %s21, 15
        %s344 = smul.addr %s343, 6
        %s345 = smul.addr %s341, 96
        %s346 = sadd.s32 %s344, %s345
        %s347 = smul.addr %s346, 4
        %s348 = scalar_lea.vmem %s3, %s347
      $region44: #{conv_up_with_skip_forward.9} parent=39 // pred_fallthru
        _
    $region40: #{conv_up_with_skip_forward.9} parent=5 // pred_fallthru
      _
  $region6: #{conv_up_with_skip_forward.9} parent=0 // loop_footer
    %s13 = sadd.s32 1, %s9
  $region7: #{conv_up_with_skip_forward.9} parent=0 // loop_footer_branch
    %8 = sbr.rel target = $region3
  $region8: #{conv_up_with_skip_forward.9} parent=0 // loop_exit
    _

// kernel: conv_up_with_skip_forward.8
$region0: #{conv_up_with_skip_forward.8}
  #allocation0 [shape = 'u32[]', space=smem, size = 0x4, offset = 0x4, fixed_abs, tag = 'smem constant byte address 0x4 - core index']
  #allocation1 [shape = 'u32[72,128]{1,0:T(1,128)}', space=vmem, size = 0x9000, scoped, tag = 'internal scratch']
  %s0 = inlined_call_operand.vmem [shape: bf16[2,18,16,342], index: 0, kind: input, shape index: {}, may-alias: {0,1,2}]
  %s1 = inlined_call_operand.vmem [shape: bf16[2,18,16,342], index: 1, kind: input, shape index: {}, may-alias: {0,1,2}]
  %s2 = inlined_call_operand.vmem [shape: bf16[2,18,16,342], index: 2, kind: input, shape index: {}, may-alias: {0,1,2}]
  %s3 = inlined_call_operand.vmem [shape: bf16[2,18,16,342], index: 3, kind: input, shape index: {}, may-alias: {3,4,5}]
  %s4 = inlined_call_operand.vmem [shape: bf16[2,18,16,342], index: 4, kind: input, shape index: {}, may-alias: {3,4,5}]
  %s5 = inlined_call_operand.vmem [shape: bf16[2,18,16,342], index: 5, kind: input, shape index: {}, may-alias: {3,4,5}]
  %s6 = inlined_call_operand.vmem [shape: bf16[16,864], index: 6, kind: input, shape index: {}]
  %s7 = inlined_call_operand.vmem [shape: f32[1,288], index: 7, kind: input, shape index: {}]
  %s8 = inlined_call_operand.vmem [shape: bf16[2,16,16,288], index: 8, kind: output, shape index: {0}]
  %s9 = inlined_call_operand.vmem [shape: f32[2,16,2], index: 9, kind: output, shape index: {1}]
  %10 = xla_tuple %s8, %s9
  %s11 = sld [smem:[#allocation0]]
  $region81: #{conv_up_with_skip_forward.8} parent=0
    _
  %s13 = ssub.s32 1, %s11
  %s14 = scalar_select 0, %s13, %s11
  loop: start=0, step=1, limit=34
  $region2: #{conv_up_with_skip_forward.8} parent=0 // loop_pre_header
    _
  $region3: #{conv_up_with_skip_forward.8} parent=0 // loop_header
    %s16 = sphi 0, %s20
    %p17 = scmp.ge.s32.totalorder %s16, 34
    %s23 = sphi 0, %s35
    %s24 = sphi 0, %s31
    %s25 = sphi 0, %s23
    %s26 = sphi 0, %s24
    %s27 = sphi 0, %s25
    %s28 = sphi 0, %s26
    %s40 = sphi 0, %s42
    %s43 = sphi 0, %s40
    %s44 = sphi 0, %s43
    %s60 = sphi 0, %s44
    %s70 = sphi 0, %s72
    %s73 = sphi 0, %s70
    %s74 = sphi 0, %s73
    %s90 = sphi 0, %s74
    %s100 = sphi 0, %s102
    %s103 = sphi 0, %s100
    %s104 = sphi 0, %s103
    %s120 = sphi 0, %s104
    %s128 = sphi 0, %s130
    %s131 = sphi 0, %s128
    %s132 = sphi 0, %s131
    %s148 = sphi 0, %s132
    %s158 = sphi 0, %s160
    %s161 = sphi 0, %s158
    %s162 = sphi 0, %s161
    %s178 = sphi 0, %s162
    %s188 = sphi 0, %s190
    %s191 = sphi 0, %s188
    %s192 = sphi 0, %s191
    %s208 = sphi 0, %s192
    %s212 = sphi 0, %s212
    %s214 = sphi 0, %s212
    %s215 = sphi 0, %s214
    %s229 = sphi 0, %s215
    %s233 = sphi 0, %s233
    %s235 = sphi 0, %s233
    %s236 = sphi 0, %s235
    %s250 = sphi 0, %s236
    %s258 = sphi 0, %s260
    %s261 = sphi 0, %s258
    %s262 = sphi 0, %s261
    %s278 = sphi 0, %s262
    %s284 = sphi 0, %s286
    %s287 = sphi 0, %s284
    %s288 = sphi 0, %s287
    %s304 = sphi 0, %s288
  $region4: #{conv_up_with_skip_forward.8} parent=0 // loop_header_branch
    %19 = sbr.rel (%p17) target = $region8
  $region5: #{conv_up_with_skip_forward.8} parent=0 // loop_body
    %s21 = ssub.s32 %s16, 1
    %s22 = ssub.s32 %s16, 2
    %s29 = sadd.s32 1, %s24
    %p30 = scmp.ge.s32.totalorder %s29, 16
    %s31 = scalar_select %p30, 0, %s29
    %s32 = sadd.s32 1, %s23
    %s33 = scalar_select %p30, %s32, %s23
    %p34 = scmp.ge.s32.totalorder %s33, 2
    %s35 = scalar_select %p34, 0, %s33
    %s36 = ssub.s32 %s23, %s35
    %s37 = ssub.s32 %s24, %s31
    %s38 = sor.u32 %s36, %s37
    %p39 = scmp.eq.s32.totalorder %s38, 0
    %s41 = sadd.s32 %s40, 1
    %s42 = scalar_select %p39, %s40, %s41
    %p45 = pneg %p39
    %p46 = scmp.eq.s32.totalorder %s16, 31
    %p47 = por %p45, %p46
    %p48 = scmp.ne.s32.totalorder %s40, %s43
    %p49 = scmp.eq.s32.totalorder %s16, 0
    %p50 = por %p48, %p49
    %p51 = scmp.ne.s32.totalorder %s40, %s43
    %p52 = scmp.eq.s32.totalorder %s21, 31
    %p53 = por %p51, %p52
    %p54 = scmp.ne.s32.totalorder %s43, %s44
    %p55 = scmp.eq.s32.totalorder %s21, 0
    %p56 = por %p54, %p55
    %p57 = scmp.ne.s32.totalorder %s43, %s44
    %p58 = scmp.eq.s32.totalorder %s22, 31
    %p59 = por %p57, %p58
    %p61 = scmp.ne.s32.totalorder %s44, %s60
    %p62 = scmp.eq.s32.totalorder %s22, 0
    %p63 = por %p61, %p62
    %s64 = sadd.s32 %s24, 1
    %s65 = sadd.s32 %s31, 1
    %s66 = ssub.s32 %s23, %s35
    %s67 = ssub.s32 %s64, %s65
    %s68 = sor.u32 %s66, %s67
    %p69 = scmp.eq.s32.totalorder %s68, 0
    %s71 = sadd.s32 %s70, 1
    %s72 = scalar_select %p69, %s70, %s71
    %p75 = pneg %p69
    %p76 = scmp.eq.s32.totalorder %s16, 31
    %p77 = por %p75, %p76
    %p78 = scmp.ne.s32.totalorder %s70, %s73
    %p79 = scmp.eq.s32.totalorder %s16, 0
    %p80 = por %p78, %p79
    %p81 = scmp.ne.s32.totalorder %s70, %s73
    %p82 = scmp.eq.s32.totalorder %s21, 31
    %p83 = por %p81, %p82
    %p84 = scmp.ne.s32.totalorder %s73, %s74
    %p85 = scmp.eq.s32.totalorder %s21, 0
    %p86 = por %p84, %p85
    %p87 = scmp.ne.s32.totalorder %s73, %s74
    %p88 = scmp.eq.s32.totalorder %s22, 31
    %p89 = por %p87, %p88
    %p91 = scmp.ne.s32.totalorder %s74, %s90
    %p92 = scmp.eq.s32.totalorder %s22, 0
    %p93 = por %p91, %p92
    %s94 = sadd.s32 %s24, 2
    %s95 = sadd.s32 %s31, 2
    %s96 = ssub.s32 %s23, %s35
    %s97 = ssub.s32 %s94, %s95
    %s98 = sor.u32 %s96, %s97
    %p99 = scmp.eq.s32.totalorder %s98, 0
    %s101 = sadd.s32 %s100, 1
    %s102 = scalar_select %p99, %s100, %s101
    %p105 = pneg %p99
    %p106 = scmp.eq.s32.totalorder %s16, 31
    %p107 = por %p105, %p106
    %p108 = scmp.ne.s32.totalorder %s100, %s103
    %p109 = scmp.eq.s32.totalorder %s16, 0
    %p110 = por %p108, %p109
    %p111 = scmp.ne.s32.totalorder %s100, %s103
    %p112 = scmp.eq.s32.totalorder %s21, 31
    %p113 = por %p111, %p112
    %p114 = scmp.ne.s32.totalorder %s103, %s104
    %p115 = scmp.eq.s32.totalorder %s21, 0
    %p116 = por %p114, %p115
    %p117 = scmp.ne.s32.totalorder %s103, %s104
    %p118 = scmp.eq.s32.totalorder %s22, 31
    %p119 = por %p117, %p118
    %p121 = scmp.ne.s32.totalorder %s104, %s120
    %p122 = scmp.eq.s32.totalorder %s22, 0
    %p123 = por %p121, %p122
    %s124 = ssub.s32 %s23, %s35
    %s125 = ssub.s32 %s24, %s31
    %s126 = sor.u32 %s124, %s125
    %p127 = scmp.eq.s32.totalorder %s126, 0
    %s129 = sadd.s32 %s128, 1
    %s130 = scalar_select %p127, %s128, %s129
    %p133 = pneg %p127
    %p134 = scmp.eq.s32.totalorder %s16, 31
    %p135 = por %p133, %p134
    %p136 = scmp.ne.s32.totalorder %s128, %s131
    %p137 = scmp.eq.s32.totalorder %s16, 0
    %p138 = por %p136, %p137
    %p139 = scmp.ne.s32.totalorder %s128, %s131
    %p140 = scmp.eq.s32.totalorder %s21, 31
    %p141 = por %p139, %p140
    %p142 = scmp.ne.s32.totalorder %s131, %s132
    %p143 = scmp.eq.s32.totalorder %s21, 0
    %p144 = por %p142, %p143
    %p145 = scmp.ne.s32.totalorder %s131, %s132
    %p146 = scmp.eq.s32.totalorder %s22, 31
    %p147 = por %p145, %p146
    %p149 = scmp.ne.s32.totalorder %s132, %s148
    %p150 = scmp.eq.s32.totalorder %s22, 0
    %p151 = por %p149, %p150
    %s152 = sadd.s32 %s24, 1
    %s153 = sadd.s32 %s31, 1
    %s154 = ssub.s32 %s23, %s35
    %s155 = ssub.s32 %s152, %s153
    %s156 = sor.u32 %s154, %s155
    %p157 = scmp.eq.s32.totalorder %s156, 0
    %s159 = sadd.s32 %s158, 1
    %s160 = scalar_select %p157, %s158, %s159
    %p163 = pneg %p157
    %p164 = scmp.eq.s32.totalorder %s16, 31
    %p165 = por %p163, %p164
    %p166 = scmp.ne.s32.totalorder %s158, %s161
    %p167 = scmp.eq.s32.totalorder %s16, 0
    %p168 = por %p166, %p167
    %p169 = scmp.ne.s32.totalorder %s158, %s161
    %p170 = scmp.eq.s32.totalorder %s21, 31
    %p171 = por %p169, %p170
    %p172 = scmp.ne.s32.totalorder %s161, %s162
    %p173 = scmp.eq.s32.totalorder %s21, 0
    %p174 = por %p172, %p173
    %p175 = scmp.ne.s32.totalorder %s161, %s162
    %p176 = scmp.eq.s32.totalorder %s22, 31
    %p177 = por %p175, %p176
    %p179 = scmp.ne.s32.totalorder %s162, %s178
    %p180 = scmp.eq.s32.totalorder %s22, 0
    %p181 = por %p179, %p180
    %s182 = sadd.s32 %s24, 2
    %s183 = sadd.s32 %s31, 2
    %s184 = ssub.s32 %s23, %s35
    %s185 = ssub.s32 %s182, %s183
    %s186 = sor.u32 %s184, %s185
    %p187 = scmp.eq.s32.totalorder %s186, 0
    %s189 = sadd.s32 %s188, 1
    %s190 = scalar_select %p187, %s188, %s189
    %p193 = pneg %p187
    %p194 = scmp.eq.s32.totalorder %s16, 31
    %p195 = por %p193, %p194
    %p196 = scmp.ne.s32.totalorder %s188, %s191
    %p197 = scmp.eq.s32.totalorder %s16, 0
    %p198 = por %p196, %p197
    %p199 = scmp.ne.s32.totalorder %s188, %s191
    %p200 = scmp.eq.s32.totalorder %s21, 31
    %p201 = por %p199, %p200
    %p202 = scmp.ne.s32.totalorder %s191, %s192
    %p203 = scmp.eq.s32.totalorder %s21, 0
    %p204 = por %p202, %p203
    %p205 = scmp.ne.s32.totalorder %s191, %s192
    %p206 = scmp.eq.s32.totalorder %s22, 31
    %p207 = por %p205, %p206
    %p209 = scmp.ne.s32.totalorder %s192, %s208
    %p210 = scmp.eq.s32.totalorder %s22, 0
    %p211 = por %p209, %p210
    %s213 = sadd.s32 %s212, 1
    %p216 = scmp.eq.s32.totalorder %s16, 31
    %p217 = scmp.ne.s32.totalorder %s212, %s214
    %p218 = scmp.eq.s32.totalorder %s16, 0
    %p219 = por %p217, %p218
    %p220 = scmp.ne.s32.totalorder %s212, %s214
    %p221 = scmp.eq.s32.totalorder %s21, 31
    %p222 = por %p220, %p221
    %p223 = scmp.ne.s32.totalorder %s214, %s215
    %p224 = scmp.eq.s32.totalorder %s21, 0
    %p225 = por %p223, %p224
    %p226 = scmp.ne.s32.totalorder %s214, %s215
    %p227 = scmp.eq.s32.totalorder %s22, 31
    %p228 = por %p226, %p227
    %p230 = scmp.ne.s32.totalorder %s215, %s229
    %p231 = scmp.eq.s32.totalorder %s22, 0
    %p232 = por %p230, %p231
    %s234 = sadd.s32 %s233, 1
    %p237 = scmp.eq.s32.totalorder %s16, 31
    %p238 = scmp.ne.s32.totalorder %s233, %s235
    %p239 = scmp.eq.s32.totalorder %s16, 0
    %p240 = por %p238, %p239
    %p241 = scmp.ne.s32.totalorder %s233, %s235
    %p242 = scmp.eq.s32.totalorder %s21, 31
    %p243 = por %p241, %p242
    %p244 = scmp.ne.s32.totalorder %s235, %s236
    %p245 = scmp.eq.s32.totalorder %s21, 0
    %p246 = por %p244, %p245
    %p247 = scmp.ne.s32.totalorder %s235, %s236
    %p248 = scmp.eq.s32.totalorder %s22, 31
    %p249 = por %p247, %p248
    %p251 = scmp.ne.s32.totalorder %s236, %s250
    %p252 = scmp.eq.s32.totalorder %s22, 0
    %p253 = por %p251, %p252
    %s254 = ssub.s32 %s23, %s35
    %s255 = ssub.s32 %s24, %s31
    %s256 = sor.u32 %s254, %s255
    %p257 = scmp.eq.s32.totalorder %s256, 0
    %s259 = sadd.s32 %s258, 1
    %s260 = scalar_select %p257, %s258, %s259
    %p263 = pneg %p257
    %p264 = scmp.eq.s32.totalorder %s16, 31
    %p265 = por %p263, %p264
    %p266 = scmp.ne.s32.totalorder %s258, %s261
    %p267 = scmp.eq.s32.totalorder %s16, 0
    %p268 = por %p266, %p267
    %p269 = scmp.ne.s32.totalorder %s258, %s261
    %p270 = scmp.eq.s32.totalorder %s21, 31
    %p271 = por %p269, %p270
    %p272 = scmp.ne.s32.totalorder %s261, %s262
    %p273 = scmp.eq.s32.totalorder %s21, 0
    %p274 = por %p272, %p273
    %p275 = scmp.ne.s32.totalorder %s261, %s262
    %p276 = scmp.eq.s32.totalorder %s22, 31
    %p277 = por %p275, %p276
    %p279 = scmp.ne.s32.totalorder %s262, %s278
    %p280 = scmp.eq.s32.totalorder %s22, 0
    %p281 = por %p279, %p280
    %s282 = ssub.s32 %s23, %s35
    %p283 = scmp.eq.s32.totalorder %s282, 0
    %s285 = sadd.s32 %s284, 1
    %s286 = scalar_select %p283, %s284, %s285
    %p289 = pneg %p283
    %p290 = scmp.eq.s32.totalorder %s16, 31
    %p291 = por %p289, %p290
    %p292 = scmp.ne.s32.totalorder %s284, %s287
    %p293 = scmp.eq.s32.totalorder %s16, 0
    %p294 = por %p292, %p293
    %p295 = scmp.ne.s32.totalorder %s284, %s287
    %p296 = scmp.eq.s32.totalorder %s21, 31
    %p297 = por %p295, %p296
    %p298 = scmp.ne.s32.totalorder %s287, %s288
    %p299 = scmp.eq.s32.totalorder %s21, 0
    %p300 = por %p298, %p299
    %p301 = scmp.ne.s32.totalorder %s287, %s288
    %p302 = scmp.eq.s32.totalorder %s22, 31
    %p303 = por %p301, %p302
    %p305 = scmp.ne.s32.totalorder %s288, %s304
    %p306 = scmp.eq.s32.totalorder %s22, 0
    %p307 = por %p305, %p306
    %p308 = scmp.le.s32.totalorder 1, %s16
    %p309 = scmp.lt.s32.totalorder %s16, 33
    %p310 = pnand %p308, %p309
    %p311 = pneg %p310
    // Predicated region
    $region9: #{conv_up_with_skip_forward.8} parent=5 // pred_check
      _
    $region10: #{conv_up_with_skip_forward.8} parent=5 // pred_check_branch
      %313 = sbr.rel (%p310) target = $region12
    $region11: #{conv_up_with_skip_forward.8} parent=5 // pred_region
      %s314 = ssub.s32 %s16, 1
      // Predicated region
      $region13: #{conv_up_with_skip_forward.8} parent=11 // pred_check
        %p315 = pneg %p225
      $region14: #{conv_up_with_skip_forward.8} parent=11 // pred_check_branch
        %317 = sbr.rel (%p315) target = $region16
      $region15: #{conv_up_with_skip_forward.8} parent=11 // pred_region
        _
      $region16: #{conv_up_with_skip_forward.8} parent=11 // pred_fallthru
        _
      // Predicated region
      $region17: #{conv_up_with_skip_forward.8} parent=11 // pred_check
        %p318 = pneg %p246
      $region18: #{conv_up_with_skip_forward.8} parent=11 // pred_check_branch
        %320 = sbr.rel (%p318) target = $region20
      $region19: #{conv_up_with_skip_forward.8} parent=11 // pred_region
        _
      $region20: #{conv_up_with_skip_forward.8} parent=11 // pred_fallthru
        _
    $region12: #{conv_up_with_skip_forward.8} parent=5 // pred_fallthru
      _
    %p321 = scmp.lt.s32.totalorder %s16, 32
    // Predicated region
    $region21: #{conv_up_with_skip_forward.8} parent=5 // pred_check
      %p322 = pneg %p321
    $region22: #{conv_up_with_skip_forward.8} parent=5 // pred_check_branch
      %324 = sbr.rel (%p322) target = $region24
    $region23: #{conv_up_with_skip_forward.8} parent=5 // pred_region
      // Predicated region
      $region25: #{conv_up_with_skip_forward.8} parent=23 // pred_check
        %p325 = pneg %p50
      $region26: #{conv_up_with_skip_forward.8} parent=23 // pred_check_branch
        %327 = sbr.rel (%p325) target = $region28
      $region27: #{conv_up_with_skip_forward.8} parent=23 // pred_region
        %p328 = scmp.lt.s32.totalorder %s23, 1
        %s329 = scalar_select %p328, %s23, 1
        %p330 = scmp.lt.s32.totalorder %s24, 17
        %s331 = scalar_select %p330, %s24, 17
        %s332 = smul.addr %s331, 6
        %s333 = smul.addr %s329, 108
        %s334 = sadd.s32 %s332, %s333
        %s335 = smul.addr %s334, 4
        %s336 = scalar_lea.vmem %s0, %s335
      $region28: #{conv_up_with_skip_forward.8} parent=23 // pred_fallthru
        _
      // Predicated region
      $region29: #{conv_up_with_skip_forward.8} parent=23 // pred_check
        %p337 = pneg %p80
      $region30: #{conv_up_with_skip_forward.8} parent=23 // pred_check_branch
        %339 = sbr.rel (%p337) target = $region32
      $region31: #{conv_up_with_skip_forward.8} parent=23 // pred_region
        %s340 = sadd.s32 %s24, 1
        %p341 = scmp.lt.s32.totalorder %s23, 1
        %s342 = scalar_select %p341, %s23, 1
        %p343 = scmp.lt.s32.totalorder %s340, 17
        %s344 = scalar_select %p343, %s340, 17
        %s345 = smul.addr %s344, 6
        %s346 = smul.addr %s342, 108
        %s347 = sadd.s32 %s345, %s346
        %s348 = smul.addr %s347, 4
        %s349 = scalar_lea.vmem %s1, %s348
        %s350 = sadd.s32 %s24, 1
      $region32: #{conv_up_with_skip_forward.8} parent=23 // pred_fallthru
        _
      // Predicated region
      $region33: #{conv_up_with_skip_forward.8} parent=23 // pred_check
        %p351 = pneg %p110
      $region34: #{conv_up_with_skip_forward.8} parent=23 // pred_check_branch
        %353 = sbr.rel (%p351) target = $region36
      $region35: #{conv_up_with_skip_forward.8} parent=23 // pred_region
        %s354 = sadd.s32 %s24, 2
        %p355 = scmp.lt.s32.totalorder %s23, 1
        %s356 = scalar_select %p355, %s23, 1
        %p357 = scmp.lt.s32.totalorder %s354, 17
        %s358 = scalar_select %p357, %s354, 17
        %s359 = smul.addr %s358, 6
        %s360 = smul.addr %s356, 108
        %s361 = sadd.s32 %s359, %s360
        %s362 = smul.addr %s361, 4
        %s363 = scalar_lea.vmem %s2, %s362
        %s364 = sadd.s32 %s24, 2
      $region36: #{conv_up_with_skip_forward.8} parent=23 // pred_fallthru
        _
      // Predicated region
      $region37: #{conv_up_with_skip_forward.8} parent=23 // pred_check
        %p365 = pneg %p138
      $region38: #{conv_up_with_skip_forward.8} parent=23 // pred_check_branch
        %367 = sbr.rel (%p365) target = $region40
      $region39: #{conv_up_with_skip_forward.8} parent=23 // pred_region
        %p368 = scmp.lt.s32.totalorder %s23, 1
        %s369 = scalar_select %p368, %s23, 1
        %p370 = scmp.lt.s32.totalorder %s24, 17
        %s371 = scalar_select %p370, %s24, 17
        %s372 = smul.addr %s371, 6
        %s373 = smul.addr %s369, 108
        %s374 = sadd.s32 %s372, %s373
        %s375 = smul.addr %s374, 4
        %s376 = scalar_lea.vmem %s3, %s375
      $region40: #{conv_up_with_skip_forward.8} parent=23 // pred_fallthru
        _
      // Predicated region
      $region41: #{conv_up_with_skip_forward.8} parent=23 // pred_check
        %p377 = pneg %p168
      $region42: #{conv_up_with_skip_forward.8} parent=23 // pred_check_branch
        %379 = sbr.rel (%p377) target = $region44
      $region43: #{conv_up_with_skip_forward.8} parent=23 // pred_region
        %s380 = sadd.s32 %s24, 1
        %p381 = scmp.lt.s32.totalorder %s23, 1
        %s382 = scalar_select %p381, %s23, 1
        %p383 = scmp.lt.s32.totalorder %s380, 17
        %s384 = scalar_select %p383, %s380, 17
        %s385 = smul.addr %s384, 6
        %s386 = smul.addr %s382, 108
        %s387 = sadd.s32 %s385, %s386
        %s388 = smul.addr %s387, 4
        %s389 = scalar_lea.vmem %s4, %s388
        %s390 = sadd.s32 %s24, 1
      $region44: #{conv_up_with_skip_forward.8} parent=23 // pred_fallthru
        _
      // Predicated region
      $region45: #{conv_up_with_skip_forward.8} parent=23 // pred_check
        %p391 = pneg %p198
      $region46: #{conv_up_with_skip_forward.8} parent=23 // pred_check_branch
        %393 = sbr.rel (%p391) target = $region48
      $region47: #{conv_up_with_skip_forward.8} parent=23 // pred_region
        %s394 = sadd.s32 %s24, 2
        %p395 = scmp.lt.s32.totalorder %s23, 1
        %s396 = scalar_select %p395, %s23, 1
        %p397 = scmp.lt.s32.totalorder %s394, 17
        %s398 = scalar_select %p397, %s394, 17
        %s399 = smul.addr %s398, 6
        %s400 = smul.addr %s396, 108
        %s401 = sadd.s32 %s399, %s400
        %s402 = smul.addr %s401, 4
        %s403 = scalar_lea.vmem %s5, %s402
        %s404 = sadd.s32 %s24, 2
      $region48: #{conv_up_with_skip_forward.8} parent=23 // pred_fallthru
        _
    $region24: #{conv_up_with_skip_forward.8} parent=5 // pred_fallthru
      _
    %p405 = scmp.le.s32.totalorder 1, %s16
    %p406 = scmp.lt.s32.totalorder %s16, 33
    %p407 = pnand %p405, %p406
    %p408 = pneg %p407
    // Predicated region
    $region49: #{conv_up_with_skip_forward.8} parent=5 // pred_check
      _
    $region50: #{conv_up_with_skip_forward.8} parent=5 // pred_check_branch
      %410 = sbr.rel (%p407) target = $region52
    $region51: #{conv_up_with_skip_forward.8} parent=5 // pred_region
      %s411 = ssub.s32 %s16, 1
      %p412 = scmp.lt.s32.totalorder %s25, 1
      %s413 = scalar_select %p412, %s25, 1
      %p414 = scmp.lt.s32.totalorder %s26, 17
      %s415 = scalar_select %p414, %s26, 17
      %s416 = smul.addr %s415, 6
      %s417 = smul.addr %s413, 108
      %s418 = sadd.s32 %s416, %s417
      %s419 = smul.addr %s418, 4
      %s420 = scalar_lea.vmem %s0, %s419
      %p421 = pneg %p56
      %p422 = pneg %p53
      %s423 = sadd.s32 %s26, 1
      %p424 = scmp.lt.s32.totalorder %s25, 1
      %s425 = scalar_select %p424, %s25, 1
      %p426 = scmp.lt.s32.totalorder %s423, 17
      %s427 = scalar_select %p426, %s423, 17
      %s428 = smul.addr %s427, 6
      %s429 = smul.addr %s425, 108
      %s430 = sadd.s32 %s428, %s429
      %s431 = smul.addr %s430, 4
      %s432 = scalar_lea.vmem %s1, %s431
      %p433 = pneg %p86
      %p434 = pneg %p83
      %s435 = sadd.s32 %s26, 2
      %p436 = scmp.lt.s32.totalorder %s25, 1
      %s437 = scalar_select %p436, %s25, 1
      %p438 = scmp.lt.s32.totalorder %s435, 17
      %s439 = scalar_select %p438, %s435, 17
      %s440 = smul.addr %s439, 6
      %s441 = smul.addr %s437, 108
      %s442 = sadd.s32 %s440, %s441
      %s443 = smul.addr %s442, 4
      %s444 = scalar_lea.vmem %s2, %s443
      %p445 = pneg %p116
      %p446 = pneg %p113
      %p447 = scmp.lt.s32.totalorder %s25, 1
      %s448 = scalar_select %p447, %s25, 1
      %p449 = scmp.lt.s32.totalorder %s26, 17
      %s450 = scalar_select %p449, %s26, 17
      %s451 = smul.addr %s450, 6
      %s452 = smul.addr %s448, 108
      %s453 = sadd.s32 %s451, %s452
      %s454 = smul.addr %s453, 4
      %s455 = scalar_lea.vmem %s3, %s454
      %p456 = pneg %p144
      %p457 = pneg %p141
      %s458 = sadd.s32 %s26, 1
      %p459 = scmp.lt.s32.totalorder %s25, 1
      %s460 = scalar_select %p459, %s25, 1
      %p461 = scmp.lt.s32.totalorder %s458, 17
      %s462 = scalar_select %p461, %s458, 17
      %s463 = smul.addr %s462, 6
      %s464 = smul.addr %s460, 108
      %s465 = sadd.s32 %s463, %s464
      %s466 = smul.addr %s465, 4
      %s467 = scalar_lea.vmem %s4, %s466
      %p468 = pneg %p174
      %p469 = pneg %p171
      %s470 = sadd.s32 %s26, 2
      %p471 = scmp.lt.s32.totalorder %s25, 1
      %s472 = scalar_select %p471, %s25, 1
      %p473 = scmp.lt.s32.totalorder %s470, 17
      %s474 = scalar_select %p473, %s470, 17
      %s475 = smul.addr %s474, 6
      %s476 = smul.addr %s472, 108
      %s477 = sadd.s32 %s475, %s476
      %s478 = smul.addr %s477, 4
      %s479 = scalar_lea.vmem %s5, %s478
      %p480 = pneg %p204
      %p481 = pneg %p201
      %p482 = pneg %p225
      %p483 = pneg %p222
      %p484 = pneg %p246
      %p485 = pneg %p243
      %p486 = pneg %p274
      %p487 = pneg %p271
      %p488 = scmp.lt.s32.totalorder %s25, 1
      %s489 = scalar_select %p488, %s25, 1
      %p490 = scmp.lt.s32.totalorder %s26, 15
      %s491 = scalar_select %p490, %s26, 15
      %s492 = smul.addr %s491, 6
      %s493 = smul.addr %s489, 96
      %s494 = sadd.s32 %s492, %s493
      %s495 = smul.addr %s494, 4
      %s496 = scalar_lea.vmem %s8, %s495
      %p497 = pneg %p300
      %p498 = pneg %p297
      %p499 = scmp.lt.s32.totalorder %s25, 1
      %s500 = scalar_select %p499, %s25, 1
      %s501 = smul.addr %s500, 2
      %s502 = smul.addr %s501, 8
      %s503 = scalar_lea.vmem %s9, %s502
      %p504 = scmp.lt.s32.totalorder %s25, 1
      %s505 = scalar_select %p504, %s25, 1
      %p506 = scmp.lt.s32.totalorder %s26, 17
      %s507 = scalar_select %p506, %s26, 17
      %s508 = smul.addr %s507, 6
      %s509 = smul.addr %s505, 108
      %s510 = sadd.s32 %s508, %s509
      %s511 = smul.addr %s510, 4
      %s512 = scalar_lea.vmem %s0, %s511
      %s513 = sadd.s32 %s26, 1
      %p514 = scmp.lt.s32.totalorder %s25, 1
      %s515 = scalar_select %p514, %s25, 1
      %p516 = scmp.lt.s32.totalorder %s513, 17
      %s517 = scalar_select %p516, %s513, 17
      %s518 = smul.addr %s517, 6
      %s519 = smul.addr %s515, 108
      %s520 = sadd.s32 %s518, %s519
      %s521 = smul.addr %s520, 4
      %s522 = scalar_lea.vmem %s1, %s521
      %s523 = sadd.s32 %s26, 1
      %s524 = sadd.s32 %s26, 2
      %p525 = scmp.lt.s32.totalorder %s25, 1
      %s526 = scalar_select %p525, %s25, 1
      %p527 = scmp.lt.s32.totalorder %s524, 17
      %s528 = scalar_select %p527, %s524, 17
      %s529 = smul.addr %s528, 6
      %s530 = smul.addr %s526, 108
      %s531 = sadd.s32 %s529, %s530
      %s532 = smul.addr %s531, 4
      %s533 = scalar_lea.vmem %s2, %s532
      %s534 = sadd.s32 %s26, 2
      %p535 = scmp.lt.s32.totalorder %s25, 1
      %s536 = scalar_select %p535, %s25, 1
      %p537 = scmp.lt.s32.totalorder %s26, 17
      %s538 = scalar_select %p537, %s26, 17
      %s539 = smul.addr %s538, 6
      %s540 = smul.addr %s536, 108
      %s541 = sadd.s32 %s539, %s540
      %s542 = smul.addr %s541, 4
      %s543 = scalar_lea.vmem %s3, %s542
      %s544 = sadd.s32 %s26, 1
      %p545 = scmp.lt.s32.totalorder %s25, 1
      %s546 = scalar_select %p545, %s25, 1
      %p547 = scmp.lt.s32.totalorder %s544, 17
      %s548 = scalar_select %p547, %s544, 17
      %s549 = smul.addr %s548, 6
      %s550 = smul.addr %s546, 108
      %s551 = sadd.s32 %s549, %s550
      %s552 = smul.addr %s551, 4
      %s553 = scalar_lea.vmem %s4, %s552
      %s554 = sadd.s32 %s26, 1
      %s555 = sadd.s32 %s26, 2
      %p556 = scmp.lt.s32.totalorder %s25, 1
      %s557 = scalar_select %p556, %s25, 1
      %p558 = scmp.lt.s32.totalorder %s555, 17
      %s559 = scalar_select %p558, %s555, 17
      %s560 = smul.addr %s559, 6
      %s561 = smul.addr %s557, 108
      %s562 = sadd.s32 %s560, %s561
      %s563 = smul.addr %s562, 4
      %s564 = scalar_lea.vmem %s5, %s563
      %s565 = sadd.s32 %s26, 2
      %p566 = scmp.lt.s32.totalorder %s25, 1
      %s567 = scalar_select %p566, %s25, 1
      %p568 = scmp.lt.s32.totalorder %s26, 15
      %s569 = scalar_select %p568, %s26, 15
      %s570 = smul.addr %s569, 6
      %s571 = smul.addr %s567, 96
      %s572 = sadd.s32 %s570, %s571
      %s573 = smul.addr %s572, 4
      %s574 = scalar_lea.vmem %s8, %s573
      %p575 = scmp.lt.s32.totalorder %s25, 1
      %s576 = scalar_select %p575, %s25, 1
      %s577 = smul.addr %s576, 2
      %s578 = smul.addr %s577, 8
      %s579 = scalar_lea.vmem %s9, %s578
      %v581 = vld [vmem:[%s512] sm:$0xff]
      %v582 = vld [vmem:[%s512 + $0x8] sm:$0xf]
      %v583 = vld [vmem:[%s512 + $0xc] sm:$0xff]
      %v584 = vld [vmem:[%s512 + $0x14] sm:$0xf]
      %v585 = vld [vmem:[%s6] sm:$0xf]
      %v586 = vld [vmem:[%s6 + $0x1c] sm:$0xf]
      %v589 = vunpack.c.l.b16 %v585
      %v590 = vunpack.c.l.b16 %v586
      %v591 = vpack.c.b16 %v590, %v589
      %592 = vrot.lane.b32.xlu0 %v591, 112
      %v593 = vpop.permute.xlu0 %592
      %v598 = vunpack.c.l.b16 %v581
      %v599 = vunpack.c.h.b16 %v581
      %v600 = vunpack.c.l.b16 %v582
      %v601 = vunpack.c.l.b16 %v583
      %v602 = vunpack.c.h.b16 %v583
      %v603 = vunpack.c.l.b16 %v584
      %v604 = vpack.c.b16 %v601, %v598
      %v605 = vpack.c.b16 %v602, %v599
      %v606 = vpack.c.b16 %v603, %v600
      %607 = vrot.lane.b32.xlu0 %v604, 127
      %v608 = vpop.permute.xlu0 %607
      %609 = vrot.lane.b32.xlu0 %v605, 127
      %v610 = vpop.permute.xlu0 %609
      %611 = vrot.lane.b32.xlu0 %v606, 127
      %v612 = vpop.permute.xlu0 %611
      %vm613 = vcmask 1039360
      %v614 = vsel %vm613, %v608, %v610
      %v615 = vsel %vm613, %v610, %v612
      %vm619 = vcmask 130048
      %v621 = vsel %vm619, %v593, 0
      %623 = vmatpush.bf16.msra.mxu0 0
      %624 = vmatpush.bf16.msra.mxu0 0
      %625 = vmatpush.bf16.msra.mxu0 0
      %626 = vmatpush.bf16.msra.mxu0 0
      %627 = vmatpush.bf16.msra.mxu0 0
      %628 = vmatpush.bf16.msra.mxu0 0
      %629 = vmatpush.bf16.msra.mxu0 0
      %630 = vmatpush.bf16.msra.mxu0 %v614
      %631 = vmatmul.bf16.gmra.mxu0 %v621
      %v632 = vpop.f32.mrf.mxu0
      %v633 = vadd.f32 0.0, %v632
      %v634 = vpop.f32.mrf.mxu0
      %v635 = vadd.f32 0.0, %v634
      %636 = vdwg.mxu0
      %637 = vmatpush.bf16.msra.mxu0 0
      %638 = vmatpush.bf16.msra.mxu0 0
      %639 = vmatpush.bf16.msra.mxu0 0
      %640 = vmatpush.bf16.msra.mxu0 0
      %641 = vmatpush.bf16.msra.mxu0 0
      %642 = vmatpush.bf16.msra.mxu0 0
      %643 = vmatpush.bf16.msra.mxu0 0
      %644 = vmatpush.bf16.msra.mxu0 %v615
      %645 = vmatmul.bf16.gmra.mxu0 %v621
      %v646 = vpop.f32.mrf.mxu0
      %v647 = vadd.f32 0.0, %v646
      %v648 = vpop.f32.mrf.mxu0
      %v649 = vadd.f32 0.0, %v648
      %650 = vdwg.mxu0
      %651 = vmatpush.bf16.msra.mxu0 0
      %652 = vmatpush.bf16.msra.mxu0 0
      %653 = vmatpush.bf16.msra.mxu0 0
      %654 = vmatpush.bf16.msra.mxu0 0
      %655 = vmatpush.bf16.msra.mxu0 0
      %656 = vmatpush.bf16.msra.mxu0 0
      %657 = vmatpush.bf16.msra.mxu0 0
      %658 = vmatpush.bf16.msra.mxu0 %v612
      %659 = vmatmul.bf16.gmra.mxu0 %v621
      %v660 = vpop.f32.mrf.mxu0
      %v661 = vadd.f32 0.0, %v660
      %v662 = vpop.f32.mrf.mxu0
      %v663 = vadd.f32 0.0, %v662
      %664 = vdwg.mxu0
      %v669 = vsel %vm619, %v591, 0
      %671 = vmatpush.bf16.msra.mxu0 0
      %672 = vmatpush.bf16.msra.mxu0 0
      %673 = vmatpush.bf16.msra.mxu0 0
      %674 = vmatpush.bf16.msra.mxu0 0
      %675 = vmatpush.bf16.msra.mxu0 0
      %676 = vmatpush.bf16.msra.mxu0 0
      %677 = vmatpush.bf16.msra.mxu0 0
      %678 = vmatpush.bf16.msra.mxu0 %v604
      %679 = vmatmul.bf16.gmra.mxu0 %v669
      %v680 = vpop.f32.mrf.mxu0
      %v681 = vadd.f32 %v633, %v680
      %v682 = vpop.f32.mrf.mxu0
      %v683 = vadd.f32 %v635, %v682
      %684 = vdwg.mxu0
      %685 = vmatpush.bf16.msra.mxu0 0
      %686 = vmatpush.bf16.msra.mxu0 0
      %687 = vmatpush.bf16.msra.mxu0 0
      %688 = vmatpush.bf16.msra.mxu0 0
      %689 = vmatpush.bf16.msra.mxu0 0
      %690 = vmatpush.bf16.msra.mxu0 0
      %691 = vmatpush.bf16.msra.mxu0 0
      %692 = vmatpush.bf16.msra.mxu0 %v605
      %693 = vmatmul.bf16.gmra.mxu0 %v669
      %v694 = vpop.f32.mrf.mxu0
      %v695 = vadd.f32 %v647, %v694
      %v696 = vpop.f32.mrf.mxu0
      %v697 = vadd.f32 %v649, %v696
      %698 = vdwg.mxu0
      %699 = vmatpush.bf16.msra.mxu0 0
      %700 = vmatpush.bf16.msra.mxu0 0
      %701 = vmatpush.bf16.msra.mxu0 0
      %702 = vmatpush.bf16.msra.mxu0 0
      %703 = vmatpush.bf16.msra.mxu0 0
      %704 = vmatpush.bf16.msra.mxu0 0
      %705 = vmatpush.bf16.msra.mxu0 0
      %706 = vmatpush.bf16.msra.mxu0 %v606
      %707 = vmatmul.bf16.gmra.mxu0 %v669
      %v708 = vpop.f32.mrf.mxu0
      %v709 = vadd.f32 %v661, %v708
      %v710 = vpop.f32.mrf.mxu0
      %v711 = vadd.f32 %v663, %v710
      %712 = vdwg.mxu0
      %713 = vrot.lane.b32.xlu0 %v591, 96
      %v714 = vpop.permute.xlu0 %713
      %715 = vrot.lane.b32.xlu0 %v604, 126
      %v716 = vpop.permute.xlu0 %715
      %717 = vrot.lane.b32.xlu0 %v605, 126
      %v718 = vpop.permute.xlu0 %717
      %719 = vrot.lane.b32.xlu0 %v606, 126
      %v720 = vpop.permute.xlu0 %719
      %vm721 = vcmask 1031168
      %v722 = vsel %vm721, %v716, %v718
      %v723 = vsel %vm721, %v718, %v720
      %v728 = vsel %vm619, %v714, 0
      %730 = vmatpush.bf16.msra.mxu0 0
      %731 = vmatpush.bf16.msra.mxu0 0
      %732 = vmatpush.bf16.msra.mxu0 0
      %733 = vmatpush.bf16.msra.mxu0 0
      %734 = vmatpush.bf16.msra.mxu0 0
      %735 = vmatpush.bf16.msra.mxu0 0
      %736 = vmatpush.bf16.msra.mxu0 0
      %737 = vmatpush.bf16.msra.mxu0 %v722
      %738 = vmatmul.bf16.gmra.mxu0 %v728
      %v739 = vpop.f32.mrf.mxu0
      %v740 = vadd.f32 0.0, %v739
      %v741 = vpop.f32.mrf.mxu0
      %v742 = vadd.f32 0.0, %v741
      %743 = vdwg.mxu0
      %744 = vmatpush.bf16.msra.mxu0 0
      %745 = vmatpush.bf16.msra.mxu0 0
      %746 = vmatpush.bf16.msra.mxu0 0
      %747 = vmatpush.bf16.msra.mxu0 0
      %748 = vmatpush.bf16.msra.mxu0 0
      %749 = vmatpush.bf16.msra.mxu0 0
      %750 = vmatpush.bf16.msra.mxu0 0
      %751 = vmatpush.bf16.msra.mxu0 %v723
      %752 = vmatmul.bf16.gmra.mxu0 %v728
      %v753 = vpop.f32.mrf.mxu0
      %v754 = vadd.f32 0.0, %v753
      %v755 = vpop.f32.mrf.mxu0
      %v756 = vadd.f32 0.0, %v755
      %757 = vdwg.mxu0
      %758 = vmatpush.bf16.msra.mxu0 0
      %759 = vmatpush.bf16.msra.mxu0 0
      %760 = vmatpush.bf16.msra.mxu0 0
      %761 = vmatpush.bf16.msra.mxu0 0
      %762 = vmatpush.bf16.msra.mxu0 0
      %763 = vmatpush.bf16.msra.mxu0 0
      %764 = vmatpush.bf16.msra.mxu0 0
      %765 = vmatpush.bf16.msra.mxu0 %v720
      %766 = vmatmul.bf16.gmra.mxu0 %v728
      %v767 = vpop.f32.mrf.mxu0
      %v768 = vadd.f32 0.0, %v767
      %v769 = vpop.f32.mrf.mxu0
      %v770 = vadd.f32 0.0, %v769
      %771 = vdwg.mxu0
      %v772 = vadd.f32 %v681, %v740
      %v773 = vadd.f32 %v695, %v754
      %v774 = vadd.f32 %v709, %v768
      %v775 = vadd.f32 %v683, %v742
      %v776 = vadd.f32 %v697, %v756
      %v777 = vadd.f32 %v711, %v770
      %778 = vrot.lane.b32.xlu0 %v591, 80
      %v779 = vpop.permute.xlu0 %778
      %780 = vrot.lane.b32.xlu0 %v604, 110
      %v781 = vpop.permute.xlu0 %780
      %782 = vrot.lane.b32.xlu0 %v605, 110
      %v783 = vpop.permute.xlu0 %782
      %784 = vrot.lane.b32.xlu0 %v606, 110
      %v785 = vpop.permute.xlu0 %784
      %vm786 = vcmask 900096
      %v787 = vsel %vm786, %v781, %v783
      %v788 = vsel %vm786, %v783, %v785
      %v793 = vsel %vm619, %v779, 0
      %795 = vmatpush.bf16.msra.mxu0 0
      %796 = vmatpush.bf16.msra.mxu0 0
      %797 = vmatpush.bf16.msra.mxu0 0
      %798 = vmatpush.bf16.msra.mxu0 0
      %799 = vmatpush.bf16.msra.mxu0 0
      %800 = vmatpush.bf16.msra.mxu0 0
      %801 = vmatpush.bf16.msra.mxu0 0
      %802 = vmatpush.bf16.msra.mxu0 %v787
      %803 = vmatmul.bf16.gmra.mxu0 %v793
      %v804 = vpop.f32.mrf.mxu0
      %v805 = vadd.f32 0.0, %v804
      %v806 = vpop.f32.mrf.mxu0
      %v807 = vadd.f32 0.0, %v806
      %808 = vdwg.mxu0
      %809 = vmatpush.bf16.msra.mxu0 0
      %810 = vmatpush.bf16.msra.mxu0 0
      %811 = vmatpush.bf16.msra.mxu0 0
      %812 = vmatpush.bf16.msra.mxu0 0
      %813 = vmatpush.bf16.msra.mxu0 0
      %814 = vmatpush.bf16.msra.mxu0 0
      %815 = vmatpush.bf16.msra.mxu0 0
      %816 = vmatpush.bf16.msra.mxu0 %v788
      %817 = vmatmul.bf16.gmra.mxu0 %v793
      %v818 = vpop.f32.mrf.mxu0
      %v819 = vadd.f32 0.0, %v818
      %v820 = vpop.f32.mrf.mxu0
      %v821 = vadd.f32 0.0, %v820
      %822 = vdwg.mxu0
      %823 = vmatpush.bf16.msra.mxu0 0
      %824 = vmatpush.bf16.msra.mxu0 0
      %825 = vmatpush.bf16.msra.mxu0 0
      %826 = vmatpush.bf16.msra.mxu0 0
      %827 = vmatpush.bf16.msra.mxu0 0
      %828 = vmatpush.bf16.msra.mxu0 0
      %829 = vmatpush.bf16.msra.mxu0 0
      %830 = vmatpush.bf16.msra.mxu0 %v785
      %831 = vmatmul.bf16.gmra.mxu0 %v793
      %v832 = vpop.f32.mrf.mxu0
      %v833 = vadd.f32 0.0, %v832
      %v834 = vpop.f32.mrf.mxu0
      %v835 = vadd.f32 0.0, %v834
      %836 = vdwg.mxu0
      %v837 = vadd.f32 %v772, %v805
      %v838 = vadd.f32 %v773, %v819
      %v839 = vadd.f32 %v774, %v833
      %v840 = vadd.f32 %v775, %v807
      %v841 = vadd.f32 %v776, %v821
      %v842 = vadd.f32 %v777, %v835
      %843 = vrot.lane.b32.xlu0 %v591, 64
      %v844 = vpop.permute.xlu0 %843
      %845 = vrot.lane.b32.xlu0 %v604, 109
      %v846 = vpop.permute.xlu0 %845
      %847 = vrot.lane.b32.xlu0 %v605, 109
      %v848 = vpop.permute.xlu0 %847
      %849 = vrot.lane.b32.xlu0 %v606, 109
      %v850 = vpop.permute.xlu0 %849
      %vm851 = vcmask 891904
      %v852 = vsel %vm851, %v846, %v848
      %v853 = vsel %vm851, %v848, %v850
      %v858 = vsel %vm619, %v844, 0
      %860 = vmatpush.bf16.msra.mxu0 0
      %861 = vmatpush.bf16.msra.mxu0 0
      %862 = vmatpush.bf16.msra.mxu0 0
      %863 = vmatpush.bf16.msra.mxu0 0
      %864 = vmatpush.bf16.msra.mxu0 0
      %865 = vmatpush.bf16.msra.mxu0 0
      %866 = vmatpush.bf16.msra.mxu0 0
      %867 = vmatpush.bf16.msra.mxu0 %v852
      %868 = vmatmul.bf16.gmra.mxu0 %v858
      %v869 = vpop.f32.mrf.mxu0
      %v870 = vadd.f32 0.0, %v869
      %v871 = vpop.f32.mrf.mxu0
      %v872 = vadd.f32 0.0, %v871
      %873 = vdwg.mxu0
      %874 = vmatpush.bf16.msra.mxu0 0
      %875 = vmatpush.bf16.msra.mxu0 0
      %876 = vmatpush.bf16.msra.mxu0 0
      %877 = vmatpush.bf16.msra.mxu0 0
      %878 = vmatpush.bf16.msra.mxu0 0
      %879 = vmatpush.bf16.msra.mxu0 0
      %880 = vmatpush.bf16.msra.mxu0 0
      %881 = vmatpush.bf16.msra.mxu0 %v853
      %882 = vmatmul.bf16.gmra.mxu0 %v858
      %v883 = vpop.f32.mrf.mxu0
      %v884 = vadd.f32 0.0, %v883
      %v885 = vpop.f32.mrf.mxu0
      %v886 = vadd.f32 0.0, %v885
      %887 = vdwg.mxu0
      %888 = vmatpush.bf16.msra.mxu0 0
      %889 = vmatpush.bf16.msra.mxu0 0
      %890 = vmatpush.bf16.msra.mxu0 0
      %891 = vmatpush.bf16.msra.mxu0 0
      %892 = vmatpush.bf16.msra.mxu0 0
      %893 = vmatpush.bf16.msra.mxu0 0
      %894 = vmatpush.bf16.msra.mxu0 0
      %895 = vmatpush.bf16.msra.mxu0 %v850
      %896 = vmatmul.bf16.gmra.mxu0 %v858
      %v897 = vpop.f32.mrf.mxu0
      %v898 = vadd.f32 0.0, %v897
      %v899 = vpop.f32.mrf.mxu0
      %v900 = vadd.f32 0.0, %v899
      %901 = vdwg.mxu0
      %v902 = vadd.f32 %v837, %v870
      %v903 = vadd.f32 %v838, %v884
      %v904 = vadd.f32 %v839, %v898
      %v905 = vadd.f32 %v840, %v872
      %v906 = vadd.f32 %v841, %v886
      %v907 = vadd.f32 %v842, %v900
      %908 = vrot.lane.b32.xlu0 %v591, 48
      %v909 = vpop.permute.xlu0 %908
      %910 = vrot.lane.b32.xlu0 %v604, 108
      %v911 = vpop.permute.xlu0 %910
      %912 = vrot.lane.b32.xlu0 %v605, 108
      %v913 = vpop.permute.xlu0 %912
      %914 = vrot.lane.b32.xlu0 %v606, 108
      %v915 = vpop.permute.xlu0 %914
      %vm916 = vcmask 883712
      %v917 = vsel %vm916, %v911, %v913
      %v918 = vsel %vm916, %v913, %v915
      %v923 = vsel %vm619, %v909, 0
      %925 = vmatpush.bf16.msra.mxu0 0
      %926 = vmatpush.bf16.msra.mxu0 0
      %927 = vmatpush.bf16.msra.mxu0 0
      %928 = vmatpush.bf16.msra.mxu0 0
      %929 = vmatpush.bf16.msra.mxu0 0
      %930 = vmatpush.bf16.msra.mxu0 0
      %931 = vmatpush.bf16.msra.mxu0 0
      %932 = vmatpush.bf16.msra.mxu0 %v917
      %933 = vmatmul.bf16.gmra.mxu0 %v923
      %v934 = vpop.f32.mrf.mxu0
      %v935 = vadd.f32 0.0, %v934
      %v936 = vpop.f32.mrf.mxu0
      %v937 = vadd.f32 0.0, %v936
      %938 = vdwg.mxu0
      %939 = vmatpush.bf16.msra.mxu0 0
      %940 = vmatpush.bf16.msra.mxu0 0
      %941 = vmatpush.bf16.msra.mxu0 0
      %942 = vmatpush.bf16.msra.mxu0 0
      %943 = vmatpush.bf16.msra.mxu0 0
      %944 = vmatpush.bf16.msra.mxu0 0
      %945 = vmatpush.bf16.msra.mxu0 0
      %946 = vmatpush.bf16.msra.mxu0 %v918
      %947 = vmatmul.bf16.gmra.mxu0 %v923
      %v948 = vpop.f32.mrf.mxu0
      %v949 = vadd.f32 0.0, %v948
      %v950 = vpop.f32.mrf.mxu0
      %v951 = vadd.f32 0.0, %v950
      %952 = vdwg.mxu0
      %953 = vmatpush.bf16.msra.mxu0 0
      %954 = vmatpush.bf16.msra.mxu0 0
      %955 = vmatpush.bf16.msra.mxu0 0
      %956 = vmatpush.bf16.msra.mxu0 0
      %957 = vmatpush.bf16.msra.mxu0 0
      %958 = vmatpush.bf16.msra.mxu0 0
      %959 = vmatpush.bf16.msra.mxu0 0
      %960 = vmatpush.bf16.msra.mxu0 %v915
      %961 = vmatmul.bf16.gmra.mxu0 %v923
      %v962 = vpop.f32.mrf.mxu0
      %v963 = vadd.f32 0.0, %v962
      %v964 = vpop.f32.mrf.mxu0
      %v965 = vadd.f32 0.0, %v964
      %966 = vdwg.mxu0
      %v967 = vadd.f32 %v902, %v935
      %v968 = vadd.f32 %v903, %v949
      %v969 = vadd.f32 %v904, %v963
      %v970 = vadd.f32 %v905, %v937
      %v971 = vadd.f32 %v906, %v951
      %v972 = vadd.f32 %v907, %v965
      %973 = vrot.lane.b32.xlu0 %v591, 32
      %v974 = vpop.permute.xlu0 %973
      %975 = vrot.lane.b32.xlu0 %v604, 92
      %v976 = vpop.permute.xlu0 %975
      %977 = vrot.lane.b32.xlu0 %v605, 92
      %v978 = vpop.permute.xlu0 %977
      %979 = vrot.lane.b32.xlu0 %v606, 92
      %v980 = vpop.permute.xlu0 %979
      %vm981 = vcmask 752640
      %v982 = vsel %vm981, %v976, %v978
      %v983 = vsel %vm981, %v978, %v980
      %v988 = vsel %vm619, %v974, 0
      %990 = vmatpush.bf16.msra.mxu0 0
      %991 = vmatpush.bf16.msra.mxu0 0
      %992 = vmatpush.bf16.msra.mxu0 0
      %993 = vmatpush.bf16.msra.mxu0 0
      %994 = vmatpush.bf16.msra.mxu0 0
      %995 = vmatpush.bf16.msra.mxu0 0
      %996 = vmatpush.bf16.msra.mxu0 0
      %997 = vmatpush.bf16.msra.mxu0 %v982
      %998 = vmatmul.bf16.gmra.mxu0 %v988
      %v999 = vpop.f32.mrf.mxu0
      %v1000 = vadd.f32 0.0, %v999
      %v1001 = vpop.f32.mrf.mxu0
      %v1002 = vadd.f32 0.0, %v1001
      %1003 = vdwg.mxu0
      %1004 = vmatpush.bf16.msra.mxu0 0
      %1005 = vmatpush.bf16.msra.mxu0 0
      %1006 = vmatpush.bf16.msra.mxu0 0
      %1007 = vmatpush.bf16.msra.mxu0 0
      %1008 = vmatpush.bf16.msra.mxu0 0
      %1009 = vmatpush.bf16.msra.mxu0 0
      %1010 = vmatpush.bf16.msra.mxu0 0
      %1011 = vmatpush.bf16.msra.mxu0 %v983
      %1012 = vmatmul.bf16.gmra.mxu0 %v988
      %v1013 = vpop.f32.mrf.mxu0
      %v1014 = vadd.f32 0.0, %v1013
      %v1015 = vpop.f32.mrf.mxu0
      %v1016 = vadd.f32 0.0, %v1015
      %1017 = vdwg.mxu0
      %1018 = vmatpush.bf16.msra.mxu0 0
      %1019 = vmatpush.bf16.msra.mxu0 0
      %1020 = vmatpush.bf16.msra.mxu0 0
      %1021 = vmatpush.bf16.msra.mxu0 0
      %1022 = vmatpush.bf16.msra.mxu0 0
      %1023 = vmatpush.bf16.msra.mxu0 0
      %1024 = vmatpush.bf16.msra.mxu0 0
      %1025 = vmatpush.bf16.msra.mxu0 %v980
      %1026 = vmatmul.bf16.gmra.mxu0 %v988
      %v1027 = vpop.f32.mrf.mxu0
      %v1028 = vadd.f32 0.0, %v1027
      %v1029 = vpop.f32.mrf.mxu0
      %v1030 = vadd.f32 0.0, %v1029
      %1031 = vdwg.mxu0
      %v1032 = vadd.f32 %v967, %v1000
      %v1033 = vadd.f32 %v968, %v1014
      %v1034 = vadd.f32 %v969, %v1028
      %v1035 = vadd.f32 %v970, %v1002
      %v1036 = vadd.f32 %v971, %v1016
      %v1037 = vadd.f32 %v972, %v1030
      %1038 = vrot.lane.b32.xlu0 %v591, 16
      %v1039 = vpop.permute.xlu0 %1038
      %1040 = vrot.lane.b32.xlu0 %v604, 91
      %v1041 = vpop.permute.xlu0 %1040
      %1042 = vrot.lane.b32.xlu0 %v605, 91
      %v1043 = vpop.permute.xlu0 %1042
      %1044 = vrot.lane.b32.xlu0 %v606, 91
      %v1045 = vpop.permute.xlu0 %1044
      %vm1046 = vcmask 744448
      %v1047 = vsel %vm1046, %v1041, %v1043
      %v1048 = vsel %vm1046, %v1043, %v1045
      %v1053 = vsel %vm619, %v1039, 0
      %1055 = vmatpush.bf16.msra.mxu0 0
      %1056 = vmatpush.bf16.msra.mxu0 0
      %1057 = vmatpush.bf16.msra.mxu0 0
      %1058 = vmatpush.bf16.msra.mxu0 0
      %1059 = vmatpush.bf16.msra.mxu0 0
      %1060 = vmatpush.bf16.msra.mxu0 0
      %1061 = vmatpush.bf16.msra.mxu0 0
      %1062 = vmatpush.bf16.msra.mxu0 %v1047
      %1063 = vmatmul.bf16.gmra.mxu0 %v1053
      %v1064 = vpop.f32.mrf.mxu0
      %v1065 = vadd.f32 0.0, %v1064
      %v1066 = vpop.f32.mrf.mxu0
      %v1067 = vadd.f32 0.0, %v1066
      %1068 = vdwg.mxu0
      %1069 = vmatpush.bf16.msra.mxu0 0
      %1070 = vmatpush.bf16.msra.mxu0 0
      %1071 = vmatpush.bf16.msra.mxu0 0
      %1072 = vmatpush.bf16.msra.mxu0 0
      %1073 = vmatpush.bf16.msra.mxu0 0
      %1074 = vmatpush.bf16.msra.mxu0 0
      %1075 = vmatpush.bf16.msra.mxu0 0
      %1076 = vmatpush.bf16.msra.mxu0 %v1048
      %1077 = vmatmul.bf16.gmra.mxu0 %v1053
      %v1078 = vpop.f32.mrf.mxu0
      %v1079 = vadd.f32 0.0, %v1078
      %v1080 = vpop.f32.mrf.mxu0
      %v1081 = vadd.f32 0.0, %v1080
      %1082 = vdwg.mxu0
      %1083 = vmatpush.bf16.msra.mxu0 0
      %1084 = vmatpush.bf16.msra.mxu0 0
      %1085 = vmatpush.bf16.msra.mxu0 0
      %1086 = vmatpush.bf16.msra.mxu0 0
      %1087 = vmatpush.bf16.msra.mxu0 0
      %1088 = vmatpush.bf16.msra.mxu0 0
      %1089 = vmatpush.bf16.msra.mxu0 0
      %1090 = vmatpush.bf16.msra.mxu0 %v1045
      %1091 = vmatmul.bf16.gmra.mxu0 %v1053
      %v1092 = vpop.f32.mrf.mxu0
      %v1093 = vadd.f32 0.0, %v1092
      %v1094 = vpop.f32.mrf.mxu0
      %v1095 = vadd.f32 0.0, %v1094
      %1096 = vdwg.mxu0
      %v1097 = vadd.f32 %v1032, %v1065
      %v1098 = vadd.f32 %v1033, %v1079
      %v1099 = vadd.f32 %v1034, %v1093
      %v1100 = vadd.f32 %v1035, %v1067
      %v1101 = vadd.f32 %v1036, %v1081
      %v1102 = vadd.f32 %v1037, %v1095
      %v1103 = vld [vmem:[%s6 + $0x4] sm:$0xf]
      %v1104 = vld [vmem:[%s6 + $0x20] sm:$0xf]
      %v1107 = vunpack.c.l.b16 %v1103
      %v1108 = vunpack.c.l.b16 %v1104
      %v1109 = vpack.c.b16 %v1108, %v1107
      %1110 = vrot.lane.b32.xlu0 %v604, 90
      %v1111 = vpop.permute.xlu0 %1110
      %1112 = vrot.lane.b32.xlu0 %v605, 90
      %v1113 = vpop.permute.xlu0 %1112
      %1114 = vrot.lane.b32.xlu0 %v606, 90
      %v1115 = vpop.permute.xlu0 %1114
      %vm1116 = vcmask 736256
      %v1117 = vsel %vm1116, %v1111, %v1113
      %v1118 = vsel %vm1116, %v1113, %v1115
      %v1123 = vsel %vm619, %v1109, 0
      %1125 = vmatpush.bf16.msra.mxu0 0
      %1126 = vmatpush.bf16.msra.mxu0 0
      %1127 = vmatpush.bf16.msra.mxu0 0
      %1128 = vmatpush.bf16.msra.mxu0 0
      %1129 = vmatpush.bf16.msra.mxu0 0
      %1130 = vmatpush.bf16.msra.mxu0 0
      %1131 = vmatpush.bf16.msra.mxu0 0
      %1132 = vmatpush.bf16.msra.mxu0 %v1117
      %1133 = vmatmul.bf16.gmra.mxu0 %v1123
      %v1134 = vpop.f32.mrf.mxu0
      %v1135 = vadd.f32 0.0, %v1134
      %v1136 = vpop.f32.mrf.mxu0
      %v1137 = vadd.f32 0.0, %v1136
      %1138 = vdwg.mxu0
      %1139 = vmatpush.bf16.msra.mxu0 0
      %1140 = vmatpush.bf16.msra.mxu0 0
      %1141 = vmatpush.bf16.msra.mxu0 0
      %1142 = vmatpush.bf16.msra.mxu0 0
      %1143 = vmatpush.bf16.msra.mxu0 0
      %1144 = vmatpush.bf16.msra.mxu0 0
      %1145 = vmatpush.bf16.msra.mxu0 0
      %1146 = vmatpush.bf16.msra.mxu0 %v1118
      %1147 = vmatmul.bf16.gmra.mxu0 %v1123
      %v1148 = vpop.f32.mrf.mxu0
      %v1149 = vadd.f32 0.0, %v1148
      %v1150 = vpop.f32.mrf.mxu0
      %v1151 = vadd.f32 0.0, %v1150
      %1152 = vdwg.mxu0
      %1153 = vmatpush.bf16.msra.mxu0 0
      %1154 = vmatpush.bf16.msra.mxu0 0
      %1155 = vmatpush.bf16.msra.mxu0 0
      %1156 = vmatpush.bf16.msra.mxu0 0
      %1157 = vmatpush.bf16.msra.mxu0 0
      %1158 = vmatpush.bf16.msra.mxu0 0
      %1159 = vmatpush.bf16.msra.mxu0 0
      %1160 = vmatpush.bf16.msra.mxu0 %v1115
      %1161 = vmatmul.bf16.gmra.mxu0 %v1123
      %v1162 = vpop.f32.mrf.mxu0
      %v1163 = vadd.f32 0.0, %v1162
      %v1164 = vpop.f32.mrf.mxu0
      %v1165 = vadd.f32 0.0, %v1164
      %1166 = vdwg.mxu0
      %v1167 = vadd.f32 %v1097, %v1135
      %v1168 = vadd.f32 %v1098, %v1149
      %v1169 = vadd.f32 %v1099, %v1163
      %v1170 = vadd.f32 %v1100, %v1137
      %v1171 = vadd.f32 %v1101, %v1151
      %v1172 = vadd.f32 %v1102, %v1165
      %v1173 = vld [vmem:[%s522] sm:$0xff]
      %v1174 = vld [vmem:[%s522 + $0x8] sm:$0xf]
      %v1175 = vld [vmem:[%s522 + $0xc] sm:$0xff]
      %v1176 = vld [vmem:[%s522 + $0x14] sm:$0xf]
      %1177 = vrot.lane.b32.xlu0 %v1109, 112
      %v1178 = vpop.permute.xlu0 %1177
      %v1183 = vunpack.c.l.b16 %v1173
      %v1184 = vunpack.c.h.b16 %v1173
      %v1185 = vunpack.c.l.b16 %v1174
      %v1186 = vunpack.c.l.b16 %v1175
      %v1187 = vunpack.c.h.b16 %v1175
      %v1188 = vunpack.c.l.b16 %v1176
      %v1189 = vpack.c.b16 %v1186, %v1183
      %v1190 = vpack.c.b16 %v1187, %v1184
      %v1191 = vpack.c.b16 %v1188, %v1185
      %v1196 = vsel %vm619, %v1178, 0
      %1198 = vmatpush.bf16.msra.mxu0 0
      %1199 = vmatpush.bf16.msra.mxu0 0
      %1200 = vmatpush.bf16.msra.mxu0 0
      %1201 = vmatpush.bf16.msra.mxu0 0
      %1202 = vmatpush.bf16.msra.mxu0 0
      %1203 = vmatpush.bf16.msra.mxu0 0
      %1204 = vmatpush.bf16.msra.mxu0 0
      %1205 = vmatpush.bf16.msra.mxu0 %v1189
      %1206 = vmatmul.bf16.gmra.mxu0 %v1196
      %v1207 = vpop.f32.mrf.mxu0
      %v1208 = vadd.f32 0.0, %v1207
      %v1209 = vpop.f32.mrf.mxu0
      %v1210 = vadd.f32 0.0, %v1209
      %1211 = vdwg.mxu0
      %1212 = vmatpush.bf16.msra.mxu0 0
      %1213 = vmatpush.bf16.msra.mxu0 0
      %1214 = vmatpush.bf16.msra.mxu0 0
      %1215 = vmatpush.bf16.msra.mxu0 0
      %1216 = vmatpush.bf16.msra.mxu0 0
      %1217 = vmatpush.bf16.msra.mxu0 0
      %1218 = vmatpush.bf16.msra.mxu0 0
      %1219 = vmatpush.bf16.msra.mxu0 %v1190
      %1220 = vmatmul.bf16.gmra.mxu0 %v1196
      %v1221 = vpop.f32.mrf.mxu0
      %v1222 = vadd.f32 0.0, %v1221
      %v1223 = vpop.f32.mrf.mxu0
      %v1224 = vadd.f32 0.0, %v1223
      %1225 = vdwg.mxu0
      %1226 = vmatpush.bf16.msra.mxu0 0
      %1227 = vmatpush.bf16.msra.mxu0 0
      %1228 = vmatpush.bf16.msra.mxu0 0
      %1229 = vmatpush.bf16.msra.mxu0 0
      %1230 = vmatpush.bf16.msra.mxu0 0
      %1231 = vmatpush.bf16.msra.mxu0 0
      %1232 = vmatpush.bf16.msra.mxu0 0
      %1233 = vmatpush.bf16.msra.mxu0 %v1191
      %1234 = vmatmul.bf16.gmra.mxu0 %v1196
      %v1235 = vpop.f32.mrf.mxu0
      %v1236 = vadd.f32 0.0, %v1235
      %v1237 = vpop.f32.mrf.mxu0
      %v1238 = vadd.f32 0.0, %v1237
      %1239 = vdwg.mxu0
      %v1240 = vadd.f32 %v1167, %v1208
      %v1241 = vadd.f32 %v1168, %v1222
      %v1242 = vadd.f32 %v1169, %v1236
      %v1243 = vadd.f32 %v1170, %v1210
      %v1244 = vadd.f32 %v1171, %v1224
      %v1245 = vadd.f32 %v1172, %v1238
      %1246 = vrot.lane.b32.xlu0 %v1109, 96
      %v1247 = vpop.permute.xlu0 %1246
      %1248 = vrot.lane.b32.xlu0 %v1189, 127
      %v1249 = vpop.permute.xlu0 %1248
      %1250 = vrot.lane.b32.xlu0 %v1190, 127
      %v1251 = vpop.permute.xlu0 %1250
      %1252 = vrot.lane.b32.xlu0 %v1191, 127
      %v1253 = vpop.permute.xlu0 %1252
      %v1254 = vsel %vm613, %v1249, %v1251
      %v1255 = vsel %vm613, %v1251, %v1253
      %v1260 = vsel %vm619, %v1247, 0
      %1262 = vmatpush.bf16.msra.mxu0 0
      %1263 = vmatpush.bf16.msra.mxu0 0
      %1264 = vmatpush.bf16.msra.mxu0 0
      %1265 = vmatpush.bf16.msra.mxu0 0
      %1266 = vmatpush.bf16.msra.mxu0 0
      %1267 = vmatpush.bf16.msra.mxu0 0
      %1268 = vmatpush.bf16.msra.mxu0 0
      %1269 = vmatpush.bf16.msra.mxu0 %v1254
      %1270 = vmatmul.bf16.gmra.mxu0 %v1260
      %v1271 = vpop.f32.mrf.mxu0
      %v1272 = vadd.f32 0.0, %v1271
      %v1273 = vpop.f32.mrf.mxu0
      %v1274 = vadd.f32 0.0, %v1273
      %1275 = vdwg.mxu0
      %1276 = vmatpush.bf16.msra.mxu0 0
      %1277 = vmatpush.bf16.msra.mxu0 0
      %1278 = vmatpush.bf16.msra.mxu0 0
      %1279 = vmatpush.bf16.msra.mxu0 0
      %1280 = vmatpush.bf16.msra.mxu0 0
      %1281 = vmatpush.bf16.msra.mxu0 0
      %1282 = vmatpush.bf16.msra.mxu0 0
      %1283 = vmatpush.bf16.msra.mxu0 %v1255
      %1284 = vmatmul.bf16.gmra.mxu0 %v1260
      %v1285 = vpop.f32.mrf.mxu0
      %v1286 = vadd.f32 0.0, %v1285
      %v1287 = vpop.f32.mrf.mxu0
      %v1288 = vadd.f32 0.0, %v1287
      %1289 = vdwg.mxu0
      %1290 = vmatpush.bf16.msra.mxu0 0
      %1291 = vmatpush.bf16.msra.mxu0 0
      %1292 = vmatpush.bf16.msra.mxu0 0
      %1293 = vmatpush.bf16.msra.mxu0 0
      %1294 = vmatpush.bf16.msra.mxu0 0
      %1295 = vmatpush.bf16.msra.mxu0 0
      %1296 = vmatpush.bf16.msra.mxu0 0
      %1297 = vmatpush.bf16.msra.mxu0 %v1253
      %1298 = vmatmul.bf16.gmra.mxu0 %v1260
      %v1299 = vpop.f32.mrf.mxu0
      %v1300 = vadd.f32 0.0, %v1299
      %v1301 = vpop.f32.mrf.mxu0
      %v1302 = vadd.f32 0.0, %v1301
      %1303 = vdwg.mxu0
      %v1304 = vadd.f32 %v1240, %v1272
      %v1305 = vadd.f32 %v1241, %v1286
      %v1306 = vadd.f32 %v1242, %v1300
      %v1307 = vadd.f32 %v1243, %v1274
      %v1308 = vadd.f32 %v1244, %v1288
      %v1309 = vadd.f32 %v1245, %v1302
      %1310 = vrot.lane.b32.xlu0 %v1109, 80
      %v1311 = vpop.permute.xlu0 %1310
      %1312 = vrot.lane.b32.xlu0 %v1189, 126
      %v1313 = vpop.permute.xlu0 %1312
      %1314 = vrot.lane.b32.xlu0 %v1190, 126
      %v1315 = vpop.permute.xlu0 %1314
      %1316 = vrot.lane.b32.xlu0 %v1191, 126
      %v1317 = vpop.permute.xlu0 %1316
      %v1318 = vsel %vm721, %v1313, %v1315
      %v1319 = vsel %vm721, %v1315, %v1317
      %v1324 = vsel %vm619, %v1311, 0
      %1326 = vmatpush.bf16.msra.mxu0 0
      %1327 = vmatpush.bf16.msra.mxu0 0
      %1328 = vmatpush.bf16.msra.mxu0 0
      %1329 = vmatpush.bf16.msra.mxu0 0
      %1330 = vmatpush.bf16.msra.mxu0 0
      %1331 = vmatpush.bf16.msra.mxu0 0
      %1332 = vmatpush.bf16.msra.mxu0 0
      %1333 = vmatpush.bf16.msra.mxu0 %v1318
      %1334 = vmatmul.bf16.gmra.mxu0 %v1324
      %v1335 = vpop.f32.mrf.mxu0
      %v1336 = vadd.f32 0.0, %v1335
      %v1337 = vpop.f32.mrf.mxu0
      %v1338 = vadd.f32 0.0, %v1337
      %1339 = vdwg.mxu0
      %1340 = vmatpush.bf16.msra.mxu0 0
      %1341 = vmatpush.bf16.msra.mxu0 0
      %1342 = vmatpush.bf16.msra.mxu0 0
      %1343 = vmatpush.bf16.msra.mxu0 0
      %1344 = vmatpush.bf16.msra.mxu0 0
      %1345 = vmatpush.bf16.msra.mxu0 0
      %1346 = vmatpush.bf16.msra.mxu0 0
      %1347 = vmatpush.bf16.msra.mxu0 %v1319
      %1348 = vmatmul.bf16.gmra.mxu0 %v1324
      %v1349 = vpop.f32.mrf.mxu0
      %v1350 = vadd.f32 0.0, %v1349
      %v1351 = vpop.f32.mrf.mxu0
      %v1352 = vadd.f32 0.0, %v1351
      %1353 = vdwg.mxu0
      %1354 = vmatpush.bf16.msra.mxu0 0
      %1355 = vmatpush.bf16.msra.mxu0 0
      %1356 = vmatpush.bf16.msra.mxu0 0
      %1357 = vmatpush.bf16.msra.mxu0 0
      %1358 = vmatpush.bf16.msra.mxu0 0
      %1359 = vmatpush.bf16.msra.mxu0 0
      %1360 = vmatpush.bf16.msra.mxu0 0
      %1361 = vmatpush.bf16.msra.mxu0 %v1317
      %1362 = vmatmul.bf16.gmra.mxu0 %v1324
      %v1363 = vpop.f32.mrf.mxu0
      %v1364 = vadd.f32 0.0, %v1363
      %v1365 = vpop.f32.mrf.mxu0
      %v1366 = vadd.f32 0.0, %v1365
      %1367 = vdwg.mxu0
      %v1368 = vadd.f32 %v1304, %v1336
      %v1369 = vadd.f32 %v1305, %v1350
      %v1370 = vadd.f32 %v1306, %v1364
      %v1371 = vadd.f32 %v1307, %v1338
      %v1372 = vadd.f32 %v1308, %v1352
      %v1373 = vadd.f32 %v1309, %v1366
      %1374 = vrot.lane.b32.xlu0 %v1109, 64
      %v1375 = vpop.permute.xlu0 %1374
      %1376 = vrot.lane.b32.xlu0 %v1189, 110
      %v1377 = vpop.permute.xlu0 %1376
      %1378 = vrot.lane.b32.xlu0 %v1190, 110
      %v1379 = vpop.permute.xlu0 %1378
      %1380 = vrot.lane.b32.xlu0 %v1191, 110
      %v1381 = vpop.permute.xlu0 %1380
      %v1382 = vsel %vm786, %v1377, %v1379
      %v1383 = vsel %vm786, %v1379, %v1381
      %v1388 = vsel %vm619, %v1375, 0
      %1390 = vmatpush.bf16.msra.mxu0 0
      %1391 = vmatpush.bf16.msra.mxu0 0
      %1392 = vmatpush.bf16.msra.mxu0 0
      %1393 = vmatpush.bf16.msra.mxu0 0
      %1394 = vmatpush.bf16.msra.mxu0 0
      %1395 = vmatpush.bf16.msra.mxu0 0
      %1396 = vmatpush.bf16.msra.mxu0 0
      %1397 = vmatpush.bf16.msra.mxu0 %v1382
      %1398 = vmatmul.bf16.gmra.mxu0 %v1388
      %v1399 = vpop.f32.mrf.mxu0
      %v1400 = vadd.f32 0.0, %v1399
      %v1401 = vpop.f32.mrf.mxu0
      %v1402 = vadd.f32 0.0, %v1401
      %1403 = vdwg.mxu0
      %1404 = vmatpush.bf16.msra.mxu0 0
      %1405 = vmatpush.bf16.msra.mxu0 0
      %1406 = vmatpush.bf16.msra.mxu0 0
      %1407 = vmatpush.bf16.msra.mxu0 0
      %1408 = vmatpush.bf16.msra.mxu0 0
      %1409 = vmatpush.bf16.msra.mxu0 0
      %1410 = vmatpush.bf16.msra.mxu0 0
      %1411 = vmatpush.bf16.msra.mxu0 %v1383
      %1412 = vmatmul.bf16.gmra.mxu0 %v1388
      %v1413 = vpop.f32.mrf.mxu0
      %v1414 = vadd.f32 0.0, %v1413
      %v1415 = vpop.f32.mrf.mxu0
      %v1416 = vadd.f32 0.0, %v1415
      %1417 = vdwg.mxu0
      %1418 = vmatpush.bf16.msra.mxu0 0
      %1419 = vmatpush.bf16.msra.mxu0 0
      %1420 = vmatpush.bf16.msra.mxu0 0
      %1421 = vmatpush.bf16.msra.mxu0 0
      %1422 = vmatpush.bf16.msra.mxu0 0
      %1423 = vmatpush.bf16.msra.mxu0 0
      %1424 = vmatpush.bf16.msra.mxu0 0
      %1425 = vmatpush.bf16.msra.mxu0 %v1381
      %1426 = vmatmul.bf16.gmra.mxu0 %v1388
      %v1427 = vpop.f32.mrf.mxu0
      %v1428 = vadd.f32 0.0, %v1427
      %v1429 = vpop.f32.mrf.mxu0
      %v1430 = vadd.f32 0.0, %v1429
      %1431 = vdwg.mxu0
      %v1432 = vadd.f32 %v1368, %v1400
      %v1433 = vadd.f32 %v1369, %v1414
      %v1434 = vadd.f32 %v1370, %v1428
      %v1435 = vadd.f32 %v1371, %v1402
      %v1436 = vadd.f32 %v1372, %v1416
      %v1437 = vadd.f32 %v1373, %v1430
      %1438 = vrot.lane.b32.xlu0 %v1109, 48
      %v1439 = vpop.permute.xlu0 %1438
      %1440 = vrot.lane.b32.xlu0 %v1189, 109
      %v1441 = vpop.permute.xlu0 %1440
      %1442 = vrot.lane.b32.xlu0 %v1190, 109
      %v1443 = vpop.permute.xlu0 %1442
      %1444 = vrot.lane.b32.xlu0 %v1191, 109
      %v1445 = vpop.permute.xlu0 %1444
      %v1446 = vsel %vm851, %v1441, %v1443
      %v1447 = vsel %vm851, %v1443, %v1445
      %v1452 = vsel %vm619, %v1439, 0
      %1454 = vmatpush.bf16.msra.mxu0 0
      %1455 = vmatpush.bf16.msra.mxu0 0
      %1456 = vmatpush.bf16.msra.mxu0 0
      %1457 = vmatpush.bf16.msra.mxu0 0
      %1458 = vmatpush.bf16.msra.mxu0 0
      %1459 = vmatpush.bf16.msra.mxu0 0
      %1460 = vmatpush.bf16.msra.mxu0 0
      %1461 = vmatpush.bf16.msra.mxu0 %v1446
      %1462 = vmatmul.bf16.gmra.mxu0 %v1452
      %v1463 = vpop.f32.mrf.mxu0
      %v1464 = vadd.f32 0.0, %v1463
      %v1465 = vpop.f32.mrf.mxu0
      %v1466 = vadd.f32 0.0, %v1465
      %1467 = vdwg.mxu0
      %1468 = vmatpush.bf16.msra.mxu0 0
      %1469 = vmatpush.bf16.msra.mxu0 0
      %1470 = vmatpush.bf16.msra.mxu0 0
      %1471 = vmatpush.bf16.msra.mxu0 0
      %1472 = vmatpush.bf16.msra.mxu0 0
      %1473 = vmatpush.bf16.msra.mxu0 0
      %1474 = vmatpush.bf16.msra.mxu0 0
      %1475 = vmatpush.bf16.msra.mxu0 %v1447
      %1476 = vmatmul.bf16.gmra.mxu0 %v1452
      %v1477 = vpop.f32.mrf.mxu0
      %v1478 = vadd.f32 0.0, %v1477
      %v1479 = vpop.f32.mrf.mxu0
      %v1480 = vadd.f32 0.0, %v1479
      %1481 = vdwg.mxu0
      %1482 = vmatpush.bf16.msra.mxu0 0
      %1483 = vmatpush.bf16.msra.mxu0 0
      %1484 = vmatpush.bf16.msra.mxu0 0
      %1485 = vmatpush.bf16.msra.mxu0 0
      %1486 = vmatpush.bf16.msra.mxu0 0
      %1487 = vmatpush.bf16.msra.mxu0 0
      %1488 = vmatpush.bf16.msra.mxu0 0
      %1489 = vmatpush.bf16.msra.mxu0 %v1445
      %1490 = vmatmul.bf16.gmra.mxu0 %v1452
      %v1491 = vpop.f32.mrf.mxu0
      %v1492 = vadd.f32 0.0, %v1491
      %v1493 = vpop.f32.mrf.mxu0
      %v1494 = vadd.f32 0.0, %v1493
      %1495 = vdwg.mxu0
      %v1496 = vadd.f32 %v1432, %v1464
      %v1497 = vadd.f32 %v1433, %v1478
      %v1498 = vadd.f32 %v1434, %v1492
      %v1499 = vadd.f32 %v1435, %v1466
      %v1500 = vadd.f32 %v1436, %v1480
      %v1501 = vadd.f32 %v1437, %v1494
      %1502 = vrot.lane.b32.xlu0 %v1109, 32
      %v1503 = vpop.permute.xlu0 %1502
      %1504 = vrot.lane.b32.xlu0 %v1189, 108
      %v1505 = vpop.permute.xlu0 %1504
      %1506 = vrot.lane.b32.xlu0 %v1190, 108
      %v1507 = vpop.permute.xlu0 %1506
      %1508 = vrot.lane.b32.xlu0 %v1191, 108
      %v1509 = vpop.permute.xlu0 %1508
      %v1510 = vsel %vm916, %v1505, %v1507
      %v1511 = vsel %vm916, %v1507, %v1509
      %v1516 = vsel %vm619, %v1503, 0
      %1518 = vmatpush.bf16.msra.mxu0 0
      %1519 = vmatpush.bf16.msra.mxu0 0
      %1520 = vmatpush.bf16.msra.mxu0 0
      %1521 = vmatpush.bf16.msra.mxu0 0
      %1522 = vmatpush.bf16.msra.mxu0 0
      %1523 = vmatpush.bf16.msra.mxu0 0
      %1524 = vmatpush.bf16.msra.mxu0 0
      %1525 = vmatpush.bf16.msra.mxu0 %v1510
      %1526 = vmatmul.bf16.gmra.mxu0 %v1516
      %v1527 = vpop.f32.mrf.mxu0
      %v1528 = vadd.f32 0.0, %v1527
      %v1529 = vpop.f32.mrf.mxu0
      %v1530 = vadd.f32 0.0, %v1529
      %1531 = vdwg.mxu0
      %1532 = vmatpush.bf16.msra.mxu0 0
      %1533 = vmatpush.bf16.msra.mxu0 0
      %1534 = vmatpush.bf16.msra.mxu0 0
      %1535 = vmatpush.bf16.msra.mxu0 0
      %1536 = vmatpush.bf16.msra.mxu0 0
      %1537 = vmatpush.bf16.msra.mxu0 0
      %1538 = vmatpush.bf16.msra.mxu0 0
      %1539 = vmatpush.bf16.msra.mxu0 %v1511
      %1540 = vmatmul.bf16.gmra.mxu0 %v1516
      %v1541 = vpop.f32.mrf.mxu0
      %v1542 = vadd.f32 0.0, %v1541
      %v1543 = vpop.f32.mrf.mxu0
      %v1544 = vadd.f32 0.0, %v1543
      %1545 = vdwg.mxu0
      %1546 = vmatpush.bf16.msra.mxu0 0
      %1547 = vmatpush.bf16.msra.mxu0 0
      %1548 = vmatpush.bf16.msra.mxu0 0
      %1549 = vmatpush.bf16.msra.mxu0 0
      %1550 = vmatpush.bf16.msra.mxu0 0
      %1551 = vmatpush.bf16.msra.mxu0 0
      %1552 = vmatpush.bf16.msra.mxu0 0
      %1553 = vmatpush.bf16.msra.mxu0 %v1509
      %1554 = vmatmul.bf16.gmra.mxu0 %v1516
      %v1555 = vpop.f32.mrf.mxu0
      %v1556 = vadd.f32 0.0, %v1555
      %v1557 = vpop.f32.mrf.mxu0
      %v1558 = vadd.f32 0.0, %v1557
      %1559 = vdwg.mxu0
      %v1560 = vadd.f32 %v1496, %v1528
      %v1561 = vadd.f32 %v1497, %v1542
      %v1562 = vadd.f32 %v1498, %v1556
      %v1563 = vadd.f32 %v1499, %v1530
      %v1564 = vadd.f32 %v1500, %v1544
      %v1565 = vadd.f32 %v1501, %v1558
      %1566 = vrot.lane.b32.xlu0 %v1109, 16
      %v1567 = vpop.permute.xlu0 %1566
      %1568 = vrot.lane.b32.xlu0 %v1189, 92
      %v1569 = vpop.permute.xlu0 %1568
      %1570 = vrot.lane.b32.xlu0 %v1190, 92
      %v1571 = vpop.permute.xlu0 %1570
      %1572 = vrot.lane.b32.xlu0 %v1191, 92
      %v1573 = vpop.permute.xlu0 %1572
      %v1574 = vsel %vm981, %v1569, %v1571
      %v1575 = vsel %vm981, %v1571, %v1573
      %v1580 = vsel %vm619, %v1567, 0
      %1582 = vmatpush.bf16.msra.mxu0 0
      %1583 = vmatpush.bf16.msra.mxu0 0
      %1584 = vmatpush.bf16.msra.mxu0 0
      %1585 = vmatpush.bf16.msra.mxu0 0
      %1586 = vmatpush.bf16.msra.mxu0 0
      %1587 = vmatpush.bf16.msra.mxu0 0
      %1588 = vmatpush.bf16.msra.mxu0 0
      %1589 = vmatpush.bf16.msra.mxu0 %v1574
      %1590 = vmatmul.bf16.gmra.mxu0 %v1580
      %v1591 = vpop.f32.mrf.mxu0
      %v1592 = vadd.f32 0.0, %v1591
      %v1593 = vpop.f32.mrf.mxu0
      %v1594 = vadd.f32 0.0, %v1593
      %1595 = vdwg.mxu0
      %1596 = vmatpush.bf16.msra.mxu0 0
      %1597 = vmatpush.bf16.msra.mxu0 0
      %1598 = vmatpush.bf16.msra.mxu0 0
      %1599 = vmatpush.bf16.msra.mxu0 0
      %1600 = vmatpush.bf16.msra.mxu0 0
      %1601 = vmatpush.bf16.msra.mxu0 0
      %1602 = vmatpush.bf16.msra.mxu0 0
      %1603 = vmatpush.bf16.msra.mxu0 %v1575
      %1604 = vmatmul.bf16.gmra.mxu0 %v1580
      %v1605 = vpop.f32.mrf.mxu0
      %v1606 = vadd.f32 0.0, %v1605
      %v1607 = vpop.f32.mrf.mxu0
      %v1608 = vadd.f32 0.0, %v1607
      %1609 = vdwg.mxu0
      %1610 = vmatpush.bf16.msra.mxu0 0
      %1611 = vmatpush.bf16.msra.mxu0 0
      %1612 = vmatpush.bf16.msra.mxu0 0
      %1613 = vmatpush.bf16.msra.mxu0 0
      %1614 = vmatpush.bf16.msra.mxu0 0
      %1615 = vmatpush.bf16.msra.mxu0 0
      %1616 = vmatpush.bf16.msra.mxu0 0
      %1617 = vmatpush.bf16.msra.mxu0 %v1573
      %1618 = vmatmul.bf16.gmra.mxu0 %v1580
      %v1619 = vpop.f32.mrf.mxu0
      %v1620 = vadd.f32 0.0, %v1619
      %v1621 = vpop.f32.mrf.mxu0
      %v1622 = vadd.f32 0.0, %v1621
      %1623 = vdwg.mxu0
      %v1624 = vadd.f32 %v1560, %v1592
      %v1625 = vadd.f32 %v1561, %v1606
      %v1626 = vadd.f32 %v1562, %v1620
      %v1627 = vadd.f32 %v1563, %v1594
      %v1628 = vadd.f32 %v1564, %v1608
      %v1629 = vadd.f32 %v1565, %v1622
      %v1630 = vld [vmem:[%s6 + $0x8] sm:$0xf]
      %v1631 = vld [vmem:[%s6 + $0x24] sm:$0xf]
      %v1634 = vunpack.c.l.b16 %v1630
      %v1635 = vunpack.c.l.b16 %v1631
      %v1636 = vpack.c.b16 %v1635, %v1634
      %1637 = vrot.lane.b32.xlu0 %v1189, 91
      %v1638 = vpop.permute.xlu0 %1637
      %1639 = vrot.lane.b32.xlu0 %v1190, 91
      %v1640 = vpop.permute.xlu0 %1639
      %1641 = vrot.lane.b32.xlu0 %v1191, 91
      %v1642 = vpop.permute.xlu0 %1641
      %v1643 = vsel %vm1046, %v1638, %v1640
      %v1644 = vsel %vm1046, %v1640, %v1642
      %v1649 = vsel %vm619, %v1636, 0
      %1651 = vmatpush.bf16.msra.mxu0 0
      %1652 = vmatpush.bf16.msra.mxu0 0
      %1653 = vmatpush.bf16.msra.mxu0 0
      %1654 = vmatpush.bf16.msra.mxu0 0
      %1655 = vmatpush.bf16.msra.mxu0 0
      %1656 = vmatpush.bf16.msra.mxu0 0
      %1657 = vmatpush.bf16.msra.mxu0 0
      %1658 = vmatpush.bf16.msra.mxu0 %v1643
      %1659 = vmatmul.bf16.gmra.mxu0 %v1649
      %v1660 = vpop.f32.mrf.mxu0
      %v1661 = vadd.f32 0.0, %v1660
      %v1662 = vpop.f32.mrf.mxu0
      %v1663 = vadd.f32 0.0, %v1662
      %1664 = vdwg.mxu0
      %1665 = vmatpush.bf16.msra.mxu0 0
      %1666 = vmatpush.bf16.msra.mxu0 0
      %1667 = vmatpush.bf16.msra.mxu0 0
      %1668 = vmatpush.bf16.msra.mxu0 0
      %1669 = vmatpush.bf16.msra.mxu0 0
      %1670 = vmatpush.bf16.msra.mxu0 0
      %1671 = vmatpush.bf16.msra.mxu0 0
      %1672 = vmatpush.bf16.msra.mxu0 %v1644
      %1673 = vmatmul.bf16.gmra.mxu0 %v1649
      %v1674 = vpop.f32.mrf.mxu0
      %v1675 = vadd.f32 0.0, %v1674
      %v1676 = vpop.f32.mrf.mxu0
      %v1677 = vadd.f32 0.0, %v1676
      %1678 = vdwg.mxu0
      %1679 = vmatpush.bf16.msra.mxu0 0
      %1680 = vmatpush.bf16.msra.mxu0 0
      %1681 = vmatpush.bf16.msra.mxu0 0
      %1682 = vmatpush.bf16.msra.mxu0 0
      %1683 = vmatpush.bf16.msra.mxu0 0
      %1684 = vmatpush.bf16.msra.mxu0 0
      %1685 = vmatpush.bf16.msra.mxu0 0
      %1686 = vmatpush.bf16.msra.mxu0 %v1642
      %1687 = vmatmul.bf16.gmra.mxu0 %v1649
      %v1688 = vpop.f32.mrf.mxu0
      %v1689 = vadd.f32 0.0, %v1688
      %v1690 = vpop.f32.mrf.mxu0
      %v1691 = vadd.f32 0.0, %v1690
      %1692 = vdwg.mxu0
      %v1693 = vadd.f32 %v1624, %v1661
      %v1694 = vadd.f32 %v1625, %v1675
      %v1695 = vadd.f32 %v1626, %v1689
      %v1696 = vadd.f32 %v1627, %v1663
      %v1697 = vadd.f32 %v1628, %v1677
      %v1698 = vadd.f32 %v1629, %v1691
      %1699 = vrot.lane.b32.xlu0 %v1636, 112
      %v1700 = vpop.permute.xlu0 %1699
      %1701 = vrot.lane.b32.xlu0 %v1189, 90
      %v1702 = vpop.permute.xlu0 %1701
      %1703 = vrot.lane.b32.xlu0 %v1190, 90
      %v1704 = vpop.permute.xlu0 %1703
      %1705 = vrot.lane.b32.xlu0 %v1191, 90
      %v1706 = vpop.permute.xlu0 %1705
      %v1707 = vsel %vm1116, %v1702, %v1704
      %v1708 = vsel %vm1116, %v1704, %v1706
      %v1713 = vsel %vm619, %v1700, 0
      %1715 = vmatpush.bf16.msra.mxu0 0
      %1716 = vmatpush.bf16.msra.mxu0 0
      %1717 = vmatpush.bf16.msra.mxu0 0
      %1718 = vmatpush.bf16.msra.mxu0 0
      %1719 = vmatpush.bf16.msra.mxu0 0
      %1720 = vmatpush.bf16.msra.mxu0 0
      %1721 = vmatpush.bf16.msra.mxu0 0
      %1722 = vmatpush.bf16.msra.mxu0 %v1707
      %1723 = vmatmul.bf16.gmra.mxu0 %v1713
      %v1724 = vpop.f32.mrf.mxu0
      %v1725 = vadd.f32 0.0, %v1724
      %v1726 = vpop.f32.mrf.mxu0
      %v1727 = vadd.f32 0.0, %v1726
      %1728 = vdwg.mxu0
      %1729 = vmatpush.bf16.msra.mxu0 0
      %1730 = vmatpush.bf16.msra.mxu0 0
      %1731 = vmatpush.bf16.msra.mxu0 0
      %1732 = vmatpush.bf16.msra.mxu0 0
      %1733 = vmatpush.bf16.msra.mxu0 0
      %1734 = vmatpush.bf16.msra.mxu0 0
      %1735 = vmatpush.bf16.msra.mxu0 0
      %1736 = vmatpush.bf16.msra.mxu0 %v1708
      %1737 = vmatmul.bf16.gmra.mxu0 %v1713
      %v1738 = vpop.f32.mrf.mxu0
      %v1739 = vadd.f32 0.0, %v1738
      %v1740 = vpop.f32.mrf.mxu0
      %v1741 = vadd.f32 0.0, %v1740
      %1742 = vdwg.mxu0
      %1743 = vmatpush.bf16.msra.mxu0 0
      %1744 = vmatpush.bf16.msra.mxu0 0
      %1745 = vmatpush.bf16.msra.mxu0 0
      %1746 = vmatpush.bf16.msra.mxu0 0
      %1747 = vmatpush.bf16.msra.mxu0 0
      %1748 = vmatpush.bf16.msra.mxu0 0
      %1749 = vmatpush.bf16.msra.mxu0 0
      %1750 = vmatpush.bf16.msra.mxu0 %v1706
      %1751 = vmatmul.bf16.gmra.mxu0 %v1713
      %v1752 = vpop.f32.mrf.mxu0
      %v1753 = vadd.f32 0.0, %v1752
      %v1754 = vpop.f32.mrf.mxu0
      %v1755 = vadd.f32 0.0, %v1754
      %1756 = vdwg.mxu0
      %v1757 = vadd.f32 %v1693, %v1725
      %v1758 = vadd.f32 %v1694, %v1739
      %v1759 = vadd.f32 %v1695, %v1753
      %v1760 = vadd.f32 %v1696, %v1727
      %v1761 = vadd.f32 %v1697, %v1741
      %v1762 = vadd.f32 %v1698, %v1755
      %v1763 = vld [vmem:[%s533] sm:$0xff]
      %v1764 = vld [vmem:[%s533 + $0x8] sm:$0xf]
      %v1765 = vld [vmem:[%s533 + $0xc] sm:$0xff]
      %v1766 = vld [vmem:[%s533 + $0x14] sm:$0xf]
      %1767 = vrot.lane.b32.xlu0 %v1636, 96
      %v1768 = vpop.permute.xlu0 %1767
      %v1773 = vunpack.c.l.b16 %v1763
      %v1774 = vunpack.c.h.b16 %v1763
      %v1775 = vunpack.c.l.b16 %v1764
      %v1776 = vunpack.c.l.b16 %v1765
      %v1777 = vunpack.c.h.b16 %v1765
      %v1778 = vunpack.c.l.b16 %v1766
      %v1779 = vpack.c.b16 %v1776, %v1773
      %v1780 = vpack.c.b16 %v1777, %v1774
      %v1781 = vpack.c.b16 %v1778, %v1775
      %v1786 = vsel %vm619, %v1768, 0
      %1788 = vmatpush.bf16.msra.mxu0 0
      %1789 = vmatpush.bf16.msra.mxu0 0
      %1790 = vmatpush.bf16.msra.mxu0 0
      %1791 = vmatpush.bf16.msra.mxu0 0
      %1792 = vmatpush.bf16.msra.mxu0 0
      %1793 = vmatpush.bf16.msra.mxu0 0
      %1794 = vmatpush.bf16.msra.mxu0 0
      %1795 = vmatpush.bf16.msra.mxu0 %v1779
      %1796 = vmatmul.bf16.gmra.mxu0 %v1786
      %v1797 = vpop.f32.mrf.mxu0
      %v1798 = vadd.f32 0.0, %v1797
      %v1799 = vpop.f32.mrf.mxu0
      %v1800 = vadd.f32 0.0, %v1799
      %1801 = vdwg.mxu0
      %1802 = vmatpush.bf16.msra.mxu0 0
      %1803 = vmatpush.bf16.msra.mxu0 0
      %1804 = vmatpush.bf16.msra.mxu0 0
      %1805 = vmatpush.bf16.msra.mxu0 0
      %1806 = vmatpush.bf16.msra.mxu0 0
      %1807 = vmatpush.bf16.msra.mxu0 0
      %1808 = vmatpush.bf16.msra.mxu0 0
      %1809 = vmatpush.bf16.msra.mxu0 %v1780
      %1810 = vmatmul.bf16.gmra.mxu0 %v1786
      %v1811 = vpop.f32.mrf.mxu0
      %v1812 = vadd.f32 0.0, %v1811
      %v1813 = vpop.f32.mrf.mxu0
      %v1814 = vadd.f32 0.0, %v1813
      %1815 = vdwg.mxu0
      %1816 = vmatpush.bf16.msra.mxu0 0
      %1817 = vmatpush.bf16.msra.mxu0 0
      %1818 = vmatpush.bf16.msra.mxu0 0
      %1819 = vmatpush.bf16.msra.mxu0 0
      %1820 = vmatpush.bf16.msra.mxu0 0
      %1821 = vmatpush.bf16.msra.mxu0 0
      %1822 = vmatpush.bf16.msra.mxu0 0
      %1823 = vmatpush.bf16.msra.mxu0 %v1781
      %1824 = vmatmul.bf16.gmra.mxu0 %v1786
      %v1825 = vpop.f32.mrf.mxu0
      %v1826 = vadd.f32 0.0, %v1825
      %v1827 = vpop.f32.mrf.mxu0
      %v1828 = vadd.f32 0.0, %v1827
      %1829 = vdwg.mxu0
      %v1830 = vadd.f32 %v1757, %v1798
      %v1831 = vadd.f32 %v1758, %v1812
      %v1832 = vadd.f32 %v1759, %v1826
      %v1833 = vadd.f32 %v1760, %v1800
      %v1834 = vadd.f32 %v1761, %v1814
      %v1835 = vadd.f32 %v1762, %v1828
      %1836 = vrot.lane.b32.xlu0 %v1636, 80
      %v1837 = vpop.permute.xlu0 %1836
      %1838 = vrot.lane.b32.xlu0 %v1779, 127
      %v1839 = vpop.permute.xlu0 %1838
      %1840 = vrot.lane.b32.xlu0 %v1780, 127
      %v1841 = vpop.permute.xlu0 %1840
      %1842 = vrot.lane.b32.xlu0 %v1781, 127
      %v1843 = vpop.permute.xlu0 %1842
      %v1844 = vsel %vm613, %v1839, %v1841
      %v1845 = vsel %vm613, %v1841, %v1843
      %v1850 = vsel %vm619, %v1837, 0
      %1852 = vmatpush.bf16.msra.mxu0 0
      %1853 = vmatpush.bf16.msra.mxu0 0
      %1854 = vmatpush.bf16.msra.mxu0 0
      %1855 = vmatpush.bf16.msra.mxu0 0
      %1856 = vmatpush.bf16.msra.mxu0 0
      %1857 = vmatpush.bf16.msra.mxu0 0
      %1858 = vmatpush.bf16.msra.mxu0 0
      %1859 = vmatpush.bf16.msra.mxu0 %v1844
      %1860 = vmatmul.bf16.gmra.mxu0 %v1850
      %v1861 = vpop.f32.mrf.mxu0
      %v1862 = vadd.f32 0.0, %v1861
      %v1863 = vpop.f32.mrf.mxu0
      %v1864 = vadd.f32 0.0, %v1863
      %1865 = vdwg.mxu0
      %1866 = vmatpush.bf16.msra.mxu0 0
      %1867 = vmatpush.bf16.msra.mxu0 0
      %1868 = vmatpush.bf16.msra.mxu0 0
      %1869 = vmatpush.bf16.msra.mxu0 0
      %1870 = vmatpush.bf16.msra.mxu0 0
      %1871 = vmatpush.bf16.msra.mxu0 0
      %1872 = vmatpush.bf16.msra.mxu0 0
      %1873 = vmatpush.bf16.msra.mxu0 %v1845
      %1874 = vmatmul.bf16.gmra.mxu0 %v1850
      %v1875 = vpop.f32.mrf.mxu0
      %v1876 = vadd.f32 0.0, %v1875
      %v1877 = vpop.f32.mrf.mxu0
      %v1878 = vadd.f32 0.0, %v1877
      %1879 = vdwg.mxu0
      %1880 = vmatpush.bf16.msra.mxu0 0
      %1881 = vmatpush.bf16.msra.mxu0 0
      %1882 = vmatpush.bf16.msra.mxu0 0
      %1883 = vmatpush.bf16.msra.mxu0 0
      %1884 = vmatpush.bf16.msra.mxu0 0
      %1885 = vmatpush.bf16.msra.mxu0 0
      %1886 = vmatpush.bf16.msra.mxu0 0
      %1887 = vmatpush.bf16.msra.mxu0 %v1843
      %1888 = vmatmul.bf16.gmra.mxu0 %v1850
      %v1889 = vpop.f32.mrf.mxu0
      %v1890 = vadd.f32 0.0, %v1889
      %v1891 = vpop.f32.mrf.mxu0
      %v1892 = vadd.f32 0.0, %v1891
      %1893 = vdwg.mxu0
      %v1894 = vadd.f32 %v1830, %v1862
      %v1895 = vadd.f32 %v1831, %v1876
      %v1896 = vadd.f32 %v1832, %v1890
      %v1897 = vadd.f32 %v1833, %v1864
      %v1898 = vadd.f32 %v1834, %v1878
      %v1899 = vadd.f32 %v1835, %v1892
      %1900 = vrot.lane.b32.xlu0 %v1636, 64
      %v1901 = vpop.permute.xlu0 %1900
      %1902 = vrot.lane.b32.xlu0 %v1779, 126
      %v1903 = vpop.permute.xlu0 %1902
      %1904 = vrot.lane.b32.xlu0 %v1780, 126
      %v1905 = vpop.permute.xlu0 %1904
      %1906 = vrot.lane.b32.xlu0 %v1781, 126
      %v1907 = vpop.permute.xlu0 %1906
      %v1908 = vsel %vm721, %v1903, %v1905
      %v1909 = vsel %vm721, %v1905, %v1907
      %v1914 = vsel %vm619, %v1901, 0
      %1916 = vmatpush.bf16.msra.mxu0 0
      %1917 = vmatpush.bf16.msra.mxu0 0
      %1918 = vmatpush.bf16.msra.mxu0 0
      %1919 = vmatpush.bf16.msra.mxu0 0
      %1920 = vmatpush.bf16.msra.mxu0 0
      %1921 = vmatpush.bf16.msra.mxu0 0
      %1922 = vmatpush.bf16.msra.mxu0 0
      %1923 = vmatpush.bf16.msra.mxu0 %v1908
      %1924 = vmatmul.bf16.gmra.mxu0 %v1914
      %v1925 = vpop.f32.mrf.mxu0
      %v1926 = vadd.f32 0.0, %v1925
      %v1927 = vpop.f32.mrf.mxu0
      %v1928 = vadd.f32 0.0, %v1927
      %1929 = vdwg.mxu0
      %1930 = vmatpush.bf16.msra.mxu0 0
      %1931 = vmatpush.bf16.msra.mxu0 0
      %1932 = vmatpush.bf16.msra.mxu0 0
      %1933 = vmatpush.bf16.msra.mxu0 0
      %1934 = vmatpush.bf16.msra.mxu0 0
      %1935 = vmatpush.bf16.msra.mxu0 0
      %1936 = vmatpush.bf16.msra.mxu0 0
      %1937 = vmatpush.bf16.msra.mxu0 %v1909
      %1938 = vmatmul.bf16.gmra.mxu0 %v1914
      %v1939 = vpop.f32.mrf.mxu0
      %v1940 = vadd.f32 0.0, %v1939
      %v1941 = vpop.f32.mrf.mxu0
      %v1942 = vadd.f32 0.0, %v1941
      %1943 = vdwg.mxu0
      %1944 = vmatpush.bf16.msra.mxu0 0
      %1945 = vmatpush.bf16.msra.mxu0 0
      %1946 = vmatpush.bf16.msra.mxu0 0
      %1947 = vmatpush.bf16.msra.mxu0 0
      %1948 = vmatpush.bf16.msra.mxu0 0
      %1949 = vmatpush.bf16.msra.mxu0 0
      %1950 = vmatpush.bf16.msra.mxu0 0
      %1951 = vmatpush.bf16.msra.mxu0 %v1907
      %1952 = vmatmul.bf16.gmra.mxu0 %v1914
      %v1953 = vpop.f32.mrf.mxu0
      %v1954 = vadd.f32 0.0, %v1953
      %v1955 = vpop.f32.mrf.mxu0
      %v1956 = vadd.f32 0.0, %v1955
      %1957 = vdwg.mxu0
      %v1958 = vadd.f32 %v1894, %v1926
      %v1959 = vadd.f32 %v1895, %v1940
      %v1960 = vadd.f32 %v1896, %v1954
      %v1961 = vadd.f32 %v1897, %v1928
      %v1962 = vadd.f32 %v1898, %v1942
      %v1963 = vadd.f32 %v1899, %v1956
      %1964 = vrot.lane.b32.xlu0 %v1636, 48
      %v1965 = vpop.permute.xlu0 %1964
      %1966 = vrot.lane.b32.xlu0 %v1779, 110
      %v1967 = vpop.permute.xlu0 %1966
      %1968 = vrot.lane.b32.xlu0 %v1780, 110
      %v1969 = vpop.permute.xlu0 %1968
      %1970 = vrot.lane.b32.xlu0 %v1781, 110
      %v1971 = vpop.permute.xlu0 %1970
      %v1972 = vsel %vm786, %v1967, %v1969
      %v1973 = vsel %vm786, %v1969, %v1971
      %v1978 = vsel %vm619, %v1965, 0
      %1980 = vmatpush.bf16.msra.mxu0 0
      %1981 = vmatpush.bf16.msra.mxu0 0
      %1982 = vmatpush.bf16.msra.mxu0 0
      %1983 = vmatpush.bf16.msra.mxu0 0
      %1984 = vmatpush.bf16.msra.mxu0 0
      %1985 = vmatpush.bf16.msra.mxu0 0
      %1986 = vmatpush.bf16.msra.mxu0 0
      %1987 = vmatpush.bf16.msra.mxu0 %v1972
      %1988 = vmatmul.bf16.gmra.mxu0 %v1978
      %v1989 = vpop.f32.mrf.mxu0
      %v1990 = vadd.f32 0.0, %v1989
      %v1991 = vpop.f32.mrf.mxu0
      %v1992 = vadd.f32 0.0, %v1991
      %1993 = vdwg.mxu0
      %1994 = vmatpush.bf16.msra.mxu0 0
      %1995 = vmatpush.bf16.msra.mxu0 0
      %1996 = vmatpush.bf16.msra.mxu0 0
      %1997 = vmatpush.bf16.msra.mxu0 0
      %1998 = vmatpush.bf16.msra.mxu0 0
      %1999 = vmatpush.bf16.msra.mxu0 0
      %2000 = vmatpush.bf16.msra.mxu0 0
      %2001 = vmatpush.bf16.msra.mxu0 %v1973
      %2002 = vmatmul.bf16.gmra.mxu0 %v1978
      %v2003 = vpop.f32.mrf.mxu0
      %v2004 = vadd.f32 0.0, %v2003
      %v2005 = vpop.f32.mrf.mxu0
      %v2006 = vadd.f32 0.0, %v2005
      %2007 = vdwg.mxu0
      %2008 = vmatpush.bf16.msra.mxu0 0
      %2009 = vmatpush.bf16.msra.mxu0 0
      %2010 = vmatpush.bf16.msra.mxu0 0
      %2011 = vmatpush.bf16.msra.mxu0 0
      %2012 = vmatpush.bf16.msra.mxu0 0
      %2013 = vmatpush.bf16.msra.mxu0 0
      %2014 = vmatpush.bf16.msra.mxu0 0
      %2015 = vmatpush.bf16.msra.mxu0 %v1971
      %2016 = vmatmul.bf16.gmra.mxu0 %v1978
      %v2017 = vpop.f32.mrf.mxu0
      %v2018 = vadd.f32 0.0, %v2017
      %v2019 = vpop.f32.mrf.mxu0
      %v2020 = vadd.f32 0.0, %v2019
      %2021 = vdwg.mxu0
      %v2022 = vadd.f32 %v1958, %v1990
      %v2023 = vadd.f32 %v1959, %v2004
      %v2024 = vadd.f32 %v1960, %v2018
      %v2025 = vadd.f32 %v1961, %v1992
      %v2026 = vadd.f32 %v1962, %v2006
      %v2027 = vadd.f32 %v1963, %v2020
      %2028 = vrot.lane.b32.xlu0 %v1636, 32
      %v2029 = vpop.permute.xlu0 %2028
      %2030 = vrot.lane.b32.xlu0 %v1779, 109
      %v2031 = vpop.permute.xlu0 %2030
      %2032 = vrot.lane.b32.xlu0 %v1780, 109
      %v2033 = vpop.permute.xlu0 %2032
      %2034 = vrot.lane.b32.xlu0 %v1781, 109
      %v2035 = vpop.permute.xlu0 %2034
      %v2036 = vsel %vm851, %v2031, %v2033
      %v2037 = vsel %vm851, %v2033, %v2035
      %v2042 = vsel %vm619, %v2029, 0
      %2044 = vmatpush.bf16.msra.mxu0 0
      %2045 = vmatpush.bf16.msra.mxu0 0
      %2046 = vmatpush.bf16.msra.mxu0 0
      %2047 = vmatpush.bf16.msra.mxu0 0
      %2048 = vmatpush.bf16.msra.mxu0 0
      %2049 = vmatpush.bf16.msra.mxu0 0
      %2050 = vmatpush.bf16.msra.mxu0 0
      %2051 = vmatpush.bf16.msra.mxu0 %v2036
      %2052 = vmatmul.bf16.gmra.mxu0 %v2042
      %v2053 = vpop.f32.mrf.mxu0
      %v2054 = vadd.f32 0.0, %v2053
      %v2055 = vpop.f32.mrf.mxu0
      %v2056 = vadd.f32 0.0, %v2055
      %2057 = vdwg.mxu0
      %2058 = vmatpush.bf16.msra.mxu0 0
      %2059 = vmatpush.bf16.msra.mxu0 0
      %2060 = vmatpush.bf16.msra.mxu0 0
      %2061 = vmatpush.bf16.msra.mxu0 0
      %2062 = vmatpush.bf16.msra.mxu0 0
      %2063 = vmatpush.bf16.msra.mxu0 0
      %2064 = vmatpush.bf16.msra.mxu0 0
      %2065 = vmatpush.bf16.msra.mxu0 %v2037
      %2066 = vmatmul.bf16.gmra.mxu0 %v2042
      %v2067 = vpop.f32.mrf.mxu0
      %v2068 = vadd.f32 0.0, %v2067
      %v2069 = vpop.f32.mrf.mxu0
      %v2070 = vadd.f32 0.0, %v2069
      %2071 = vdwg.mxu0
      %2072 = vmatpush.bf16.msra.mxu0 0
      %2073 = vmatpush.bf16.msra.mxu0 0
      %2074 = vmatpush.bf16.msra.mxu0 0
      %2075 = vmatpush.bf16.msra.mxu0 0
      %2076 = vmatpush.bf16.msra.mxu0 0
      %2077 = vmatpush.bf16.msra.mxu0 0
      %2078 = vmatpush.bf16.msra.mxu0 0
      %2079 = vmatpush.bf16.msra.mxu0 %v2035
      %2080 = vmatmul.bf16.gmra.mxu0 %v2042
      %v2081 = vpop.f32.mrf.mxu0
      %v2082 = vadd.f32 0.0, %v2081
      %v2083 = vpop.f32.mrf.mxu0
      %v2084 = vadd.f32 0.0, %v2083
      %2085 = vdwg.mxu0
      %v2086 = vadd.f32 %v2022, %v2054
      %v2087 = vadd.f32 %v2023, %v2068
      %v2088 = vadd.f32 %v2024, %v2082
      %v2089 = vadd.f32 %v2025, %v2056
      %v2090 = vadd.f32 %v2026, %v2070
      %v2091 = vadd.f32 %v2027, %v2084
      %2092 = vrot.lane.b32.xlu0 %v1636, 16
      %v2093 = vpop.permute.xlu0 %2092
      %2094 = vrot.lane.b32.xlu0 %v1779, 108
      %v2095 = vpop.permute.xlu0 %2094
      %2096 = vrot.lane.b32.xlu0 %v1780, 108
      %v2097 = vpop.permute.xlu0 %2096
      %2098 = vrot.lane.b32.xlu0 %v1781, 108
      %v2099 = vpop.permute.xlu0 %2098
      %v2100 = vsel %vm916, %v2095, %v2097
      %v2101 = vsel %vm916, %v2097, %v2099
      %v2106 = vsel %vm619, %v2093, 0
      %2108 = vmatpush.bf16.msra.mxu0 0
      %2109 = vmatpush.bf16.msra.mxu0 0
      %2110 = vmatpush.bf16.msra.mxu0 0
      %2111 = vmatpush.bf16.msra.mxu0 0
      %2112 = vmatpush.bf16.msra.mxu0 0
      %2113 = vmatpush.bf16.msra.mxu0 0
      %2114 = vmatpush.bf16.msra.mxu0 0
      %2115 = vmatpush.bf16.msra.mxu0 %v2100
      %2116 = vmatmul.bf16.gmra.mxu0 %v2106
      %v2117 = vpop.f32.mrf.mxu0
      %v2118 = vadd.f32 0.0, %v2117
      %v2119 = vpop.f32.mrf.mxu0
      %v2120 = vadd.f32 0.0, %v2119
      %2121 = vdwg.mxu0
      %2122 = vmatpush.bf16.msra.mxu0 0
      %2123 = vmatpush.bf16.msra.mxu0 0
      %2124 = vmatpush.bf16.msra.mxu0 0
      %2125 = vmatpush.bf16.msra.mxu0 0
      %2126 = vmatpush.bf16.msra.mxu0 0
      %2127 = vmatpush.bf16.msra.mxu0 0
      %2128 = vmatpush.bf16.msra.mxu0 0
      %2129 = vmatpush.bf16.msra.mxu0 %v2101
      %2130 = vmatmul.bf16.gmra.mxu0 %v2106
      %v2131 = vpop.f32.mrf.mxu0
      %v2132 = vadd.f32 0.0, %v2131
      %v2133 = vpop.f32.mrf.mxu0
      %v2134 = vadd.f32 0.0, %v2133
      %2135 = vdwg.mxu0
      %2136 = vmatpush.bf16.msra.mxu0 0
      %2137 = vmatpush.bf16.msra.mxu0 0
      %2138 = vmatpush.bf16.msra.mxu0 0
      %2139 = vmatpush.bf16.msra.mxu0 0
      %2140 = vmatpush.bf16.msra.mxu0 0
      %2141 = vmatpush.bf16.msra.mxu0 0
      %2142 = vmatpush.bf16.msra.mxu0 0
      %2143 = vmatpush.bf16.msra.mxu0 %v2099
      %2144 = vmatmul.bf16.gmra.mxu0 %v2106
      %v2145 = vpop.f32.mrf.mxu0
      %v2146 = vadd.f32 0.0, %v2145
      %v2147 = vpop.f32.mrf.mxu0
      %v2148 = vadd.f32 0.0, %v2147
      %2149 = vdwg.mxu0
      %v2150 = vadd.f32 %v2086, %v2118
      %v2151 = vadd.f32 %v2087, %v2132
      %v2152 = vadd.f32 %v2088, %v2146
      %v2153 = vadd.f32 %v2089, %v2120
      %v2154 = vadd.f32 %v2090, %v2134
      %v2155 = vadd.f32 %v2091, %v2148
      %v2156 = vld [vmem:[%s6 + $0xc] sm:$0xf]
      %v2157 = vld [vmem:[%s6 + $0x28] sm:$0xf]
      %v2160 = vunpack.c.l.b16 %v2156
      %v2161 = vunpack.c.l.b16 %v2157
      %v2162 = vpack.c.b16 %v2161, %v2160
      %2163 = vrot.lane.b32.xlu0 %v1779, 92
      %v2164 = vpop.permute.xlu0 %2163
      %2165 = vrot.lane.b32.xlu0 %v1780, 92
      %v2166 = vpop.permute.xlu0 %2165
      %2167 = vrot.lane.b32.xlu0 %v1781, 92
      %v2168 = vpop.permute.xlu0 %2167
      %v2169 = vsel %vm981, %v2164, %v2166
      %v2170 = vsel %vm981, %v2166, %v2168
      %v2175 = vsel %vm619, %v2162, 0
      %2177 = vmatpush.bf16.msra.mxu0 0
      %2178 = vmatpush.bf16.msra.mxu0 0
      %2179 = vmatpush.bf16.msra.mxu0 0
      %2180 = vmatpush.bf16.msra.mxu0 0
      %2181 = vmatpush.bf16.msra.mxu0 0
      %2182 = vmatpush.bf16.msra.mxu0 0
      %2183 = vmatpush.bf16.msra.mxu0 0
      %2184 = vmatpush.bf16.msra.mxu0 %v2169
      %2185 = vmatmul.bf16.gmra.mxu0 %v2175
      %v2186 = vpop.f32.mrf.mxu0
      %v2187 = vadd.f32 0.0, %v2186
      %v2188 = vpop.f32.mrf.mxu0
      %v2189 = vadd.f32 0.0, %v2188
      %2190 = vdwg.mxu0
      %2191 = vmatpush.bf16.msra.mxu0 0
      %2192 = vmatpush.bf16.msra.mxu0 0
      %2193 = vmatpush.bf16.msra.mxu0 0
      %2194 = vmatpush.bf16.msra.mxu0 0
      %2195 = vmatpush.bf16.msra.mxu0 0
      %2196 = vmatpush.bf16.msra.mxu0 0
      %2197 = vmatpush.bf16.msra.mxu0 0
      %2198 = vmatpush.bf16.msra.mxu0 %v2170
      %2199 = vmatmul.bf16.gmra.mxu0 %v2175
      %v2200 = vpop.f32.mrf.mxu0
      %v2201 = vadd.f32 0.0, %v2200
      %v2202 = vpop.f32.mrf.mxu0
      %v2203 = vadd.f32 0.0, %v2202
      %2204 = vdwg.mxu0
      %2205 = vmatpush.bf16.msra.mxu0 0
      %2206 = vmatpush.bf16.msra.mxu0 0
      %2207 = vmatpush.bf16.msra.mxu0 0
      %2208 = vmatpush.bf16.msra.mxu0 0
      %2209 = vmatpush.bf16.msra.mxu0 0
      %2210 = vmatpush.bf16.msra.mxu0 0
      %2211 = vmatpush.bf16.msra.mxu0 0
      %2212 = vmatpush.bf16.msra.mxu0 %v2168
      %2213 = vmatmul.bf16.gmra.mxu0 %v2175
      %v2214 = vpop.f32.mrf.mxu0
      %v2215 = vadd.f32 0.0, %v2214
      %v2216 = vpop.f32.mrf.mxu0
      %v2217 = vadd.f32 0.0, %v2216
      %2218 = vdwg.mxu0
      %v2219 = vadd.f32 %v2150, %v2187
      %v2220 = vadd.f32 %v2151, %v2201
      %v2221 = vadd.f32 %v2152, %v2215
      %v2222 = vadd.f32 %v2153, %v2189
      %v2223 = vadd.f32 %v2154, %v2203
      %v2224 = vadd.f32 %v2155, %v2217
      %2225 = vrot.lane.b32.xlu0 %v2162, 112
      %v2226 = vpop.permute.xlu0 %2225
      %2227 = vrot.lane.b32.xlu0 %v1779, 91
      %v2228 = vpop.permute.xlu0 %2227
      %2229 = vrot.lane.b32.xlu0 %v1780, 91
      %v2230 = vpop.permute.xlu0 %2229
      %2231 = vrot.lane.b32.xlu0 %v1781, 91
      %v2232 = vpop.permute.xlu0 %2231
      %v2233 = vsel %vm1046, %v2228, %v2230
      %v2234 = vsel %vm1046, %v2230, %v2232
      %v2239 = vsel %vm619, %v2226, 0
      %2241 = vmatpush.bf16.msra.mxu0 0
      %2242 = vmatpush.bf16.msra.mxu0 0
      %2243 = vmatpush.bf16.msra.mxu0 0
      %2244 = vmatpush.bf16.msra.mxu0 0
      %2245 = vmatpush.bf16.msra.mxu0 0
      %2246 = vmatpush.bf16.msra.mxu0 0
      %2247 = vmatpush.bf16.msra.mxu0 0
      %2248 = vmatpush.bf16.msra.mxu0 %v2233
      %2249 = vmatmul.bf16.gmra.mxu0 %v2239
      %v2250 = vpop.f32.mrf.mxu0
      %v2251 = vadd.f32 0.0, %v2250
      %v2252 = vpop.f32.mrf.mxu0
      %v2253 = vadd.f32 0.0, %v2252
      %2254 = vdwg.mxu0
      %2255 = vmatpush.bf16.msra.mxu0 0
      %2256 = vmatpush.bf16.msra.mxu0 0
      %2257 = vmatpush.bf16.msra.mxu0 0
      %2258 = vmatpush.bf16.msra.mxu0 0
      %2259 = vmatpush.bf16.msra.mxu0 0
      %2260 = vmatpush.bf16.msra.mxu0 0
      %2261 = vmatpush.bf16.msra.mxu0 0
      %2262 = vmatpush.bf16.msra.mxu0 %v2234
      %2263 = vmatmul.bf16.gmra.mxu0 %v2239
      %v2264 = vpop.f32.mrf.mxu0
      %v2265 = vadd.f32 0.0, %v2264
      %v2266 = vpop.f32.mrf.mxu0
      %v2267 = vadd.f32 0.0, %v2266
      %2268 = vdwg.mxu0
      %2269 = vmatpush.bf16.msra.mxu0 0
      %2270 = vmatpush.bf16.msra.mxu0 0
      %2271 = vmatpush.bf16.msra.mxu0 0
      %2272 = vmatpush.bf16.msra.mxu0 0
      %2273 = vmatpush.bf16.msra.mxu0 0
      %2274 = vmatpush.bf16.msra.mxu0 0
      %2275 = vmatpush.bf16.msra.mxu0 0
      %2276 = vmatpush.bf16.msra.mxu0 %v2232
      %2277 = vmatmul.bf16.gmra.mxu0 %v2239
      %v2278 = vpop.f32.mrf.mxu0
      %v2279 = vadd.f32 0.0, %v2278
      %v2280 = vpop.f32.mrf.mxu0
      %v2281 = vadd.f32 0.0, %v2280
      %2282 = vdwg.mxu0
      %v2283 = vadd.f32 %v2219, %v2251
      %v2284 = vadd.f32 %v2220, %v2265
      %v2285 = vadd.f32 %v2221, %v2279
      %v2286 = vadd.f32 %v2222, %v2253
      %v2287 = vadd.f32 %v2223, %v2267
      %v2288 = vadd.f32 %v2224, %v2281
      %2289 = vrot.lane.b32.xlu0 %v2162, 96
      %v2290 = vpop.permute.xlu0 %2289
      %2291 = vrot.lane.b32.xlu0 %v1779, 90
      %v2292 = vpop.permute.xlu0 %2291
      %2293 = vrot.lane.b32.xlu0 %v1780, 90
      %v2294 = vpop.permute.xlu0 %2293
      %2295 = vrot.lane.b32.xlu0 %v1781, 90
      %v2296 = vpop.permute.xlu0 %2295
      %v2297 = vsel %vm1116, %v2292, %v2294
      %v2298 = vsel %vm1116, %v2294, %v2296
      %v2303 = vsel %vm619, %v2290, 0
      %2305 = vmatpush.bf16.msra.mxu0 0
      %2306 = vmatpush.bf16.msra.mxu0 0
      %2307 = vmatpush.bf16.msra.mxu0 0
      %2308 = vmatpush.bf16.msra.mxu0 0
      %2309 = vmatpush.bf16.msra.mxu0 0
      %2310 = vmatpush.bf16.msra.mxu0 0
      %2311 = vmatpush.bf16.msra.mxu0 0
      %2312 = vmatpush.bf16.msra.mxu0 %v2297
      %2313 = vmatmul.bf16.gmra.mxu0 %v2303
      %v2314 = vpop.f32.mrf.mxu0
      %v2315 = vadd.f32 0.0, %v2314
      %v2316 = vpop.f32.mrf.mxu0
      %v2317 = vadd.f32 0.0, %v2316
      %2318 = vdwg.mxu0
      %2319 = vmatpush.bf16.msra.mxu0 0
      %2320 = vmatpush.bf16.msra.mxu0 0
      %2321 = vmatpush.bf16.msra.mxu0 0
      %2322 = vmatpush.bf16.msra.mxu0 0
      %2323 = vmatpush.bf16.msra.mxu0 0
      %2324 = vmatpush.bf16.msra.mxu0 0
      %2325 = vmatpush.bf16.msra.mxu0 0
      %2326 = vmatpush.bf16.msra.mxu0 %v2298
      %2327 = vmatmul.bf16.gmra.mxu0 %v2303
      %v2328 = vpop.f32.mrf.mxu0
      %v2329 = vadd.f32 0.0, %v2328
      %v2330 = vpop.f32.mrf.mxu0
      %v2331 = vadd.f32 0.0, %v2330
      %2332 = vdwg.mxu0
      %2333 = vmatpush.bf16.msra.mxu0 0
      %2334 = vmatpush.bf16.msra.mxu0 0
      %2335 = vmatpush.bf16.msra.mxu0 0
      %2336 = vmatpush.bf16.msra.mxu0 0
      %2337 = vmatpush.bf16.msra.mxu0 0
      %2338 = vmatpush.bf16.msra.mxu0 0
      %2339 = vmatpush.bf16.msra.mxu0 0
      %2340 = vmatpush.bf16.msra.mxu0 %v2296
      %2341 = vmatmul.bf16.gmra.mxu0 %v2303
      %v2342 = vpop.f32.mrf.mxu0
      %v2343 = vadd.f32 0.0, %v2342
      %v2344 = vpop.f32.mrf.mxu0
      %v2345 = vadd.f32 0.0, %v2344
      %2346 = vdwg.mxu0
      %v2347 = vadd.f32 %v2283, %v2315
      %v2348 = vadd.f32 %v2284, %v2329
      %v2349 = vadd.f32 %v2285, %v2343
      %v2350 = vadd.f32 %v2286, %v2317
      %v2351 = vadd.f32 %v2287, %v2331
      %v2352 = vadd.f32 %v2288, %v2345
      %v2353 = vld [vmem:[%s543] sm:$0xff]
      %v2354 = vld [vmem:[%s543 + $0x8] sm:$0xf]
      %v2355 = vld [vmem:[%s543 + $0xc] sm:$0xff]
      %v2356 = vld [vmem:[%s543 + $0x14] sm:$0xf]
      %2357 = vrot.lane.b32.xlu0 %v2162, 80
      %v2358 = vpop.permute.xlu0 %2357
      %v2363 = vunpack.c.l.b16 %v2353
      %v2364 = vunpack.c.h.b16 %v2353
      %v2365 = vunpack.c.l.b16 %v2354
      %v2366 = vunpack.c.l.b16 %v2355
      %v2367 = vunpack.c.h.b16 %v2355
      %v2368 = vunpack.c.l.b16 %v2356
      %v2369 = vpack.c.b16 %v2366, %v2363
      %v2370 = vpack.c.b16 %v2367, %v2364
      %v2371 = vpack.c.b16 %v2368, %v2365
      %v2376 = vsel %vm619, %v2358, 0
      %2378 = vmatpush.bf16.msra.mxu0 0
      %2379 = vmatpush.bf16.msra.mxu0 0
      %2380 = vmatpush.bf16.msra.mxu0 0
      %2381 = vmatpush.bf16.msra.mxu0 0
      %2382 = vmatpush.bf16.msra.mxu0 0
      %2383 = vmatpush.bf16.msra.mxu0 0
      %2384 = vmatpush.bf16.msra.mxu0 0
      %2385 = vmatpush.bf16.msra.mxu0 %v2369
      %2386 = vmatmul.bf16.gmra.mxu0 %v2376
      %v2387 = vpop.f32.mrf.mxu0
      %v2388 = vadd.f32 0.0, %v2387
      %v2389 = vpop.f32.mrf.mxu0
      %v2390 = vadd.f32 0.0, %v2389
      %2391 = vdwg.mxu0
      %2392 = vmatpush.bf16.msra.mxu0 0
      %2393 = vmatpush.bf16.msra.mxu0 0
      %2394 = vmatpush.bf16.msra.mxu0 0
      %2395 = vmatpush.bf16.msra.mxu0 0
      %2396 = vmatpush.bf16.msra.mxu0 0
      %2397 = vmatpush.bf16.msra.mxu0 0
      %2398 = vmatpush.bf16.msra.mxu0 0
      %2399 = vmatpush.bf16.msra.mxu0 %v2370
      %2400 = vmatmul.bf16.gmra.mxu0 %v2376
      %v2401 = vpop.f32.mrf.mxu0
      %v2402 = vadd.f32 0.0, %v2401
      %v2403 = vpop.f32.mrf.mxu0
      %v2404 = vadd.f32 0.0, %v2403
      %2405 = vdwg.mxu0
      %2406 = vmatpush.bf16.msra.mxu0 0
      %2407 = vmatpush.bf16.msra.mxu0 0
      %2408 = vmatpush.bf16.msra.mxu0 0
      %2409 = vmatpush.bf16.msra.mxu0 0
      %2410 = vmatpush.bf16.msra.mxu0 0
      %2411 = vmatpush.bf16.msra.mxu0 0
      %2412 = vmatpush.bf16.msra.mxu0 0
      %2413 = vmatpush.bf16.msra.mxu0 %v2371
      %2414 = vmatmul.bf16.gmra.mxu0 %v2376
      %v2415 = vpop.f32.mrf.mxu0
      %v2416 = vadd.f32 0.0, %v2415
      %v2417 = vpop.f32.mrf.mxu0
      %v2418 = vadd.f32 0.0, %v2417
      %2419 = vdwg.mxu0
      %v2420 = vadd.f32 %v2347, %v2388
      %v2421 = vadd.f32 %v2348, %v2402
      %v2422 = vadd.f32 %v2349, %v2416
      %v2423 = vadd.f32 %v2350, %v2390
      %v2424 = vadd.f32 %v2351, %v2404
      %v2425 = vadd.f32 %v2352, %v2418
      %2426 = vrot.lane.b32.xlu0 %v2162, 64
      %v2427 = vpop.permute.xlu0 %2426
      %2428 = vrot.lane.b32.xlu0 %v2369, 127
      %v2429 = vpop.permute.xlu0 %2428
      %2430 = vrot.lane.b32.xlu0 %v2370, 127
      %v2431 = vpop.permute.xlu0 %2430
      %2432 = vrot.lane.b32.xlu0 %v2371, 127
      %v2433 = vpop.permute.xlu0 %2432
      %v2434 = vsel %vm613, %v2429, %v2431
      %v2435 = vsel %vm613, %v2431, %v2433
      %v2440 = vsel %vm619, %v2427, 0
      %2442 = vmatpush.bf16.msra.mxu0 0
      %2443 = vmatpush.bf16.msra.mxu0 0
      %2444 = vmatpush.bf16.msra.mxu0 0
      %2445 = vmatpush.bf16.msra.mxu0 0
      %2446 = vmatpush.bf16.msra.mxu0 0
      %2447 = vmatpush.bf16.msra.mxu0 0
      %2448 = vmatpush.bf16.msra.mxu0 0
      %2449 = vmatpush.bf16.msra.mxu0 %v2434
      %2450 = vmatmul.bf16.gmra.mxu0 %v2440
      %v2451 = vpop.f32.mrf.mxu0
      %v2452 = vadd.f32 0.0, %v2451
      %v2453 = vpop.f32.mrf.mxu0
      %v2454 = vadd.f32 0.0, %v2453
      %2455 = vdwg.mxu0
      %2456 = vmatpush.bf16.msra.mxu0 0
      %2457 = vmatpush.bf16.msra.mxu0 0
      %2458 = vmatpush.bf16.msra.mxu0 0
      %2459 = vmatpush.bf16.msra.mxu0 0
      %2460 = vmatpush.bf16.msra.mxu0 0
      %2461 = vmatpush.bf16.msra.mxu0 0
      %2462 = vmatpush.bf16.msra.mxu0 0
      %2463 = vmatpush.bf16.msra.mxu0 %v2435
      %2464 = vmatmul.bf16.gmra.mxu0 %v2440
      %v2465 = vpop.f32.mrf.mxu0
      %v2466 = vadd.f32 0.0, %v2465
      %v2467 = vpop.f32.mrf.mxu0
      %v2468 = vadd.f32 0.0, %v2467
      %2469 = vdwg.mxu0
      %2470 = vmatpush.bf16.msra.mxu0 0
      %2471 = vmatpush.bf16.msra.mxu0 0
      %2472 = vmatpush.bf16.msra.mxu0 0
      %2473 = vmatpush.bf16.msra.mxu0 0
      %2474 = vmatpush.bf16.msra.mxu0 0
      %2475 = vmatpush.bf16.msra.mxu0 0
      %2476 = vmatpush.bf16.msra.mxu0 0
      %2477 = vmatpush.bf16.msra.mxu0 %v2433
      %2478 = vmatmul.bf16.gmra.mxu0 %v2440
      %v2479 = vpop.f32.mrf.mxu0
      %v2480 = vadd.f32 0.0, %v2479
      %v2481 = vpop.f32.mrf.mxu0
      %v2482 = vadd.f32 0.0, %v2481
      %2483 = vdwg.mxu0
      %v2484 = vadd.f32 %v2420, %v2452
      %v2485 = vadd.f32 %v2421, %v2466
      %v2486 = vadd.f32 %v2422, %v2480
      %v2487 = vadd.f32 %v2423, %v2454
      %v2488 = vadd.f32 %v2424, %v2468
      %v2489 = vadd.f32 %v2425, %v2482
      %2490 = vrot.lane.b32.xlu0 %v2162, 48
      %v2491 = vpop.permute.xlu0 %2490
      %2492 = vrot.lane.b32.xlu0 %v2369, 126
      %v2493 = vpop.permute.xlu0 %2492
      %2494 = vrot.lane.b32.xlu0 %v2370, 126
      %v2495 = vpop.permute.xlu0 %2494
      %2496 = vrot.lane.b32.xlu0 %v2371, 126
      %v2497 = vpop.permute.xlu0 %2496
      %v2498 = vsel %vm721, %v2493, %v2495
      %v2499 = vsel %vm721, %v2495, %v2497
      %v2504 = vsel %vm619, %v2491, 0
      %2506 = vmatpush.bf16.msra.mxu0 0
      %2507 = vmatpush.bf16.msra.mxu0 0
      %2508 = vmatpush.bf16.msra.mxu0 0
      %2509 = vmatpush.bf16.msra.mxu0 0
      %2510 = vmatpush.bf16.msra.mxu0 0
      %2511 = vmatpush.bf16.msra.mxu0 0
      %2512 = vmatpush.bf16.msra.mxu0 0
      %2513 = vmatpush.bf16.msra.mxu0 %v2498
      %2514 = vmatmul.bf16.gmra.mxu0 %v2504
      %v2515 = vpop.f32.mrf.mxu0
      %v2516 = vadd.f32 0.0, %v2515
      %v2517 = vpop.f32.mrf.mxu0
      %v2518 = vadd.f32 0.0, %v2517
      %2519 = vdwg.mxu0
      %2520 = vmatpush.bf16.msra.mxu0 0
      %2521 = vmatpush.bf16.msra.mxu0 0
      %2522 = vmatpush.bf16.msra.mxu0 0
      %2523 = vmatpush.bf16.msra.mxu0 0
      %2524 = vmatpush.bf16.msra.mxu0 0
      %2525 = vmatpush.bf16.msra.mxu0 0
      %2526 = vmatpush.bf16.msra.mxu0 0
      %2527 = vmatpush.bf16.msra.mxu0 %v2499
      %2528 = vmatmul.bf16.gmra.mxu0 %v2504
      %v2529 = vpop.f32.mrf.mxu0
      %v2530 = vadd.f32 0.0, %v2529
      %v2531 = vpop.f32.mrf.mxu0
      %v2532 = vadd.f32 0.0, %v2531
      %2533 = vdwg.mxu0
      %2534 = vmatpush.bf16.msra.mxu0 0
      %2535 = vmatpush.bf16.msra.mxu0 0
      %2536 = vmatpush.bf16.msra.mxu0 0
      %2537 = vmatpush.bf16.msra.mxu0 0
      %2538 = vmatpush.bf16.msra.mxu0 0
      %2539 = vmatpush.bf16.msra.mxu0 0
      %2540 = vmatpush.bf16.msra.mxu0 0
      %2541 = vmatpush.bf16.msra.mxu0 %v2497
      %2542 = vmatmul.bf16.gmra.mxu0 %v2504
      %v2543 = vpop.f32.mrf.mxu0
      %v2544 = vadd.f32 0.0, %v2543
      %v2545 = vpop.f32.mrf.mxu0
      %v2546 = vadd.f32 0.0, %v2545
      %2547 = vdwg.mxu0
      %v2548 = vadd.f32 %v2484, %v2516
      %v2549 = vadd.f32 %v2485, %v2530
      %v2550 = vadd.f32 %v2486, %v2544
      %v2551 = vadd.f32 %v2487, %v2518
      %v2552 = vadd.f32 %v2488, %v2532
      %v2553 = vadd.f32 %v2489, %v2546
      %2554 = vrot.lane.b32.xlu0 %v2162, 32
      %v2555 = vpop.permute.xlu0 %2554
      %2556 = vrot.lane.b32.xlu0 %v2369, 110
      %v2557 = vpop.permute.xlu0 %2556
      %2558 = vrot.lane.b32.xlu0 %v2370, 110
      %v2559 = vpop.permute.xlu0 %2558
      %2560 = vrot.lane.b32.xlu0 %v2371, 110
      %v2561 = vpop.permute.xlu0 %2560
      %v2562 = vsel %vm786, %v2557, %v2559
      %v2563 = vsel %vm786, %v2559, %v2561
      %v2568 = vsel %vm619, %v2555, 0
      %2570 = vmatpush.bf16.msra.mxu0 0
      %2571 = vmatpush.bf16.msra.mxu0 0
      %2572 = vmatpush.bf16.msra.mxu0 0
      %2573 = vmatpush.bf16.msra.mxu0 0
      %2574 = vmatpush.bf16.msra.mxu0 0
      %2575 = vmatpush.bf16.msra.mxu0 0
      %2576 = vmatpush.bf16.msra.mxu0 0
      %2577 = vmatpush.bf16.msra.mxu0 %v2562
      %2578 = vmatmul.bf16.gmra.mxu0 %v2568
      %v2579 = vpop.f32.mrf.mxu0
      %v2580 = vadd.f32 0.0, %v2579
      %v2581 = vpop.f32.mrf.mxu0
      %v2582 = vadd.f32 0.0, %v2581
      %2583 = vdwg.mxu0
      %2584 = vmatpush.bf16.msra.mxu0 0
      %2585 = vmatpush.bf16.msra.mxu0 0
      %2586 = vmatpush.bf16.msra.mxu0 0
      %2587 = vmatpush.bf16.msra.mxu0 0
      %2588 = vmatpush.bf16.msra.mxu0 0
      %2589 = vmatpush.bf16.msra.mxu0 0
      %2590 = vmatpush.bf16.msra.mxu0 0
      %2591 = vmatpush.bf16.msra.mxu0 %v2563
      %2592 = vmatmul.bf16.gmra.mxu0 %v2568
      %v2593 = vpop.f32.mrf.mxu0
      %v2594 = vadd.f32 0.0, %v2593
      %v2595 = vpop.f32.mrf.mxu0
      %v2596 = vadd.f32 0.0, %v2595
      %2597 = vdwg.mxu0
      %2598 = vmatpush.bf16.msra.mxu0 0
      %2599 = vmatpush.bf16.msra.mxu0 0
      %2600 = vmatpush.bf16.msra.mxu0 0
      %2601 = vmatpush.bf16.msra.mxu0 0
      %2602 = vmatpush.bf16.msra.mxu0 0
      %2603 = vmatpush.bf16.msra.mxu0 0
      %2604 = vmatpush.bf16.msra.mxu0 0
      %2605 = vmatpush.bf16.msra.mxu0 %v2561
      %2606 = vmatmul.bf16.gmra.mxu0 %v2568
      %v2607 = vpop.f32.mrf.mxu0
      %v2608 = vadd.f32 0.0, %v2607
      %v2609 = vpop.f32.mrf.mxu0
      %v2610 = vadd.f32 0.0, %v2609
      %2611 = vdwg.mxu0
      %v2612 = vadd.f32 %v2548, %v2580
      %v2613 = vadd.f32 %v2549, %v2594
      %v2614 = vadd.f32 %v2550, %v2608
      %v2615 = vadd.f32 %v2551, %v2582
      %v2616 = vadd.f32 %v2552, %v2596
      %v2617 = vadd.f32 %v2553, %v2610
      %2618 = vrot.lane.b32.xlu0 %v2162, 16
      %v2619 = vpop.permute.xlu0 %2618
      %2620 = vrot.lane.b32.xlu0 %v2369, 109
      %v2621 = vpop.permute.xlu0 %2620
      %2622 = vrot.lane.b32.xlu0 %v2370, 109
      %v2623 = vpop.permute.xlu0 %2622
      %2624 = vrot.lane.b32.xlu0 %v2371, 109
      %v2625 = vpop.permute.xlu0 %2624
      %v2626 = vsel %vm851, %v2621, %v2623
      %v2627 = vsel %vm851, %v2623, %v2625
      %v2632 = vsel %vm619, %v2619, 0
      %2634 = vmatpush.bf16.msra.mxu0 0
      %2635 = vmatpush.bf16.msra.mxu0 0
      %2636 = vmatpush.bf16.msra.mxu0 0
      %2637 = vmatpush.bf16.msra.mxu0 0
      %2638 = vmatpush.bf16.msra.mxu0 0
      %2639 = vmatpush.bf16.msra.mxu0 0
      %2640 = vmatpush.bf16.msra.mxu0 0
      %2641 = vmatpush.bf16.msra.mxu0 %v2626
      %2642 = vmatmul.bf16.gmra.mxu0 %v2632
      %v2643 = vpop.f32.mrf.mxu0
      %v2644 = vadd.f32 0.0, %v2643
      %v2645 = vpop.f32.mrf.mxu0
      %v2646 = vadd.f32 0.0, %v2645
      %2647 = vdwg.mxu0
      %2648 = vmatpush.bf16.msra.mxu0 0
      %2649 = vmatpush.bf16.msra.mxu0 0
      %2650 = vmatpush.bf16.msra.mxu0 0
      %2651 = vmatpush.bf16.msra.mxu0 0
      %2652 = vmatpush.bf16.msra.mxu0 0
      %2653 = vmatpush.bf16.msra.mxu0 0
      %2654 = vmatpush.bf16.msra.mxu0 0
      %2655 = vmatpush.bf16.msra.mxu0 %v2627
      %2656 = vmatmul.bf16.gmra.mxu0 %v2632
      %v2657 = vpop.f32.mrf.mxu0
      %v2658 = vadd.f32 0.0, %v2657
      %v2659 = vpop.f32.mrf.mxu0
      %v2660 = vadd.f32 0.0, %v2659
      %2661 = vdwg.mxu0
      %2662 = vmatpush.bf16.msra.mxu0 0
      %2663 = vmatpush.bf16.msra.mxu0 0
      %2664 = vmatpush.bf16.msra.mxu0 0
      %2665 = vmatpush.bf16.msra.mxu0 0
      %2666 = vmatpush.bf16.msra.mxu0 0
      %2667 = vmatpush.bf16.msra.mxu0 0
      %2668 = vmatpush.bf16.msra.mxu0 0
      %2669 = vmatpush.bf16.msra.mxu0 %v2625
      %2670 = vmatmul.bf16.gmra.mxu0 %v2632
      %v2671 = vpop.f32.mrf.mxu0
      %v2672 = vadd.f32 0.0, %v2671
      %v2673 = vpop.f32.mrf.mxu0
      %v2674 = vadd.f32 0.0, %v2673
      %2675 = vdwg.mxu0
      %v2676 = vadd.f32 %v2612, %v2644
      %v2677 = vadd.f32 %v2613, %v2658
      %v2678 = vadd.f32 %v2614, %v2672
      %v2679 = vadd.f32 %v2615, %v2646
      %v2680 = vadd.f32 %v2616, %v2660
      %v2681 = vadd.f32 %v2617, %v2674
      %v2682 = vld [vmem:[%s6 + $0x10] sm:$0xf]
      %v2683 = vld [vmem:[%s6 + $0x2c] sm:$0xf]
      %v2686 = vunpack.c.l.b16 %v2682
      %v2687 = vunpack.c.l.b16 %v2683
      %v2688 = vpack.c.b16 %v2687, %v2686
      %2689 = vrot.lane.b32.xlu0 %v2369, 108
      %v2690 = vpop.permute.xlu0 %2689
      %2691 = vrot.lane.b32.xlu0 %v2370, 108
      %v2692 = vpop.permute.xlu0 %2691
      %2693 = vrot.lane.b32.xlu0 %v2371, 108
      %v2694 = vpop.permute.xlu0 %2693
      %v2695 = vsel %vm916, %v2690, %v2692
      %v2696 = vsel %vm916, %v2692, %v2694
      %v2701 = vsel %vm619, %v2688, 0
      %2703 = vmatpush.bf16.msra.mxu0 0
      %2704 = vmatpush.bf16.msra.mxu0 0
      %2705 = vmatpush.bf16.msra.mxu0 0
      %2706 = vmatpush.bf16.msra.mxu0 0
      %2707 = vmatpush.bf16.msra.mxu0 0
      %2708 = vmatpush.bf16.msra.mxu0 0
      %2709 = vmatpush.bf16.msra.mxu0 0
      %2710 = vmatpush.bf16.msra.mxu0 %v2695
      %2711 = vmatmul.bf16.gmra.mxu0 %v2701
      %v2712 = vpop.f32.mrf.mxu0
      %v2713 = vadd.f32 0.0, %v2712
      %v2714 = vpop.f32.mrf.mxu0
      %v2715 = vadd.f32 0.0, %v2714
      %2716 = vdwg.mxu0
      %2717 = vmatpush.bf16.msra.mxu0 0
      %2718 = vmatpush.bf16.msra.mxu0 0
      %2719 = vmatpush.bf16.msra.mxu0 0
      %2720 = vmatpush.bf16.msra.mxu0 0
      %2721 = vmatpush.bf16.msra.mxu0 0
      %2722 = vmatpush.bf16.msra.mxu0 0
      %2723 = vmatpush.bf16.msra.mxu0 0
      %2724 = vmatpush.bf16.msra.mxu0 %v2696
      %2725 = vmatmul.bf16.gmra.mxu0 %v2701
      %v2726 = vpop.f32.mrf.mxu0
      %v2727 = vadd.f32 0.0, %v2726
      %v2728 = vpop.f32.mrf.mxu0
      %v2729 = vadd.f32 0.0, %v2728
      %2730 = vdwg.mxu0
      %2731 = vmatpush.bf16.msra.mxu0 0
      %2732 = vmatpush.bf16.msra.mxu0 0
      %2733 = vmatpush.bf16.msra.mxu0 0
      %2734 = vmatpush.bf16.msra.mxu0 0
      %2735 = vmatpush.bf16.msra.mxu0 0
      %2736 = vmatpush.bf16.msra.mxu0 0
      %2737 = vmatpush.bf16.msra.mxu0 0
      %2738 = vmatpush.bf16.msra.mxu0 %v2694
      %2739 = vmatmul.bf16.gmra.mxu0 %v2701
      %v2740 = vpop.f32.mrf.mxu0
      %v2741 = vadd.f32 0.0, %v2740
      %v2742 = vpop.f32.mrf.mxu0
      %v2743 = vadd.f32 0.0, %v2742
      %2744 = vdwg.mxu0
      %v2745 = vadd.f32 %v2676, %v2713
      %v2746 = vadd.f32 %v2677, %v2727
      %v2747 = vadd.f32 %v2678, %v2741
      %v2748 = vadd.f32 %v2679, %v2715
      %v2749 = vadd.f32 %v2680, %v2729
      %v2750 = vadd.f32 %v2681, %v2743
      %2751 = vrot.lane.b32.xlu0 %v2688, 112
      %v2752 = vpop.permute.xlu0 %2751
      %2753 = vrot.lane.b32.xlu0 %v2369, 92
      %v2754 = vpop.permute.xlu0 %2753
      %2755 = vrot.lane.b32.xlu0 %v2370, 92
      %v2756 = vpop.permute.xlu0 %2755
      %2757 = vrot.lane.b32.xlu0 %v2371, 92
      %v2758 = vpop.permute.xlu0 %2757
      %v2759 = vsel %vm981, %v2754, %v2756
      %v2760 = vsel %vm981, %v2756, %v2758
      %v2765 = vsel %vm619, %v2752, 0
      %2767 = vmatpush.bf16.msra.mxu0 0
      %2768 = vmatpush.bf16.msra.mxu0 0
      %2769 = vmatpush.bf16.msra.mxu0 0
      %2770 = vmatpush.bf16.msra.mxu0 0
      %2771 = vmatpush.bf16.msra.mxu0 0
      %2772 = vmatpush.bf16.msra.mxu0 0
      %2773 = vmatpush.bf16.msra.mxu0 0
      %2774 = vmatpush.bf16.msra.mxu0 %v2759
      %2775 = vmatmul.bf16.gmra.mxu0 %v2765
      %v2776 = vpop.f32.mrf.mxu0
      %v2777 = vadd.f32 0.0, %v2776
      %v2778 = vpop.f32.mrf.mxu0
      %v2779 = vadd.f32 0.0, %v2778
      %2780 = vdwg.mxu0
      %2781 = vmatpush.bf16.msra.mxu0 0
      %2782 = vmatpush.bf16.msra.mxu0 0
      %2783 = vmatpush.bf16.msra.mxu0 0
      %2784 = vmatpush.bf16.msra.mxu0 0
      %2785 = vmatpush.bf16.msra.mxu0 0
      %2786 = vmatpush.bf16.msra.mxu0 0
      %2787 = vmatpush.bf16.msra.mxu0 0
      %2788 = vmatpush.bf16.msra.mxu0 %v2760
      %2789 = vmatmul.bf16.gmra.mxu0 %v2765
      %v2790 = vpop.f32.mrf.mxu0
      %v2791 = vadd.f32 0.0, %v2790
      %v2792 = vpop.f32.mrf.mxu0
      %v2793 = vadd.f32 0.0, %v2792
      %2794 = vdwg.mxu0
      %2795 = vmatpush.bf16.msra.mxu0 0
      %2796 = vmatpush.bf16.msra.mxu0 0
      %2797 = vmatpush.bf16.msra.mxu0 0
      %2798 = vmatpush.bf16.msra.mxu0 0
      %2799 = vmatpush.bf16.msra.mxu0 0
      %2800 = vmatpush.bf16.msra.mxu0 0
      %2801 = vmatpush.bf16.msra.mxu0 0
      %2802 = vmatpush.bf16.msra.mxu0 %v2758
      %2803 = vmatmul.bf16.gmra.mxu0 %v2765
      %v2804 = vpop.f32.mrf.mxu0
      %v2805 = vadd.f32 0.0, %v2804
      %v2806 = vpop.f32.mrf.mxu0
      %v2807 = vadd.f32 0.0, %v2806
      %2808 = vdwg.mxu0
      %v2809 = vadd.f32 %v2745, %v2777
      %v2810 = vadd.f32 %v2746, %v2791
      %v2811 = vadd.f32 %v2747, %v2805
      %v2812 = vadd.f32 %v2748, %v2779
      %v2813 = vadd.f32 %v2749, %v2793
      %v2814 = vadd.f32 %v2750, %v2807
      %2815 = vrot.lane.b32.xlu0 %v2688, 96
      %v2816 = vpop.permute.xlu0 %2815
      %2817 = vrot.lane.b32.xlu0 %v2369, 91
      %v2818 = vpop.permute.xlu0 %2817
      %2819 = vrot.lane.b32.xlu0 %v2370, 91
      %v2820 = vpop.permute.xlu0 %2819
      %2821 = vrot.lane.b32.xlu0 %v2371, 91
      %v2822 = vpop.permute.xlu0 %2821
      %v2823 = vsel %vm1046, %v2818, %v2820
      %v2824 = vsel %vm1046, %v2820, %v2822
      %v2829 = vsel %vm619, %v2816, 0
      %2831 = vmatpush.bf16.msra.mxu0 0
      %2832 = vmatpush.bf16.msra.mxu0 0
      %2833 = vmatpush.bf16.msra.mxu0 0
      %2834 = vmatpush.bf16.msra.mxu0 0
      %2835 = vmatpush.bf16.msra.mxu0 0
      %2836 = vmatpush.bf16.msra.mxu0 0
      %2837 = vmatpush.bf16.msra.mxu0 0
      %2838 = vmatpush.bf16.msra.mxu0 %v2823
      %2839 = vmatmul.bf16.gmra.mxu0 %v2829
      %v2840 = vpop.f32.mrf.mxu0
      %v2841 = vadd.f32 0.0, %v2840
      %v2842 = vpop.f32.mrf.mxu0
      %v2843 = vadd.f32 0.0, %v2842
      %2844 = vdwg.mxu0
      %2845 = vmatpush.bf16.msra.mxu0 0
      %2846 = vmatpush.bf16.msra.mxu0 0
      %2847 = vmatpush.bf16.msra.mxu0 0
      %2848 = vmatpush.bf16.msra.mxu0 0
      %2849 = vmatpush.bf16.msra.mxu0 0
      %2850 = vmatpush.bf16.msra.mxu0 0
      %2851 = vmatpush.bf16.msra.mxu0 0
      %2852 = vmatpush.bf16.msra.mxu0 %v2824
      %2853 = vmatmul.bf16.gmra.mxu0 %v2829
      %v2854 = vpop.f32.mrf.mxu0
      %v2855 = vadd.f32 0.0, %v2854
      %v2856 = vpop.f32.mrf.mxu0
      %v2857 = vadd.f32 0.0, %v2856
      %2858 = vdwg.mxu0
      %2859 = vmatpush.bf16.msra.mxu0 0
      %2860 = vmatpush.bf16.msra.mxu0 0
      %2861 = vmatpush.bf16.msra.mxu0 0
      %2862 = vmatpush.bf16.msra.mxu0 0
      %2863 = vmatpush.bf16.msra.mxu0 0
      %2864 = vmatpush.bf16.msra.mxu0 0
      %2865 = vmatpush.bf16.msra.mxu0 0
      %2866 = vmatpush.bf16.msra.mxu0 %v2822
      %2867 = vmatmul.bf16.gmra.mxu0 %v2829
      %v2868 = vpop.f32.mrf.mxu0
      %v2869 = vadd.f32 0.0, %v2868
      %v2870 = vpop.f32.mrf.mxu0
      %v2871 = vadd.f32 0.0, %v2870
      %2872 = vdwg.mxu0
      %v2873 = vadd.f32 %v2809, %v2841
      %v2874 = vadd.f32 %v2810, %v2855
      %v2875 = vadd.f32 %v2811, %v2869
      %v2876 = vadd.f32 %v2812, %v2843
      %v2877 = vadd.f32 %v2813, %v2857
      %v2878 = vadd.f32 %v2814, %v2871
      %2879 = vrot.lane.b32.xlu0 %v2688, 80
      %v2880 = vpop.permute.xlu0 %2879
      %2881 = vrot.lane.b32.xlu0 %v2369, 90
      %v2882 = vpop.permute.xlu0 %2881
      %2883 = vrot.lane.b32.xlu0 %v2370, 90
      %v2884 = vpop.permute.xlu0 %2883
      %2885 = vrot.lane.b32.xlu0 %v2371, 90
      %v2886 = vpop.permute.xlu0 %2885
      %v2887 = vsel %vm1116, %v2882, %v2884
      %v2888 = vsel %vm1116, %v2884, %v2886
      %v2893 = vsel %vm619, %v2880, 0
      %2895 = vmatpush.bf16.msra.mxu0 0
      %2896 = vmatpush.bf16.msra.mxu0 0
      %2897 = vmatpush.bf16.msra.mxu0 0
      %2898 = vmatpush.bf16.msra.mxu0 0
      %2899 = vmatpush.bf16.msra.mxu0 0
      %2900 = vmatpush.bf16.msra.mxu0 0
      %2901 = vmatpush.bf16.msra.mxu0 0
      %2902 = vmatpush.bf16.msra.mxu0 %v2887
      %2903 = vmatmul.bf16.gmra.mxu0 %v2893
      %v2904 = vpop.f32.mrf.mxu0
      %v2905 = vadd.f32 0.0, %v2904
      %v2906 = vpop.f32.mrf.mxu0
      %v2907 = vadd.f32 0.0, %v2906
      %2908 = vdwg.mxu0
      %2909 = vmatpush.bf16.msra.mxu0 0
      %2910 = vmatpush.bf16.msra.mxu0 0
      %2911 = vmatpush.bf16.msra.mxu0 0
      %2912 = vmatpush.bf16.msra.mxu0 0
      %2913 = vmatpush.bf16.msra.mxu0 0
      %2914 = vmatpush.bf16.msra.mxu0 0
      %2915 = vmatpush.bf16.msra.mxu0 0
      %2916 = vmatpush.bf16.msra.mxu0 %v2888
      %2917 = vmatmul.bf16.gmra.mxu0 %v2893
      %v2918 = vpop.f32.mrf.mxu0
      %v2919 = vadd.f32 0.0, %v2918
      %v2920 = vpop.f32.mrf.mxu0
      %v2921 = vadd.f32 0.0, %v2920
      %2922 = vdwg.mxu0
      %2923 = vmatpush.bf16.msra.mxu0 0
      %2924 = vmatpush.bf16.msra.mxu0 0
      %2925 = vmatpush.bf16.msra.mxu0 0
      %2926 = vmatpush.bf16.msra.mxu0 0
      %2927 = vmatpush.bf16.msra.mxu0 0
      %2928 = vmatpush.bf16.msra.mxu0 0
      %2929 = vmatpush.bf16.msra.mxu0 0
      %2930 = vmatpush.bf16.msra.mxu0 %v2886
      %2931 = vmatmul.bf16.gmra.mxu0 %v2893
      %v2932 = vpop.f32.mrf.mxu0
      %v2933 = vadd.f32 0.0, %v2932
      %v2934 = vpop.f32.mrf.mxu0
      %v2935 = vadd.f32 0.0, %v2934
      %2936 = vdwg.mxu0
      %v2937 = vadd.f32 %v2873, %v2905
      %v2938 = vadd.f32 %v2874, %v2919
      %v2939 = vadd.f32 %v2875, %v2933
      %v2940 = vadd.f32 %v2876, %v2907
      %v2941 = vadd.f32 %v2877, %v2921
      %v2942 = vadd.f32 %v2878, %v2935
      %v2943 = vld [vmem:[%s553] sm:$0xff]
      %v2944 = vld [vmem:[%s553 + $0x8] sm:$0xf]
      %v2945 = vld [vmem:[%s553 + $0xc] sm:$0xff]
      %v2946 = vld [vmem:[%s553 + $0x14] sm:$0xf]
      %2947 = vrot.lane.b32.xlu0 %v2688, 64
      %v2948 = vpop.permute.xlu0 %2947
      %v2953 = vunpack.c.l.b16 %v2943
      %v2954 = vunpack.c.h.b16 %v2943
      %v2955 = vunpack.c.l.b16 %v2944
      %v2956 = vunpack.c.l.b16 %v2945
      %v2957 = vunpack.c.h.b16 %v2945
      %v2958 = vunpack.c.l.b16 %v2946
      %v2959 = vpack.c.b16 %v2956, %v2953
      %v2960 = vpack.c.b16 %v2957, %v2954
      %v2961 = vpack.c.b16 %v2958, %v2955
      %v2966 = vsel %vm619, %v2948, 0
      %2968 = vmatpush.bf16.msra.mxu0 0
      %2969 = vmatpush.bf16.msra.mxu0 0
      %2970 = vmatpush.bf16.msra.mxu0 0
      %2971 = vmatpush.bf16.msra.mxu0 0
      %2972 = vmatpush.bf16.msra.mxu0 0
      %2973 = vmatpush.bf16.msra.mxu0 0
      %2974 = vmatpush.bf16.msra.mxu0 0
      %2975 = vmatpush.bf16.msra.mxu0 %v2959
      %2976 = vmatmul.bf16.gmra.mxu0 %v2966
      %v2977 = vpop.f32.mrf.mxu0
      %v2978 = vadd.f32 0.0, %v2977
      %v2979 = vpop.f32.mrf.mxu0
      %v2980 = vadd.f32 0.0, %v2979
      %2981 = vdwg.mxu0
      %2982 = vmatpush.bf16.msra.mxu0 0
      %2983 = vmatpush.bf16.msra.mxu0 0
      %2984 = vmatpush.bf16.msra.mxu0 0
      %2985 = vmatpush.bf16.msra.mxu0 0
      %2986 = vmatpush.bf16.msra.mxu0 0
      %2987 = vmatpush.bf16.msra.mxu0 0
      %2988 = vmatpush.bf16.msra.mxu0 0
      %2989 = vmatpush.bf16.msra.mxu0 %v2960
      %2990 = vmatmul.bf16.gmra.mxu0 %v2966
      %v2991 = vpop.f32.mrf.mxu0
      %v2992 = vadd.f32 0.0, %v2991
      %v2993 = vpop.f32.mrf.mxu0
      %v2994 = vadd.f32 0.0, %v2993
      %2995 = vdwg.mxu0
      %2996 = vmatpush.bf16.msra.mxu0 0
      %2997 = vmatpush.bf16.msra.mxu0 0
      %2998 = vmatpush.bf16.msra.mxu0 0
      %2999 = vmatpush.bf16.msra.mxu0 0
      %3000 = vmatpush.bf16.msra.mxu0 0
      %3001 = vmatpush.bf16.msra.mxu0 0
      %3002 = vmatpush.bf16.msra.mxu0 0
      %3003 = vmatpush.bf16.msra.mxu0 %v2961
      %3004 = vmatmul.bf16.gmra.mxu0 %v2966
      %v3005 = vpop.f32.mrf.mxu0
      %v3006 = vadd.f32 0.0, %v3005
      %v3007 = vpop.f32.mrf.mxu0
      %v3008 = vadd.f32 0.0, %v3007
      %3009 = vdwg.mxu0
      %v3010 = vadd.f32 %v2937, %v2978
      %v3011 = vadd.f32 %v2938, %v2992
      %v3012 = vadd.f32 %v2939, %v3006
      %v3013 = vadd.f32 %v2940, %v2980
      %v3014 = vadd.f32 %v2941, %v2994
      %v3015 = vadd.f32 %v2942, %v3008
      %3016 = vrot.lane.b32.xlu0 %v2688, 48
      %v3017 = vpop.permute.xlu0 %3016
      %3018 = vrot.lane.b32.xlu0 %v2959, 127
      %v3019 = vpop.permute.xlu0 %3018
      %3020 = vrot.lane.b32.xlu0 %v2960, 127
      %v3021 = vpop.permute.xlu0 %3020
      %3022 = vrot.lane.b32.xlu0 %v2961, 127
      %v3023 = vpop.permute.xlu0 %3022
      %v3024 = vsel %vm613, %v3019, %v3021
      %v3025 = vsel %vm613, %v3021, %v3023
      %v3030 = vsel %vm619, %v3017, 0
      %3032 = vmatpush.bf16.msra.mxu0 0
      %3033 = vmatpush.bf16.msra.mxu0 0
      %3034 = vmatpush.bf16.msra.mxu0 0
      %3035 = vmatpush.bf16.msra.mxu0 0
      %3036 = vmatpush.bf16.msra.mxu0 0
      %3037 = vmatpush.bf16.msra.mxu0 0
      %3038 = vmatpush.bf16.msra.mxu0 0
      %3039 = vmatpush.bf16.msra.mxu0 %v3024
      %3040 = vmatmul.bf16.gmra.mxu0 %v3030
      %v3041 = vpop.f32.mrf.mxu0
      %v3042 = vadd.f32 0.0, %v3041
      %v3043 = vpop.f32.mrf.mxu0
      %v3044 = vadd.f32 0.0, %v3043
      %3045 = vdwg.mxu0
      %3046 = vmatpush.bf16.msra.mxu0 0
      %3047 = vmatpush.bf16.msra.mxu0 0
      %3048 = vmatpush.bf16.msra.mxu0 0
      %3049 = vmatpush.bf16.msra.mxu0 0
      %3050 = vmatpush.bf16.msra.mxu0 0
      %3051 = vmatpush.bf16.msra.mxu0 0
      %3052 = vmatpush.bf16.msra.mxu0 0
      %3053 = vmatpush.bf16.msra.mxu0 %v3025
      %3054 = vmatmul.bf16.gmra.mxu0 %v3030
      %v3055 = vpop.f32.mrf.mxu0
      %v3056 = vadd.f32 0.0, %v3055
      %v3057 = vpop.f32.mrf.mxu0
      %v3058 = vadd.f32 0.0, %v3057
      %3059 = vdwg.mxu0
      %3060 = vmatpush.bf16.msra.mxu0 0
      %3061 = vmatpush.bf16.msra.mxu0 0
      %3062 = vmatpush.bf16.msra.mxu0 0
      %3063 = vmatpush.bf16.msra.mxu0 0
      %3064 = vmatpush.bf16.msra.mxu0 0
      %3065 = vmatpush.bf16.msra.mxu0 0
      %3066 = vmatpush.bf16.msra.mxu0 0
      %3067 = vmatpush.bf16.msra.mxu0 %v3023
      %3068 = vmatmul.bf16.gmra.mxu0 %v3030
      %v3069 = vpop.f32.mrf.mxu0
      %v3070 = vadd.f32 0.0, %v3069
      %v3071 = vpop.f32.mrf.mxu0
      %v3072 = vadd.f32 0.0, %v3071
      %3073 = vdwg.mxu0
      %v3074 = vadd.f32 %v3010, %v3042
      %v3075 = vadd.f32 %v3011, %v3056
      %v3076 = vadd.f32 %v3012, %v3070
      %v3077 = vadd.f32 %v3013, %v3044
      %v3078 = vadd.f32 %v3014, %v3058
      %v3079 = vadd.f32 %v3015, %v3072
      %3080 = vrot.lane.b32.xlu0 %v2688, 32
      %v3081 = vpop.permute.xlu0 %3080
      %3082 = vrot.lane.b32.xlu0 %v2959, 126
      %v3083 = vpop.permute.xlu0 %3082
      %3084 = vrot.lane.b32.xlu0 %v2960, 126
      %v3085 = vpop.permute.xlu0 %3084
      %3086 = vrot.lane.b32.xlu0 %v2961, 126
      %v3087 = vpop.permute.xlu0 %3086
      %v3088 = vsel %vm721, %v3083, %v3085
      %v3089 = vsel %vm721, %v3085, %v3087
      %v3094 = vsel %vm619, %v3081, 0
      %3096 = vmatpush.bf16.msra.mxu0 0
      %3097 = vmatpush.bf16.msra.mxu0 0
      %3098 = vmatpush.bf16.msra.mxu0 0
      %3099 = vmatpush.bf16.msra.mxu0 0
      %3100 = vmatpush.bf16.msra.mxu0 0
      %3101 = vmatpush.bf16.msra.mxu0 0
      %3102 = vmatpush.bf16.msra.mxu0 0
      %3103 = vmatpush.bf16.msra.mxu0 %v3088
      %3104 = vmatmul.bf16.gmra.mxu0 %v3094
      %v3105 = vpop.f32.mrf.mxu0
      %v3106 = vadd.f32 0.0, %v3105
      %v3107 = vpop.f32.mrf.mxu0
      %v3108 = vadd.f32 0.0, %v3107
      %3109 = vdwg.mxu0
      %3110 = vmatpush.bf16.msra.mxu0 0
      %3111 = vmatpush.bf16.msra.mxu0 0
      %3112 = vmatpush.bf16.msra.mxu0 0
      %3113 = vmatpush.bf16.msra.mxu0 0
      %3114 = vmatpush.bf16.msra.mxu0 0
      %3115 = vmatpush.bf16.msra.mxu0 0
      %3116 = vmatpush.bf16.msra.mxu0 0
      %3117 = vmatpush.bf16.msra.mxu0 %v3089
      %3118 = vmatmul.bf16.gmra.mxu0 %v3094
      %v3119 = vpop.f32.mrf.mxu0
      %v3120 = vadd.f32 0.0, %v3119
      %v3121 = vpop.f32.mrf.mxu0
      %v3122 = vadd.f32 0.0, %v3121
      %3123 = vdwg.mxu0
      %3124 = vmatpush.bf16.msra.mxu0 0
      %3125 = vmatpush.bf16.msra.mxu0 0
      %3126 = vmatpush.bf16.msra.mxu0 0
      %3127 = vmatpush.bf16.msra.mxu0 0
      %3128 = vmatpush.bf16.msra.mxu0 0
      %3129 = vmatpush.bf16.msra.mxu0 0
      %3130 = vmatpush.bf16.msra.mxu0 0
      %3131 = vmatpush.bf16.msra.mxu0 %v3087
      %3132 = vmatmul.bf16.gmra.mxu0 %v3094
      %v3133 = vpop.f32.mrf.mxu0
      %v3134 = vadd.f32 0.0, %v3133
      %v3135 = vpop.f32.mrf.mxu0
      %v3136 = vadd.f32 0.0, %v3135
      %3137 = vdwg.mxu0
      %v3138 = vadd.f32 %v3074, %v3106
      %v3139 = vadd.f32 %v3075, %v3120
      %v3140 = vadd.f32 %v3076, %v3134
      %v3141 = vadd.f32 %v3077, %v3108
      %v3142 = vadd.f32 %v3078, %v3122
      %v3143 = vadd.f32 %v3079, %v3136
      %3144 = vrot.lane.b32.xlu0 %v2688, 16
      %v3145 = vpop.permute.xlu0 %3144
      %3146 = vrot.lane.b32.xlu0 %v2959, 110
      %v3147 = vpop.permute.xlu0 %3146
      %3148 = vrot.lane.b32.xlu0 %v2960, 110
      %v3149 = vpop.permute.xlu0 %3148
      %3150 = vrot.lane.b32.xlu0 %v2961, 110
      %v3151 = vpop.permute.xlu0 %3150
      %v3152 = vsel %vm786, %v3147, %v3149
      %v3153 = vsel %vm786, %v3149, %v3151
      %v3158 = vsel %vm619, %v3145, 0
      %3160 = vmatpush.bf16.msra.mxu0 0
      %3161 = vmatpush.bf16.msra.mxu0 0
      %3162 = vmatpush.bf16.msra.mxu0 0
      %3163 = vmatpush.bf16.msra.mxu0 0
      %3164 = vmatpush.bf16.msra.mxu0 0
      %3165 = vmatpush.bf16.msra.mxu0 0
      %3166 = vmatpush.bf16.msra.mxu0 0
      %3167 = vmatpush.bf16.msra.mxu0 %v3152
      %3168 = vmatmul.bf16.gmra.mxu0 %v3158
      %v3169 = vpop.f32.mrf.mxu0
      %v3170 = vadd.f32 0.0, %v3169
      %v3171 = vpop.f32.mrf.mxu0
      %v3172 = vadd.f32 0.0, %v3171
      %3173 = vdwg.mxu0
      %3174 = vmatpush.bf16.msra.mxu0 0
      %3175 = vmatpush.bf16.msra.mxu0 0
      %3176 = vmatpush.bf16.msra.mxu0 0
      %3177 = vmatpush.bf16.msra.mxu0 0
      %3178 = vmatpush.bf16.msra.mxu0 0
      %3179 = vmatpush.bf16.msra.mxu0 0
      %3180 = vmatpush.bf16.msra.mxu0 0
      %3181 = vmatpush.bf16.msra.mxu0 %v3153
      %3182 = vmatmul.bf16.gmra.mxu0 %v3158
      %v3183 = vpop.f32.mrf.mxu0
      %v3184 = vadd.f32 0.0, %v3183
      %v3185 = vpop.f32.mrf.mxu0
      %v3186 = vadd.f32 0.0, %v3185
      %3187 = vdwg.mxu0
      %3188 = vmatpush.bf16.msra.mxu0 0
      %3189 = vmatpush.bf16.msra.mxu0 0
      %3190 = vmatpush.bf16.msra.mxu0 0
      %3191 = vmatpush.bf16.msra.mxu0 0
      %3192 = vmatpush.bf16.msra.mxu0 0
      %3193 = vmatpush.bf16.msra.mxu0 0
      %3194 = vmatpush.bf16.msra.mxu0 0
      %3195 = vmatpush.bf16.msra.mxu0 %v3151
      %3196 = vmatmul.bf16.gmra.mxu0 %v3158
      %v3197 = vpop.f32.mrf.mxu0
      %v3198 = vadd.f32 0.0, %v3197
      %v3199 = vpop.f32.mrf.mxu0
      %v3200 = vadd.f32 0.0, %v3199
      %3201 = vdwg.mxu0
      %v3202 = vadd.f32 %v3138, %v3170
      %v3203 = vadd.f32 %v3139, %v3184
      %v3204 = vadd.f32 %v3140, %v3198
      %v3205 = vadd.f32 %v3141, %v3172
      %v3206 = vadd.f32 %v3142, %v3186
      %v3207 = vadd.f32 %v3143, %v3200
      %v3208 = vld [vmem:[%s6 + $0x14] sm:$0xf]
      %v3209 = vld [vmem:[%s6 + $0x30] sm:$0xf]
      %v3212 = vunpack.c.l.b16 %v3208
      %v3213 = vunpack.c.l.b16 %v3209
      %v3214 = vpack.c.b16 %v3213, %v3212
      %3215 = vrot.lane.b32.xlu0 %v2959, 109
      %v3216 = vpop.permute.xlu0 %3215
      %3217 = vrot.lane.b32.xlu0 %v2960, 109
      %v3218 = vpop.permute.xlu0 %3217
      %3219 = vrot.lane.b32.xlu0 %v2961, 109
      %v3220 = vpop.permute.xlu0 %3219
      %v3221 = vsel %vm851, %v3216, %v3218
      %v3222 = vsel %vm851, %v3218, %v3220
      %v3227 = vsel %vm619, %v3214, 0
      %3229 = vmatpush.bf16.msra.mxu0 0
      %3230 = vmatpush.bf16.msra.mxu0 0
      %3231 = vmatpush.bf16.msra.mxu0 0
      %3232 = vmatpush.bf16.msra.mxu0 0
      %3233 = vmatpush.bf16.msra.mxu0 0
      %3234 = vmatpush.bf16.msra.mxu0 0
      %3235 = vmatpush.bf16.msra.mxu0 0
      %3236 = vmatpush.bf16.msra.mxu0 %v3221
      %3237 = vmatmul.bf16.gmra.mxu0 %v3227
      %v3238 = vpop.f32.mrf.mxu0
      %v3239 = vadd.f32 0.0, %v3238
      %v3240 = vpop.f32.mrf.mxu0
      %v3241 = vadd.f32 0.0, %v3240
      %3242 = vdwg.mxu0
      %3243 = vmatpush.bf16.msra.mxu0 0
      %3244 = vmatpush.bf16.msra.mxu0 0
      %3245 = vmatpush.bf16.msra.mxu0 0
      %3246 = vmatpush.bf16.msra.mxu0 0
      %3247 = vmatpush.bf16.msra.mxu0 0
      %3248 = vmatpush.bf16.msra.mxu0 0
      %3249 = vmatpush.bf16.msra.mxu0 0
      %3250 = vmatpush.bf16.msra.mxu0 %v3222
      %3251 = vmatmul.bf16.gmra.mxu0 %v3227
      %v3252 = vpop.f32.mrf.mxu0
      %v3253 = vadd.f32 0.0, %v3252
      %v3254 = vpop.f32.mrf.mxu0
      %v3255 = vadd.f32 0.0, %v3254
      %3256 = vdwg.mxu0
      %3257 = vmatpush.bf16.msra.mxu0 0
      %3258 = vmatpush.bf16.msra.mxu0 0
      %3259 = vmatpush.bf16.msra.mxu0 0
      %3260 = vmatpush.bf16.msra.mxu0 0
      %3261 = vmatpush.bf16.msra.mxu0 0
      %3262 = vmatpush.bf16.msra.mxu0 0
      %3263 = vmatpush.bf16.msra.mxu0 0
      %3264 = vmatpush.bf16.msra.mxu0 %v3220
      %3265 = vmatmul.bf16.gmra.mxu0 %v3227
      %v3266 = vpop.f32.mrf.mxu0
      %v3267 = vadd.f32 0.0, %v3266
      %v3268 = vpop.f32.mrf.mxu0
      %v3269 = vadd.f32 0.0, %v3268
      %3270 = vdwg.mxu0
      %v3271 = vadd.f32 %v3202, %v3239
      %v3272 = vadd.f32 %v3203, %v3253
      %v3273 = vadd.f32 %v3204, %v3267
      %v3274 = vadd.f32 %v3205, %v3241
      %v3275 = vadd.f32 %v3206, %v3255
      %v3276 = vadd.f32 %v3207, %v3269
      %3277 = vrot.lane.b32.xlu0 %v3214, 112
      %v3278 = vpop.permute.xlu0 %3277
      %3279 = vrot.lane.b32.xlu0 %v2959, 108
      %v3280 = vpop.permute.xlu0 %3279
      %3281 = vrot.lane.b32.xlu0 %v2960, 108
      %v3282 = vpop.permute.xlu0 %3281
      %3283 = vrot.lane.b32.xlu0 %v2961, 108
      %v3284 = vpop.permute.xlu0 %3283
      %v3285 = vsel %vm916, %v3280, %v3282
      %v3286 = vsel %vm916, %v3282, %v3284
      %v3291 = vsel %vm619, %v3278, 0
      %3293 = vmatpush.bf16.msra.mxu0 0
      %3294 = vmatpush.bf16.msra.mxu0 0
      %3295 = vmatpush.bf16.msra.mxu0 0
      %3296 = vmatpush.bf16.msra.mxu0 0
      %3297 = vmatpush.bf16.msra.mxu0 0
      %3298 = vmatpush.bf16.msra.mxu0 0
      %3299 = vmatpush.bf16.msra.mxu0 0
      %3300 = vmatpush.bf16.msra.mxu0 %v3285
      %3301 = vmatmul.bf16.gmra.mxu0 %v3291
      %v3302 = vpop.f32.mrf.mxu0
      %v3303 = vadd.f32 0.0, %v3302
      %v3304 = vpop.f32.mrf.mxu0
      %v3305 = vadd.f32 0.0, %v3304
      %3306 = vdwg.mxu0
      %3307 = vmatpush.bf16.msra.mxu0 0
      %3308 = vmatpush.bf16.msra.mxu0 0
      %3309 = vmatpush.bf16.msra.mxu0 0
      %3310 = vmatpush.bf16.msra.mxu0 0
      %3311 = vmatpush.bf16.msra.mxu0 0
      %3312 = vmatpush.bf16.msra.mxu0 0
      %3313 = vmatpush.bf16.msra.mxu0 0
      %3314 = vmatpush.bf16.msra.mxu0 %v3286
      %3315 = vmatmul.bf16.gmra.mxu0 %v3291
      %v3316 = vpop.f32.mrf.mxu0
      %v3317 = vadd.f32 0.0, %v3316
      %v3318 = vpop.f32.mrf.mxu0
      %v3319 = vadd.f32 0.0, %v3318
      %3320 = vdwg.mxu0
      %3321 = vmatpush.bf16.msra.mxu0 0
      %3322 = vmatpush.bf16.msra.mxu0 0
      %3323 = vmatpush.bf16.msra.mxu0 0
      %3324 = vmatpush.bf16.msra.mxu0 0
      %3325 = vmatpush.bf16.msra.mxu0 0
      %3326 = vmatpush.bf16.msra.mxu0 0
      %3327 = vmatpush.bf16.msra.mxu0 0
      %3328 = vmatpush.bf16.msra.mxu0 %v3284
      %3329 = vmatmul.bf16.gmra.mxu0 %v3291
      %v3330 = vpop.f32.mrf.mxu0
      %v3331 = vadd.f32 0.0, %v3330
      %v3332 = vpop.f32.mrf.mxu0
      %v3333 = vadd.f32 0.0, %v3332
      %3334 = vdwg.mxu0
      %v3335 = vadd.f32 %v3271, %v3303
      %v3336 = vadd.f32 %v3272, %v3317
      %v3337 = vadd.f32 %v3273, %v3331
      %v3338 = vadd.f32 %v3274, %v3305
      %v3339 = vadd.f32 %v3275, %v3319
      %v3340 = vadd.f32 %v3276, %v3333
      %3341 = vrot.lane.b32.xlu0 %v3214, 96
      %v3342 = vpop.permute.xlu0 %3341
      %3343 = vrot.lane.b32.xlu0 %v2959, 92
      %v3344 = vpop.permute.xlu0 %3343
      %3345 = vrot.lane.b32.xlu0 %v2960, 92
      %v3346 = vpop.permute.xlu0 %3345
      %3347 = vrot.lane.b32.xlu0 %v2961, 92
      %v3348 = vpop.permute.xlu0 %3347
      %v3349 = vsel %vm981, %v3344, %v3346
      %v3350 = vsel %vm981, %v3346, %v3348
      %v3355 = vsel %vm619, %v3342, 0
      %3357 = vmatpush.bf16.msra.mxu0 0
      %3358 = vmatpush.bf16.msra.mxu0 0
      %3359 = vmatpush.bf16.msra.mxu0 0
      %3360 = vmatpush.bf16.msra.mxu0 0
      %3361 = vmatpush.bf16.msra.mxu0 0
      %3362 = vmatpush.bf16.msra.mxu0 0
      %3363 = vmatpush.bf16.msra.mxu0 0
      %3364 = vmatpush.bf16.msra.mxu0 %v3349
      %3365 = vmatmul.bf16.gmra.mxu0 %v3355
      %v3366 = vpop.f32.mrf.mxu0
      %v3367 = vadd.f32 0.0, %v3366
      %v3368 = vpop.f32.mrf.mxu0
      %v3369 = vadd.f32 0.0, %v3368
      %3370 = vdwg.mxu0
      %3371 = vmatpush.bf16.msra.mxu0 0
      %3372 = vmatpush.bf16.msra.mxu0 0
      %3373 = vmatpush.bf16.msra.mxu0 0
      %3374 = vmatpush.bf16.msra.mxu0 0
      %3375 = vmatpush.bf16.msra.mxu0 0
      %3376 = vmatpush.bf16.msra.mxu0 0
      %3377 = vmatpush.bf16.msra.mxu0 0
      %3378 = vmatpush.bf16.msra.mxu0 %v3350
      %3379 = vmatmul.bf16.gmra.mxu0 %v3355
      %v3380 = vpop.f32.mrf.mxu0
      %v3381 = vadd.f32 0.0, %v3380
      %v3382 = vpop.f32.mrf.mxu0
      %v3383 = vadd.f32 0.0, %v3382
      %3384 = vdwg.mxu0
      %3385 = vmatpush.bf16.msra.mxu0 0
      %3386 = vmatpush.bf16.msra.mxu0 0
      %3387 = vmatpush.bf16.msra.mxu0 0
      %3388 = vmatpush.bf16.msra.mxu0 0
      %3389 = vmatpush.bf16.msra.mxu0 0
      %3390 = vmatpush.bf16.msra.mxu0 0
      %3391 = vmatpush.bf16.msra.mxu0 0
      %3392 = vmatpush.bf16.msra.mxu0 %v3348
      %3393 = vmatmul.bf16.gmra.mxu0 %v3355
      %v3394 = vpop.f32.mrf.mxu0
      %v3395 = vadd.f32 0.0, %v3394
      %v3396 = vpop.f32.mrf.mxu0
      %v3397 = vadd.f32 0.0, %v3396
      %3398 = vdwg.mxu0
      %v3399 = vadd.f32 %v3335, %v3367
      %v3400 = vadd.f32 %v3336, %v3381
      %v3401 = vadd.f32 %v3337, %v3395
      %v3402 = vadd.f32 %v3338, %v3369
      %v3403 = vadd.f32 %v3339, %v3383
      %v3404 = vadd.f32 %v3340, %v3397
      %3405 = vrot.lane.b32.xlu0 %v3214, 80
      %v3406 = vpop.permute.xlu0 %3405
      %3407 = vrot.lane.b32.xlu0 %v2959, 91
      %v3408 = vpop.permute.xlu0 %3407
      %3409 = vrot.lane.b32.xlu0 %v2960, 91
      %v3410 = vpop.permute.xlu0 %3409
      %3411 = vrot.lane.b32.xlu0 %v2961, 91
      %v3412 = vpop.permute.xlu0 %3411
      %v3413 = vsel %vm1046, %v3408, %v3410
      %v3414 = vsel %vm1046, %v3410, %v3412
      %v3419 = vsel %vm619, %v3406, 0
      %3421 = vmatpush.bf16.msra.mxu0 0
      %3422 = vmatpush.bf16.msra.mxu0 0
      %3423 = vmatpush.bf16.msra.mxu0 0
      %3424 = vmatpush.bf16.msra.mxu0 0
      %3425 = vmatpush.bf16.msra.mxu0 0
      %3426 = vmatpush.bf16.msra.mxu0 0
      %3427 = vmatpush.bf16.msra.mxu0 0
      %3428 = vmatpush.bf16.msra.mxu0 %v3413
      %3429 = vmatmul.bf16.gmra.mxu0 %v3419
      %v3430 = vpop.f32.mrf.mxu0
      %v3431 = vadd.f32 0.0, %v3430
      %v3432 = vpop.f32.mrf.mxu0
      %v3433 = vadd.f32 0.0, %v3432
      %3434 = vdwg.mxu0
      %3435 = vmatpush.bf16.msra.mxu0 0
      %3436 = vmatpush.bf16.msra.mxu0 0
      %3437 = vmatpush.bf16.msra.mxu0 0
      %3438 = vmatpush.bf16.msra.mxu0 0
      %3439 = vmatpush.bf16.msra.mxu0 0
      %3440 = vmatpush.bf16.msra.mxu0 0
      %3441 = vmatpush.bf16.msra.mxu0 0
      %3442 = vmatpush.bf16.msra.mxu0 %v3414
      %3443 = vmatmul.bf16.gmra.mxu0 %v3419
      %v3444 = vpop.f32.mrf.mxu0
      %v3445 = vadd.f32 0.0, %v3444
      %v3446 = vpop.f32.mrf.mxu0
      %v3447 = vadd.f32 0.0, %v3446
      %3448 = vdwg.mxu0
      %3449 = vmatpush.bf16.msra.mxu0 0
      %3450 = vmatpush.bf16.msra.mxu0 0
      %3451 = vmatpush.bf16.msra.mxu0 0
      %3452 = vmatpush.bf16.msra.mxu0 0
      %3453 = vmatpush.bf16.msra.mxu0 0
      %3454 = vmatpush.bf16.msra.mxu0 0
      %3455 = vmatpush.bf16.msra.mxu0 0
      %3456 = vmatpush.bf16.msra.mxu0 %v3412
      %3457 = vmatmul.bf16.gmra.mxu0 %v3419
      %v3458 = vpop.f32.mrf.mxu0
      %v3459 = vadd.f32 0.0, %v3458
      %v3460 = vpop.f32.mrf.mxu0
      %v3461 = vadd.f32 0.0, %v3460
      %3462 = vdwg.mxu0
      %v3463 = vadd.f32 %v3399, %v3431
      %v3464 = vadd.f32 %v3400, %v3445
      %v3465 = vadd.f32 %v3401, %v3459
      %v3466 = vadd.f32 %v3402, %v3433
      %v3467 = vadd.f32 %v3403, %v3447
      %v3468 = vadd.f32 %v3404, %v3461
      %3469 = vrot.lane.b32.xlu0 %v3214, 64
      %v3470 = vpop.permute.xlu0 %3469
      %3471 = vrot.lane.b32.xlu0 %v2959, 90
      %v3472 = vpop.permute.xlu0 %3471
      %3473 = vrot.lane.b32.xlu0 %v2960, 90
      %v3474 = vpop.permute.xlu0 %3473
      %3475 = vrot.lane.b32.xlu0 %v2961, 90
      %v3476 = vpop.permute.xlu0 %3475
      %v3477 = vsel %vm1116, %v3472, %v3474
      %v3478 = vsel %vm1116, %v3474, %v3476
      %v3483 = vsel %vm619, %v3470, 0
      %3485 = vmatpush.bf16.msra.mxu0 0
      %3486 = vmatpush.bf16.msra.mxu0 0
      %3487 = vmatpush.bf16.msra.mxu0 0
      %3488 = vmatpush.bf16.msra.mxu0 0
      %3489 = vmatpush.bf16.msra.mxu0 0
      %3490 = vmatpush.bf16.msra.mxu0 0
      %3491 = vmatpush.bf16.msra.mxu0 0
      %3492 = vmatpush.bf16.msra.mxu0 %v3477
      %3493 = vmatmul.bf16.gmra.mxu0 %v3483
      %v3494 = vpop.f32.mrf.mxu0
      %v3495 = vadd.f32 0.0, %v3494
      %v3496 = vpop.f32.mrf.mxu0
      %v3497 = vadd.f32 0.0, %v3496
      %3498 = vdwg.mxu0
      %3499 = vmatpush.bf16.msra.mxu0 0
      %3500 = vmatpush.bf16.msra.mxu0 0
      %3501 = vmatpush.bf16.msra.mxu0 0
      %3502 = vmatpush.bf16.msra.mxu0 0
      %3503 = vmatpush.bf16.msra.mxu0 0
      %3504 = vmatpush.bf16.msra.mxu0 0
      %3505 = vmatpush.bf16.msra.mxu0 0
      %3506 = vmatpush.bf16.msra.mxu0 %v3478
      %3507 = vmatmul.bf16.gmra.mxu0 %v3483
      %v3508 = vpop.f32.mrf.mxu0
      %v3509 = vadd.f32 0.0, %v3508
      %v3510 = vpop.f32.mrf.mxu0
      %v3511 = vadd.f32 0.0, %v3510
      %3512 = vdwg.mxu0
      %3513 = vmatpush.bf16.msra.mxu0 0
      %3514 = vmatpush.bf16.msra.mxu0 0
      %3515 = vmatpush.bf16.msra.mxu0 0
      %3516 = vmatpush.bf16.msra.mxu0 0
      %3517 = vmatpush.bf16.msra.mxu0 0
      %3518 = vmatpush.bf16.msra.mxu0 0
      %3519 = vmatpush.bf16.msra.mxu0 0
      %3520 = vmatpush.bf16.msra.mxu0 %v3476
      %3521 = vmatmul.bf16.gmra.mxu0 %v3483
      %v3522 = vpop.f32.mrf.mxu0
      %v3523 = vadd.f32 0.0, %v3522
      %v3524 = vpop.f32.mrf.mxu0
      %v3525 = vadd.f32 0.0, %v3524
      %3526 = vdwg.mxu0
      %v3527 = vadd.f32 %v3463, %v3495
      %v3528 = vadd.f32 %v3464, %v3509
      %v3529 = vadd.f32 %v3465, %v3523
      %v3530 = vadd.f32 %v3466, %v3497
      %v3531 = vadd.f32 %v3467, %v3511
      %v3532 = vadd.f32 %v3468, %v3525
      %v3533 = vld [vmem:[%s564] sm:$0xff]
      %v3534 = vld [vmem:[%s564 + $0x8] sm:$0xf]
      %v3535 = vld [vmem:[%s564 + $0xc] sm:$0xff]
      %v3536 = vld [vmem:[%s564 + $0x14] sm:$0xf]
      %3537 = vrot.lane.b32.xlu0 %v3214, 48
      %v3538 = vpop.permute.xlu0 %3537
      %v3543 = vunpack.c.l.b16 %v3533
      %v3544 = vunpack.c.h.b16 %v3533
      %v3545 = vunpack.c.l.b16 %v3534
      %v3546 = vunpack.c.l.b16 %v3535
      %v3547 = vunpack.c.h.b16 %v3535
      %v3548 = vunpack.c.l.b16 %v3536
      %v3549 = vpack.c.b16 %v3546, %v3543
      %v3550 = vpack.c.b16 %v3547, %v3544
      %v3551 = vpack.c.b16 %v3548, %v3545
      %v3556 = vsel %vm619, %v3538, 0
      %3558 = vmatpush.bf16.msra.mxu0 0
      %3559 = vmatpush.bf16.msra.mxu0 0
      %3560 = vmatpush.bf16.msra.mxu0 0
      %3561 = vmatpush.bf16.msra.mxu0 0
      %3562 = vmatpush.bf16.msra.mxu0 0
      %3563 = vmatpush.bf16.msra.mxu0 0
      %3564 = vmatpush.bf16.msra.mxu0 0
      %3565 = vmatpush.bf16.msra.mxu0 %v3549
      %3566 = vmatmul.bf16.gmra.mxu0 %v3556
      %v3567 = vpop.f32.mrf.mxu0
      %v3568 = vadd.f32 0.0, %v3567
      %v3569 = vpop.f32.mrf.mxu0
      %v3570 = vadd.f32 0.0, %v3569
      %3571 = vdwg.mxu0
      %3572 = vmatpush.bf16.msra.mxu0 0
      %3573 = vmatpush.bf16.msra.mxu0 0
      %3574 = vmatpush.bf16.msra.mxu0 0
      %3575 = vmatpush.bf16.msra.mxu0 0
      %3576 = vmatpush.bf16.msra.mxu0 0
      %3577 = vmatpush.bf16.msra.mxu0 0
      %3578 = vmatpush.bf16.msra.mxu0 0
      %3579 = vmatpush.bf16.msra.mxu0 %v3550
      %3580 = vmatmul.bf16.gmra.mxu0 %v3556
      %v3581 = vpop.f32.mrf.mxu0
      %v3582 = vadd.f32 0.0, %v3581
      %v3583 = vpop.f32.mrf.mxu0
      %v3584 = vadd.f32 0.0, %v3583
      %3585 = vdwg.mxu0
      %3586 = vmatpush.bf16.msra.mxu0 0
      %3587 = vmatpush.bf16.msra.mxu0 0
      %3588 = vmatpush.bf16.msra.mxu0 0
      %3589 = vmatpush.bf16.msra.mxu0 0
      %3590 = vmatpush.bf16.msra.mxu0 0
      %3591 = vmatpush.bf16.msra.mxu0 0
      %3592 = vmatpush.bf16.msra.mxu0 0
      %3593 = vmatpush.bf16.msra.mxu0 %v3551
      %3594 = vmatmul.bf16.gmra.mxu0 %v3556
      %v3595 = vpop.f32.mrf.mxu0
      %v3596 = vadd.f32 0.0, %v3595
      %v3597 = vpop.f32.mrf.mxu0
      %v3598 = vadd.f32 0.0, %v3597
      %3599 = vdwg.mxu0
      %v3600 = vadd.f32 %v3527, %v3568
      %v3601 = vadd.f32 %v3528, %v3582
      %v3602 = vadd.f32 %v3529, %v3596
      %v3603 = vadd.f32 %v3530, %v3570
      %v3604 = vadd.f32 %v3531, %v3584
      %v3605 = vadd.f32 %v3532, %v3598
      %3606 = vrot.lane.b32.xlu0 %v3214, 32
      %v3607 = vpop.permute.xlu0 %3606
      %3608 = vrot.lane.b32.xlu0 %v3549, 127
      %v3609 = vpop.permute.xlu0 %3608
      %3610 = vrot.lane.b32.xlu0 %v3550, 127
      %v3611 = vpop.permute.xlu0 %3610
      %3612 = vrot.lane.b32.xlu0 %v3551, 127
      %v3613 = vpop.permute.xlu0 %3612
      %v3614 = vsel %vm613, %v3609, %v3611
      %v3615 = vsel %vm613, %v3611, %v3613
      %v3620 = vsel %vm619, %v3607, 0
      %3622 = vmatpush.bf16.msra.mxu0 0
      %3623 = vmatpush.bf16.msra.mxu0 0
      %3624 = vmatpush.bf16.msra.mxu0 0
      %3625 = vmatpush.bf16.msra.mxu0 0
      %3626 = vmatpush.bf16.msra.mxu0 0
      %3627 = vmatpush.bf16.msra.mxu0 0
      %3628 = vmatpush.bf16.msra.mxu0 0
      %3629 = vmatpush.bf16.msra.mxu0 %v3614
      %3630 = vmatmul.bf16.gmra.mxu0 %v3620
      %v3631 = vpop.f32.mrf.mxu0
      %v3632 = vadd.f32 0.0, %v3631
      %v3633 = vpop.f32.mrf.mxu0
      %v3634 = vadd.f32 0.0, %v3633
      %3635 = vdwg.mxu0
      %3636 = vmatpush.bf16.msra.mxu0 0
      %3637 = vmatpush.bf16.msra.mxu0 0
      %3638 = vmatpush.bf16.msra.mxu0 0
      %3639 = vmatpush.bf16.msra.mxu0 0
      %3640 = vmatpush.bf16.msra.mxu0 0
      %3641 = vmatpush.bf16.msra.mxu0 0
      %3642 = vmatpush.bf16.msra.mxu0 0
      %3643 = vmatpush.bf16.msra.mxu0 %v3615
      %3644 = vmatmul.bf16.gmra.mxu0 %v3620
      %v3645 = vpop.f32.mrf.mxu0
      %v3646 = vadd.f32 0.0, %v3645
      %v3647 = vpop.f32.mrf.mxu0
      %v3648 = vadd.f32 0.0, %v3647
      %3649 = vdwg.mxu0
      %3650 = vmatpush.bf16.msra.mxu0 0
      %3651 = vmatpush.bf16.msra.mxu0 0
      %3652 = vmatpush.bf16.msra.mxu0 0
      %3653 = vmatpush.bf16.msra.mxu0 0
      %3654 = vmatpush.bf16.msra.mxu0 0
      %3655 = vmatpush.bf16.msra.mxu0 0
      %3656 = vmatpush.bf16.msra.mxu0 0
      %3657 = vmatpush.bf16.msra.mxu0 %v3613
      %3658 = vmatmul.bf16.gmra.mxu0 %v3620
      %v3659 = vpop.f32.mrf.mxu0
      %v3660 = vadd.f32 0.0, %v3659
      %v3661 = vpop.f32.mrf.mxu0
      %v3662 = vadd.f32 0.0, %v3661
      %3663 = vdwg.mxu0
      %v3664 = vadd.f32 %v3600, %v3632
      %v3665 = vadd.f32 %v3601, %v3646
      %v3666 = vadd.f32 %v3602, %v3660
      %v3667 = vadd.f32 %v3603, %v3634
      %v3668 = vadd.f32 %v3604, %v3648
      %v3669 = vadd.f32 %v3605, %v3662
      %3670 = vrot.lane.b32.xlu0 %v3214, 16
      %v3671 = vpop.permute.xlu0 %3670
      %3672 = vrot.lane.b32.xlu0 %v3549, 126
      %v3673 = vpop.permute.xlu0 %3672
      %3674 = vrot.lane.b32.xlu0 %v3550, 126
      %v3675 = vpop.permute.xlu0 %3674
      %3676 = vrot.lane.b32.xlu0 %v3551, 126
      %v3677 = vpop.permute.xlu0 %3676
      %v3678 = vsel %vm721, %v3673, %v3675
      %v3679 = vsel %vm721, %v3675, %v3677
      %v3684 = vsel %vm619, %v3671, 0
      %3686 = vmatpush.bf16.msra.mxu0 0
      %3687 = vmatpush.bf16.msra.mxu0 0
      %3688 = vmatpush.bf16.msra.mxu0 0
      %3689 = vmatpush.bf16.msra.mxu0 0
      %3690 = vmatpush.bf16.msra.mxu0 0
      %3691 = vmatpush.bf16.msra.mxu0 0
      %3692 = vmatpush.bf16.msra.mxu0 0
      %3693 = vmatpush.bf16.msra.mxu0 %v3678
      %3694 = vmatmul.bf16.gmra.mxu0 %v3684
      %v3695 = vpop.f32.mrf.mxu0
      %v3696 = vadd.f32 0.0, %v3695
      %v3697 = vpop.f32.mrf.mxu0
      %v3698 = vadd.f32 0.0, %v3697
      %3699 = vdwg.mxu0
      %3700 = vmatpush.bf16.msra.mxu0 0
      %3701 = vmatpush.bf16.msra.mxu0 0
      %3702 = vmatpush.bf16.msra.mxu0 0
      %3703 = vmatpush.bf16.msra.mxu0 0
      %3704 = vmatpush.bf16.msra.mxu0 0
      %3705 = vmatpush.bf16.msra.mxu0 0
      %3706 = vmatpush.bf16.msra.mxu0 0
      %3707 = vmatpush.bf16.msra.mxu0 %v3679
      %3708 = vmatmul.bf16.gmra.mxu0 %v3684
      %v3709 = vpop.f32.mrf.mxu0
      %v3710 = vadd.f32 0.0, %v3709
      %v3711 = vpop.f32.mrf.mxu0
      %v3712 = vadd.f32 0.0, %v3711
      %3713 = vdwg.mxu0
      %3714 = vmatpush.bf16.msra.mxu0 0
      %3715 = vmatpush.bf16.msra.mxu0 0
      %3716 = vmatpush.bf16.msra.mxu0 0
      %3717 = vmatpush.bf16.msra.mxu0 0
      %3718 = vmatpush.bf16.msra.mxu0 0
      %3719 = vmatpush.bf16.msra.mxu0 0
      %3720 = vmatpush.bf16.msra.mxu0 0
      %3721 = vmatpush.bf16.msra.mxu0 %v3677
      %3722 = vmatmul.bf16.gmra.mxu0 %v3684
      %v3723 = vpop.f32.mrf.mxu0
      %v3724 = vadd.f32 0.0, %v3723
      %v3725 = vpop.f32.mrf.mxu0
      %v3726 = vadd.f32 0.0, %v3725
      %3727 = vdwg.mxu0
      %v3728 = vadd.f32 %v3664, %v3696
      %v3729 = vadd.f32 %v3665, %v3710
      %v3730 = vadd.f32 %v3666, %v3724
      %v3731 = vadd.f32 %v3667, %v3698
      %v3732 = vadd.f32 %v3668, %v3712
      %v3733 = vadd.f32 %v3669, %v3726
      %v3734 = vld [vmem:[%s6 + $0x18] sm:$0xf]
      %v3735 = vld [vmem:[%s6 + $0x34] sm:$0xf]
      %v3738 = vunpack.c.l.b16 %v3734
      %v3739 = vunpack.c.l.b16 %v3735
      %v3740 = vpack.c.b16 %v3739, %v3738
      %3741 = vrot.lane.b32.xlu0 %v3549, 110
      %v3742 = vpop.permute.xlu0 %3741
      %3743 = vrot.lane.b32.xlu0 %v3550, 110
      %v3744 = vpop.permute.xlu0 %3743
      %3745 = vrot.lane.b32.xlu0 %v3551, 110
      %v3746 = vpop.permute.xlu0 %3745
      %v3747 = vsel %vm786, %v3742, %v3744
      %v3748 = vsel %vm786, %v3744, %v3746
      %v3753 = vsel %vm619, %v3740, 0
      %3755 = vmatpush.bf16.msra.mxu0 0
      %3756 = vmatpush.bf16.msra.mxu0 0
      %3757 = vmatpush.bf16.msra.mxu0 0
      %3758 = vmatpush.bf16.msra.mxu0 0
      %3759 = vmatpush.bf16.msra.mxu0 0
      %3760 = vmatpush.bf16.msra.mxu0 0
      %3761 = vmatpush.bf16.msra.mxu0 0
      %3762 = vmatpush.bf16.msra.mxu0 %v3747
      %3763 = vmatmul.bf16.gmra.mxu0 %v3753
      %v3764 = vpop.f32.mrf.mxu0
      %v3765 = vadd.f32 0.0, %v3764
      %v3766 = vpop.f32.mrf.mxu0
      %v3767 = vadd.f32 0.0, %v3766
      %3768 = vdwg.mxu0
      %3769 = vmatpush.bf16.msra.mxu0 0
      %3770 = vmatpush.bf16.msra.mxu0 0
      %3771 = vmatpush.bf16.msra.mxu0 0
      %3772 = vmatpush.bf16.msra.mxu0 0
      %3773 = vmatpush.bf16.msra.mxu0 0
      %3774 = vmatpush.bf16.msra.mxu0 0
      %3775 = vmatpush.bf16.msra.mxu0 0
      %3776 = vmatpush.bf16.msra.mxu0 %v3748
      %3777 = vmatmul.bf16.gmra.mxu0 %v3753
      %v3778 = vpop.f32.mrf.mxu0
      %v3779 = vadd.f32 0.0, %v3778
      %v3780 = vpop.f32.mrf.mxu0
      %v3781 = vadd.f32 0.0, %v3780
      %3782 = vdwg.mxu0
      %3783 = vmatpush.bf16.msra.mxu0 0
      %3784 = vmatpush.bf16.msra.mxu0 0
      %3785 = vmatpush.bf16.msra.mxu0 0
      %3786 = vmatpush.bf16.msra.mxu0 0
      %3787 = vmatpush.bf16.msra.mxu0 0
      %3788 = vmatpush.bf16.msra.mxu0 0
      %3789 = vmatpush.bf16.msra.mxu0 0
      %3790 = vmatpush.bf16.msra.mxu0 %v3746
      %3791 = vmatmul.bf16.gmra.mxu0 %v3753
      %v3792 = vpop.f32.mrf.mxu0
      %v3793 = vadd.f32 0.0, %v3792
      %v3794 = vpop.f32.mrf.mxu0
      %v3795 = vadd.f32 0.0, %v3794
      %3796 = vdwg.mxu0
      %v3797 = vadd.f32 %v3728, %v3765
      %v3798 = vadd.f32 %v3729, %v3779
      %v3799 = vadd.f32 %v3730, %v3793
      %v3800 = vadd.f32 %v3731, %v3767
      %v3801 = vadd.f32 %v3732, %v3781
      %v3802 = vadd.f32 %v3733, %v3795
      %3803 = vrot.lane.b32.xlu0 %v3740, 112
      %v3804 = vpop.permute.xlu0 %3803
      %3805 = vrot.lane.b32.xlu0 %v3549, 109
      %v3806 = vpop.permute.xlu0 %3805
      %3807 = vrot.lane.b32.xlu0 %v3550, 109
      %v3808 = vpop.permute.xlu0 %3807
      %3809 = vrot.lane.b32.xlu0 %v3551, 109
      %v3810 = vpop.permute.xlu0 %3809
      %v3811 = vsel %vm851, %v3806, %v3808
      %v3812 = vsel %vm851, %v3808, %v3810
      %v3817 = vsel %vm619, %v3804, 0
      %3819 = vmatpush.bf16.msra.mxu0 0
      %3820 = vmatpush.bf16.msra.mxu0 0
      %3821 = vmatpush.bf16.msra.mxu0 0
      %3822 = vmatpush.bf16.msra.mxu0 0
      %3823 = vmatpush.bf16.msra.mxu0 0
      %3824 = vmatpush.bf16.msra.mxu0 0
      %3825 = vmatpush.bf16.msra.mxu0 0
      %3826 = vmatpush.bf16.msra.mxu0 %v3811
      %3827 = vmatmul.bf16.gmra.mxu0 %v3817
      %v3828 = vpop.f32.mrf.mxu0
      %v3829 = vadd.f32 0.0, %v3828
      %v3830 = vpop.f32.mrf.mxu0
      %v3831 = vadd.f32 0.0, %v3830
      %3832 = vdwg.mxu0
      %3833 = vmatpush.bf16.msra.mxu0 0
      %3834 = vmatpush.bf16.msra.mxu0 0
      %3835 = vmatpush.bf16.msra.mxu0 0
      %3836 = vmatpush.bf16.msra.mxu0 0
      %3837 = vmatpush.bf16.msra.mxu0 0
      %3838 = vmatpush.bf16.msra.mxu0 0
      %3839 = vmatpush.bf16.msra.mxu0 0
      %3840 = vmatpush.bf16.msra.mxu0 %v3812
      %3841 = vmatmul.bf16.gmra.mxu0 %v3817
      %v3842 = vpop.f32.mrf.mxu0
      %v3843 = vadd.f32 0.0, %v3842
      %v3844 = vpop.f32.mrf.mxu0
      %v3845 = vadd.f32 0.0, %v3844
      %3846 = vdwg.mxu0
      %3847 = vmatpush.bf16.msra.mxu0 0
      %3848 = vmatpush.bf16.msra.mxu0 0
      %3849 = vmatpush.bf16.msra.mxu0 0
      %3850 = vmatpush.bf16.msra.mxu0 0
      %3851 = vmatpush.bf16.msra.mxu0 0
      %3852 = vmatpush.bf16.msra.mxu0 0
      %3853 = vmatpush.bf16.msra.mxu0 0
      %3854 = vmatpush.bf16.msra.mxu0 %v3810
      %3855 = vmatmul.bf16.gmra.mxu0 %v3817
      %v3856 = vpop.f32.mrf.mxu0
      %v3857 = vadd.f32 0.0, %v3856
      %v3858 = vpop.f32.mrf.mxu0
      %v3859 = vadd.f32 0.0, %v3858
      %3860 = vdwg.mxu0
      %v3861 = vadd.f32 %v3797, %v3829
      %v3862 = vadd.f32 %v3798, %v3843
      %v3863 = vadd.f32 %v3799, %v3857
      %v3864 = vadd.f32 %v3800, %v3831
      %v3865 = vadd.f32 %v3801, %v3845
      %v3866 = vadd.f32 %v3802, %v3859
      %3867 = vrot.lane.b32.xlu0 %v3740, 96
      %v3868 = vpop.permute.xlu0 %3867
      %3869 = vrot.lane.b32.xlu0 %v3549, 108
      %v3870 = vpop.permute.xlu0 %3869
      %3871 = vrot.lane.b32.xlu0 %v3550, 108
      %v3872 = vpop.permute.xlu0 %3871
      %3873 = vrot.lane.b32.xlu0 %v3551, 108
      %v3874 = vpop.permute.xlu0 %3873
      %v3875 = vsel %vm916, %v3870, %v3872
      %v3876 = vsel %vm916, %v3872, %v3874
      %v3881 = vsel %vm619, %v3868, 0
      %3883 = vmatpush.bf16.msra.mxu0 0
      %3884 = vmatpush.bf16.msra.mxu0 0
      %3885 = vmatpush.bf16.msra.mxu0 0
      %3886 = vmatpush.bf16.msra.mxu0 0
      %3887 = vmatpush.bf16.msra.mxu0 0
      %3888 = vmatpush.bf16.msra.mxu0 0
      %3889 = vmatpush.bf16.msra.mxu0 0
      %3890 = vmatpush.bf16.msra.mxu0 %v3875
      %3891 = vmatmul.bf16.gmra.mxu0 %v3881
      %v3892 = vpop.f32.mrf.mxu0
      %v3893 = vadd.f32 0.0, %v3892
      %v3894 = vpop.f32.mrf.mxu0
      %v3895 = vadd.f32 0.0, %v3894
      %3896 = vdwg.mxu0
      %3897 = vmatpush.bf16.msra.mxu0 0
      %3898 = vmatpush.bf16.msra.mxu0 0
      %3899 = vmatpush.bf16.msra.mxu0 0
      %3900 = vmatpush.bf16.msra.mxu0 0
      %3901 = vmatpush.bf16.msra.mxu0 0
      %3902 = vmatpush.bf16.msra.mxu0 0
      %3903 = vmatpush.bf16.msra.mxu0 0
      %3904 = vmatpush.bf16.msra.mxu0 %v3876
      %3905 = vmatmul.bf16.gmra.mxu0 %v3881
      %v3906 = vpop.f32.mrf.mxu0
      %v3907 = vadd.f32 0.0, %v3906
      %v3908 = vpop.f32.mrf.mxu0
      %v3909 = vadd.f32 0.0, %v3908
      %3910 = vdwg.mxu0
      %3911 = vmatpush.bf16.msra.mxu0 0
      %3912 = vmatpush.bf16.msra.mxu0 0
      %3913 = vmatpush.bf16.msra.mxu0 0
      %3914 = vmatpush.bf16.msra.mxu0 0
      %3915 = vmatpush.bf16.msra.mxu0 0
      %3916 = vmatpush.bf16.msra.mxu0 0
      %3917 = vmatpush.bf16.msra.mxu0 0
      %3918 = vmatpush.bf16.msra.mxu0 %v3874
      %3919 = vmatmul.bf16.gmra.mxu0 %v3881
      %v3920 = vpop.f32.mrf.mxu0
      %v3921 = vadd.f32 0.0, %v3920
      %v3922 = vpop.f32.mrf.mxu0
      %v3923 = vadd.f32 0.0, %v3922
      %3924 = vdwg.mxu0
      %v3925 = vadd.f32 %v3861, %v3893
      %v3926 = vadd.f32 %v3862, %v3907
      %v3927 = vadd.f32 %v3863, %v3921
      %v3928 = vadd.f32 %v3864, %v3895
      %v3929 = vadd.f32 %v3865, %v3909
      %v3930 = vadd.f32 %v3866, %v3923
      %3931 = vrot.lane.b32.xlu0 %v3740, 80
      %v3932 = vpop.permute.xlu0 %3931
      %3933 = vrot.lane.b32.xlu0 %v3549, 92
      %v3934 = vpop.permute.xlu0 %3933
      %3935 = vrot.lane.b32.xlu0 %v3550, 92
      %v3936 = vpop.permute.xlu0 %3935
      %3937 = vrot.lane.b32.xlu0 %v3551, 92
      %v3938 = vpop.permute.xlu0 %3937
      %v3939 = vsel %vm981, %v3934, %v3936
      %v3940 = vsel %vm981, %v3936, %v3938
      %v3945 = vsel %vm619, %v3932, 0
      %3947 = vmatpush.bf16.msra.mxu0 0
      %3948 = vmatpush.bf16.msra.mxu0 0
      %3949 = vmatpush.bf16.msra.mxu0 0
      %3950 = vmatpush.bf16.msra.mxu0 0
      %3951 = vmatpush.bf16.msra.mxu0 0
      %3952 = vmatpush.bf16.msra.mxu0 0
      %3953 = vmatpush.bf16.msra.mxu0 0
      %3954 = vmatpush.bf16.msra.mxu0 %v3939
      %3955 = vmatmul.bf16.gmra.mxu0 %v3945
      %v3956 = vpop.f32.mrf.mxu0
      %v3957 = vadd.f32 0.0, %v3956
      %v3958 = vpop.f32.mrf.mxu0
      %v3959 = vadd.f32 0.0, %v3958
      %3960 = vdwg.mxu0
      %3961 = vmatpush.bf16.msra.mxu0 0
      %3962 = vmatpush.bf16.msra.mxu0 0
      %3963 = vmatpush.bf16.msra.mxu0 0
      %3964 = vmatpush.bf16.msra.mxu0 0
      %3965 = vmatpush.bf16.msra.mxu0 0
      %3966 = vmatpush.bf16.msra.mxu0 0
      %3967 = vmatpush.bf16.msra.mxu0 0
      %3968 = vmatpush.bf16.msra.mxu0 %v3940
      %3969 = vmatmul.bf16.gmra.mxu0 %v3945
      %v3970 = vpop.f32.mrf.mxu0
      %v3971 = vadd.f32 0.0, %v3970
      %v3972 = vpop.f32.mrf.mxu0
      %v3973 = vadd.f32 0.0, %v3972
      %3974 = vdwg.mxu0
      %3975 = vmatpush.bf16.msra.mxu0 0
      %3976 = vmatpush.bf16.msra.mxu0 0
      %3977 = vmatpush.bf16.msra.mxu0 0
      %3978 = vmatpush.bf16.msra.mxu0 0
      %3979 = vmatpush.bf16.msra.mxu0 0
      %3980 = vmatpush.bf16.msra.mxu0 0
      %3981 = vmatpush.bf16.msra.mxu0 0
      %3982 = vmatpush.bf16.msra.mxu0 %v3938
      %3983 = vmatmul.bf16.gmra.mxu0 %v3945
      %v3984 = vpop.f32.mrf.mxu0
      %v3985 = vadd.f32 0.0, %v3984
      %v3986 = vpop.f32.mrf.mxu0
      %v3987 = vadd.f32 0.0, %v3986
      %3988 = vdwg.mxu0
      %v3989 = vadd.f32 %v3925, %v3957
      %v3990 = vadd.f32 %v3926, %v3971
      %v3991 = vadd.f32 %v3927, %v3985
      %v3992 = vadd.f32 %v3928, %v3959
      %v3993 = vadd.f32 %v3929, %v3973
      %v3994 = vadd.f32 %v3930, %v3987
      %3995 = vrot.lane.b32.xlu0 %v3740, 64
      %v3996 = vpop.permute.xlu0 %3995
      %3997 = vrot.lane.b32.xlu0 %v3549, 91
      %v3998 = vpop.permute.xlu0 %3997
      %3999 = vrot.lane.b32.xlu0 %v3550, 91
      %v4000 = vpop.permute.xlu0 %3999
      %4001 = vrot.lane.b32.xlu0 %v3551, 91
      %v4002 = vpop.permute.xlu0 %4001
      %v4003 = vsel %vm1046, %v3998, %v4000
      %v4004 = vsel %vm1046, %v4000, %v4002
      %v4009 = vsel %vm619, %v3996, 0
      %4011 = vmatpush.bf16.msra.mxu0 0
      %4012 = vmatpush.bf16.msra.mxu0 0
      %4013 = vmatpush.bf16.msra.mxu0 0
      %4014 = vmatpush.bf16.msra.mxu0 0
      %4015 = vmatpush.bf16.msra.mxu0 0
      %4016 = vmatpush.bf16.msra.mxu0 0
      %4017 = vmatpush.bf16.msra.mxu0 0
      %4018 = vmatpush.bf16.msra.mxu0 %v4003
      %4019 = vmatmul.bf16.gmra.mxu0 %v4009
      %v4020 = vpop.f32.mrf.mxu0
      %v4021 = vadd.f32 0.0, %v4020
      %v4022 = vpop.f32.mrf.mxu0
      %v4023 = vadd.f32 0.0, %v4022
      %4024 = vdwg.mxu0
      %4025 = vmatpush.bf16.msra.mxu0 0
      %4026 = vmatpush.bf16.msra.mxu0 0
      %4027 = vmatpush.bf16.msra.mxu0 0
      %4028 = vmatpush.bf16.msra.mxu0 0
      %4029 = vmatpush.bf16.msra.mxu0 0
      %4030 = vmatpush.bf16.msra.mxu0 0
      %4031 = vmatpush.bf16.msra.mxu0 0
      %4032 = vmatpush.bf16.msra.mxu0 %v4004
      %4033 = vmatmul.bf16.gmra.mxu0 %v4009
      %v4034 = vpop.f32.mrf.mxu0
      %v4035 = vadd.f32 0.0, %v4034
      %v4036 = vpop.f32.mrf.mxu0
      %v4037 = vadd.f32 0.0, %v4036
      %4038 = vdwg.mxu0
      %4039 = vmatpush.bf16.msra.mxu0 0
      %4040 = vmatpush.bf16.msra.mxu0 0
      %4041 = vmatpush.bf16.msra.mxu0 0
      %4042 = vmatpush.bf16.msra.mxu0 0
      %4043 = vmatpush.bf16.msra.mxu0 0
      %4044 = vmatpush.bf16.msra.mxu0 0
      %4045 = vmatpush.bf16.msra.mxu0 0
      %4046 = vmatpush.bf16.msra.mxu0 %v4002
      %4047 = vmatmul.bf16.gmra.mxu0 %v4009
      %v4048 = vpop.f32.mrf.mxu0
      %v4049 = vadd.f32 0.0, %v4048
      %v4050 = vpop.f32.mrf.mxu0
      %v4051 = vadd.f32 0.0, %v4050
      %4052 = vdwg.mxu0
      %v4053 = vadd.f32 %v3989, %v4021
      %v4054 = vadd.f32 %v3990, %v4035
      %v4055 = vadd.f32 %v3991, %v4049
      %v4056 = vadd.f32 %v3992, %v4023
      %v4057 = vadd.f32 %v3993, %v4037
      %v4058 = vadd.f32 %v3994, %v4051
      %4059 = vrot.lane.b32.xlu0 %v3740, 48
      %v4060 = vpop.permute.xlu0 %4059
      %4061 = vrot.lane.b32.xlu0 %v3549, 90
      %v4062 = vpop.permute.xlu0 %4061
      %4063 = vrot.lane.b32.xlu0 %v3550, 90
      %v4064 = vpop.permute.xlu0 %4063
      %4065 = vrot.lane.b32.xlu0 %v3551, 90
      %v4066 = vpop.permute.xlu0 %4065
      %v4067 = vsel %vm1116, %v4062, %v4064
      %v4068 = vsel %vm1116, %v4064, %v4066
      %v4073 = vsel %vm619, %v4060, 0
      %4075 = vmatpush.bf16.msra.mxu0 0
      %4076 = vmatpush.bf16.msra.mxu0 0
      %4077 = vmatpush.bf16.msra.mxu0 0
      %4078 = vmatpush.bf16.msra.mxu0 0
      %4079 = vmatpush.bf16.msra.mxu0 0
      %4080 = vmatpush.bf16.msra.mxu0 0
      %4081 = vmatpush.bf16.msra.mxu0 0
      %4082 = vmatpush.bf16.msra.mxu0 %v4067
      %4083 = vmatmul.bf16.gmra.mxu0 %v4073
      %v4084 = vpop.f32.mrf.mxu0
      %v4085 = vadd.f32 0.0, %v4084
      %v4086 = vpop.f32.mrf.mxu0
      %v4087 = vadd.f32 0.0, %v4086
      %4088 = vdwg.mxu0
      %4089 = vmatpush.bf16.msra.mxu0 0
      %4090 = vmatpush.bf16.msra.mxu0 0
      %4091 = vmatpush.bf16.msra.mxu0 0
      %4092 = vmatpush.bf16.msra.mxu0 0
      %4093 = vmatpush.bf16.msra.mxu0 0
      %4094 = vmatpush.bf16.msra.mxu0 0
      %4095 = vmatpush.bf16.msra.mxu0 0
      %4096 = vmatpush.bf16.msra.mxu0 %v4068
      %4097 = vmatmul.bf16.gmra.mxu0 %v4073
      %v4098 = vpop.f32.mrf.mxu0
      %v4099 = vadd.f32 0.0, %v4098
      %v4100 = vpop.f32.mrf.mxu0
      %v4101 = vadd.f32 0.0, %v4100
      %4102 = vdwg.mxu0
      %4103 = vmatpush.bf16.msra.mxu0 0
      %4104 = vmatpush.bf16.msra.mxu0 0
      %4105 = vmatpush.bf16.msra.mxu0 0
      %4106 = vmatpush.bf16.msra.mxu0 0
      %4107 = vmatpush.bf16.msra.mxu0 0
      %4108 = vmatpush.bf16.msra.mxu0 0
      %4109 = vmatpush.bf16.msra.mxu0 0
      %4110 = vmatpush.bf16.msra.mxu0 %v4066
      %4111 = vmatmul.bf16.gmra.mxu0 %v4073
      %v4112 = vpop.f32.mrf.mxu0
      %v4113 = vadd.f32 0.0, %v4112
      %v4114 = vpop.f32.mrf.mxu0
      %v4115 = vadd.f32 0.0, %v4114
      %4116 = vdwg.mxu0
      %v4117 = vadd.f32 %v4053, %v4085
      %v4118 = vadd.f32 %v4054, %v4099
      %v4119 = vadd.f32 %v4055, %v4113
      %v4120 = vadd.f32 %v4056, %v4087
      %v4121 = vadd.f32 %v4057, %v4101
      %v4122 = vadd.f32 %v4058, %v4115
      %v4123 = vpack.c.bf16 %v4118, %v4117
      %v4124 = vpack.c.bf16 %v4119, %v4119
      %v4125 = vpack.c.bf16 %v4121, %v4120
      %v4126 = vpack.c.bf16 %v4122, %v4122
      %4127 = vst [vmem:[%s574] sm:$0xff] %v4123
      %vm4128 = vcmask 257024
      %4129 = vst.msk [vmem:[%s574 + $0x8] sm:$0xf] %vm4128, %v4124
      %4130 = vst [vmem:[%s574 + $0xc] sm:$0xff] %v4125
      %4131 = vst.msk [vmem:[%s574 + $0x14] sm:$0xf] %vm4128, %v4126
      %v4132 = vld [vmem:[%s7] sm:$0x7]
      %v4134 = vperm.slane %v4132, 0
      %v4135 = vperm.slane %v4132, 1
      %v4136 = vperm.slane %v4132, 2
      %v4140 = vmul.f32 %v4117, %v4134
      %v4141 = vmul.f32 %v4118, %v4135
      %v4142 = vmul.f32 %v4119, %v4136
      %v4143 = vmul.f32 %v4120, %v4134
      %v4144 = vmul.f32 %v4121, %v4135
      %v4145 = vmul.f32 %v4122, %v4136
      %v4146 = vadd.f32 %v4140, %v4141
      %vm4147 = vcmask 261120
      %v4148 = vsel %vm4147, %v4142, 0.0
      %v4149 = vadd.f32 %v4146, %v4148
      %4150 = vadd.xlane.f32.xlu0 %v4149
      %v4151 = vpop.xlane.xlu0 %4150
      %v4152 = vadd.f32 %v4143, %v4144
      %v4153 = vsel %vm4147, %v4145, 0.0
      %v4154 = vadd.f32 %v4152, %v4153
      %4155 = vadd.xlane.f32.xlu0 %v4154
      %v4156 = vpop.xlane.xlu0 %4155
      %v4157 = vmul.f32 %v4140, %v4117
      %v4158 = vmul.f32 %v4141, %v4118
      %v4159 = vmul.f32 %v4142, %v4119
      %v4160 = vmul.f32 %v4143, %v4120
      %v4161 = vmul.f32 %v4144, %v4121
      %v4162 = vmul.f32 %v4145, %v4122
      %v4163 = vadd.f32 %v4157, %v4158
      %v4164 = vsel %vm4147, %v4159, 0.0
      %v4165 = vadd.f32 %v4163, %v4164
      %4166 = vadd.xlane.f32.xlu0 %v4165
      %v4167 = vpop.xlane.xlu0 %4166
      %v4168 = vadd.f32 %v4160, %v4161
      %v4169 = vsel %vm4147, %v4162, 0.0
      %v4170 = vadd.f32 %v4168, %v4169
      %4171 = vadd.xlane.f32.xlu0 %v4170
      %v4172 = vpop.xlane.xlu0 %4171
      %p4173 = scmp.eq.s32.totalorder %s26, 0
      // Predicated region
      $region53: #{conv_up_with_skip_forward.8} parent=51 // pred_check
        %p4174 = pneg %p4173
      $region54: #{conv_up_with_skip_forward.8} parent=51 // pred_check_branch
        %4176 = sbr.rel (%p4174) target = $region56
      $region55: #{conv_up_with_skip_forward.8} parent=51 // pred_region
        %vm4177 = vcmask 7168
        %4178 = vst.msk [vmem:[%s579] sm:$0xff] %vm4177, %v4151
        %4179 = vst.msk [vmem:[%s579 + $0x8] sm:$0xff] %vm4177, %v4156
        %vm4180 = vcmask 15368
        %4181 = vst.msk [vmem:[%s579] sm:$0xff] %vm4180, %v4167
        %4182 = vst.msk [vmem:[%s579 + $0x8] sm:$0xff] %vm4180, %v4172
      $region56: #{conv_up_with_skip_forward.8} parent=51 // pred_fallthru
        _
      %p4183 = scmp.gt.s32.totalorder %s26, 0
      // Predicated region
      $region57: #{conv_up_with_skip_forward.8} parent=51 // pred_check
        %p4184 = pneg %p4183
      $region58: #{conv_up_with_skip_forward.8} parent=51 // pred_check_branch
        %4186 = sbr.rel (%p4184) target = $region60
      $region59: #{conv_up_with_skip_forward.8} parent=51 // pred_region
        %v4187 = vld [vmem:[%s579] sm:$0xff]
        %v4188 = vld [vmem:[%s579 + $0x8] sm:$0xff]
        %v4189 = vadd.f32 %v4187, %v4151
        %v4190 = vadd.f32 %v4188, %v4156
        %vm4191 = vcmask 7168
        %4192 = vst.msk [vmem:[%s579] sm:$0xff] %vm4191, %v4189
        %4193 = vst.msk [vmem:[%s579 + $0x8] sm:$0xff] %vm4191, %v4190
        %v4194 = vld [vmem:[%s579] sm:$0xff]
        %v4195 = vld [vmem:[%s579 + $0x8] sm:$0xff]
        %v4196 = vadd.f32 %v4194, %v4167
        %v4197 = vadd.f32 %v4195, %v4172
        %vm4198 = vcmask 15368
        %4199 = vst.msk [vmem:[%s579] sm:$0xff] %vm4198, %v4196
        %4200 = vst.msk [vmem:[%s579 + $0x8] sm:$0xff] %vm4198, %v4197
      $region60: #{conv_up_with_skip_forward.8} parent=51 // pred_fallthru
        _
      %p4201 = scmp.lt.s32.totalorder %s25, 1
      %s4202 = scalar_select %p4201, %s25, 1
      %p4203 = scmp.lt.s32.totalorder %s26, 15
      %s4204 = scalar_select %p4203, %s26, 15
      %s4205 = smul.addr %s4204, 6
      %s4206 = smul.addr %s4202, 96
      %s4207 = sadd.s32 %s4205, %s4206
      %s4208 = smul.addr %s4207, 4
      %s4209 = scalar_lea.vmem %s8, %s4208
      %p4210 = scmp.lt.s32.totalorder %s25, 1
      %s4211 = scalar_select %p4210, %s25, 1
      %s4212 = smul.addr %s4211, 2
      %s4213 = smul.addr %s4212, 8
      %s4214 = scalar_lea.vmem %s9, %s4213
      // Predicated region
      $region61: #{conv_up_with_skip_forward.8} parent=51 // pred_check
        %p4215 = pneg %p271
      $region62: #{conv_up_with_skip_forward.8} parent=51 // pred_check_branch
        %4217 = sbr.rel (%p4215) target = $region64
      $region63: #{conv_up_with_skip_forward.8} parent=51 // pred_region
        _
      $region64: #{conv_up_with_skip_forward.8} parent=51 // pred_fallthru
        _
      // Predicated region
      $region65: #{conv_up_with_skip_forward.8} parent=51 // pred_check
        %p4218 = pneg %p297
      $region66: #{conv_up_with_skip_forward.8} parent=51 // pred_check_branch
        %4220 = sbr.rel (%p4218) target = $region68
      $region67: #{conv_up_with_skip_forward.8} parent=51 // pred_region
        _
      $region68: #{conv_up_with_skip_forward.8} parent=51 // pred_fallthru
        _
    $region52: #{conv_up_with_skip_forward.8} parent=5 // pred_fallthru
      _
    %p4221 = scmp.le.s32.totalorder 2, %s16
    // Predicated region
    $region69: #{conv_up_with_skip_forward.8} parent=5 // pred_check
      %p4222 = pneg %p4221
    $region70: #{conv_up_with_skip_forward.8} parent=5 // pred_check_branch
      %4224 = sbr.rel (%p4222) target = $region72
    $region71: #{conv_up_with_skip_forward.8} parent=5 // pred_region
      %s4225 = ssub.s32 %s16, 2
      // Predicated region
      $region73: #{conv_up_with_skip_forward.8} parent=71 // pred_check
        %p4226 = pneg %p277
      $region74: #{conv_up_with_skip_forward.8} parent=71 // pred_check_branch
        %4228 = sbr.rel (%p4226) target = $region76
      $region75: #{conv_up_with_skip_forward.8} parent=71 // pred_region
        %p4229 = scmp.lt.s32.totalorder %s27, 1
        %s4230 = scalar_select %p4229, %s27, 1
        %p4231 = scmp.lt.s32.totalorder %s28, 15
        %s4232 = scalar_select %p4231, %s28, 15
        %s4233 = smul.addr %s4232, 6
        %s4234 = smul.addr %s4230, 96
        %s4235 = sadd.s32 %s4233, %s4234
        %s4236 = smul.addr %s4235, 4
        %s4237 = scalar_lea.vmem %s8, %s4236
      $region76: #{conv_up_with_skip_forward.8} parent=71 // pred_fallthru
        _
      // Predicated region
      $region77: #{conv_up_with_skip_forward.8} parent=71 // pred_check
        %p4238 = pneg %p303
      $region78: #{conv_up_with_skip_forward.8} parent=71 // pred_check_branch
        %4240 = sbr.rel (%p4238) target = $region80
      $region79: #{conv_up_with_skip_forward.8} parent=71 // pred_region
        %p4241 = scmp.lt.s32.totalorder %s27, 1
        %s4242 = scalar_select %p4241, %s27, 1
        %s4243 = smul.addr %s4242, 2
        %s4244 = smul.addr %s4243, 8
        %s4245 = scalar_lea.vmem %s9, %s4244
      $region80: #{conv_up_with_skip_forward.8} parent=71 // pred_fallthru
        _
    $region72: #{conv_up_with_skip_forward.8} parent=5 // pred_fallthru
      _
  $region6: #{conv_up_with_skip_forward.8} parent=0 // loop_footer
    %s20 = sadd.s32 1, %s16
  $region7: #{conv_up_with_skip_forward.8} parent=0 // loop_footer_branch
    %15 = sbr.rel target = $region3
  $region8: #{conv_up_with_skip_forward.8} parent=0 // loop_exit
    _

// kernel: conv_up_with_skip_forward.10
$region0: #{conv_up_with_skip_forward.10}
  #allocation0 [shape = 'u32[]', space=smem, size = 0x4, offset = 0x4, fixed_abs, tag = 'smem constant byte address 0x4 - core index']
  #allocation1 [shape = 'u32[72,128]{1,0:T(1,128)}', space=vmem, size = 0x9000, scoped, tag = 'internal scratch']
  %s0 = inlined_call_operand.vmem [shape: bf16[2,18,16,342], index: 0, kind: input, shape index: {}, may-alias: {0,1,2}]
  %s1 = inlined_call_operand.vmem [shape: bf16[2,18,16,342], index: 1, kind: input, shape index: {}, may-alias: {0,1,2}]
  %s2 = inlined_call_operand.vmem [shape: bf16[2,18,16,342], index: 2, kind: input, shape index: {}, may-alias: {0,1,2}]
  %s3 = inlined_call_operand.vmem [shape: bf16[16,432], index: 3, kind: input, shape index: {}]
  %s4 = inlined_call_operand.vmem [shape: f32[1,288], index: 4, kind: input, shape index: {}]
  %s5 = inlined_call_operand.vmem [shape: bf16[2,16,16,288], index: 5, kind: output, shape index: {0}]
  %s6 = inlined_call_operand.vmem [shape: f32[2,16,2], index: 6, kind: output, shape index: {1}]
  %7 = xla_tuple %s5, %s6
  %s8 = sld [smem:[#allocation0]]
  $region69: #{conv_up_with_skip_forward.10} parent=0
    _
  %s10 = ssub.s32 1, %s8
  %s11 = scalar_select 0, %s10, %s8
  loop: start=0, step=1, limit=34
  $region2: #{conv_up_with_skip_forward.10} parent=0 // loop_pre_header
    _
  $region3: #{conv_up_with_skip_forward.10} parent=0 // loop_header
    %s13 = sphi 0, %s17
    %p14 = scmp.ge.s32.totalorder %s13, 34
    %s20 = sphi 0, %s32
    %s21 = sphi 0, %s28
    %s22 = sphi 0, %s20
    %s23 = sphi 0, %s21
    %s24 = sphi 0, %s22
    %s25 = sphi 0, %s23
    %s37 = sphi 0, %s39
    %s40 = sphi 0, %s37
    %s41 = sphi 0, %s40
    %s57 = sphi 0, %s41
    %s67 = sphi 0, %s69
    %s70 = sphi 0, %s67
    %s71 = sphi 0, %s70
    %s87 = sphi 0, %s71
    %s97 = sphi 0, %s99
    %s100 = sphi 0, %s97
    %s101 = sphi 0, %s100
    %s117 = sphi 0, %s101
    %s121 = sphi 0, %s121
    %s123 = sphi 0, %s121
    %s124 = sphi 0, %s123
    %s138 = sphi 0, %s124
    %s142 = sphi 0, %s142
    %s144 = sphi 0, %s142
    %s145 = sphi 0, %s144
    %s159 = sphi 0, %s145
    %s167 = sphi 0, %s169
    %s170 = sphi 0, %s167
    %s171 = sphi 0, %s170
    %s187 = sphi 0, %s171
    %s193 = sphi 0, %s195
    %s196 = sphi 0, %s193
    %s197 = sphi 0, %s196
    %s213 = sphi 0, %s197
  $region4: #{conv_up_with_skip_forward.10} parent=0 // loop_header_branch
    %16 = sbr.rel (%p14) target = $region8
  $region5: #{conv_up_with_skip_forward.10} parent=0 // loop_body
    %s18 = ssub.s32 %s13, 1
    %s19 = ssub.s32 %s13, 2
    %s26 = sadd.s32 1, %s21
    %p27 = scmp.ge.s32.totalorder %s26, 16
    %s28 = scalar_select %p27, 0, %s26
    %s29 = sadd.s32 1, %s20
    %s30 = scalar_select %p27, %s29, %s20
    %p31 = scmp.ge.s32.totalorder %s30, 2
    %s32 = scalar_select %p31, 0, %s30
    %s33 = ssub.s32 %s20, %s32
    %s34 = ssub.s32 %s21, %s28
    %s35 = sor.u32 %s33, %s34
    %p36 = scmp.eq.s32.totalorder %s35, 0
    %s38 = sadd.s32 %s37, 1
    %s39 = scalar_select %p36, %s37, %s38
    %p42 = pneg %p36
    %p43 = scmp.eq.s32.totalorder %s13, 31
    %p44 = por %p42, %p43
    %p45 = scmp.ne.s32.totalorder %s37, %s40
    %p46 = scmp.eq.s32.totalorder %s13, 0
    %p47 = por %p45, %p46
    %p48 = scmp.ne.s32.totalorder %s37, %s40
    %p49 = scmp.eq.s32.totalorder %s18, 31
    %p50 = por %p48, %p49
    %p51 = scmp.ne.s32.totalorder %s40, %s41
    %p52 = scmp.eq.s32.totalorder %s18, 0
    %p53 = por %p51, %p52
    %p54 = scmp.ne.s32.totalorder %s40, %s41
    %p55 = scmp.eq.s32.totalorder %s19, 31
    %p56 = por %p54, %p55
    %p58 = scmp.ne.s32.totalorder %s41, %s57
    %p59 = scmp.eq.s32.totalorder %s19, 0
    %p60 = por %p58, %p59
    %s61 = sadd.s32 %s21, 1
    %s62 = sadd.s32 %s28, 1
    %s63 = ssub.s32 %s20, %s32
    %s64 = ssub.s32 %s61, %s62
    %s65 = sor.u32 %s63, %s64
    %p66 = scmp.eq.s32.totalorder %s65, 0
    %s68 = sadd.s32 %s67, 1
    %s69 = scalar_select %p66, %s67, %s68
    %p72 = pneg %p66
    %p73 = scmp.eq.s32.totalorder %s13, 31
    %p74 = por %p72, %p73
    %p75 = scmp.ne.s32.totalorder %s67, %s70
    %p76 = scmp.eq.s32.totalorder %s13, 0
    %p77 = por %p75, %p76
    %p78 = scmp.ne.s32.totalorder %s67, %s70
    %p79 = scmp.eq.s32.totalorder %s18, 31
    %p80 = por %p78, %p79
    %p81 = scmp.ne.s32.totalorder %s70, %s71
    %p82 = scmp.eq.s32.totalorder %s18, 0
    %p83 = por %p81, %p82
    %p84 = scmp.ne.s32.totalorder %s70, %s71
    %p85 = scmp.eq.s32.totalorder %s19, 31
    %p86 = por %p84, %p85
    %p88 = scmp.ne.s32.totalorder %s71, %s87
    %p89 = scmp.eq.s32.totalorder %s19, 0
    %p90 = por %p88, %p89
    %s91 = sadd.s32 %s21, 2
    %s92 = sadd.s32 %s28, 2
    %s93 = ssub.s32 %s20, %s32
    %s94 = ssub.s32 %s91, %s92
    %s95 = sor.u32 %s93, %s94
    %p96 = scmp.eq.s32.totalorder %s95, 0
    %s98 = sadd.s32 %s97, 1
    %s99 = scalar_select %p96, %s97, %s98
    %p102 = pneg %p96
    %p103 = scmp.eq.s32.totalorder %s13, 31
    %p104 = por %p102, %p103
    %p105 = scmp.ne.s32.totalorder %s97, %s100
    %p106 = scmp.eq.s32.totalorder %s13, 0
    %p107 = por %p105, %p106
    %p108 = scmp.ne.s32.totalorder %s97, %s100
    %p109 = scmp.eq.s32.totalorder %s18, 31
    %p110 = por %p108, %p109
    %p111 = scmp.ne.s32.totalorder %s100, %s101
    %p112 = scmp.eq.s32.totalorder %s18, 0
    %p113 = por %p111, %p112
    %p114 = scmp.ne.s32.totalorder %s100, %s101
    %p115 = scmp.eq.s32.totalorder %s19, 31
    %p116 = por %p114, %p115
    %p118 = scmp.ne.s32.totalorder %s101, %s117
    %p119 = scmp.eq.s32.totalorder %s19, 0
    %p120 = por %p118, %p119
    %s122 = sadd.s32 %s121, 1
    %p125 = scmp.eq.s32.totalorder %s13, 31
    %p126 = scmp.ne.s32.totalorder %s121, %s123
    %p127 = scmp.eq.s32.totalorder %s13, 0
    %p128 = por %p126, %p127
    %p129 = scmp.ne.s32.totalorder %s121, %s123
    %p130 = scmp.eq.s32.totalorder %s18, 31
    %p131 = por %p129, %p130
    %p132 = scmp.ne.s32.totalorder %s123, %s124
    %p133 = scmp.eq.s32.totalorder %s18, 0
    %p134 = por %p132, %p133
    %p135 = scmp.ne.s32.totalorder %s123, %s124
    %p136 = scmp.eq.s32.totalorder %s19, 31
    %p137 = por %p135, %p136
    %p139 = scmp.ne.s32.totalorder %s124, %s138
    %p140 = scmp.eq.s32.totalorder %s19, 0
    %p141 = por %p139, %p140
    %s143 = sadd.s32 %s142, 1
    %p146 = scmp.eq.s32.totalorder %s13, 31
    %p147 = scmp.ne.s32.totalorder %s142, %s144
    %p148 = scmp.eq.s32.totalorder %s13, 0
    %p149 = por %p147, %p148
    %p150 = scmp.ne.s32.totalorder %s142, %s144
    %p151 = scmp.eq.s32.totalorder %s18, 31
    %p152 = por %p150, %p151
    %p153 = scmp.ne.s32.totalorder %s144, %s145
    %p154 = scmp.eq.s32.totalorder %s18, 0
    %p155 = por %p153, %p154
    %p156 = scmp.ne.s32.totalorder %s144, %s145
    %p157 = scmp.eq.s32.totalorder %s19, 31
    %p158 = por %p156, %p157
    %p160 = scmp.ne.s32.totalorder %s145, %s159
    %p161 = scmp.eq.s32.totalorder %s19, 0
    %p162 = por %p160, %p161
    %s163 = ssub.s32 %s20, %s32
    %s164 = ssub.s32 %s21, %s28
    %s165 = sor.u32 %s163, %s164
    %p166 = scmp.eq.s32.totalorder %s165, 0
    %s168 = sadd.s32 %s167, 1
    %s169 = scalar_select %p166, %s167, %s168
    %p172 = pneg %p166
    %p173 = scmp.eq.s32.totalorder %s13, 31
    %p174 = por %p172, %p173
    %p175 = scmp.ne.s32.totalorder %s167, %s170
    %p176 = scmp.eq.s32.totalorder %s13, 0
    %p177 = por %p175, %p176
    %p178 = scmp.ne.s32.totalorder %s167, %s170
    %p179 = scmp.eq.s32.totalorder %s18, 31
    %p180 = por %p178, %p179
    %p181 = scmp.ne.s32.totalorder %s170, %s171
    %p182 = scmp.eq.s32.totalorder %s18, 0
    %p183 = por %p181, %p182
    %p184 = scmp.ne.s32.totalorder %s170, %s171
    %p185 = scmp.eq.s32.totalorder %s19, 31
    %p186 = por %p184, %p185
    %p188 = scmp.ne.s32.totalorder %s171, %s187
    %p189 = scmp.eq.s32.totalorder %s19, 0
    %p190 = por %p188, %p189
    %s191 = ssub.s32 %s20, %s32
    %p192 = scmp.eq.s32.totalorder %s191, 0
    %s194 = sadd.s32 %s193, 1
    %s195 = scalar_select %p192, %s193, %s194
    %p198 = pneg %p192
    %p199 = scmp.eq.s32.totalorder %s13, 31
    %p200 = por %p198, %p199
    %p201 = scmp.ne.s32.totalorder %s193, %s196
    %p202 = scmp.eq.s32.totalorder %s13, 0
    %p203 = por %p201, %p202
    %p204 = scmp.ne.s32.totalorder %s193, %s196
    %p205 = scmp.eq.s32.totalorder %s18, 31
    %p206 = por %p204, %p205
    %p207 = scmp.ne.s32.totalorder %s196, %s197
    %p208 = scmp.eq.s32.totalorder %s18, 0
    %p209 = por %p207, %p208
    %p210 = scmp.ne.s32.totalorder %s196, %s197
    %p211 = scmp.eq.s32.totalorder %s19, 31
    %p212 = por %p210, %p211
    %p214 = scmp.ne.s32.totalorder %s197, %s213
    %p215 = scmp.eq.s32.totalorder %s19, 0
    %p216 = por %p214, %p215
    %p217 = scmp.le.s32.totalorder 1, %s13
    %p218 = scmp.lt.s32.totalorder %s13, 33
    %p219 = pnand %p217, %p218
    %p220 = pneg %p219
    // Predicated region
    $region9: #{conv_up_with_skip_forward.10} parent=5 // pred_check
      _
    $region10: #{conv_up_with_skip_forward.10} parent=5 // pred_check_branch
      %222 = sbr.rel (%p219) target = $region12
    $region11: #{conv_up_with_skip_forward.10} parent=5 // pred_region
      %s223 = ssub.s32 %s13, 1
      // Predicated region
      $region13: #{conv_up_with_skip_forward.10} parent=11 // pred_check
        %p224 = pneg %p134
      $region14: #{conv_up_with_skip_forward.10} parent=11 // pred_check_branch
        %226 = sbr.rel (%p224) target = $region16
      $region15: #{conv_up_with_skip_forward.10} parent=11 // pred_region
        _
      $region16: #{conv_up_with_skip_forward.10} parent=11 // pred_fallthru
        _
      // Predicated region
      $region17: #{conv_up_with_skip_forward.10} parent=11 // pred_check
        %p227 = pneg %p155
      $region18: #{conv_up_with_skip_forward.10} parent=11 // pred_check_branch
        %229 = sbr.rel (%p227) target = $region20
      $region19: #{conv_up_with_skip_forward.10} parent=11 // pred_region
        _
      $region20: #{conv_up_with_skip_forward.10} parent=11 // pred_fallthru
        _
    $region12: #{conv_up_with_skip_forward.10} parent=5 // pred_fallthru
      _
    %p230 = scmp.lt.s32.totalorder %s13, 32
    // Predicated region
    $region21: #{conv_up_with_skip_forward.10} parent=5 // pred_check
      %p231 = pneg %p230
    $region22: #{conv_up_with_skip_forward.10} parent=5 // pred_check_branch
      %233 = sbr.rel (%p231) target = $region24
    $region23: #{conv_up_with_skip_forward.10} parent=5 // pred_region
      // Predicated region
      $region25: #{conv_up_with_skip_forward.10} parent=23 // pred_check
        %p234 = pneg %p47
      $region26: #{conv_up_with_skip_forward.10} parent=23 // pred_check_branch
        %236 = sbr.rel (%p234) target = $region28
      $region27: #{conv_up_with_skip_forward.10} parent=23 // pred_region
        %p237 = scmp.lt.s32.totalorder %s20, 1
        %s238 = scalar_select %p237, %s20, 1
        %p239 = scmp.lt.s32.totalorder %s21, 17
        %s240 = scalar_select %p239, %s21, 17
        %s241 = smul.addr %s240, 6
        %s242 = smul.addr %s238, 108
        %s243 = sadd.s32 %s241, %s242
        %s244 = smul.addr %s243, 4
        %s245 = scalar_lea.vmem %s0, %s244
      $region28: #{conv_up_with_skip_forward.10} parent=23 // pred_fallthru
        _
      // Predicated region
      $region29: #{conv_up_with_skip_forward.10} parent=23 // pred_check
        %p246 = pneg %p77
      $region30: #{conv_up_with_skip_forward.10} parent=23 // pred_check_branch
        %248 = sbr.rel (%p246) target = $region32
      $region31: #{conv_up_with_skip_forward.10} parent=23 // pred_region
        %s249 = sadd.s32 %s21, 1
        %p250 = scmp.lt.s32.totalorder %s20, 1
        %s251 = scalar_select %p250, %s20, 1
        %p252 = scmp.lt.s32.totalorder %s249, 17
        %s253 = scalar_select %p252, %s249, 17
        %s254 = smul.addr %s253, 6
        %s255 = smul.addr %s251, 108
        %s256 = sadd.s32 %s254, %s255
        %s257 = smul.addr %s256, 4
        %s258 = scalar_lea.vmem %s1, %s257
        %s259 = sadd.s32 %s21, 1
      $region32: #{conv_up_with_skip_forward.10} parent=23 // pred_fallthru
        _
      // Predicated region
      $region33: #{conv_up_with_skip_forward.10} parent=23 // pred_check
        %p260 = pneg %p107
      $region34: #{conv_up_with_skip_forward.10} parent=23 // pred_check_branch
        %262 = sbr.rel (%p260) target = $region36
      $region35: #{conv_up_with_skip_forward.10} parent=23 // pred_region
        %s263 = sadd.s32 %s21, 2
        %p264 = scmp.lt.s32.totalorder %s20, 1
        %s265 = scalar_select %p264, %s20, 1
        %p266 = scmp.lt.s32.totalorder %s263, 17
        %s267 = scalar_select %p266, %s263, 17
        %s268 = smul.addr %s267, 6
        %s269 = smul.addr %s265, 108
        %s270 = sadd.s32 %s268, %s269
        %s271 = smul.addr %s270, 4
        %s272 = scalar_lea.vmem %s2, %s271
        %s273 = sadd.s32 %s21, 2
      $region36: #{conv_up_with_skip_forward.10} parent=23 // pred_fallthru
        _
    $region24: #{conv_up_with_skip_forward.10} parent=5 // pred_fallthru
      _
    %p274 = scmp.le.s32.totalorder 1, %s13
    %p275 = scmp.lt.s32.totalorder %s13, 33
    %p276 = pnand %p274, %p275
    %p277 = pneg %p276
    // Predicated region
    $region37: #{conv_up_with_skip_forward.10} parent=5 // pred_check
      _
    $region38: #{conv_up_with_skip_forward.10} parent=5 // pred_check_branch
      %279 = sbr.rel (%p276) target = $region40
    $region39: #{conv_up_with_skip_forward.10} parent=5 // pred_region
      %s280 = ssub.s32 %s13, 1
      %p281 = scmp.lt.s32.totalorder %s22, 1
      %s282 = scalar_select %p281, %s22, 1
      %p283 = scmp.lt.s32.totalorder %s23, 17
      %s284 = scalar_select %p283, %s23, 17
      %s285 = smul.addr %s284, 6
      %s286 = smul.addr %s282, 108
      %s287 = sadd.s32 %s285, %s286
      %s288 = smul.addr %s287, 4
      %s289 = scalar_lea.vmem %s0, %s288
      %p290 = pneg %p53
      %p291 = pneg %p50
      %s292 = sadd.s32 %s23, 1
      %p293 = scmp.lt.s32.totalorder %s22, 1
      %s294 = scalar_select %p293, %s22, 1
      %p295 = scmp.lt.s32.totalorder %s292, 17
      %s296 = scalar_select %p295, %s292, 17
      %s297 = smul.addr %s296, 6
      %s298 = smul.addr %s294, 108
      %s299 = sadd.s32 %s297, %s298
      %s300 = smul.addr %s299, 4
      %s301 = scalar_lea.vmem %s1, %s300
      %p302 = pneg %p83
      %p303 = pneg %p80
      %s304 = sadd.s32 %s23, 2
      %p305 = scmp.lt.s32.totalorder %s22, 1
      %s306 = scalar_select %p305, %s22, 1
      %p307 = scmp.lt.s32.totalorder %s304, 17
      %s308 = scalar_select %p307, %s304, 17
      %s309 = smul.addr %s308, 6
      %s310 = smul.addr %s306, 108
      %s311 = sadd.s32 %s309, %s310
      %s312 = smul.addr %s311, 4
      %s313 = scalar_lea.vmem %s2, %s312
      %p314 = pneg %p113
      %p315 = pneg %p110
      %p316 = pneg %p134
      %p317 = pneg %p131
      %p318 = pneg %p155
      %p319 = pneg %p152
      %p320 = pneg %p183
      %p321 = pneg %p180
      %p322 = scmp.lt.s32.totalorder %s22, 1
      %s323 = scalar_select %p322, %s22, 1
      %p324 = scmp.lt.s32.totalorder %s23, 15
      %s325 = scalar_select %p324, %s23, 15
      %s326 = smul.addr %s325, 6
      %s327 = smul.addr %s323, 96
      %s328 = sadd.s32 %s326, %s327
      %s329 = smul.addr %s328, 4
      %s330 = scalar_lea.vmem %s5, %s329
      %p331 = pneg %p209
      %p332 = pneg %p206
      %p333 = scmp.lt.s32.totalorder %s22, 1
      %s334 = scalar_select %p333, %s22, 1
      %s335 = smul.addr %s334, 2
      %s336 = smul.addr %s335, 8
      %s337 = scalar_lea.vmem %s6, %s336
      %p338 = scmp.lt.s32.totalorder %s22, 1
      %s339 = scalar_select %p338, %s22, 1
      %p340 = scmp.lt.s32.totalorder %s23, 17
      %s341 = scalar_select %p340, %s23, 17
      %s342 = smul.addr %s341, 6
      %s343 = smul.addr %s339, 108
      %s344 = sadd.s32 %s342, %s343
      %s345 = smul.addr %s344, 4
      %s346 = scalar_lea.vmem %s0, %s345
      %s347 = sadd.s32 %s23, 1
      %p348 = scmp.lt.s32.totalorder %s22, 1
      %s349 = scalar_select %p348, %s22, 1
      %p350 = scmp.lt.s32.totalorder %s347, 17
      %s351 = scalar_select %p350, %s347, 17
      %s352 = smul.addr %s351, 6
      %s353 = smul.addr %s349, 108
      %s354 = sadd.s32 %s352, %s353
      %s355 = smul.addr %s354, 4
      %s356 = scalar_lea.vmem %s1, %s355
      %s357 = sadd.s32 %s23, 1
      %s358 = sadd.s32 %s23, 2
      %p359 = scmp.lt.s32.totalorder %s22, 1
      %s360 = scalar_select %p359, %s22, 1
      %p361 = scmp.lt.s32.totalorder %s358, 17
      %s362 = scalar_select %p361, %s358, 17
      %s363 = smul.addr %s362, 6
      %s364 = smul.addr %s360, 108
      %s365 = sadd.s32 %s363, %s364
      %s366 = smul.addr %s365, 4
      %s367 = scalar_lea.vmem %s2, %s366
      %s368 = sadd.s32 %s23, 2
      %p369 = scmp.lt.s32.totalorder %s22, 1
      %s370 = scalar_select %p369, %s22, 1
      %p371 = scmp.lt.s32.totalorder %s23, 15
      %s372 = scalar_select %p371, %s23, 15
      %s373 = smul.addr %s372, 6
      %s374 = smul.addr %s370, 96
      %s375 = sadd.s32 %s373, %s374
      %s376 = smul.addr %s375, 4
      %s377 = scalar_lea.vmem %s5, %s376
      %p378 = scmp.lt.s32.totalorder %s22, 1
      %s379 = scalar_select %p378, %s22, 1
      %s380 = smul.addr %s379, 2
      %s381 = smul.addr %s380, 8
      %s382 = scalar_lea.vmem %s6, %s381
      %v384 = vld [vmem:[%s346] sm:$0xff]
      %v385 = vld [vmem:[%s346 + $0x8] sm:$0xf]
      %v386 = vld [vmem:[%s346 + $0xc] sm:$0xff]
      %v387 = vld [vmem:[%s346 + $0x14] sm:$0xf]
      %v388 = vld [vmem:[%s3] sm:$0xf]
      %v389 = vld [vmem:[%s3 + $0x10] sm:$0xf]
      %v392 = vunpack.c.l.b16 %v388
      %v393 = vunpack.c.l.b16 %v389
      %v394 = vpack.c.b16 %v393, %v392
      %395 = vrot.lane.b32.xlu0 %v394, 112
      %v396 = vpop.permute.xlu0 %395
      %v401 = vunpack.c.l.b16 %v384
      %v402 = vunpack.c.h.b16 %v384
      %v403 = vunpack.c.l.b16 %v385
      %v404 = vunpack.c.l.b16 %v386
      %v405 = vunpack.c.h.b16 %v386
      %v406 = vunpack.c.l.b16 %v387
      %v407 = vpack.c.b16 %v404, %v401
      %v408 = vpack.c.b16 %v405, %v402
      %v409 = vpack.c.b16 %v406, %v403
      %410 = vrot.lane.b32.xlu0 %v407, 127
      %v411 = vpop.permute.xlu0 %410
      %412 = vrot.lane.b32.xlu0 %v408, 127
      %v413 = vpop.permute.xlu0 %412
      %414 = vrot.lane.b32.xlu0 %v409, 127
      %v415 = vpop.permute.xlu0 %414
      %vm416 = vcmask 1039360
      %v417 = vsel %vm416, %v411, %v413
      %v418 = vsel %vm416, %v413, %v415
      %vm422 = vcmask 130048
      %v424 = vsel %vm422, %v396, 0
      %426 = vmatpush.bf16.msra.mxu0 0
      %427 = vmatpush.bf16.msra.mxu0 0
      %428 = vmatpush.bf16.msra.mxu0 0
      %429 = vmatpush.bf16.msra.mxu0 0
      %430 = vmatpush.bf16.msra.mxu0 0
      %431 = vmatpush.bf16.msra.mxu0 0
      %432 = vmatpush.bf16.msra.mxu0 0
      %433 = vmatpush.bf16.msra.mxu0 %v417
      %434 = vmatmul.bf16.gmra.mxu0 %v424
      %v435 = vpop.f32.mrf.mxu0
      %v436 = vadd.f32 0.0, %v435
      %v437 = vpop.f32.mrf.mxu0
      %v438 = vadd.f32 0.0, %v437
      %439 = vdwg.mxu0
      %440 = vmatpush.bf16.msra.mxu0 0
      %441 = vmatpush.bf16.msra.mxu0 0
      %442 = vmatpush.bf16.msra.mxu0 0
      %443 = vmatpush.bf16.msra.mxu0 0
      %444 = vmatpush.bf16.msra.mxu0 0
      %445 = vmatpush.bf16.msra.mxu0 0
      %446 = vmatpush.bf16.msra.mxu0 0
      %447 = vmatpush.bf16.msra.mxu0 %v418
      %448 = vmatmul.bf16.gmra.mxu0 %v424
      %v449 = vpop.f32.mrf.mxu0
      %v450 = vadd.f32 0.0, %v449
      %v451 = vpop.f32.mrf.mxu0
      %v452 = vadd.f32 0.0, %v451
      %453 = vdwg.mxu0
      %454 = vmatpush.bf16.msra.mxu0 0
      %455 = vmatpush.bf16.msra.mxu0 0
      %456 = vmatpush.bf16.msra.mxu0 0
      %457 = vmatpush.bf16.msra.mxu0 0
      %458 = vmatpush.bf16.msra.mxu0 0
      %459 = vmatpush.bf16.msra.mxu0 0
      %460 = vmatpush.bf16.msra.mxu0 0
      %461 = vmatpush.bf16.msra.mxu0 %v415
      %462 = vmatmul.bf16.gmra.mxu0 %v424
      %v463 = vpop.f32.mrf.mxu0
      %v464 = vadd.f32 0.0, %v463
      %v465 = vpop.f32.mrf.mxu0
      %v466 = vadd.f32 0.0, %v465
      %467 = vdwg.mxu0
      %v472 = vsel %vm422, %v394, 0
      %474 = vmatpush.bf16.msra.mxu0 0
      %475 = vmatpush.bf16.msra.mxu0 0
      %476 = vmatpush.bf16.msra.mxu0 0
      %477 = vmatpush.bf16.msra.mxu0 0
      %478 = vmatpush.bf16.msra.mxu0 0
      %479 = vmatpush.bf16.msra.mxu0 0
      %480 = vmatpush.bf16.msra.mxu0 0
      %481 = vmatpush.bf16.msra.mxu0 %v407
      %482 = vmatmul.bf16.gmra.mxu0 %v472
      %v483 = vpop.f32.mrf.mxu0
      %v484 = vadd.f32 %v436, %v483
      %v485 = vpop.f32.mrf.mxu0
      %v486 = vadd.f32 %v438, %v485
      %487 = vdwg.mxu0
      %488 = vmatpush.bf16.msra.mxu0 0
      %489 = vmatpush.bf16.msra.mxu0 0
      %490 = vmatpush.bf16.msra.mxu0 0
      %491 = vmatpush.bf16.msra.mxu0 0
      %492 = vmatpush.bf16.msra.mxu0 0
      %493 = vmatpush.bf16.msra.mxu0 0
      %494 = vmatpush.bf16.msra.mxu0 0
      %495 = vmatpush.bf16.msra.mxu0 %v408
      %496 = vmatmul.bf16.gmra.mxu0 %v472
      %v497 = vpop.f32.mrf.mxu0
      %v498 = vadd.f32 %v450, %v497
      %v499 = vpop.f32.mrf.mxu0
      %v500 = vadd.f32 %v452, %v499
      %501 = vdwg.mxu0
      %502 = vmatpush.bf16.msra.mxu0 0
      %503 = vmatpush.bf16.msra.mxu0 0
      %504 = vmatpush.bf16.msra.mxu0 0
      %505 = vmatpush.bf16.msra.mxu0 0
      %506 = vmatpush.bf16.msra.mxu0 0
      %507 = vmatpush.bf16.msra.mxu0 0
      %508 = vmatpush.bf16.msra.mxu0 0
      %509 = vmatpush.bf16.msra.mxu0 %v409
      %510 = vmatmul.bf16.gmra.mxu0 %v472
      %v511 = vpop.f32.mrf.mxu0
      %v512 = vadd.f32 %v464, %v511
      %v513 = vpop.f32.mrf.mxu0
      %v514 = vadd.f32 %v466, %v513
      %515 = vdwg.mxu0
      %516 = vrot.lane.b32.xlu0 %v394, 96
      %v517 = vpop.permute.xlu0 %516
      %518 = vrot.lane.b32.xlu0 %v407, 126
      %v519 = vpop.permute.xlu0 %518
      %520 = vrot.lane.b32.xlu0 %v408, 126
      %v521 = vpop.permute.xlu0 %520
      %522 = vrot.lane.b32.xlu0 %v409, 126
      %v523 = vpop.permute.xlu0 %522
      %vm524 = vcmask 1031168
      %v525 = vsel %vm524, %v519, %v521
      %v526 = vsel %vm524, %v521, %v523
      %v531 = vsel %vm422, %v517, 0
      %533 = vmatpush.bf16.msra.mxu0 0
      %534 = vmatpush.bf16.msra.mxu0 0
      %535 = vmatpush.bf16.msra.mxu0 0
      %536 = vmatpush.bf16.msra.mxu0 0
      %537 = vmatpush.bf16.msra.mxu0 0
      %538 = vmatpush.bf16.msra.mxu0 0
      %539 = vmatpush.bf16.msra.mxu0 0
      %540 = vmatpush.bf16.msra.mxu0 %v525
      %541 = vmatmul.bf16.gmra.mxu0 %v531
      %v542 = vpop.f32.mrf.mxu0
      %v543 = vadd.f32 0.0, %v542
      %v544 = vpop.f32.mrf.mxu0
      %v545 = vadd.f32 0.0, %v544
      %546 = vdwg.mxu0
      %547 = vmatpush.bf16.msra.mxu0 0
      %548 = vmatpush.bf16.msra.mxu0 0
      %549 = vmatpush.bf16.msra.mxu0 0
      %550 = vmatpush.bf16.msra.mxu0 0
      %551 = vmatpush.bf16.msra.mxu0 0
      %552 = vmatpush.bf16.msra.mxu0 0
      %553 = vmatpush.bf16.msra.mxu0 0
      %554 = vmatpush.bf16.msra.mxu0 %v526
      %555 = vmatmul.bf16.gmra.mxu0 %v531
      %v556 = vpop.f32.mrf.mxu0
      %v557 = vadd.f32 0.0, %v556
      %v558 = vpop.f32.mrf.mxu0
      %v559 = vadd.f32 0.0, %v558
      %560 = vdwg.mxu0
      %561 = vmatpush.bf16.msra.mxu0 0
      %562 = vmatpush.bf16.msra.mxu0 0
      %563 = vmatpush.bf16.msra.mxu0 0
      %564 = vmatpush.bf16.msra.mxu0 0
      %565 = vmatpush.bf16.msra.mxu0 0
      %566 = vmatpush.bf16.msra.mxu0 0
      %567 = vmatpush.bf16.msra.mxu0 0
      %568 = vmatpush.bf16.msra.mxu0 %v523
      %569 = vmatmul.bf16.gmra.mxu0 %v531
      %v570 = vpop.f32.mrf.mxu0
      %v571 = vadd.f32 0.0, %v570
      %v572 = vpop.f32.mrf.mxu0
      %v573 = vadd.f32 0.0, %v572
      %574 = vdwg.mxu0
      %v575 = vadd.f32 %v484, %v543
      %v576 = vadd.f32 %v498, %v557
      %v577 = vadd.f32 %v512, %v571
      %v578 = vadd.f32 %v486, %v545
      %v579 = vadd.f32 %v500, %v559
      %v580 = vadd.f32 %v514, %v573
      %581 = vrot.lane.b32.xlu0 %v394, 80
      %v582 = vpop.permute.xlu0 %581
      %583 = vrot.lane.b32.xlu0 %v407, 110
      %v584 = vpop.permute.xlu0 %583
      %585 = vrot.lane.b32.xlu0 %v408, 110
      %v586 = vpop.permute.xlu0 %585
      %587 = vrot.lane.b32.xlu0 %v409, 110
      %v588 = vpop.permute.xlu0 %587
      %vm589 = vcmask 900096
      %v590 = vsel %vm589, %v584, %v586
      %v591 = vsel %vm589, %v586, %v588
      %v596 = vsel %vm422, %v582, 0
      %598 = vmatpush.bf16.msra.mxu0 0
      %599 = vmatpush.bf16.msra.mxu0 0
      %600 = vmatpush.bf16.msra.mxu0 0
      %601 = vmatpush.bf16.msra.mxu0 0
      %602 = vmatpush.bf16.msra.mxu0 0
      %603 = vmatpush.bf16.msra.mxu0 0
      %604 = vmatpush.bf16.msra.mxu0 0
      %605 = vmatpush.bf16.msra.mxu0 %v590
      %606 = vmatmul.bf16.gmra.mxu0 %v596
      %v607 = vpop.f32.mrf.mxu0
      %v608 = vadd.f32 0.0, %v607
      %v609 = vpop.f32.mrf.mxu0
      %v610 = vadd.f32 0.0, %v609
      %611 = vdwg.mxu0
      %612 = vmatpush.bf16.msra.mxu0 0
      %613 = vmatpush.bf16.msra.mxu0 0
      %614 = vmatpush.bf16.msra.mxu0 0
      %615 = vmatpush.bf16.msra.mxu0 0
      %616 = vmatpush.bf16.msra.mxu0 0
      %617 = vmatpush.bf16.msra.mxu0 0
      %618 = vmatpush.bf16.msra.mxu0 0
      %619 = vmatpush.bf16.msra.mxu0 %v591
      %620 = vmatmul.bf16.gmra.mxu0 %v596
      %v621 = vpop.f32.mrf.mxu0
      %v622 = vadd.f32 0.0, %v621
      %v623 = vpop.f32.mrf.mxu0
      %v624 = vadd.f32 0.0, %v623
      %625 = vdwg.mxu0
      %626 = vmatpush.bf16.msra.mxu0 0
      %627 = vmatpush.bf16.msra.mxu0 0
      %628 = vmatpush.bf16.msra.mxu0 0
      %629 = vmatpush.bf16.msra.mxu0 0
      %630 = vmatpush.bf16.msra.mxu0 0
      %631 = vmatpush.bf16.msra.mxu0 0
      %632 = vmatpush.bf16.msra.mxu0 0
      %633 = vmatpush.bf16.msra.mxu0 %v588
      %634 = vmatmul.bf16.gmra.mxu0 %v596
      %v635 = vpop.f32.mrf.mxu0
      %v636 = vadd.f32 0.0, %v635
      %v637 = vpop.f32.mrf.mxu0
      %v638 = vadd.f32 0.0, %v637
      %639 = vdwg.mxu0
      %v640 = vadd.f32 %v575, %v608
      %v641 = vadd.f32 %v576, %v622
      %v642 = vadd.f32 %v577, %v636
      %v643 = vadd.f32 %v578, %v610
      %v644 = vadd.f32 %v579, %v624
      %v645 = vadd.f32 %v580, %v638
      %646 = vrot.lane.b32.xlu0 %v394, 64
      %v647 = vpop.permute.xlu0 %646
      %648 = vrot.lane.b32.xlu0 %v407, 109
      %v649 = vpop.permute.xlu0 %648
      %650 = vrot.lane.b32.xlu0 %v408, 109
      %v651 = vpop.permute.xlu0 %650
      %652 = vrot.lane.b32.xlu0 %v409, 109
      %v653 = vpop.permute.xlu0 %652
      %vm654 = vcmask 891904
      %v655 = vsel %vm654, %v649, %v651
      %v656 = vsel %vm654, %v651, %v653
      %v661 = vsel %vm422, %v647, 0
      %663 = vmatpush.bf16.msra.mxu0 0
      %664 = vmatpush.bf16.msra.mxu0 0
      %665 = vmatpush.bf16.msra.mxu0 0
      %666 = vmatpush.bf16.msra.mxu0 0
      %667 = vmatpush.bf16.msra.mxu0 0
      %668 = vmatpush.bf16.msra.mxu0 0
      %669 = vmatpush.bf16.msra.mxu0 0
      %670 = vmatpush.bf16.msra.mxu0 %v655
      %671 = vmatmul.bf16.gmra.mxu0 %v661
      %v672 = vpop.f32.mrf.mxu0
      %v673 = vadd.f32 0.0, %v672
      %v674 = vpop.f32.mrf.mxu0
      %v675 = vadd.f32 0.0, %v674
      %676 = vdwg.mxu0
      %677 = vmatpush.bf16.msra.mxu0 0
      %678 = vmatpush.bf16.msra.mxu0 0
      %679 = vmatpush.bf16.msra.mxu0 0
      %680 = vmatpush.bf16.msra.mxu0 0
      %681 = vmatpush.bf16.msra.mxu0 0
      %682 = vmatpush.bf16.msra.mxu0 0
      %683 = vmatpush.bf16.msra.mxu0 0
      %684 = vmatpush.bf16.msra.mxu0 %v656
      %685 = vmatmul.bf16.gmra.mxu0 %v661
      %v686 = vpop.f32.mrf.mxu0
      %v687 = vadd.f32 0.0, %v686
      %v688 = vpop.f32.mrf.mxu0
      %v689 = vadd.f32 0.0, %v688
      %690 = vdwg.mxu0
      %691 = vmatpush.bf16.msra.mxu0 0
      %692 = vmatpush.bf16.msra.mxu0 0
      %693 = vmatpush.bf16.msra.mxu0 0
      %694 = vmatpush.bf16.msra.mxu0 0
      %695 = vmatpush.bf16.msra.mxu0 0
      %696 = vmatpush.bf16.msra.mxu0 0
      %697 = vmatpush.bf16.msra.mxu0 0
      %698 = vmatpush.bf16.msra.mxu0 %v653
      %699 = vmatmul.bf16.gmra.mxu0 %v661
      %v700 = vpop.f32.mrf.mxu0
      %v701 = vadd.f32 0.0, %v700
      %v702 = vpop.f32.mrf.mxu0
      %v703 = vadd.f32 0.0, %v702
      %704 = vdwg.mxu0
      %v705 = vadd.f32 %v640, %v673
      %v706 = vadd.f32 %v641, %v687
      %v707 = vadd.f32 %v642, %v701
      %v708 = vadd.f32 %v643, %v675
      %v709 = vadd.f32 %v644, %v689
      %v710 = vadd.f32 %v645, %v703
      %711 = vrot.lane.b32.xlu0 %v394, 48
      %v712 = vpop.permute.xlu0 %711
      %713 = vrot.lane.b32.xlu0 %v407, 108
      %v714 = vpop.permute.xlu0 %713
      %715 = vrot.lane.b32.xlu0 %v408, 108
      %v716 = vpop.permute.xlu0 %715
      %717 = vrot.lane.b32.xlu0 %v409, 108
      %v718 = vpop.permute.xlu0 %717
      %vm719 = vcmask 883712
      %v720 = vsel %vm719, %v714, %v716
      %v721 = vsel %vm719, %v716, %v718
      %v726 = vsel %vm422, %v712, 0
      %728 = vmatpush.bf16.msra.mxu0 0
      %729 = vmatpush.bf16.msra.mxu0 0
      %730 = vmatpush.bf16.msra.mxu0 0
      %731 = vmatpush.bf16.msra.mxu0 0
      %732 = vmatpush.bf16.msra.mxu0 0
      %733 = vmatpush.bf16.msra.mxu0 0
      %734 = vmatpush.bf16.msra.mxu0 0
      %735 = vmatpush.bf16.msra.mxu0 %v720
      %736 = vmatmul.bf16.gmra.mxu0 %v726
      %v737 = vpop.f32.mrf.mxu0
      %v738 = vadd.f32 0.0, %v737
      %v739 = vpop.f32.mrf.mxu0
      %v740 = vadd.f32 0.0, %v739
      %741 = vdwg.mxu0
      %742 = vmatpush.bf16.msra.mxu0 0
      %743 = vmatpush.bf16.msra.mxu0 0
      %744 = vmatpush.bf16.msra.mxu0 0
      %745 = vmatpush.bf16.msra.mxu0 0
      %746 = vmatpush.bf16.msra.mxu0 0
      %747 = vmatpush.bf16.msra.mxu0 0
      %748 = vmatpush.bf16.msra.mxu0 0
      %749 = vmatpush.bf16.msra.mxu0 %v721
      %750 = vmatmul.bf16.gmra.mxu0 %v726
      %v751 = vpop.f32.mrf.mxu0
      %v752 = vadd.f32 0.0, %v751
      %v753 = vpop.f32.mrf.mxu0
      %v754 = vadd.f32 0.0, %v753
      %755 = vdwg.mxu0
      %756 = vmatpush.bf16.msra.mxu0 0
      %757 = vmatpush.bf16.msra.mxu0 0
      %758 = vmatpush.bf16.msra.mxu0 0
      %759 = vmatpush.bf16.msra.mxu0 0
      %760 = vmatpush.bf16.msra.mxu0 0
      %761 = vmatpush.bf16.msra.mxu0 0
      %762 = vmatpush.bf16.msra.mxu0 0
      %763 = vmatpush.bf16.msra.mxu0 %v718
      %764 = vmatmul.bf16.gmra.mxu0 %v726
      %v765 = vpop.f32.mrf.mxu0
      %v766 = vadd.f32 0.0, %v765
      %v767 = vpop.f32.mrf.mxu0
      %v768 = vadd.f32 0.0, %v767
      %769 = vdwg.mxu0
      %v770 = vadd.f32 %v705, %v738
      %v771 = vadd.f32 %v706, %v752
      %v772 = vadd.f32 %v707, %v766
      %v773 = vadd.f32 %v708, %v740
      %v774 = vadd.f32 %v709, %v754
      %v775 = vadd.f32 %v710, %v768
      %776 = vrot.lane.b32.xlu0 %v394, 32
      %v777 = vpop.permute.xlu0 %776
      %778 = vrot.lane.b32.xlu0 %v407, 92
      %v779 = vpop.permute.xlu0 %778
      %780 = vrot.lane.b32.xlu0 %v408, 92
      %v781 = vpop.permute.xlu0 %780
      %782 = vrot.lane.b32.xlu0 %v409, 92
      %v783 = vpop.permute.xlu0 %782
      %vm784 = vcmask 752640
      %v785 = vsel %vm784, %v779, %v781
      %v786 = vsel %vm784, %v781, %v783
      %v791 = vsel %vm422, %v777, 0
      %793 = vmatpush.bf16.msra.mxu0 0
      %794 = vmatpush.bf16.msra.mxu0 0
      %795 = vmatpush.bf16.msra.mxu0 0
      %796 = vmatpush.bf16.msra.mxu0 0
      %797 = vmatpush.bf16.msra.mxu0 0
      %798 = vmatpush.bf16.msra.mxu0 0
      %799 = vmatpush.bf16.msra.mxu0 0
      %800 = vmatpush.bf16.msra.mxu0 %v785
      %801 = vmatmul.bf16.gmra.mxu0 %v791
      %v802 = vpop.f32.mrf.mxu0
      %v803 = vadd.f32 0.0, %v802
      %v804 = vpop.f32.mrf.mxu0
      %v805 = vadd.f32 0.0, %v804
      %806 = vdwg.mxu0
      %807 = vmatpush.bf16.msra.mxu0 0
      %808 = vmatpush.bf16.msra.mxu0 0
      %809 = vmatpush.bf16.msra.mxu0 0
      %810 = vmatpush.bf16.msra.mxu0 0
      %811 = vmatpush.bf16.msra.mxu0 0
      %812 = vmatpush.bf16.msra.mxu0 0
      %813 = vmatpush.bf16.msra.mxu0 0
      %814 = vmatpush.bf16.msra.mxu0 %v786
      %815 = vmatmul.bf16.gmra.mxu0 %v791
      %v816 = vpop.f32.mrf.mxu0
      %v817 = vadd.f32 0.0, %v816
      %v818 = vpop.f32.mrf.mxu0
      %v819 = vadd.f32 0.0, %v818
      %820 = vdwg.mxu0
      %821 = vmatpush.bf16.msra.mxu0 0
      %822 = vmatpush.bf16.msra.mxu0 0
      %823 = vmatpush.bf16.msra.mxu0 0
      %824 = vmatpush.bf16.msra.mxu0 0
      %825 = vmatpush.bf16.msra.mxu0 0
      %826 = vmatpush.bf16.msra.mxu0 0
      %827 = vmatpush.bf16.msra.mxu0 0
      %828 = vmatpush.bf16.msra.mxu0 %v783
      %829 = vmatmul.bf16.gmra.mxu0 %v791
      %v830 = vpop.f32.mrf.mxu0
      %v831 = vadd.f32 0.0, %v830
      %v832 = vpop.f32.mrf.mxu0
      %v833 = vadd.f32 0.0, %v832
      %834 = vdwg.mxu0
      %v835 = vadd.f32 %v770, %v803
      %v836 = vadd.f32 %v771, %v817
      %v837 = vadd.f32 %v772, %v831
      %v838 = vadd.f32 %v773, %v805
      %v839 = vadd.f32 %v774, %v819
      %v840 = vadd.f32 %v775, %v833
      %841 = vrot.lane.b32.xlu0 %v394, 16
      %v842 = vpop.permute.xlu0 %841
      %843 = vrot.lane.b32.xlu0 %v407, 91
      %v844 = vpop.permute.xlu0 %843
      %845 = vrot.lane.b32.xlu0 %v408, 91
      %v846 = vpop.permute.xlu0 %845
      %847 = vrot.lane.b32.xlu0 %v409, 91
      %v848 = vpop.permute.xlu0 %847
      %vm849 = vcmask 744448
      %v850 = vsel %vm849, %v844, %v846
      %v851 = vsel %vm849, %v846, %v848
      %v856 = vsel %vm422, %v842, 0
      %858 = vmatpush.bf16.msra.mxu0 0
      %859 = vmatpush.bf16.msra.mxu0 0
      %860 = vmatpush.bf16.msra.mxu0 0
      %861 = vmatpush.bf16.msra.mxu0 0
      %862 = vmatpush.bf16.msra.mxu0 0
      %863 = vmatpush.bf16.msra.mxu0 0
      %864 = vmatpush.bf16.msra.mxu0 0
      %865 = vmatpush.bf16.msra.mxu0 %v850
      %866 = vmatmul.bf16.gmra.mxu0 %v856
      %v867 = vpop.f32.mrf.mxu0
      %v868 = vadd.f32 0.0, %v867
      %v869 = vpop.f32.mrf.mxu0
      %v870 = vadd.f32 0.0, %v869
      %871 = vdwg.mxu0
      %872 = vmatpush.bf16.msra.mxu0 0
      %873 = vmatpush.bf16.msra.mxu0 0
      %874 = vmatpush.bf16.msra.mxu0 0
      %875 = vmatpush.bf16.msra.mxu0 0
      %876 = vmatpush.bf16.msra.mxu0 0
      %877 = vmatpush.bf16.msra.mxu0 0
      %878 = vmatpush.bf16.msra.mxu0 0
      %879 = vmatpush.bf16.msra.mxu0 %v851
      %880 = vmatmul.bf16.gmra.mxu0 %v856
      %v881 = vpop.f32.mrf.mxu0
      %v882 = vadd.f32 0.0, %v881
      %v883 = vpop.f32.mrf.mxu0
      %v884 = vadd.f32 0.0, %v883
      %885 = vdwg.mxu0
      %886 = vmatpush.bf16.msra.mxu0 0
      %887 = vmatpush.bf16.msra.mxu0 0
      %888 = vmatpush.bf16.msra.mxu0 0
      %889 = vmatpush.bf16.msra.mxu0 0
      %890 = vmatpush.bf16.msra.mxu0 0
      %891 = vmatpush.bf16.msra.mxu0 0
      %892 = vmatpush.bf16.msra.mxu0 0
      %893 = vmatpush.bf16.msra.mxu0 %v848
      %894 = vmatmul.bf16.gmra.mxu0 %v856
      %v895 = vpop.f32.mrf.mxu0
      %v896 = vadd.f32 0.0, %v895
      %v897 = vpop.f32.mrf.mxu0
      %v898 = vadd.f32 0.0, %v897
      %899 = vdwg.mxu0
      %v900 = vadd.f32 %v835, %v868
      %v901 = vadd.f32 %v836, %v882
      %v902 = vadd.f32 %v837, %v896
      %v903 = vadd.f32 %v838, %v870
      %v904 = vadd.f32 %v839, %v884
      %v905 = vadd.f32 %v840, %v898
      %v906 = vld [vmem:[%s3 + $0x4] sm:$0xf]
      %v907 = vld [vmem:[%s3 + $0x14] sm:$0xf]
      %v910 = vunpack.c.l.b16 %v906
      %v911 = vunpack.c.l.b16 %v907
      %v912 = vpack.c.b16 %v911, %v910
      %913 = vrot.lane.b32.xlu0 %v407, 90
      %v914 = vpop.permute.xlu0 %913
      %915 = vrot.lane.b32.xlu0 %v408, 90
      %v916 = vpop.permute.xlu0 %915
      %917 = vrot.lane.b32.xlu0 %v409, 90
      %v918 = vpop.permute.xlu0 %917
      %vm919 = vcmask 736256
      %v920 = vsel %vm919, %v914, %v916
      %v921 = vsel %vm919, %v916, %v918
      %v926 = vsel %vm422, %v912, 0
      %928 = vmatpush.bf16.msra.mxu0 0
      %929 = vmatpush.bf16.msra.mxu0 0
      %930 = vmatpush.bf16.msra.mxu0 0
      %931 = vmatpush.bf16.msra.mxu0 0
      %932 = vmatpush.bf16.msra.mxu0 0
      %933 = vmatpush.bf16.msra.mxu0 0
      %934 = vmatpush.bf16.msra.mxu0 0
      %935 = vmatpush.bf16.msra.mxu0 %v920
      %936 = vmatmul.bf16.gmra.mxu0 %v926
      %v937 = vpop.f32.mrf.mxu0
      %v938 = vadd.f32 0.0, %v937
      %v939 = vpop.f32.mrf.mxu0
      %v940 = vadd.f32 0.0, %v939
      %941 = vdwg.mxu0
      %942 = vmatpush.bf16.msra.mxu0 0
      %943 = vmatpush.bf16.msra.mxu0 0
      %944 = vmatpush.bf16.msra.mxu0 0
      %945 = vmatpush.bf16.msra.mxu0 0
      %946 = vmatpush.bf16.msra.mxu0 0
      %947 = vmatpush.bf16.msra.mxu0 0
      %948 = vmatpush.bf16.msra.mxu0 0
      %949 = vmatpush.bf16.msra.mxu0 %v921
      %950 = vmatmul.bf16.gmra.mxu0 %v926
      %v951 = vpop.f32.mrf.mxu0
      %v952 = vadd.f32 0.0, %v951
      %v953 = vpop.f32.mrf.mxu0
      %v954 = vadd.f32 0.0, %v953
      %955 = vdwg.mxu0
      %956 = vmatpush.bf16.msra.mxu0 0
      %957 = vmatpush.bf16.msra.mxu0 0
      %958 = vmatpush.bf16.msra.mxu0 0
      %959 = vmatpush.bf16.msra.mxu0 0
      %960 = vmatpush.bf16.msra.mxu0 0
      %961 = vmatpush.bf16.msra.mxu0 0
      %962 = vmatpush.bf16.msra.mxu0 0
      %963 = vmatpush.bf16.msra.mxu0 %v918
      %964 = vmatmul.bf16.gmra.mxu0 %v926
      %v965 = vpop.f32.mrf.mxu0
      %v966 = vadd.f32 0.0, %v965
      %v967 = vpop.f32.mrf.mxu0
      %v968 = vadd.f32 0.0, %v967
      %969 = vdwg.mxu0
      %v970 = vadd.f32 %v900, %v938
      %v971 = vadd.f32 %v901, %v952
      %v972 = vadd.f32 %v902, %v966
      %v973 = vadd.f32 %v903, %v940
      %v974 = vadd.f32 %v904, %v954
      %v975 = vadd.f32 %v905, %v968
      %v976 = vld [vmem:[%s356] sm:$0xff]
      %v977 = vld [vmem:[%s356 + $0x8] sm:$0xf]
      %v978 = vld [vmem:[%s356 + $0xc] sm:$0xff]
      %v979 = vld [vmem:[%s356 + $0x14] sm:$0xf]
      %980 = vrot.lane.b32.xlu0 %v912, 112
      %v981 = vpop.permute.xlu0 %980
      %v986 = vunpack.c.l.b16 %v976
      %v987 = vunpack.c.h.b16 %v976
      %v988 = vunpack.c.l.b16 %v977
      %v989 = vunpack.c.l.b16 %v978
      %v990 = vunpack.c.h.b16 %v978
      %v991 = vunpack.c.l.b16 %v979
      %v992 = vpack.c.b16 %v989, %v986
      %v993 = vpack.c.b16 %v990, %v987
      %v994 = vpack.c.b16 %v991, %v988
      %v999 = vsel %vm422, %v981, 0
      %1001 = vmatpush.bf16.msra.mxu0 0
      %1002 = vmatpush.bf16.msra.mxu0 0
      %1003 = vmatpush.bf16.msra.mxu0 0
      %1004 = vmatpush.bf16.msra.mxu0 0
      %1005 = vmatpush.bf16.msra.mxu0 0
      %1006 = vmatpush.bf16.msra.mxu0 0
      %1007 = vmatpush.bf16.msra.mxu0 0
      %1008 = vmatpush.bf16.msra.mxu0 %v992
      %1009 = vmatmul.bf16.gmra.mxu0 %v999
      %v1010 = vpop.f32.mrf.mxu0
      %v1011 = vadd.f32 0.0, %v1010
      %v1012 = vpop.f32.mrf.mxu0
      %v1013 = vadd.f32 0.0, %v1012
      %1014 = vdwg.mxu0
      %1015 = vmatpush.bf16.msra.mxu0 0
      %1016 = vmatpush.bf16.msra.mxu0 0
      %1017 = vmatpush.bf16.msra.mxu0 0
      %1018 = vmatpush.bf16.msra.mxu0 0
      %1019 = vmatpush.bf16.msra.mxu0 0
      %1020 = vmatpush.bf16.msra.mxu0 0
      %1021 = vmatpush.bf16.msra.mxu0 0
      %1022 = vmatpush.bf16.msra.mxu0 %v993
      %1023 = vmatmul.bf16.gmra.mxu0 %v999
      %v1024 = vpop.f32.mrf.mxu0
      %v1025 = vadd.f32 0.0, %v1024
      %v1026 = vpop.f32.mrf.mxu0
      %v1027 = vadd.f32 0.0, %v1026
      %1028 = vdwg.mxu0
      %1029 = vmatpush.bf16.msra.mxu0 0
      %1030 = vmatpush.bf16.msra.mxu0 0
      %1031 = vmatpush.bf16.msra.mxu0 0
      %1032 = vmatpush.bf16.msra.mxu0 0
      %1033 = vmatpush.bf16.msra.mxu0 0
      %1034 = vmatpush.bf16.msra.mxu0 0
      %1035 = vmatpush.bf16.msra.mxu0 0
      %1036 = vmatpush.bf16.msra.mxu0 %v994
      %1037 = vmatmul.bf16.gmra.mxu0 %v999
      %v1038 = vpop.f32.mrf.mxu0
      %v1039 = vadd.f32 0.0, %v1038
      %v1040 = vpop.f32.mrf.mxu0
      %v1041 = vadd.f32 0.0, %v1040
      %1042 = vdwg.mxu0
      %v1043 = vadd.f32 %v970, %v1011
      %v1044 = vadd.f32 %v971, %v1025
      %v1045 = vadd.f32 %v972, %v1039
      %v1046 = vadd.f32 %v973, %v1013
      %v1047 = vadd.f32 %v974, %v1027
      %v1048 = vadd.f32 %v975, %v1041
      %1049 = vrot.lane.b32.xlu0 %v912, 96
      %v1050 = vpop.permute.xlu0 %1049
      %1051 = vrot.lane.b32.xlu0 %v992, 127
      %v1052 = vpop.permute.xlu0 %1051
      %1053 = vrot.lane.b32.xlu0 %v993, 127
      %v1054 = vpop.permute.xlu0 %1053
      %1055 = vrot.lane.b32.xlu0 %v994, 127
      %v1056 = vpop.permute.xlu0 %1055
      %v1057 = vsel %vm416, %v1052, %v1054
      %v1058 = vsel %vm416, %v1054, %v1056
      %v1063 = vsel %vm422, %v1050, 0
      %1065 = vmatpush.bf16.msra.mxu0 0
      %1066 = vmatpush.bf16.msra.mxu0 0
      %1067 = vmatpush.bf16.msra.mxu0 0
      %1068 = vmatpush.bf16.msra.mxu0 0
      %1069 = vmatpush.bf16.msra.mxu0 0
      %1070 = vmatpush.bf16.msra.mxu0 0
      %1071 = vmatpush.bf16.msra.mxu0 0
      %1072 = vmatpush.bf16.msra.mxu0 %v1057
      %1073 = vmatmul.bf16.gmra.mxu0 %v1063
      %v1074 = vpop.f32.mrf.mxu0
      %v1075 = vadd.f32 0.0, %v1074
      %v1076 = vpop.f32.mrf.mxu0
      %v1077 = vadd.f32 0.0, %v1076
      %1078 = vdwg.mxu0
      %1079 = vmatpush.bf16.msra.mxu0 0
      %1080 = vmatpush.bf16.msra.mxu0 0
      %1081 = vmatpush.bf16.msra.mxu0 0
      %1082 = vmatpush.bf16.msra.mxu0 0
      %1083 = vmatpush.bf16.msra.mxu0 0
      %1084 = vmatpush.bf16.msra.mxu0 0
      %1085 = vmatpush.bf16.msra.mxu0 0
      %1086 = vmatpush.bf16.msra.mxu0 %v1058
      %1087 = vmatmul.bf16.gmra.mxu0 %v1063
      %v1088 = vpop.f32.mrf.mxu0
      %v1089 = vadd.f32 0.0, %v1088
      %v1090 = vpop.f32.mrf.mxu0
      %v1091 = vadd.f32 0.0, %v1090
      %1092 = vdwg.mxu0
      %1093 = vmatpush.bf16.msra.mxu0 0
      %1094 = vmatpush.bf16.msra.mxu0 0
      %1095 = vmatpush.bf16.msra.mxu0 0
      %1096 = vmatpush.bf16.msra.mxu0 0
      %1097 = vmatpush.bf16.msra.mxu0 0
      %1098 = vmatpush.bf16.msra.mxu0 0
      %1099 = vmatpush.bf16.msra.mxu0 0
      %1100 = vmatpush.bf16.msra.mxu0 %v1056
      %1101 = vmatmul.bf16.gmra.mxu0 %v1063
      %v1102 = vpop.f32.mrf.mxu0
      %v1103 = vadd.f32 0.0, %v1102
      %v1104 = vpop.f32.mrf.mxu0
      %v1105 = vadd.f32 0.0, %v1104
      %1106 = vdwg.mxu0
      %v1107 = vadd.f32 %v1043, %v1075
      %v1108 = vadd.f32 %v1044, %v1089
      %v1109 = vadd.f32 %v1045, %v1103
      %v1110 = vadd.f32 %v1046, %v1077
      %v1111 = vadd.f32 %v1047, %v1091
      %v1112 = vadd.f32 %v1048, %v1105
      %1113 = vrot.lane.b32.xlu0 %v912, 80
      %v1114 = vpop.permute.xlu0 %1113
      %1115 = vrot.lane.b32.xlu0 %v992, 126
      %v1116 = vpop.permute.xlu0 %1115
      %1117 = vrot.lane.b32.xlu0 %v993, 126
      %v1118 = vpop.permute.xlu0 %1117
      %1119 = vrot.lane.b32.xlu0 %v994, 126
      %v1120 = vpop.permute.xlu0 %1119
      %v1121 = vsel %vm524, %v1116, %v1118
      %v1122 = vsel %vm524, %v1118, %v1120
      %v1127 = vsel %vm422, %v1114, 0
      %1129 = vmatpush.bf16.msra.mxu0 0
      %1130 = vmatpush.bf16.msra.mxu0 0
      %1131 = vmatpush.bf16.msra.mxu0 0
      %1132 = vmatpush.bf16.msra.mxu0 0
      %1133 = vmatpush.bf16.msra.mxu0 0
      %1134 = vmatpush.bf16.msra.mxu0 0
      %1135 = vmatpush.bf16.msra.mxu0 0
      %1136 = vmatpush.bf16.msra.mxu0 %v1121
      %1137 = vmatmul.bf16.gmra.mxu0 %v1127
      %v1138 = vpop.f32.mrf.mxu0
      %v1139 = vadd.f32 0.0, %v1138
      %v1140 = vpop.f32.mrf.mxu0
      %v1141 = vadd.f32 0.0, %v1140
      %1142 = vdwg.mxu0
      %1143 = vmatpush.bf16.msra.mxu0 0
      %1144 = vmatpush.bf16.msra.mxu0 0
      %1145 = vmatpush.bf16.msra.mxu0 0
      %1146 = vmatpush.bf16.msra.mxu0 0
      %1147 = vmatpush.bf16.msra.mxu0 0
      %1148 = vmatpush.bf16.msra.mxu0 0
      %1149 = vmatpush.bf16.msra.mxu0 0
      %1150 = vmatpush.bf16.msra.mxu0 %v1122
      %1151 = vmatmul.bf16.gmra.mxu0 %v1127
      %v1152 = vpop.f32.mrf.mxu0
      %v1153 = vadd.f32 0.0, %v1152
      %v1154 = vpop.f32.mrf.mxu0
      %v1155 = vadd.f32 0.0, %v1154
      %1156 = vdwg.mxu0
      %1157 = vmatpush.bf16.msra.mxu0 0
      %1158 = vmatpush.bf16.msra.mxu0 0
      %1159 = vmatpush.bf16.msra.mxu0 0
      %1160 = vmatpush.bf16.msra.mxu0 0
      %1161 = vmatpush.bf16.msra.mxu0 0
      %1162 = vmatpush.bf16.msra.mxu0 0
      %1163 = vmatpush.bf16.msra.mxu0 0
      %1164 = vmatpush.bf16.msra.mxu0 %v1120
      %1165 = vmatmul.bf16.gmra.mxu0 %v1127
      %v1166 = vpop.f32.mrf.mxu0
      %v1167 = vadd.f32 0.0, %v1166
      %v1168 = vpop.f32.mrf.mxu0
      %v1169 = vadd.f32 0.0, %v1168
      %1170 = vdwg.mxu0
      %v1171 = vadd.f32 %v1107, %v1139
      %v1172 = vadd.f32 %v1108, %v1153
      %v1173 = vadd.f32 %v1109, %v1167
      %v1174 = vadd.f32 %v1110, %v1141
      %v1175 = vadd.f32 %v1111, %v1155
      %v1176 = vadd.f32 %v1112, %v1169
      %1177 = vrot.lane.b32.xlu0 %v912, 64
      %v1178 = vpop.permute.xlu0 %1177
      %1179 = vrot.lane.b32.xlu0 %v992, 110
      %v1180 = vpop.permute.xlu0 %1179
      %1181 = vrot.lane.b32.xlu0 %v993, 110
      %v1182 = vpop.permute.xlu0 %1181
      %1183 = vrot.lane.b32.xlu0 %v994, 110
      %v1184 = vpop.permute.xlu0 %1183
      %v1185 = vsel %vm589, %v1180, %v1182
      %v1186 = vsel %vm589, %v1182, %v1184
      %v1191 = vsel %vm422, %v1178, 0
      %1193 = vmatpush.bf16.msra.mxu0 0
      %1194 = vmatpush.bf16.msra.mxu0 0
      %1195 = vmatpush.bf16.msra.mxu0 0
      %1196 = vmatpush.bf16.msra.mxu0 0
      %1197 = vmatpush.bf16.msra.mxu0 0
      %1198 = vmatpush.bf16.msra.mxu0 0
      %1199 = vmatpush.bf16.msra.mxu0 0
      %1200 = vmatpush.bf16.msra.mxu0 %v1185
      %1201 = vmatmul.bf16.gmra.mxu0 %v1191
      %v1202 = vpop.f32.mrf.mxu0
      %v1203 = vadd.f32 0.0, %v1202
      %v1204 = vpop.f32.mrf.mxu0
      %v1205 = vadd.f32 0.0, %v1204
      %1206 = vdwg.mxu0
      %1207 = vmatpush.bf16.msra.mxu0 0
      %1208 = vmatpush.bf16.msra.mxu0 0
      %1209 = vmatpush.bf16.msra.mxu0 0
      %1210 = vmatpush.bf16.msra.mxu0 0
      %1211 = vmatpush.bf16.msra.mxu0 0
      %1212 = vmatpush.bf16.msra.mxu0 0
      %1213 = vmatpush.bf16.msra.mxu0 0
      %1214 = vmatpush.bf16.msra.mxu0 %v1186
      %1215 = vmatmul.bf16.gmra.mxu0 %v1191
      %v1216 = vpop.f32.mrf.mxu0
      %v1217 = vadd.f32 0.0, %v1216
      %v1218 = vpop.f32.mrf.mxu0
      %v1219 = vadd.f32 0.0, %v1218
      %1220 = vdwg.mxu0
      %1221 = vmatpush.bf16.msra.mxu0 0
      %1222 = vmatpush.bf16.msra.mxu0 0
      %1223 = vmatpush.bf16.msra.mxu0 0
      %1224 = vmatpush.bf16.msra.mxu0 0
      %1225 = vmatpush.bf16.msra.mxu0 0
      %1226 = vmatpush.bf16.msra.mxu0 0
      %1227 = vmatpush.bf16.msra.mxu0 0
      %1228 = vmatpush.bf16.msra.mxu0 %v1184
      %1229 = vmatmul.bf16.gmra.mxu0 %v1191
      %v1230 = vpop.f32.mrf.mxu0
      %v1231 = vadd.f32 0.0, %v1230
      %v1232 = vpop.f32.mrf.mxu0
      %v1233 = vadd.f32 0.0, %v1232
      %1234 = vdwg.mxu0
      %v1235 = vadd.f32 %v1171, %v1203
      %v1236 = vadd.f32 %v1172, %v1217
      %v1237 = vadd.f32 %v1173, %v1231
      %v1238 = vadd.f32 %v1174, %v1205
      %v1239 = vadd.f32 %v1175, %v1219
      %v1240 = vadd.f32 %v1176, %v1233
      %1241 = vrot.lane.b32.xlu0 %v912, 48
      %v1242 = vpop.permute.xlu0 %1241
      %1243 = vrot.lane.b32.xlu0 %v992, 109
      %v1244 = vpop.permute.xlu0 %1243
      %1245 = vrot.lane.b32.xlu0 %v993, 109
      %v1246 = vpop.permute.xlu0 %1245
      %1247 = vrot.lane.b32.xlu0 %v994, 109
      %v1248 = vpop.permute.xlu0 %1247
      %v1249 = vsel %vm654, %v1244, %v1246
      %v1250 = vsel %vm654, %v1246, %v1248
      %v1255 = vsel %vm422, %v1242, 0
      %1257 = vmatpush.bf16.msra.mxu0 0
      %1258 = vmatpush.bf16.msra.mxu0 0
      %1259 = vmatpush.bf16.msra.mxu0 0
      %1260 = vmatpush.bf16.msra.mxu0 0
      %1261 = vmatpush.bf16.msra.mxu0 0
      %1262 = vmatpush.bf16.msra.mxu0 0
      %1263 = vmatpush.bf16.msra.mxu0 0
      %1264 = vmatpush.bf16.msra.mxu0 %v1249
      %1265 = vmatmul.bf16.gmra.mxu0 %v1255
      %v1266 = vpop.f32.mrf.mxu0
      %v1267 = vadd.f32 0.0, %v1266
      %v1268 = vpop.f32.mrf.mxu0
      %v1269 = vadd.f32 0.0, %v1268
      %1270 = vdwg.mxu0
      %1271 = vmatpush.bf16.msra.mxu0 0
      %1272 = vmatpush.bf16.msra.mxu0 0
      %1273 = vmatpush.bf16.msra.mxu0 0
      %1274 = vmatpush.bf16.msra.mxu0 0
      %1275 = vmatpush.bf16.msra.mxu0 0
      %1276 = vmatpush.bf16.msra.mxu0 0
      %1277 = vmatpush.bf16.msra.mxu0 0
      %1278 = vmatpush.bf16.msra.mxu0 %v1250
      %1279 = vmatmul.bf16.gmra.mxu0 %v1255
      %v1280 = vpop.f32.mrf.mxu0
      %v1281 = vadd.f32 0.0, %v1280
      %v1282 = vpop.f32.mrf.mxu0
      %v1283 = vadd.f32 0.0, %v1282
      %1284 = vdwg.mxu0
      %1285 = vmatpush.bf16.msra.mxu0 0
      %1286 = vmatpush.bf16.msra.mxu0 0
      %1287 = vmatpush.bf16.msra.mxu0 0
      %1288 = vmatpush.bf16.msra.mxu0 0
      %1289 = vmatpush.bf16.msra.mxu0 0
      %1290 = vmatpush.bf16.msra.mxu0 0
      %1291 = vmatpush.bf16.msra.mxu0 0
      %1292 = vmatpush.bf16.msra.mxu0 %v1248
      %1293 = vmatmul.bf16.gmra.mxu0 %v1255
      %v1294 = vpop.f32.mrf.mxu0
      %v1295 = vadd.f32 0.0, %v1294
      %v1296 = vpop.f32.mrf.mxu0
      %v1297 = vadd.f32 0.0, %v1296
      %1298 = vdwg.mxu0
      %v1299 = vadd.f32 %v1235, %v1267
      %v1300 = vadd.f32 %v1236, %v1281
      %v1301 = vadd.f32 %v1237, %v1295
      %v1302 = vadd.f32 %v1238, %v1269
      %v1303 = vadd.f32 %v1239, %v1283
      %v1304 = vadd.f32 %v1240, %v1297
      %1305 = vrot.lane.b32.xlu0 %v912, 32
      %v1306 = vpop.permute.xlu0 %1305
      %1307 = vrot.lane.b32.xlu0 %v992, 108
      %v1308 = vpop.permute.xlu0 %1307
      %1309 = vrot.lane.b32.xlu0 %v993, 108
      %v1310 = vpop.permute.xlu0 %1309
      %1311 = vrot.lane.b32.xlu0 %v994, 108
      %v1312 = vpop.permute.xlu0 %1311
      %v1313 = vsel %vm719, %v1308, %v1310
      %v1314 = vsel %vm719, %v1310, %v1312
      %v1319 = vsel %vm422, %v1306, 0
      %1321 = vmatpush.bf16.msra.mxu0 0
      %1322 = vmatpush.bf16.msra.mxu0 0
      %1323 = vmatpush.bf16.msra.mxu0 0
      %1324 = vmatpush.bf16.msra.mxu0 0
      %1325 = vmatpush.bf16.msra.mxu0 0
      %1326 = vmatpush.bf16.msra.mxu0 0
      %1327 = vmatpush.bf16.msra.mxu0 0
      %1328 = vmatpush.bf16.msra.mxu0 %v1313
      %1329 = vmatmul.bf16.gmra.mxu0 %v1319
      %v1330 = vpop.f32.mrf.mxu0
      %v1331 = vadd.f32 0.0, %v1330
      %v1332 = vpop.f32.mrf.mxu0
      %v1333 = vadd.f32 0.0, %v1332
      %1334 = vdwg.mxu0
      %1335 = vmatpush.bf16.msra.mxu0 0
      %1336 = vmatpush.bf16.msra.mxu0 0
      %1337 = vmatpush.bf16.msra.mxu0 0
      %1338 = vmatpush.bf16.msra.mxu0 0
      %1339 = vmatpush.bf16.msra.mxu0 0
      %1340 = vmatpush.bf16.msra.mxu0 0
      %1341 = vmatpush.bf16.msra.mxu0 0
      %1342 = vmatpush.bf16.msra.mxu0 %v1314
      %1343 = vmatmul.bf16.gmra.mxu0 %v1319
      %v1344 = vpop.f32.mrf.mxu0
      %v1345 = vadd.f32 0.0, %v1344
      %v1346 = vpop.f32.mrf.mxu0
      %v1347 = vadd.f32 0.0, %v1346
      %1348 = vdwg.mxu0
      %1349 = vmatpush.bf16.msra.mxu0 0
      %1350 = vmatpush.bf16.msra.mxu0 0
      %1351 = vmatpush.bf16.msra.mxu0 0
      %1352 = vmatpush.bf16.msra.mxu0 0
      %1353 = vmatpush.bf16.msra.mxu0 0
      %1354 = vmatpush.bf16.msra.mxu0 0
      %1355 = vmatpush.bf16.msra.mxu0 0
      %1356 = vmatpush.bf16.msra.mxu0 %v1312
      %1357 = vmatmul.bf16.gmra.mxu0 %v1319
      %v1358 = vpop.f32.mrf.mxu0
      %v1359 = vadd.f32 0.0, %v1358
      %v1360 = vpop.f32.mrf.mxu0
      %v1361 = vadd.f32 0.0, %v1360
      %1362 = vdwg.mxu0
      %v1363 = vadd.f32 %v1299, %v1331
      %v1364 = vadd.f32 %v1300, %v1345
      %v1365 = vadd.f32 %v1301, %v1359
      %v1366 = vadd.f32 %v1302, %v1333
      %v1367 = vadd.f32 %v1303, %v1347
      %v1368 = vadd.f32 %v1304, %v1361
      %1369 = vrot.lane.b32.xlu0 %v912, 16
      %v1370 = vpop.permute.xlu0 %1369
      %1371 = vrot.lane.b32.xlu0 %v992, 92
      %v1372 = vpop.permute.xlu0 %1371
      %1373 = vrot.lane.b32.xlu0 %v993, 92
      %v1374 = vpop.permute.xlu0 %1373
      %1375 = vrot.lane.b32.xlu0 %v994, 92
      %v1376 = vpop.permute.xlu0 %1375
      %v1377 = vsel %vm784, %v1372, %v1374
      %v1378 = vsel %vm784, %v1374, %v1376
      %v1383 = vsel %vm422, %v1370, 0
      %1385 = vmatpush.bf16.msra.mxu0 0
      %1386 = vmatpush.bf16.msra.mxu0 0
      %1387 = vmatpush.bf16.msra.mxu0 0
      %1388 = vmatpush.bf16.msra.mxu0 0
      %1389 = vmatpush.bf16.msra.mxu0 0
      %1390 = vmatpush.bf16.msra.mxu0 0
      %1391 = vmatpush.bf16.msra.mxu0 0
      %1392 = vmatpush.bf16.msra.mxu0 %v1377
      %1393 = vmatmul.bf16.gmra.mxu0 %v1383
      %v1394 = vpop.f32.mrf.mxu0
      %v1395 = vadd.f32 0.0, %v1394
      %v1396 = vpop.f32.mrf.mxu0
      %v1397 = vadd.f32 0.0, %v1396
      %1398 = vdwg.mxu0
      %1399 = vmatpush.bf16.msra.mxu0 0
      %1400 = vmatpush.bf16.msra.mxu0 0
      %1401 = vmatpush.bf16.msra.mxu0 0
      %1402 = vmatpush.bf16.msra.mxu0 0
      %1403 = vmatpush.bf16.msra.mxu0 0
      %1404 = vmatpush.bf16.msra.mxu0 0
      %1405 = vmatpush.bf16.msra.mxu0 0
      %1406 = vmatpush.bf16.msra.mxu0 %v1378
      %1407 = vmatmul.bf16.gmra.mxu0 %v1383
      %v1408 = vpop.f32.mrf.mxu0
      %v1409 = vadd.f32 0.0, %v1408
      %v1410 = vpop.f32.mrf.mxu0
      %v1411 = vadd.f32 0.0, %v1410
      %1412 = vdwg.mxu0
      %1413 = vmatpush.bf16.msra.mxu0 0
      %1414 = vmatpush.bf16.msra.mxu0 0
      %1415 = vmatpush.bf16.msra.mxu0 0
      %1416 = vmatpush.bf16.msra.mxu0 0
      %1417 = vmatpush.bf16.msra.mxu0 0
      %1418 = vmatpush.bf16.msra.mxu0 0
      %1419 = vmatpush.bf16.msra.mxu0 0
      %1420 = vmatpush.bf16.msra.mxu0 %v1376
      %1421 = vmatmul.bf16.gmra.mxu0 %v1383
      %v1422 = vpop.f32.mrf.mxu0
      %v1423 = vadd.f32 0.0, %v1422
      %v1424 = vpop.f32.mrf.mxu0
      %v1425 = vadd.f32 0.0, %v1424
      %1426 = vdwg.mxu0
      %v1427 = vadd.f32 %v1363, %v1395
      %v1428 = vadd.f32 %v1364, %v1409
      %v1429 = vadd.f32 %v1365, %v1423
      %v1430 = vadd.f32 %v1366, %v1397
      %v1431 = vadd.f32 %v1367, %v1411
      %v1432 = vadd.f32 %v1368, %v1425
      %v1433 = vld [vmem:[%s3 + $0x8] sm:$0xf]
      %v1434 = vld [vmem:[%s3 + $0x18] sm:$0xf]
      %v1437 = vunpack.c.l.b16 %v1433
      %v1438 = vunpack.c.l.b16 %v1434
      %v1439 = vpack.c.b16 %v1438, %v1437
      %1440 = vrot.lane.b32.xlu0 %v992, 91
      %v1441 = vpop.permute.xlu0 %1440
      %1442 = vrot.lane.b32.xlu0 %v993, 91
      %v1443 = vpop.permute.xlu0 %1442
      %1444 = vrot.lane.b32.xlu0 %v994, 91
      %v1445 = vpop.permute.xlu0 %1444
      %v1446 = vsel %vm849, %v1441, %v1443
      %v1447 = vsel %vm849, %v1443, %v1445
      %v1452 = vsel %vm422, %v1439, 0
      %1454 = vmatpush.bf16.msra.mxu0 0
      %1455 = vmatpush.bf16.msra.mxu0 0
      %1456 = vmatpush.bf16.msra.mxu0 0
      %1457 = vmatpush.bf16.msra.mxu0 0
      %1458 = vmatpush.bf16.msra.mxu0 0
      %1459 = vmatpush.bf16.msra.mxu0 0
      %1460 = vmatpush.bf16.msra.mxu0 0
      %1461 = vmatpush.bf16.msra.mxu0 %v1446
      %1462 = vmatmul.bf16.gmra.mxu0 %v1452
      %v1463 = vpop.f32.mrf.mxu0
      %v1464 = vadd.f32 0.0, %v1463
      %v1465 = vpop.f32.mrf.mxu0
      %v1466 = vadd.f32 0.0, %v1465
      %1467 = vdwg.mxu0
      %1468 = vmatpush.bf16.msra.mxu0 0
      %1469 = vmatpush.bf16.msra.mxu0 0
      %1470 = vmatpush.bf16.msra.mxu0 0
      %1471 = vmatpush.bf16.msra.mxu0 0
      %1472 = vmatpush.bf16.msra.mxu0 0
      %1473 = vmatpush.bf16.msra.mxu0 0
      %1474 = vmatpush.bf16.msra.mxu0 0
      %1475 = vmatpush.bf16.msra.mxu0 %v1447
      %1476 = vmatmul.bf16.gmra.mxu0 %v1452
      %v1477 = vpop.f32.mrf.mxu0
      %v1478 = vadd.f32 0.0, %v1477
      %v1479 = vpop.f32.mrf.mxu0
      %v1480 = vadd.f32 0.0, %v1479
      %1481 = vdwg.mxu0
      %1482 = vmatpush.bf16.msra.mxu0 0
      %1483 = vmatpush.bf16.msra.mxu0 0
      %1484 = vmatpush.bf16.msra.mxu0 0
      %1485 = vmatpush.bf16.msra.mxu0 0
      %1486 = vmatpush.bf16.msra.mxu0 0
      %1487 = vmatpush.bf16.msra.mxu0 0
      %1488 = vmatpush.bf16.msra.mxu0 0
      %1489 = vmatpush.bf16.msra.mxu0 %v1445
      %1490 = vmatmul.bf16.gmra.mxu0 %v1452
      %v1491 = vpop.f32.mrf.mxu0
      %v1492 = vadd.f32 0.0, %v1491
      %v1493 = vpop.f32.mrf.mxu0
      %v1494 = vadd.f32 0.0, %v1493
      %1495 = vdwg.mxu0
      %v1496 = vadd.f32 %v1427, %v1464
      %v1497 = vadd.f32 %v1428, %v1478
      %v1498 = vadd.f32 %v1429, %v1492
      %v1499 = vadd.f32 %v1430, %v1466
      %v1500 = vadd.f32 %v1431, %v1480
      %v1501 = vadd.f32 %v1432, %v1494
      %1502 = vrot.lane.b32.xlu0 %v1439, 112
      %v1503 = vpop.permute.xlu0 %1502
      %1504 = vrot.lane.b32.xlu0 %v992, 90
      %v1505 = vpop.permute.xlu0 %1504
      %1506 = vrot.lane.b32.xlu0 %v993, 90
      %v1507 = vpop.permute.xlu0 %1506
      %1508 = vrot.lane.b32.xlu0 %v994, 90
      %v1509 = vpop.permute.xlu0 %1508
      %v1510 = vsel %vm919, %v1505, %v1507
      %v1511 = vsel %vm919, %v1507, %v1509
      %v1516 = vsel %vm422, %v1503, 0
      %1518 = vmatpush.bf16.msra.mxu0 0
      %1519 = vmatpush.bf16.msra.mxu0 0
      %1520 = vmatpush.bf16.msra.mxu0 0
      %1521 = vmatpush.bf16.msra.mxu0 0
      %1522 = vmatpush.bf16.msra.mxu0 0
      %1523 = vmatpush.bf16.msra.mxu0 0
      %1524 = vmatpush.bf16.msra.mxu0 0
      %1525 = vmatpush.bf16.msra.mxu0 %v1510
      %1526 = vmatmul.bf16.gmra.mxu0 %v1516
      %v1527 = vpop.f32.mrf.mxu0
      %v1528 = vadd.f32 0.0, %v1527
      %v1529 = vpop.f32.mrf.mxu0
      %v1530 = vadd.f32 0.0, %v1529
      %1531 = vdwg.mxu0
      %1532 = vmatpush.bf16.msra.mxu0 0
      %1533 = vmatpush.bf16.msra.mxu0 0
      %1534 = vmatpush.bf16.msra.mxu0 0
      %1535 = vmatpush.bf16.msra.mxu0 0
      %1536 = vmatpush.bf16.msra.mxu0 0
      %1537 = vmatpush.bf16.msra.mxu0 0
      %1538 = vmatpush.bf16.msra.mxu0 0
      %1539 = vmatpush.bf16.msra.mxu0 %v1511
      %1540 = vmatmul.bf16.gmra.mxu0 %v1516
      %v1541 = vpop.f32.mrf.mxu0
      %v1542 = vadd.f32 0.0, %v1541
      %v1543 = vpop.f32.mrf.mxu0
      %v1544 = vadd.f32 0.0, %v1543
      %1545 = vdwg.mxu0
      %1546 = vmatpush.bf16.msra.mxu0 0
      %1547 = vmatpush.bf16.msra.mxu0 0
      %1548 = vmatpush.bf16.msra.mxu0 0
      %1549 = vmatpush.bf16.msra.mxu0 0
      %1550 = vmatpush.bf16.msra.mxu0 0
      %1551 = vmatpush.bf16.msra.mxu0 0
      %1552 = vmatpush.bf16.msra.mxu0 0
      %1553 = vmatpush.bf16.msra.mxu0 %v1509
      %1554 = vmatmul.bf16.gmra.mxu0 %v1516
      %v1555 = vpop.f32.mrf.mxu0
      %v1556 = vadd.f32 0.0, %v1555
      %v1557 = vpop.f32.mrf.mxu0
      %v1558 = vadd.f32 0.0, %v1557
      %1559 = vdwg.mxu0
      %v1560 = vadd.f32 %v1496, %v1528
      %v1561 = vadd.f32 %v1497, %v1542
      %v1562 = vadd.f32 %v1498, %v1556
      %v1563 = vadd.f32 %v1499, %v1530
      %v1564 = vadd.f32 %v1500, %v1544
      %v1565 = vadd.f32 %v1501, %v1558
      %v1566 = vld [vmem:[%s367] sm:$0xff]
      %v1567 = vld [vmem:[%s367 + $0x8] sm:$0xf]
      %v1568 = vld [vmem:[%s367 + $0xc] sm:$0xff]
      %v1569 = vld [vmem:[%s367 + $0x14] sm:$0xf]
      %1570 = vrot.lane.b32.xlu0 %v1439, 96
      %v1571 = vpop.permute.xlu0 %1570
      %v1576 = vunpack.c.l.b16 %v1566
      %v1577 = vunpack.c.h.b16 %v1566
      %v1578 = vunpack.c.l.b16 %v1567
      %v1579 = vunpack.c.l.b16 %v1568
      %v1580 = vunpack.c.h.b16 %v1568
      %v1581 = vunpack.c.l.b16 %v1569
      %v1582 = vpack.c.b16 %v1579, %v1576
      %v1583 = vpack.c.b16 %v1580, %v1577
      %v1584 = vpack.c.b16 %v1581, %v1578
      %v1589 = vsel %vm422, %v1571, 0
      %1591 = vmatpush.bf16.msra.mxu0 0
      %1592 = vmatpush.bf16.msra.mxu0 0
      %1593 = vmatpush.bf16.msra.mxu0 0
      %1594 = vmatpush.bf16.msra.mxu0 0
      %1595 = vmatpush.bf16.msra.mxu0 0
      %1596 = vmatpush.bf16.msra.mxu0 0
      %1597 = vmatpush.bf16.msra.mxu0 0
      %1598 = vmatpush.bf16.msra.mxu0 %v1582
      %1599 = vmatmul.bf16.gmra.mxu0 %v1589
      %v1600 = vpop.f32.mrf.mxu0
      %v1601 = vadd.f32 0.0, %v1600
      %v1602 = vpop.f32.mrf.mxu0
      %v1603 = vadd.f32 0.0, %v1602
      %1604 = vdwg.mxu0
      %1605 = vmatpush.bf16.msra.mxu0 0
      %1606 = vmatpush.bf16.msra.mxu0 0
      %1607 = vmatpush.bf16.msra.mxu0 0
      %1608 = vmatpush.bf16.msra.mxu0 0
      %1609 = vmatpush.bf16.msra.mxu0 0
      %1610 = vmatpush.bf16.msra.mxu0 0
      %1611 = vmatpush.bf16.msra.mxu0 0
      %1612 = vmatpush.bf16.msra.mxu0 %v1583
      %1613 = vmatmul.bf16.gmra.mxu0 %v1589
      %v1614 = vpop.f32.mrf.mxu0
      %v1615 = vadd.f32 0.0, %v1614
      %v1616 = vpop.f32.mrf.mxu0
      %v1617 = vadd.f32 0.0, %v1616
      %1618 = vdwg.mxu0
      %1619 = vmatpush.bf16.msra.mxu0 0
      %1620 = vmatpush.bf16.msra.mxu0 0
      %1621 = vmatpush.bf16.msra.mxu0 0
      %1622 = vmatpush.bf16.msra.mxu0 0
      %1623 = vmatpush.bf16.msra.mxu0 0
      %1624 = vmatpush.bf16.msra.mxu0 0
      %1625 = vmatpush.bf16.msra.mxu0 0
      %1626 = vmatpush.bf16.msra.mxu0 %v1584
      %1627 = vmatmul.bf16.gmra.mxu0 %v1589
      %v1628 = vpop.f32.mrf.mxu0
      %v1629 = vadd.f32 0.0, %v1628
      %v1630 = vpop.f32.mrf.mxu0
      %v1631 = vadd.f32 0.0, %v1630
      %1632 = vdwg.mxu0
      %v1633 = vadd.f32 %v1560, %v1601
      %v1634 = vadd.f32 %v1561, %v1615
      %v1635 = vadd.f32 %v1562, %v1629
      %v1636 = vadd.f32 %v1563, %v1603
      %v1637 = vadd.f32 %v1564, %v1617
      %v1638 = vadd.f32 %v1565, %v1631
      %1639 = vrot.lane.b32.xlu0 %v1439, 80
      %v1640 = vpop.permute.xlu0 %1639
      %1641 = vrot.lane.b32.xlu0 %v1582, 127
      %v1642 = vpop.permute.xlu0 %1641
      %1643 = vrot.lane.b32.xlu0 %v1583, 127
      %v1644 = vpop.permute.xlu0 %1643
      %1645 = vrot.lane.b32.xlu0 %v1584, 127
      %v1646 = vpop.permute.xlu0 %1645
      %v1647 = vsel %vm416, %v1642, %v1644
      %v1648 = vsel %vm416, %v1644, %v1646
      %v1653 = vsel %vm422, %v1640, 0
      %1655 = vmatpush.bf16.msra.mxu0 0
      %1656 = vmatpush.bf16.msra.mxu0 0
      %1657 = vmatpush.bf16.msra.mxu0 0
      %1658 = vmatpush.bf16.msra.mxu0 0
      %1659 = vmatpush.bf16.msra.mxu0 0
      %1660 = vmatpush.bf16.msra.mxu0 0
      %1661 = vmatpush.bf16.msra.mxu0 0
      %1662 = vmatpush.bf16.msra.mxu0 %v1647
      %1663 = vmatmul.bf16.gmra.mxu0 %v1653
      %v1664 = vpop.f32.mrf.mxu0
      %v1665 = vadd.f32 0.0, %v1664
      %v1666 = vpop.f32.mrf.mxu0
      %v1667 = vadd.f32 0.0, %v1666
      %1668 = vdwg.mxu0
      %1669 = vmatpush.bf16.msra.mxu0 0
      %1670 = vmatpush.bf16.msra.mxu0 0
      %1671 = vmatpush.bf16.msra.mxu0 0
      %1672 = vmatpush.bf16.msra.mxu0 0
      %1673 = vmatpush.bf16.msra.mxu0 0
      %1674 = vmatpush.bf16.msra.mxu0 0
      %1675 = vmatpush.bf16.msra.mxu0 0
      %1676 = vmatpush.bf16.msra.mxu0 %v1648
      %1677 = vmatmul.bf16.gmra.mxu0 %v1653
      %v1678 = vpop.f32.mrf.mxu0
      %v1679 = vadd.f32 0.0, %v1678
      %v1680 = vpop.f32.mrf.mxu0
      %v1681 = vadd.f32 0.0, %v1680
      %1682 = vdwg.mxu0
      %1683 = vmatpush.bf16.msra.mxu0 0
      %1684 = vmatpush.bf16.msra.mxu0 0
      %1685 = vmatpush.bf16.msra.mxu0 0
      %1686 = vmatpush.bf16.msra.mxu0 0
      %1687 = vmatpush.bf16.msra.mxu0 0
      %1688 = vmatpush.bf16.msra.mxu0 0
      %1689 = vmatpush.bf16.msra.mxu0 0
      %1690 = vmatpush.bf16.msra.mxu0 %v1646
      %1691 = vmatmul.bf16.gmra.mxu0 %v1653
      %v1692 = vpop.f32.mrf.mxu0
      %v1693 = vadd.f32 0.0, %v1692
      %v1694 = vpop.f32.mrf.mxu0
      %v1695 = vadd.f32 0.0, %v1694
      %1696 = vdwg.mxu0
      %v1697 = vadd.f32 %v1633, %v1665
      %v1698 = vadd.f32 %v1634, %v1679
      %v1699 = vadd.f32 %v1635, %v1693
      %v1700 = vadd.f32 %v1636, %v1667
      %v1701 = vadd.f32 %v1637, %v1681
      %v1702 = vadd.f32 %v1638, %v1695
      %1703 = vrot.lane.b32.xlu0 %v1439, 64
      %v1704 = vpop.permute.xlu0 %1703
      %1705 = vrot.lane.b32.xlu0 %v1582, 126
      %v1706 = vpop.permute.xlu0 %1705
      %1707 = vrot.lane.b32.xlu0 %v1583, 126
      %v1708 = vpop.permute.xlu0 %1707
      %1709 = vrot.lane.b32.xlu0 %v1584, 126
      %v1710 = vpop.permute.xlu0 %1709
      %v1711 = vsel %vm524, %v1706, %v1708
      %v1712 = vsel %vm524, %v1708, %v1710
      %v1717 = vsel %vm422, %v1704, 0
      %1719 = vmatpush.bf16.msra.mxu0 0
      %1720 = vmatpush.bf16.msra.mxu0 0
      %1721 = vmatpush.bf16.msra.mxu0 0
      %1722 = vmatpush.bf16.msra.mxu0 0
      %1723 = vmatpush.bf16.msra.mxu0 0
      %1724 = vmatpush.bf16.msra.mxu0 0
      %1725 = vmatpush.bf16.msra.mxu0 0
      %1726 = vmatpush.bf16.msra.mxu0 %v1711
      %1727 = vmatmul.bf16.gmra.mxu0 %v1717
      %v1728 = vpop.f32.mrf.mxu0
      %v1729 = vadd.f32 0.0, %v1728
      %v1730 = vpop.f32.mrf.mxu0
      %v1731 = vadd.f32 0.0, %v1730
      %1732 = vdwg.mxu0
      %1733 = vmatpush.bf16.msra.mxu0 0
      %1734 = vmatpush.bf16.msra.mxu0 0
      %1735 = vmatpush.bf16.msra.mxu0 0
      %1736 = vmatpush.bf16.msra.mxu0 0
      %1737 = vmatpush.bf16.msra.mxu0 0
      %1738 = vmatpush.bf16.msra.mxu0 0
      %1739 = vmatpush.bf16.msra.mxu0 0
      %1740 = vmatpush.bf16.msra.mxu0 %v1712
      %1741 = vmatmul.bf16.gmra.mxu0 %v1717
      %v1742 = vpop.f32.mrf.mxu0
      %v1743 = vadd.f32 0.0, %v1742
      %v1744 = vpop.f32.mrf.mxu0
      %v1745 = vadd.f32 0.0, %v1744
      %1746 = vdwg.mxu0
      %1747 = vmatpush.bf16.msra.mxu0 0
      %1748 = vmatpush.bf16.msra.mxu0 0
      %1749 = vmatpush.bf16.msra.mxu0 0
      %1750 = vmatpush.bf16.msra.mxu0 0
      %1751 = vmatpush.bf16.msra.mxu0 0
      %1752 = vmatpush.bf16.msra.mxu0 0
      %1753 = vmatpush.bf16.msra.mxu0 0
      %1754 = vmatpush.bf16.msra.mxu0 %v1710
      %1755 = vmatmul.bf16.gmra.mxu0 %v1717
      %v1756 = vpop.f32.mrf.mxu0
      %v1757 = vadd.f32 0.0, %v1756
      %v1758 = vpop.f32.mrf.mxu0
      %v1759 = vadd.f32 0.0, %v1758
      %1760 = vdwg.mxu0
      %v1761 = vadd.f32 %v1697, %v1729
      %v1762 = vadd.f32 %v1698, %v1743
      %v1763 = vadd.f32 %v1699, %v1757
      %v1764 = vadd.f32 %v1700, %v1731
      %v1765 = vadd.f32 %v1701, %v1745
      %v1766 = vadd.f32 %v1702, %v1759
      %1767 = vrot.lane.b32.xlu0 %v1439, 48
      %v1768 = vpop.permute.xlu0 %1767
      %1769 = vrot.lane.b32.xlu0 %v1582, 110
      %v1770 = vpop.permute.xlu0 %1769
      %1771 = vrot.lane.b32.xlu0 %v1583, 110
      %v1772 = vpop.permute.xlu0 %1771
      %1773 = vrot.lane.b32.xlu0 %v1584, 110
      %v1774 = vpop.permute.xlu0 %1773
      %v1775 = vsel %vm589, %v1770, %v1772
      %v1776 = vsel %vm589, %v1772, %v1774
      %v1781 = vsel %vm422, %v1768, 0
      %1783 = vmatpush.bf16.msra.mxu0 0
      %1784 = vmatpush.bf16.msra.mxu0 0
      %1785 = vmatpush.bf16.msra.mxu0 0
      %1786 = vmatpush.bf16.msra.mxu0 0
      %1787 = vmatpush.bf16.msra.mxu0 0
      %1788 = vmatpush.bf16.msra.mxu0 0
      %1789 = vmatpush.bf16.msra.mxu0 0
      %1790 = vmatpush.bf16.msra.mxu0 %v1775
      %1791 = vmatmul.bf16.gmra.mxu0 %v1781
      %v1792 = vpop.f32.mrf.mxu0
      %v1793 = vadd.f32 0.0, %v1792
      %v1794 = vpop.f32.mrf.mxu0
      %v1795 = vadd.f32 0.0, %v1794
      %1796 = vdwg.mxu0
      %1797 = vmatpush.bf16.msra.mxu0 0
      %1798 = vmatpush.bf16.msra.mxu0 0
      %1799 = vmatpush.bf16.msra.mxu0 0
      %1800 = vmatpush.bf16.msra.mxu0 0
      %1801 = vmatpush.bf16.msra.mxu0 0
      %1802 = vmatpush.bf16.msra.mxu0 0
      %1803 = vmatpush.bf16.msra.mxu0 0
      %1804 = vmatpush.bf16.msra.mxu0 %v1776
      %1805 = vmatmul.bf16.gmra.mxu0 %v1781
      %v1806 = vpop.f32.mrf.mxu0
      %v1807 = vadd.f32 0.0, %v1806
      %v1808 = vpop.f32.mrf.mxu0
      %v1809 = vadd.f32 0.0, %v1808
      %1810 = vdwg.mxu0
      %1811 = vmatpush.bf16.msra.mxu0 0
      %1812 = vmatpush.bf16.msra.mxu0 0
      %1813 = vmatpush.bf16.msra.mxu0 0
      %1814 = vmatpush.bf16.msra.mxu0 0
      %1815 = vmatpush.bf16.msra.mxu0 0
      %1816 = vmatpush.bf16.msra.mxu0 0
      %1817 = vmatpush.bf16.msra.mxu0 0
      %1818 = vmatpush.bf16.msra.mxu0 %v1774
      %1819 = vmatmul.bf16.gmra.mxu0 %v1781
      %v1820 = vpop.f32.mrf.mxu0
      %v1821 = vadd.f32 0.0, %v1820
      %v1822 = vpop.f32.mrf.mxu0
      %v1823 = vadd.f32 0.0, %v1822
      %1824 = vdwg.mxu0
      %v1825 = vadd.f32 %v1761, %v1793
      %v1826 = vadd.f32 %v1762, %v1807
      %v1827 = vadd.f32 %v1763, %v1821
      %v1828 = vadd.f32 %v1764, %v1795
      %v1829 = vadd.f32 %v1765, %v1809
      %v1830 = vadd.f32 %v1766, %v1823
      %1831 = vrot.lane.b32.xlu0 %v1439, 32
      %v1832 = vpop.permute.xlu0 %1831
      %1833 = vrot.lane.b32.xlu0 %v1582, 109
      %v1834 = vpop.permute.xlu0 %1833
      %1835 = vrot.lane.b32.xlu0 %v1583, 109
      %v1836 = vpop.permute.xlu0 %1835
      %1837 = vrot.lane.b32.xlu0 %v1584, 109
      %v1838 = vpop.permute.xlu0 %1837
      %v1839 = vsel %vm654, %v1834, %v1836
      %v1840 = vsel %vm654, %v1836, %v1838
      %v1845 = vsel %vm422, %v1832, 0
      %1847 = vmatpush.bf16.msra.mxu0 0
      %1848 = vmatpush.bf16.msra.mxu0 0
      %1849 = vmatpush.bf16.msra.mxu0 0
      %1850 = vmatpush.bf16.msra.mxu0 0
      %1851 = vmatpush.bf16.msra.mxu0 0
      %1852 = vmatpush.bf16.msra.mxu0 0
      %1853 = vmatpush.bf16.msra.mxu0 0
      %1854 = vmatpush.bf16.msra.mxu0 %v1839
      %1855 = vmatmul.bf16.gmra.mxu0 %v1845
      %v1856 = vpop.f32.mrf.mxu0
      %v1857 = vadd.f32 0.0, %v1856
      %v1858 = vpop.f32.mrf.mxu0
      %v1859 = vadd.f32 0.0, %v1858
      %1860 = vdwg.mxu0
      %1861 = vmatpush.bf16.msra.mxu0 0
      %1862 = vmatpush.bf16.msra.mxu0 0
      %1863 = vmatpush.bf16.msra.mxu0 0
      %1864 = vmatpush.bf16.msra.mxu0 0
      %1865 = vmatpush.bf16.msra.mxu0 0
      %1866 = vmatpush.bf16.msra.mxu0 0
      %1867 = vmatpush.bf16.msra.mxu0 0
      %1868 = vmatpush.bf16.msra.mxu0 %v1840
      %1869 = vmatmul.bf16.gmra.mxu0 %v1845
      %v1870 = vpop.f32.mrf.mxu0
      %v1871 = vadd.f32 0.0, %v1870
      %v1872 = vpop.f32.mrf.mxu0
      %v1873 = vadd.f32 0.0, %v1872
      %1874 = vdwg.mxu0
      %1875 = vmatpush.bf16.msra.mxu0 0
      %1876 = vmatpush.bf16.msra.mxu0 0
      %1877 = vmatpush.bf16.msra.mxu0 0
      %1878 = vmatpush.bf16.msra.mxu0 0
      %1879 = vmatpush.bf16.msra.mxu0 0
      %1880 = vmatpush.bf16.msra.mxu0 0
      %1881 = vmatpush.bf16.msra.mxu0 0
      %1882 = vmatpush.bf16.msra.mxu0 %v1838
      %1883 = vmatmul.bf16.gmra.mxu0 %v1845
      %v1884 = vpop.f32.mrf.mxu0
      %v1885 = vadd.f32 0.0, %v1884
      %v1886 = vpop.f32.mrf.mxu0
      %v1887 = vadd.f32 0.0, %v1886
      %1888 = vdwg.mxu0
      %v1889 = vadd.f32 %v1825, %v1857
      %v1890 = vadd.f32 %v1826, %v1871
      %v1891 = vadd.f32 %v1827, %v1885
      %v1892 = vadd.f32 %v1828, %v1859
      %v1893 = vadd.f32 %v1829, %v1873
      %v1894 = vadd.f32 %v1830, %v1887
      %1895 = vrot.lane.b32.xlu0 %v1439, 16
      %v1896 = vpop.permute.xlu0 %1895
      %1897 = vrot.lane.b32.xlu0 %v1582, 108
      %v1898 = vpop.permute.xlu0 %1897
      %1899 = vrot.lane.b32.xlu0 %v1583, 108
      %v1900 = vpop.permute.xlu0 %1899
      %1901 = vrot.lane.b32.xlu0 %v1584, 108
      %v1902 = vpop.permute.xlu0 %1901
      %v1903 = vsel %vm719, %v1898, %v1900
      %v1904 = vsel %vm719, %v1900, %v1902
      %v1909 = vsel %vm422, %v1896, 0
      %1911 = vmatpush.bf16.msra.mxu0 0
      %1912 = vmatpush.bf16.msra.mxu0 0
      %1913 = vmatpush.bf16.msra.mxu0 0
      %1914 = vmatpush.bf16.msra.mxu0 0
      %1915 = vmatpush.bf16.msra.mxu0 0
      %1916 = vmatpush.bf16.msra.mxu0 0
      %1917 = vmatpush.bf16.msra.mxu0 0
      %1918 = vmatpush.bf16.msra.mxu0 %v1903
      %1919 = vmatmul.bf16.gmra.mxu0 %v1909
      %v1920 = vpop.f32.mrf.mxu0
      %v1921 = vadd.f32 0.0, %v1920
      %v1922 = vpop.f32.mrf.mxu0
      %v1923 = vadd.f32 0.0, %v1922
      %1924 = vdwg.mxu0
      %1925 = vmatpush.bf16.msra.mxu0 0
      %1926 = vmatpush.bf16.msra.mxu0 0
      %1927 = vmatpush.bf16.msra.mxu0 0
      %1928 = vmatpush.bf16.msra.mxu0 0
      %1929 = vmatpush.bf16.msra.mxu0 0
      %1930 = vmatpush.bf16.msra.mxu0 0
      %1931 = vmatpush.bf16.msra.mxu0 0
      %1932 = vmatpush.bf16.msra.mxu0 %v1904
      %1933 = vmatmul.bf16.gmra.mxu0 %v1909
      %v1934 = vpop.f32.mrf.mxu0
      %v1935 = vadd.f32 0.0, %v1934
      %v1936 = vpop.f32.mrf.mxu0
      %v1937 = vadd.f32 0.0, %v1936
      %1938 = vdwg.mxu0
      %1939 = vmatpush.bf16.msra.mxu0 0
      %1940 = vmatpush.bf16.msra.mxu0 0
      %1941 = vmatpush.bf16.msra.mxu0 0
      %1942 = vmatpush.bf16.msra.mxu0 0
      %1943 = vmatpush.bf16.msra.mxu0 0
      %1944 = vmatpush.bf16.msra.mxu0 0
      %1945 = vmatpush.bf16.msra.mxu0 0
      %1946 = vmatpush.bf16.msra.mxu0 %v1902
      %1947 = vmatmul.bf16.gmra.mxu0 %v1909
      %v1948 = vpop.f32.mrf.mxu0
      %v1949 = vadd.f32 0.0, %v1948
      %v1950 = vpop.f32.mrf.mxu0
      %v1951 = vadd.f32 0.0, %v1950
      %1952 = vdwg.mxu0
      %v1953 = vadd.f32 %v1889, %v1921
      %v1954 = vadd.f32 %v1890, %v1935
      %v1955 = vadd.f32 %v1891, %v1949
      %v1956 = vadd.f32 %v1892, %v1923
      %v1957 = vadd.f32 %v1893, %v1937
      %v1958 = vadd.f32 %v1894, %v1951
      %v1959 = vld [vmem:[%s3 + $0xc] sm:$0xf]
      %v1960 = vld [vmem:[%s3 + $0x1c] sm:$0xf]
      %v1963 = vunpack.c.l.b16 %v1959
      %v1964 = vunpack.c.l.b16 %v1960
      %v1965 = vpack.c.b16 %v1964, %v1963
      %1966 = vrot.lane.b32.xlu0 %v1582, 92
      %v1967 = vpop.permute.xlu0 %1966
      %1968 = vrot.lane.b32.xlu0 %v1583, 92
      %v1969 = vpop.permute.xlu0 %1968
      %1970 = vrot.lane.b32.xlu0 %v1584, 92
      %v1971 = vpop.permute.xlu0 %1970
      %v1972 = vsel %vm784, %v1967, %v1969
      %v1973 = vsel %vm784, %v1969, %v1971
      %v1978 = vsel %vm422, %v1965, 0
      %1980 = vmatpush.bf16.msra.mxu0 0
      %1981 = vmatpush.bf16.msra.mxu0 0
      %1982 = vmatpush.bf16.msra.mxu0 0
      %1983 = vmatpush.bf16.msra.mxu0 0
      %1984 = vmatpush.bf16.msra.mxu0 0
      %1985 = vmatpush.bf16.msra.mxu0 0
      %1986 = vmatpush.bf16.msra.mxu0 0
      %1987 = vmatpush.bf16.msra.mxu0 %v1972
      %1988 = vmatmul.bf16.gmra.mxu0 %v1978
      %v1989 = vpop.f32.mrf.mxu0
      %v1990 = vadd.f32 0.0, %v1989
      %v1991 = vpop.f32.mrf.mxu0
      %v1992 = vadd.f32 0.0, %v1991
      %1993 = vdwg.mxu0
      %1994 = vmatpush.bf16.msra.mxu0 0
      %1995 = vmatpush.bf16.msra.mxu0 0
      %1996 = vmatpush.bf16.msra.mxu0 0
      %1997 = vmatpush.bf16.msra.mxu0 0
      %1998 = vmatpush.bf16.msra.mxu0 0
      %1999 = vmatpush.bf16.msra.mxu0 0
      %2000 = vmatpush.bf16.msra.mxu0 0
      %2001 = vmatpush.bf16.msra.mxu0 %v1973
      %2002 = vmatmul.bf16.gmra.mxu0 %v1978
      %v2003 = vpop.f32.mrf.mxu0
      %v2004 = vadd.f32 0.0, %v2003
      %v2005 = vpop.f32.mrf.mxu0
      %v2006 = vadd.f32 0.0, %v2005
      %2007 = vdwg.mxu0
      %2008 = vmatpush.bf16.msra.mxu0 0
      %2009 = vmatpush.bf16.msra.mxu0 0
      %2010 = vmatpush.bf16.msra.mxu0 0
      %2011 = vmatpush.bf16.msra.mxu0 0
      %2012 = vmatpush.bf16.msra.mxu0 0
      %2013 = vmatpush.bf16.msra.mxu0 0
      %2014 = vmatpush.bf16.msra.mxu0 0
      %2015 = vmatpush.bf16.msra.mxu0 %v1971
      %2016 = vmatmul.bf16.gmra.mxu0 %v1978
      %v2017 = vpop.f32.mrf.mxu0
      %v2018 = vadd.f32 0.0, %v2017
      %v2019 = vpop.f32.mrf.mxu0
      %v2020 = vadd.f32 0.0, %v2019
      %2021 = vdwg.mxu0
      %v2022 = vadd.f32 %v1953, %v1990
      %v2023 = vadd.f32 %v1954, %v2004
      %v2024 = vadd.f32 %v1955, %v2018
      %v2025 = vadd.f32 %v1956, %v1992
      %v2026 = vadd.f32 %v1957, %v2006
      %v2027 = vadd.f32 %v1958, %v2020
      %2028 = vrot.lane.b32.xlu0 %v1965, 112
      %v2029 = vpop.permute.xlu0 %2028
      %2030 = vrot.lane.b32.xlu0 %v1582, 91
      %v2031 = vpop.permute.xlu0 %2030
      %2032 = vrot.lane.b32.xlu0 %v1583, 91
      %v2033 = vpop.permute.xlu0 %2032
      %2034 = vrot.lane.b32.xlu0 %v1584, 91
      %v2035 = vpop.permute.xlu0 %2034
      %v2036 = vsel %vm849, %v2031, %v2033
      %v2037 = vsel %vm849, %v2033, %v2035
      %v2042 = vsel %vm422, %v2029, 0
      %2044 = vmatpush.bf16.msra.mxu0 0
      %2045 = vmatpush.bf16.msra.mxu0 0
      %2046 = vmatpush.bf16.msra.mxu0 0
      %2047 = vmatpush.bf16.msra.mxu0 0
      %2048 = vmatpush.bf16.msra.mxu0 0
      %2049 = vmatpush.bf16.msra.mxu0 0
      %2050 = vmatpush.bf16.msra.mxu0 0
      %2051 = vmatpush.bf16.msra.mxu0 %v2036
      %2052 = vmatmul.bf16.gmra.mxu0 %v2042
      %v2053 = vpop.f32.mrf.mxu0
      %v2054 = vadd.f32 0.0, %v2053
      %v2055 = vpop.f32.mrf.mxu0
      %v2056 = vadd.f32 0.0, %v2055
      %2057 = vdwg.mxu0
      %2058 = vmatpush.bf16.msra.mxu0 0
      %2059 = vmatpush.bf16.msra.mxu0 0
      %2060 = vmatpush.bf16.msra.mxu0 0
      %2061 = vmatpush.bf16.msra.mxu0 0
      %2062 = vmatpush.bf16.msra.mxu0 0
      %2063 = vmatpush.bf16.msra.mxu0 0
      %2064 = vmatpush.bf16.msra.mxu0 0
      %2065 = vmatpush.bf16.msra.mxu0 %v2037
      %2066 = vmatmul.bf16.gmra.mxu0 %v2042
      %v2067 = vpop.f32.mrf.mxu0
      %v2068 = vadd.f32 0.0, %v2067
      %v2069 = vpop.f32.mrf.mxu0
      %v2070 = vadd.f32 0.0, %v2069
      %2071 = vdwg.mxu0
      %2072 = vmatpush.bf16.msra.mxu0 0
      %2073 = vmatpush.bf16.msra.mxu0 0
      %2074 = vmatpush.bf16.msra.mxu0 0
      %2075 = vmatpush.bf16.msra.mxu0 0
      %2076 = vmatpush.bf16.msra.mxu0 0
      %2077 = vmatpush.bf16.msra.mxu0 0
      %2078 = vmatpush.bf16.msra.mxu0 0
      %2079 = vmatpush.bf16.msra.mxu0 %v2035
      %2080 = vmatmul.bf16.gmra.mxu0 %v2042
      %v2081 = vpop.f32.mrf.mxu0
      %v2082 = vadd.f32 0.0, %v2081
      %v2083 = vpop.f32.mrf.mxu0
      %v2084 = vadd.f32 0.0, %v2083
      %2085 = vdwg.mxu0
      %v2086 = vadd.f32 %v2022, %v2054
      %v2087 = vadd.f32 %v2023, %v2068
      %v2088 = vadd.f32 %v2024, %v2082
      %v2089 = vadd.f32 %v2025, %v2056
      %v2090 = vadd.f32 %v2026, %v2070
      %v2091 = vadd.f32 %v2027, %v2084
      %2092 = vrot.lane.b32.xlu0 %v1965, 96
      %v2093 = vpop.permute.xlu0 %2092
      %2094 = vrot.lane.b32.xlu0 %v1582, 90
      %v2095 = vpop.permute.xlu0 %2094
      %2096 = vrot.lane.b32.xlu0 %v1583, 90
      %v2097 = vpop.permute.xlu0 %2096
      %2098 = vrot.lane.b32.xlu0 %v1584, 90
      %v2099 = vpop.permute.xlu0 %2098
      %v2100 = vsel %vm919, %v2095, %v2097
      %v2101 = vsel %vm919, %v2097, %v2099
      %v2106 = vsel %vm422, %v2093, 0
      %2108 = vmatpush.bf16.msra.mxu0 0
      %2109 = vmatpush.bf16.msra.mxu0 0
      %2110 = vmatpush.bf16.msra.mxu0 0
      %2111 = vmatpush.bf16.msra.mxu0 0
      %2112 = vmatpush.bf16.msra.mxu0 0
      %2113 = vmatpush.bf16.msra.mxu0 0
      %2114 = vmatpush.bf16.msra.mxu0 0
      %2115 = vmatpush.bf16.msra.mxu0 %v2100
      %2116 = vmatmul.bf16.gmra.mxu0 %v2106
      %v2117 = vpop.f32.mrf.mxu0
      %v2118 = vadd.f32 0.0, %v2117
      %v2119 = vpop.f32.mrf.mxu0
      %v2120 = vadd.f32 0.0, %v2119
      %2121 = vdwg.mxu0
      %2122 = vmatpush.bf16.msra.mxu0 0
      %2123 = vmatpush.bf16.msra.mxu0 0
      %2124 = vmatpush.bf16.msra.mxu0 0
      %2125 = vmatpush.bf16.msra.mxu0 0
      %2126 = vmatpush.bf16.msra.mxu0 0
      %2127 = vmatpush.bf16.msra.mxu0 0
      %2128 = vmatpush.bf16.msra.mxu0 0
      %2129 = vmatpush.bf16.msra.mxu0 %v2101
      %2130 = vmatmul.bf16.gmra.mxu0 %v2106
      %v2131 = vpop.f32.mrf.mxu0
      %v2132 = vadd.f32 0.0, %v2131
      %v2133 = vpop.f32.mrf.mxu0
      %v2134 = vadd.f32 0.0, %v2133
      %2135 = vdwg.mxu0
      %2136 = vmatpush.bf16.msra.mxu0 0
      %2137 = vmatpush.bf16.msra.mxu0 0
      %2138 = vmatpush.bf16.msra.mxu0 0
      %2139 = vmatpush.bf16.msra.mxu0 0
      %2140 = vmatpush.bf16.msra.mxu0 0
      %2141 = vmatpush.bf16.msra.mxu0 0
      %2142 = vmatpush.bf16.msra.mxu0 0
      %2143 = vmatpush.bf16.msra.mxu0 %v2099
      %2144 = vmatmul.bf16.gmra.mxu0 %v2106
      %v2145 = vpop.f32.mrf.mxu0
      %v2146 = vadd.f32 0.0, %v2145
      %v2147 = vpop.f32.mrf.mxu0
      %v2148 = vadd.f32 0.0, %v2147
      %2149 = vdwg.mxu0
      %v2150 = vadd.f32 %v2086, %v2118
      %v2151 = vadd.f32 %v2087, %v2132
      %v2152 = vadd.f32 %v2088, %v2146
      %v2153 = vadd.f32 %v2089, %v2120
      %v2154 = vadd.f32 %v2090, %v2134
      %v2155 = vadd.f32 %v2091, %v2148
      %v2156 = vpack.c.bf16 %v2151, %v2150
      %v2157 = vpack.c.bf16 %v2152, %v2152
      %v2158 = vpack.c.bf16 %v2154, %v2153
      %v2159 = vpack.c.bf16 %v2155, %v2155
      %2160 = vst [vmem:[%s377] sm:$0xff] %v2156
      %vm2161 = vcmask 257024
      %2162 = vst.msk [vmem:[%s377 + $0x8] sm:$0xf] %vm2161, %v2157
      %2163 = vst [vmem:[%s377 + $0xc] sm:$0xff] %v2158
      %2164 = vst.msk [vmem:[%s377 + $0x14] sm:$0xf] %vm2161, %v2159
      %v2165 = vld [vmem:[%s4] sm:$0x7]
      %v2167 = vperm.slane %v2165, 0
      %v2168 = vperm.slane %v2165, 1
      %v2169 = vperm.slane %v2165, 2
      %v2173 = vmul.f32 %v2150, %v2167
      %v2174 = vmul.f32 %v2151, %v2168
      %v2175 = vmul.f32 %v2152, %v2169
      %v2176 = vmul.f32 %v2153, %v2167
      %v2177 = vmul.f32 %v2154, %v2168
      %v2178 = vmul.f32 %v2155, %v2169
      %v2179 = vadd.f32 %v2173, %v2174
      %vm2180 = vcmask 261120
      %v2181 = vsel %vm2180, %v2175, 0.0
      %v2182 = vadd.f32 %v2179, %v2181
      %2183 = vadd.xlane.f32.xlu0 %v2182
      %v2184 = vpop.xlane.xlu0 %2183
      %v2185 = vadd.f32 %v2176, %v2177
      %v2186 = vsel %vm2180, %v2178, 0.0
      %v2187 = vadd.f32 %v2185, %v2186
      %2188 = vadd.xlane.f32.xlu0 %v2187
      %v2189 = vpop.xlane.xlu0 %2188
      %v2190 = vmul.f32 %v2173, %v2150
      %v2191 = vmul.f32 %v2174, %v2151
      %v2192 = vmul.f32 %v2175, %v2152
      %v2193 = vmul.f32 %v2176, %v2153
      %v2194 = vmul.f32 %v2177, %v2154
      %v2195 = vmul.f32 %v2178, %v2155
      %v2196 = vadd.f32 %v2190, %v2191
      %v2197 = vsel %vm2180, %v2192, 0.0
      %v2198 = vadd.f32 %v2196, %v2197
      %2199 = vadd.xlane.f32.xlu0 %v2198
      %v2200 = vpop.xlane.xlu0 %2199
      %v2201 = vadd.f32 %v2193, %v2194
      %v2202 = vsel %vm2180, %v2195, 0.0
      %v2203 = vadd.f32 %v2201, %v2202
      %2204 = vadd.xlane.f32.xlu0 %v2203
      %v2205 = vpop.xlane.xlu0 %2204
      %p2206 = scmp.eq.s32.totalorder %s23, 0
      // Predicated region
      $region41: #{conv_up_with_skip_forward.10} parent=39 // pred_check
        %p2207 = pneg %p2206
      $region42: #{conv_up_with_skip_forward.10} parent=39 // pred_check_branch
        %2209 = sbr.rel (%p2207) target = $region44
      $region43: #{conv_up_with_skip_forward.10} parent=39 // pred_region
        %vm2210 = vcmask 7168
        %2211 = vst.msk [vmem:[%s382] sm:$0xff] %vm2210, %v2184
        %2212 = vst.msk [vmem:[%s382 + $0x8] sm:$0xff] %vm2210, %v2189
        %vm2213 = vcmask 15368
        %2214 = vst.msk [vmem:[%s382] sm:$0xff] %vm2213, %v2200
        %2215 = vst.msk [vmem:[%s382 + $0x8] sm:$0xff] %vm2213, %v2205
      $region44: #{conv_up_with_skip_forward.10} parent=39 // pred_fallthru
        _
      %p2216 = scmp.gt.s32.totalorder %s23, 0
      // Predicated region
      $region45: #{conv_up_with_skip_forward.10} parent=39 // pred_check
        %p2217 = pneg %p2216
      $region46: #{conv_up_with_skip_forward.10} parent=39 // pred_check_branch
        %2219 = sbr.rel (%p2217) target = $region48
      $region47: #{conv_up_with_skip_forward.10} parent=39 // pred_region
        %v2220 = vld [vmem:[%s382] sm:$0xff]
        %v2221 = vld [vmem:[%s382 + $0x8] sm:$0xff]
        %v2222 = vadd.f32 %v2220, %v2184
        %v2223 = vadd.f32 %v2221, %v2189
        %vm2224 = vcmask 7168
        %2225 = vst.msk [vmem:[%s382] sm:$0xff] %vm2224, %v2222
        %2226 = vst.msk [vmem:[%s382 + $0x8] sm:$0xff] %vm2224, %v2223
        %v2227 = vld [vmem:[%s382] sm:$0xff]
        %v2228 = vld [vmem:[%s382 + $0x8] sm:$0xff]
        %v2229 = vadd.f32 %v2227, %v2200
        %v2230 = vadd.f32 %v2228, %v2205
        %vm2231 = vcmask 15368
        %2232 = vst.msk [vmem:[%s382] sm:$0xff] %vm2231, %v2229
        %2233 = vst.msk [vmem:[%s382 + $0x8] sm:$0xff] %vm2231, %v2230
      $region48: #{conv_up_with_skip_forward.10} parent=39 // pred_fallthru
        _
      %p2234 = scmp.lt.s32.totalorder %s22, 1
      %s2235 = scalar_select %p2234, %s22, 1
      %p2236 = scmp.lt.s32.totalorder %s23, 15
      %s2237 = scalar_select %p2236, %s23, 15
      %s2238 = smul.addr %s2237, 6
      %s2239 = smul.addr %s2235, 96
      %s2240 = sadd.s32 %s2238, %s2239
      %s2241 = smul.addr %s2240, 4
      %s2242 = scalar_lea.vmem %s5, %s2241
      %p2243 = scmp.lt.s32.totalorder %s22, 1
      %s2244 = scalar_select %p2243, %s22, 1
      %s2245 = smul.addr %s2244, 2
      %s2246 = smul.addr %s2245, 8
      %s2247 = scalar_lea.vmem %s6, %s2246
      // Predicated region
      $region49: #{conv_up_with_skip_forward.10} parent=39 // pred_check
        %p2248 = pneg %p180
      $region50: #{conv_up_with_skip_forward.10} parent=39 // pred_check_branch
        %2250 = sbr.rel (%p2248) target = $region52
      $region51: #{conv_up_with_skip_forward.10} parent=39 // pred_region
        _
      $region52: #{conv_up_with_skip_forward.10} parent=39 // pred_fallthru
        _
      // Predicated region
      $region53: #{conv_up_with_skip_forward.10} parent=39 // pred_check
        %p2251 = pneg %p206
      $region54: #{conv_up_with_skip_forward.10} parent=39 // pred_check_branch
        %2253 = sbr.rel (%p2251) target = $region56
      $region55: #{conv_up_with_skip_forward.10} parent=39 // pred_region
        _
      $region56: #{conv_up_with_skip_forward.10} parent=39 // pred_fallthru
        _
    $region40: #{conv_up_with_skip_forward.10} parent=5 // pred_fallthru
      _
    %p2254 = scmp.le.s32.totalorder 2, %s13
    // Predicated region
    $region57: #{conv_up_with_skip_forward.10} parent=5 // pred_check
      %p2255 = pneg %p2254
    $region58: #{conv_up_with_skip_forward.10} parent=5 // pred_check_branch
      %2257 = sbr.rel (%p2255) target = $region60
    $region59: #{conv_up_with_skip_forward.10} parent=5 // pred_region
      %s2258 = ssub.s32 %s13, 2
      // Predicated region
      $region61: #{conv_up_with_skip_forward.10} parent=59 // pred_check
        %p2259 = pneg %p186
      $region62: #{conv_up_with_skip_forward.10} parent=59 // pred_check_branch
        %2261 = sbr.rel (%p2259) target = $region64
      $region63: #{conv_up_with_skip_forward.10} parent=59 // pred_region
        %p2262 = scmp.lt.s32.totalorder %s24, 1
        %s2263 = scalar_select %p2262, %s24, 1
        %p2264 = scmp.lt.s32.totalorder %s25, 15
        %s2265 = scalar_select %p2264, %s25, 15
        %s2266 = smul.addr %s2265, 6
        %s2267 = smul.addr %s2263, 96
        %s2268 = sadd.s32 %s2266, %s2267
        %s2269 = smul.addr %s2268, 4
        %s2270 = scalar_lea.vmem %s5, %s2269
      $region64: #{conv_up_with_skip_forward.10} parent=59 // pred_fallthru
        _
      // Predicated region
      $region65: #{conv_up_with_skip_forward.10} parent=59 // pred_check
        %p2271 = pneg %p212
      $region66: #{conv_up_with_skip_forward.10} parent=59 // pred_check_branch
        %2273 = sbr.rel (%p2271) target = $region68
      $region67: #{conv_up_with_skip_forward.10} parent=59 // pred_region
        %p2274 = scmp.lt.s32.totalorder %s24, 1
        %s2275 = scalar_select %p2274, %s24, 1
        %s2276 = smul.addr %s2275, 2
        %s2277 = smul.addr %s2276, 8
        %s2278 = scalar_lea.vmem %s6, %s2277
      $region68: #{conv_up_with_skip_forward.10} parent=59 // pred_fallthru
        _
    $region60: #{conv_up_with_skip_forward.10} parent=5 // pred_fallthru
      _
  $region6: #{conv_up_with_skip_forward.10} parent=0 // loop_footer
    %s17 = sadd.s32 1, %s13
  $region7: #{conv_up_with_skip_forward.10} parent=0 // loop_footer_branch
    %12 = sbr.rel target = $region3
  $region8: #{conv_up_with_skip_forward.10} parent=0 // loop_exit
    _

// kernel: conv_up_with_skip_forward.11
$region0: #{conv_up_with_skip_forward.11}
  #allocation0 [shape = 'u32[]', space=smem, size = 0x4, offset = 0x4, fixed_abs, tag = 'smem constant byte address 0x4 - core index']
  #allocation1 [shape = 'u32[72,128]{1,0:T(1,128)}', space=vmem, size = 0x9000, scoped, tag = 'internal scratch']
  %s0 = inlined_call_operand.vmem [shape: bf16[2,16,16,288], index: 0, kind: input, shape index: {}]
  %s1 = inlined_call_operand.vmem [shape: f32[2,16,1], index: 1, kind: input, shape index: {}]
  %s2 = inlined_call_operand.vmem [shape: f32[2,16,1], index: 2, kind: input, shape index: {}]
  %s3 = inlined_call_operand.vmem [shape: f32[2,16,16,288], index: 3, kind: output, shape index: {}]
  %s4 = sld [smem:[#allocation0]]
  $region45: #{conv_up_with_skip_forward.11} parent=0
    _
  %s6 = ssub.s32 1, %s4
  %s7 = scalar_select 0, %s6, %s4
  loop: start=0, step=1, limit=34
  $region2: #{conv_up_with_skip_forward.11} parent=0 // loop_pre_header
    _
  $region3: #{conv_up_with_skip_forward.11} parent=0 // loop_header
    %s9 = sphi 0, %s13
    %p10 = scmp.ge.s32.totalorder %s9, 34
    %s16 = sphi 0, %s28
    %s17 = sphi 0, %s24
    %s18 = sphi 0, %s16
    %s19 = sphi 0, %s17
    %s20 = sphi 0, %s18
    %s21 = sphi 0, %s19
    %s33 = sphi 0, %s35
    %s36 = sphi 0, %s33
    %s37 = sphi 0, %s36
    %s53 = sphi 0, %s37
    %s59 = sphi 0, %s61
    %s62 = sphi 0, %s59
    %s63 = sphi 0, %s62
    %s79 = sphi 0, %s63
    %s85 = sphi 0, %s87
    %s88 = sphi 0, %s85
    %s89 = sphi 0, %s88
    %s105 = sphi 0, %s89
    %s113 = sphi 0, %s115
    %s116 = sphi 0, %s113
    %s117 = sphi 0, %s116
    %s133 = sphi 0, %s117
  $region4: #{conv_up_with_skip_forward.11} parent=0 // loop_header_branch
    %12 = sbr.rel (%p10) target = $region8
  $region5: #{conv_up_with_skip_forward.11} parent=0 // loop_body
    %s14 = ssub.s32 %s9, 1
    %s15 = ssub.s32 %s9, 2
    %s22 = sadd.s32 1, %s17
    %p23 = scmp.ge.s32.totalorder %s22, 16
    %s24 = scalar_select %p23, 0, %s22
    %s25 = sadd.s32 1, %s16
    %s26 = scalar_select %p23, %s25, %s16
    %p27 = scmp.ge.s32.totalorder %s26, 2
    %s28 = scalar_select %p27, 0, %s26
    %s29 = ssub.s32 %s16, %s28
    %s30 = ssub.s32 %s17, %s24
    %s31 = sor.u32 %s29, %s30
    %p32 = scmp.eq.s32.totalorder %s31, 0
    %s34 = sadd.s32 %s33, 1
    %s35 = scalar_select %p32, %s33, %s34
    %p38 = pneg %p32
    %p39 = scmp.eq.s32.totalorder %s9, 31
    %p40 = por %p38, %p39
    %p41 = scmp.ne.s32.totalorder %s33, %s36
    %p42 = scmp.eq.s32.totalorder %s9, 0
    %p43 = por %p41, %p42
    %p44 = scmp.ne.s32.totalorder %s33, %s36
    %p45 = scmp.eq.s32.totalorder %s14, 31
    %p46 = por %p44, %p45
    %p47 = scmp.ne.s32.totalorder %s36, %s37
    %p48 = scmp.eq.s32.totalorder %s14, 0
    %p49 = por %p47, %p48
    %p50 = scmp.ne.s32.totalorder %s36, %s37
    %p51 = scmp.eq.s32.totalorder %s15, 31
    %p52 = por %p50, %p51
    %p54 = scmp.ne.s32.totalorder %s37, %s53
    %p55 = scmp.eq.s32.totalorder %s15, 0
    %p56 = por %p54, %p55
    %s57 = ssub.s32 %s16, %s28
    %p58 = scmp.eq.s32.totalorder %s57, 0
    %s60 = sadd.s32 %s59, 1
    %s61 = scalar_select %p58, %s59, %s60
    %p64 = pneg %p58
    %p65 = scmp.eq.s32.totalorder %s9, 31
    %p66 = por %p64, %p65
    %p67 = scmp.ne.s32.totalorder %s59, %s62
    %p68 = scmp.eq.s32.totalorder %s9, 0
    %p69 = por %p67, %p68
    %p70 = scmp.ne.s32.totalorder %s59, %s62
    %p71 = scmp.eq.s32.totalorder %s14, 31
    %p72 = por %p70, %p71
    %p73 = scmp.ne.s32.totalorder %s62, %s63
    %p74 = scmp.eq.s32.totalorder %s14, 0
    %p75 = por %p73, %p74
    %p76 = scmp.ne.s32.totalorder %s62, %s63
    %p77 = scmp.eq.s32.totalorder %s15, 31
    %p78 = por %p76, %p77
    %p80 = scmp.ne.s32.totalorder %s63, %s79
    %p81 = scmp.eq.s32.totalorder %s15, 0
    %p82 = por %p80, %p81
    %s83 = ssub.s32 %s16, %s28
    %p84 = scmp.eq.s32.totalorder %s83, 0
    %s86 = sadd.s32 %s85, 1
    %s87 = scalar_select %p84, %s85, %s86
    %p90 = pneg %p84
    %p91 = scmp.eq.s32.totalorder %s9, 31
    %p92 = por %p90, %p91
    %p93 = scmp.ne.s32.totalorder %s85, %s88
    %p94 = scmp.eq.s32.totalorder %s9, 0
    %p95 = por %p93, %p94
    %p96 = scmp.ne.s32.totalorder %s85, %s88
    %p97 = scmp.eq.s32.totalorder %s14, 31
    %p98 = por %p96, %p97
    %p99 = scmp.ne.s32.totalorder %s88, %s89
    %p100 = scmp.eq.s32.totalorder %s14, 0
    %p101 = por %p99, %p100
    %p102 = scmp.ne.s32.totalorder %s88, %s89
    %p103 = scmp.eq.s32.totalorder %s15, 31
    %p104 = por %p102, %p103
    %p106 = scmp.ne.s32.totalorder %s89, %s105
    %p107 = scmp.eq.s32.totalorder %s15, 0
    %p108 = por %p106, %p107
    %s109 = ssub.s32 %s16, %s28
    %s110 = ssub.s32 %s17, %s24
    %s111 = sor.u32 %s109, %s110
    %p112 = scmp.eq.s32.totalorder %s111, 0
    %s114 = sadd.s32 %s113, 1
    %s115 = scalar_select %p112, %s113, %s114
    %p118 = pneg %p112
    %p119 = scmp.eq.s32.totalorder %s9, 31
    %p120 = por %p118, %p119
    %p121 = scmp.ne.s32.totalorder %s113, %s116
    %p122 = scmp.eq.s32.totalorder %s9, 0
    %p123 = por %p121, %p122
    %p124 = scmp.ne.s32.totalorder %s113, %s116
    %p125 = scmp.eq.s32.totalorder %s14, 31
    %p126 = por %p124, %p125
    %p127 = scmp.ne.s32.totalorder %s116, %s117
    %p128 = scmp.eq.s32.totalorder %s14, 0
    %p129 = por %p127, %p128
    %p130 = scmp.ne.s32.totalorder %s116, %s117
    %p131 = scmp.eq.s32.totalorder %s15, 31
    %p132 = por %p130, %p131
    %p134 = scmp.ne.s32.totalorder %s117, %s133
    %p135 = scmp.eq.s32.totalorder %s15, 0
    %p136 = por %p134, %p135
    %p137 = scmp.le.s32.totalorder 1, %s9
    %p138 = scmp.lt.s32.totalorder %s9, 33
    %p139 = pnand %p137, %p138
    %p140 = pneg %p139
    // Predicated region
    $region9: #{conv_up_with_skip_forward.11} parent=5 // pred_check
      _
    $region10: #{conv_up_with_skip_forward.11} parent=5 // pred_check_branch
      %142 = sbr.rel (%p139) target = $region12
    $region11: #{conv_up_with_skip_forward.11} parent=5 // pred_region
      %s143 = ssub.s32 %s9, 1
    $region12: #{conv_up_with_skip_forward.11} parent=5 // pred_fallthru
      _
    %p144 = scmp.lt.s32.totalorder %s9, 32
    // Predicated region
    $region13: #{conv_up_with_skip_forward.11} parent=5 // pred_check
      %p145 = pneg %p144
    $region14: #{conv_up_with_skip_forward.11} parent=5 // pred_check_branch
      %147 = sbr.rel (%p145) target = $region16
    $region15: #{conv_up_with_skip_forward.11} parent=5 // pred_region
      // Predicated region
      $region17: #{conv_up_with_skip_forward.11} parent=15 // pred_check
        %p148 = pneg %p43
      $region18: #{conv_up_with_skip_forward.11} parent=15 // pred_check_branch
        %150 = sbr.rel (%p148) target = $region20
      $region19: #{conv_up_with_skip_forward.11} parent=15 // pred_region
        %p151 = scmp.lt.s32.totalorder %s16, 1
        %s152 = scalar_select %p151, %s16, 1
        %p153 = scmp.lt.s32.totalorder %s17, 15
        %s154 = scalar_select %p153, %s17, 15
        %s155 = smul.addr %s154, 6
        %s156 = smul.addr %s152, 96
        %s157 = sadd.s32 %s155, %s156
        %s158 = smul.addr %s157, 4
        %s159 = scalar_lea.vmem %s0, %s158
      $region20: #{conv_up_with_skip_forward.11} parent=15 // pred_fallthru
        _
      // Predicated region
      $region21: #{conv_up_with_skip_forward.11} parent=15 // pred_check
        %p160 = pneg %p69
      $region22: #{conv_up_with_skip_forward.11} parent=15 // pred_check_branch
        %162 = sbr.rel (%p160) target = $region24
      $region23: #{conv_up_with_skip_forward.11} parent=15 // pred_region
        %p163 = scmp.lt.s32.totalorder %s16, 1
        %s164 = scalar_select %p163, %s16, 1
        %s165 = smul.addr %s164, 2
        %s166 = smul.addr %s165, 8
        %s167 = scalar_lea.vmem %s1, %s166
      $region24: #{conv_up_with_skip_forward.11} parent=15 // pred_fallthru
        _
      // Predicated region
      $region25: #{conv_up_with_skip_forward.11} parent=15 // pred_check
        %p168 = pneg %p95
      $region26: #{conv_up_with_skip_forward.11} parent=15 // pred_check_branch
        %170 = sbr.rel (%p168) target = $region28
      $region27: #{conv_up_with_skip_forward.11} parent=15 // pred_region
        %p171 = scmp.lt.s32.totalorder %s16, 1
        %s172 = scalar_select %p171, %s16, 1
        %s173 = smul.addr %s172, 2
        %s174 = smul.addr %s173, 8
        %s175 = scalar_lea.vmem %s2, %s174
      $region28: #{conv_up_with_skip_forward.11} parent=15 // pred_fallthru
        _
    $region16: #{conv_up_with_skip_forward.11} parent=5 // pred_fallthru
      _
    %p176 = scmp.le.s32.totalorder 1, %s9
    %p177 = scmp.lt.s32.totalorder %s9, 33
    %p178 = pnand %p176, %p177
    %p179 = pneg %p178
    // Predicated region
    $region29: #{conv_up_with_skip_forward.11} parent=5 // pred_check
      _
    $region30: #{conv_up_with_skip_forward.11} parent=5 // pred_check_branch
      %181 = sbr.rel (%p178) target = $region32
    $region31: #{conv_up_with_skip_forward.11} parent=5 // pred_region
      %s182 = ssub.s32 %s9, 1
      %p183 = scmp.lt.s32.totalorder %s18, 1
      %s184 = scalar_select %p183, %s18, 1
      %p185 = scmp.lt.s32.totalorder %s19, 15
      %s186 = scalar_select %p185, %s19, 15
      %s187 = smul.addr %s186, 6
      %s188 = smul.addr %s184, 96
      %s189 = sadd.s32 %s187, %s188
      %s190 = smul.addr %s189, 4
      %s191 = scalar_lea.vmem %s0, %s190
      %p192 = pneg %p49
      %p193 = pneg %p46
      %p194 = scmp.lt.s32.totalorder %s18, 1
      %s195 = scalar_select %p194, %s18, 1
      %s196 = smul.addr %s195, 2
      %s197 = smul.addr %s196, 8
      %s198 = scalar_lea.vmem %s1, %s197
      %p199 = pneg %p75
      %p200 = pneg %p72
      %p201 = scmp.lt.s32.totalorder %s18, 1
      %s202 = scalar_select %p201, %s18, 1
      %s203 = smul.addr %s202, 2
      %s204 = smul.addr %s203, 8
      %s205 = scalar_lea.vmem %s2, %s204
      %p206 = pneg %p101
      %p207 = pneg %p98
      %p208 = pneg %p129
      %p209 = pneg %p126
      %p210 = scmp.lt.s32.totalorder %s18, 1
      %s211 = scalar_select %p210, %s18, 1
      %p212 = scmp.lt.s32.totalorder %s19, 15
      %s213 = scalar_select %p212, %s19, 15
      %s214 = smul.addr %s213, 6
      %s215 = smul.addr %s211, 96
      %s216 = sadd.s32 %s214, %s215
      %s217 = smul.addr %s216, 8
      %s218 = scalar_lea.vmem %s3, %s217
      %p219 = scmp.lt.s32.totalorder %s18, 1
      %s220 = scalar_select %p219, %s18, 1
      %p221 = scmp.lt.s32.totalorder %s19, 15
      %s222 = scalar_select %p221, %s19, 15
      %s223 = smul.addr %s222, 6
      %s224 = smul.addr %s220, 96
      %s225 = sadd.s32 %s223, %s224
      %s226 = smul.addr %s225, 4
      %s227 = scalar_lea.vmem %s0, %s226
      %p228 = scmp.lt.s32.totalorder %s18, 1
      %s229 = scalar_select %p228, %s18, 1
      %s230 = smul.addr %s229, 2
      %s231 = smul.addr %s230, 8
      %s232 = scalar_lea.vmem %s1, %s231
      %p233 = scmp.lt.s32.totalorder %s18, 1
      %s234 = scalar_select %p233, %s18, 1
      %s235 = smul.addr %s234, 2
      %s236 = smul.addr %s235, 8
      %s237 = scalar_lea.vmem %s2, %s236
      %p238 = scmp.lt.s32.totalorder %s18, 1
      %s239 = scalar_select %p238, %s18, 1
      %p240 = scmp.lt.s32.totalorder %s19, 15
      %s241 = scalar_select %p240, %s19, 15
      %s242 = smul.addr %s241, 6
      %s243 = smul.addr %s239, 96
      %s244 = sadd.s32 %s242, %s243
      %s245 = smul.addr %s244, 8
      %s246 = scalar_lea.vmem %s3, %s245
      %v247 = vld [vmem:[%s227] sm:$0xff]
      %v248 = vld [vmem:[%s227 + $0x8] sm:$0xf]
      %v249 = vld [vmem:[%s227 + $0xc] sm:$0xff]
      %v250 = vld [vmem:[%s227 + $0x14] sm:$0xf]
      %v251 = vunpack.c.l.bf16 %v247
      %v252 = vunpack.c.h.bf16 %v247
      %v253 = vunpack.c.l.bf16 %v248
      %v254 = vunpack.c.l.bf16 %v249
      %v255 = vunpack.c.h.bf16 %v249
      %v256 = vunpack.c.l.bf16 %v250
      %v257 = vld [vmem:[%s232] sm:$0xff]
      %v258 = vld [vmem:[%s232 + $0x8] sm:$0xff]
      %260 = vset.pattern.permute.xlu0 0
      %261 = vperm.xlu0 %260, %v257
      %v262 = vpop.permute.xlu0 %261
      %265 = vset.pattern.permute.xlu0 0
      %266 = vperm.xlu0 %265, %v258
      %v267 = vpop.permute.xlu0 %266
      %v269 = vmul.f32 %v251, %v262
      %v270 = vmul.f32 %v252, %v262
      %v271 = vmul.f32 %v253, %v262
      %v272 = vmul.f32 %v254, %v267
      %v273 = vmul.f32 %v255, %v267
      %v274 = vmul.f32 %v256, %v267
      %v275 = vld [vmem:[%s237] sm:$0xff]
      %v276 = vld [vmem:[%s237 + $0x8] sm:$0xff]
      %278 = vset.pattern.permute.xlu0 0
      %279 = vperm.xlu0 %278, %v275
      %v280 = vpop.permute.xlu0 %279
      %283 = vset.pattern.permute.xlu0 0
      %284 = vperm.xlu0 %283, %v276
      %v285 = vpop.permute.xlu0 %284
      %v287 = vadd.f32 %v269, %v280
      %v288 = vadd.f32 %v270, %v280
      %v289 = vadd.f32 %v271, %v280
      %v290 = vadd.f32 %v272, %v285
      %v291 = vadd.f32 %v273, %v285
      %v292 = vadd.f32 %v274, %v285
      %vm293 = vcmp.ge.f32.partialorder %v287, 0.0
      %vm294 = vcmp.ge.f32.partialorder %v288, 0.0
      %vm295 = vcmp.ge.f32.partialorder %v289, 0.0
      %vm296 = vcmp.ge.f32.partialorder %v290, 0.0
      %vm297 = vcmp.ge.f32.partialorder %v291, 0.0
      %vm298 = vcmp.ge.f32.partialorder %v292, 0.0
      %v299 = vmul.f32 %v287, 0.1
      %v300 = vmul.f32 %v288, 0.1
      %v301 = vmul.f32 %v289, 0.1
      %v302 = vmul.f32 %v290, 0.1
      %v303 = vmul.f32 %v291, 0.1
      %v304 = vmul.f32 %v292, 0.1
      %v305 = vsel %vm293, %v287, %v299
      %v306 = vsel %vm294, %v288, %v300
      %v307 = vsel %vm295, %v289, %v301
      %v308 = vsel %vm296, %v290, %v302
      %v309 = vsel %vm297, %v291, %v303
      %v310 = vsel %vm298, %v292, %v304
      %311 = vst [vmem:[%s246] sm:$0xff] %v305
      %312 = vst [vmem:[%s246 + $0x8] sm:$0xff] %v306
      %vm313 = vcmask 261120
      %314 = vst.msk [vmem:[%s246 + $0x10] sm:$0xff] %vm313, %v307
      %315 = vst [vmem:[%s246 + $0x18] sm:$0xff] %v308
      %316 = vst [vmem:[%s246 + $0x20] sm:$0xff] %v309
      %317 = vst.msk [vmem:[%s246 + $0x28] sm:$0xff] %vm313, %v310
      %p318 = scmp.lt.s32.totalorder %s18, 1
      %s319 = scalar_select %p318, %s18, 1
      %p320 = scmp.lt.s32.totalorder %s19, 15
      %s321 = scalar_select %p320, %s19, 15
      %s322 = smul.addr %s321, 6
      %s323 = smul.addr %s319, 96
      %s324 = sadd.s32 %s322, %s323
      %s325 = smul.addr %s324, 8
      %s326 = scalar_lea.vmem %s3, %s325
      // Predicated region
      $region33: #{conv_up_with_skip_forward.11} parent=31 // pred_check
        %p327 = pneg %p126
      $region34: #{conv_up_with_skip_forward.11} parent=31 // pred_check_branch
        %329 = sbr.rel (%p327) target = $region36
      $region35: #{conv_up_with_skip_forward.11} parent=31 // pred_region
        _
      $region36: #{conv_up_with_skip_forward.11} parent=31 // pred_fallthru
        _
    $region32: #{conv_up_with_skip_forward.11} parent=5 // pred_fallthru
      _
    %p330 = scmp.le.s32.totalorder 2, %s9
    // Predicated region
    $region37: #{conv_up_with_skip_forward.11} parent=5 // pred_check
      %p331 = pneg %p330
    $region38: #{conv_up_with_skip_forward.11} parent=5 // pred_check_branch
      %333 = sbr.rel (%p331) target = $region40
    $region39: #{conv_up_with_skip_forward.11} parent=5 // pred_region
      %s334 = ssub.s32 %s9, 2
      // Predicated region
      $region41: #{conv_up_with_skip_forward.11} parent=39 // pred_check
        %p335 = pneg %p132
      $region42: #{conv_up_with_skip_forward.11} parent=39 // pred_check_branch
        %337 = sbr.rel (%p335) target = $region44
      $region43: #{conv_up_with_skip_forward.11} parent=39 // pred_region
        %p338 = scmp.lt.s32.totalorder %s20, 1
        %s339 = scalar_select %p338, %s20, 1
        %p340 = scmp.lt.s32.totalorder %s21, 15
        %s341 = scalar_select %p340, %s21, 15
        %s342 = smul.addr %s341, 6
        %s343 = smul.addr %s339, 96
        %s344 = sadd.s32 %s342, %s343
        %s345 = smul.addr %s344, 8
        %s346 = scalar_lea.vmem %s3, %s345
      $region44: #{conv_up_with_skip_forward.11} parent=39 // pred_fallthru
        _
    $region40: #{conv_up_with_skip_forward.11} parent=5 // pred_fallthru
      _
  $region6: #{conv_up_with_skip_forward.11} parent=0 // loop_footer
    %s13 = sadd.s32 1, %s9
  $region7: #{conv_up_with_skip_forward.11} parent=0 // loop_footer_branch
    %8 = sbr.rel target = $region3
  $region8: #{conv_up_with_skip_forward.11} parent=0 // loop_exit
    _

</llo_original>
